<compile_context>
chip_gen: v7x
topology: tpu7x:2x2x1
jax: 0.10.0
libtpu: 0.0.40
codegen_flags: <defaults>
</compile_context>

<pallas_src>
import jax
import jax.numpy as jnp
from jax.experimental import pallas as pl
from jax.experimental.pallas import tpu as pltpu

EPS = 1e-5  # PyTorch GroupNorm default eps

_VMEM_LIMIT_CACHE = None


def _vmem_limit_bytes():
    """~3/4 of physical VMEM, capped at 100 MiB; safe fallback of 48 MiB."""
    global _VMEM_LIMIT_CACHE
    if _VMEM_LIMIT_CACHE is None:
        cap = 64 * 1024 * 1024
        try:
            info = pltpu.get_tpu_info()
            cap = int(getattr(info, "vmem_capacity_bytes", cap) or cap)
        except Exception:
            pass
        _VMEM_LIMIT_CACHE = min((cap * 3) // 4, 100 * 1024 * 1024)
    return _VMEM_LIMIT_CACHE


# ----------------------------- in-kernel helpers ------------------------------

def _leaky(x, slope):
    # valid for 0 < slope < 1: max(x, slope*x) == leaky_relu(x)
    return jnp.maximum(x, slope * x)


def _dot(a, b):
    # bf16 MXU matmul, f32 accumulation.
    return jnp.dot(a.astype(jnp.bfloat16), b.astype(jnp.bfloat16),
                   preferred_element_type=jnp.float32)


def _gn_rows(h, gamma, beta):
    # GroupNorm(C, C) on NCL data laid out (C, N): per-channel (row) statistics
    # over the N points.  One-pass sum / sum-of-squares, f32 math, biased var.
    inv_n = 1.0 / h.shape[1]
    mean = jnp.sum(h, axis=1, keepdims=True) * inv_n
    ex2 = jnp.sum(h * h, axis=1, keepdims=True) * inv_n
    var = jnp.maximum(ex2 - mean * mean, 0.0)
    return (h - mean) * jax.lax.rsqrt(var + EPS) * gamma + beta


def _gn_single_group_row(d, gamma, beta):
    # GroupNorm(1, C) on one sample laid out as a (1, C) row: statistics over
    # all C channels (lanes).  gamma/beta are (1, C).
    inv_c = 1.0 / d.shape[1]
    mean = jnp.sum(d, axis=1, keepdims=True) * inv_c
    ex2 = jnp.sum(d * d, axis=1, keepdims=True) * inv_c
    var = jnp.maximum(ex2 - mean * mean, 0.0)
    return (d - mean) * jax.lax.rsqrt(var + EPS) * gamma + beta


# -------------------- kernel 1: feature extractor + max pool + heads ----------
# feature = conv1(3->64) -> gn1 -> lrelu(0.01) -> conv2(64->128) -> lrelu(0.01)
#           -> gn2 -> conv3(128->1024), max over points, then (fused):
#   fp  = posterior-conv1 feature projection (1024 -> 1027) + conv1 bias
#   x_d = Linear(1024,512) -> GN(1,512) -> lrelu(0.1) -> Linear(512,128)
#         -> GN(1,128) -> lrelu(0.1) -> Linear(128,64) -> Linear(64,1) -> sigmoid

def feature_disc_kernel(x_ref,
                        w1_ref, b1_ref, g1w_ref, g1b_ref,
                        w2_ref, b2_ref, g2w_ref, g2b_ref,
                        w3_ref, b3_ref,
                        pw1f_ref, pb1_ref,
                        dw1_ref, db1_ref, dg1w_ref, dg1b_ref,
                        dw2_ref, db2_ref, dg2w_ref, dg2b_ref,
                        dw3_ref, db3_ref, dw4_ref, db4_ref,
                        fp_ref, xd_ref):
    x = x_ref[0]                                                     # (3, N), N on lanes
    h = _dot(w1_ref[...], x) + b1_ref[...]                           # (64, N) f32
    h = _leaky(_gn_rows(h, g1w_ref[...], g1b_ref[...]), 0.01)
    h = h.astype(jnp.bfloat16)                                       # bf16 inter-layer
    h = _dot(w2_ref[...], h) + b2_ref[...]                           # (128, N) f32
    h = _gn_rows(_leaky(h, 0.01), g2w_ref[...], g2b_ref[...])        # conv2->relu->gn2
    h = h.astype(jnp.bfloat16)
    h = _dot(w3_ref[...], h) + b3_ref[...]                           # (1024, N) f32

    feat_col = jnp.max(h, axis=1, keepdims=True)                     # (1024, 1) max over points
    feat_row = jnp.transpose(feat_col, (1, 0)).astype(jnp.bfloat16)  # (1, 1024) lane-dense

    # fused posterior-conv1 feature projection (+ its bias): lane-dense output
    fp = _dot(feat_row, pw1f_ref[...]) + pb1_ref[...]                # (1, 1027)
    fp_ref[...] = fp[None]                                           # (1, 1, 1027)

    # fused discriminator MLP head, row layout (lane-dense activations)
    d = _dot(feat_row, dw1_ref[...]) + db1_ref[...]                  # (1, 512)
    d = _leaky(_gn_single_group_row(d, dg1w_ref[...], dg1b_ref[...]), 0.1)
    d = _dot(d, dw2_ref[...]) + db2_ref[...]                         # (1, 128)
    d = _leaky(_gn_single_group_row(d, dg2w_ref[...], dg2b_ref[...]), 0.1)
    d = _dot(d, dw3_ref[...]) + db3_ref[...]                         # (1, 64)
    d = _dot(d, dw4_ref[...]) + db4_ref[...]                         # (1, 1)
    xd_ref[...] = jax.nn.sigmoid(d)[None]                            # (1, 1, 1)


# ----------------------------- kernel 2: PointGenCon decoder ------------------
# conv1(1027->1027)->gn->lrelu(0.01); conv2(1027->513)->gn->lrelu;
# conv3(513->256)->gn->lrelu; conv4(256->3)->tanh.
# conv1's contribution from the (constant-per-sample) 1024 feature channels plus
# its bias arrives pre-computed as `fp` (1027, 1); only the 3 grid channels are
# projected per point here (the (B,N,1027) broadcast-concat never materializes).

def posterior_kernel(grid_ref, fp_ref,
                     w1g_ref, g1w_ref, g1b_ref,
                     w2_ref, b2_ref, g2w_ref, g2b_ref,
                     w3_ref, b3_ref, g3w_ref, g3b_ref,
                     w4_ref, b4_ref, out_ref):
    g = grid_ref[0]                                                  # (3, N)
    fp = fp_ref[0]                                                   # (1027, 1)
    h = _dot(w1g_ref[...], g) + fp                                   # (1027, N) f32
    h = _leaky(_gn_rows(h, g1w_ref[...], g1b_ref[...]), 0.01).astype(jnp.bfloat16)
    h = _dot(w2_ref[...], h) + b2_ref[...]                           # (513, N)
    h = _leaky(_gn_rows(h, g2w_ref[...], g2b_ref[...]), 0.01).astype(jnp.bfloat16)
    h = _dot(w3_ref[...], h) + b3_ref[...]                           # (256, N)
    h = _leaky(_gn_rows(h, g3w_ref[...], g3b_ref[...]), 0.01).astype(jnp.bfloat16)
    h = jnp.tanh(_dot(w4_ref[...], h) + b4_ref[...])                 # (3, N)
    out_ref[...] = h[None]                                           # (1, 3, N) lane-dense


# ----------------------------- pallas_call wrappers ---------------------------

def _const_spec(a):
    # Whole parameter tensor resident in VMEM; constant index map across the B
    # grid, so Pallas never re-fetches it.
    nd = a.ndim
    return pl.BlockSpec(a.shape, lambda b, _nd=nd: (0,) * _nd)


def _compiler_params():
    return pltpu.CompilerParams(
        dimension_semantics=("parallel",),
        vmem_limit_bytes=_vmem_limit_bytes())


def run_feature_disc(x, p):
    B, _, N = x.shape
    args = (x,
            p["f_w1"], p["f_b1"], p["f_g1w"], p["f_g1b"],
            p["f_w2"], p["f_b2"], p["f_g2w"], p["f_g2b"],
            p["f_w3"], p["f_b3"],
            p["p_w1f_t"], p["p_b1"],
            p["d_w1t"], p["d_b1"], p["d_g1w"], p["d_g1b"],
            p["d_w2t"], p["d_b2"], p["d_g2w"], p["d_g2b"],
            p["d_w3t"], p["d_b3"], p["d_w4t"], p["d_b4"])
    in_specs = ([pl.BlockSpec((1, 3, N), lambda b: (b, 0, 0))]
                + [_const_spec(a) for a in args[1:]])
    fp, x_d = pl.pallas_call(
        feature_disc_kernel,
        out_shape=(jax.ShapeDtypeStruct((B, 1, 1027), jnp.float32),
                   jax.ShapeDtypeStruct((B, 1, 1), jnp.float32)),
        grid=(B,),
        in_specs=in_specs,
        out_specs=(pl.BlockSpec((1, 1, 1027), lambda b: (b, 0, 0)),
                   pl.BlockSpec((1, 1, 1), lambda b: (b, 0, 0))),
        compiler_params=_compiler_params(),
    )(*args)
    return fp, x_d[:, 0, :]                  # (B, 1, 1027), (B, 1)


def run_posterior(grid_pts, fp_col, p):
    B, _, N = grid_pts.shape
    args = (grid_pts, fp_col,
            p["p_w1g"], p["p_g1w"], p["p_g1b"],
            p["p_w2"], p["p_b2"], p["p_g2w"], p["p_g2b"],
            p["p_w3"], p["p_b3"], p["p_g3w"], p["p_g3b"],
            p["p_w4"], p["p_b4"])
    in_specs = ([pl.BlockSpec((1, 3, N), lambda b: (b, 0, 0)),
                 pl.BlockSpec((1, 1027, 1), lambda b: (b, 0, 0))]
                + [_const_spec(a) for a in args[2:]])
    return pl.pallas_call(
        posterior_kernel,
        out_shape=jax.ShapeDtypeStruct((B, 3, N), jnp.float32),
        grid=(B,),
        in_specs=in_specs,
        out_specs=pl.BlockSpec((1, 3, N), lambda b: (b, 0, 0)),
        compiler_params=_compiler_params(),
    )(*args)


# ----------------------------- parameters -------------------------------------

def init_params(key):
    # Matches PyTorch __init__: Conv1d/Linear weights ~ N(0, 0.02), GroupNorm
    # weights ~ N(1, 0.02), Linear/GroupNorm biases = 0.  Conv1d biases are not
    # reset by the PyTorch loop, so they keep the default U(-1/sqrt(fan_in), .).
    keys = iter(jax.random.split(key, 64))

    def w(shape):                            # bf16 for the MXU
        return (0.02 * jax.random.normal(next(keys), shape)).astype(jnp.bfloat16)

    def conv_b(c_out, c_in):                 # PyTorch default Conv1d bias init, column
        bound = 1.0 / (c_in ** 0.5)
        return jax.random.uniform(next(keys), (c_out, 1), jnp.float32, -bound, bound)

    def gn_col(c):                           # (C, 1) columns for (C, N) broadcasting
        gw = (1.0 + 0.02 * jax.random.normal(next(keys), (c, 1))).astype(jnp.float32)
        return gw, jnp.zeros((c, 1), jnp.float32)

    def gn_row(c):                           # (1, C) rows for the row-layout head
        gw = (1.0 + 0.02 * jax.random.normal(next(keys), (1, c))).astype(jnp.float32)
        return gw, jnp.zeros((1, c), jnp.float32)

    p = {}
    # feature extractor: conv1 3->64, gn1(64), conv2 64->128, gn2(128), conv3 128->1024
    p["f_w1"], p["f_b1"] = w((64, 3)), conv_b(64, 3)
    p["f_g1w"], p["f_g1b"] = gn_col(64)
    p["f_w2"], p["f_b2"] = w((128, 64)), conv_b(128, 64)
    p["f_g2w"], p["f_g2b"] = gn_col(128)
    p["f_w3"], p["f_b3"] = w((1024, 128)), conv_b(1024, 128)

    # posterior conv1, split along input channels: first 1024 (feat part, stored
    # transposed (1024, 1027) and fused into kernel 1) and last 3 (grid part).
    bs = 1027
    p["p_w1f_t"] = w((1024, bs))
    bound1 = 1.0 / (bs ** 0.5)
    p["p_b1"] = jax.random.uniform(next(keys), (1, bs), jnp.float32, -bound1, bound1)

    # discriminator MLP head: weights stored transposed (in, out); Linear biases
    # are zeroed by the PyTorch init loop.
    p["d_w1t"], p["d_b1"] = w((1024, 512)), jnp.zeros((1, 512), jnp.float32)
    p["d_g1w"], p["d_g1b"] = gn_row(512)
    p["d_w2t"], p["d_b2"] = w((512, 128)), jnp.zeros((1, 128), jnp.float32)
    p["d_g2w"], p["d_g2b"] = gn_row(128)
    p["d_w3t"], p["d_b3"] = w((128, 64)), jnp.zeros((1, 64), jnp.float32)
    p["d_w4t"], p["d_b4"] = w((64, 1)), jnp.zeros((1, 1), jnp.float32)

    # PointGenCon posterior: 1027 -> 1027 -> 513 -> 256 -> 3
    p["p_w1g"] = w((bs, 3))
    p["p_g1w"], p["p_g1b"] = gn_col(bs)
    p["p_w2"], p["p_b2"] = w((bs // 2, bs)), conv_b(bs // 2, bs)
    p["p_g2w"], p["p_g2b"] = gn_col(bs // 2)
    p["p_w3"], p["p_b3"] = w((bs // 4, bs // 2)), conv_b(bs // 4, bs // 2)
    p["p_g3w"], p["p_g3b"] = gn_col(bs // 4)
    p["p_w4"], p["p_b4"] = w((3, bs // 4)), conv_b(3, bs // 4)
    return p


# ----------------------------- full forward -----------------------------------

def discriminator_forward(x, p, grid_key):
    """x: (B, 3, N) PyTorch NCL layout. Returns (x_d: (B, 1), x_r: (B, N, 3))."""
    B, C, N = x.shape
    assert C == 3
    if N % 128 != 0:
        # N sits on the 128-lane axis; padding would change GN / max semantics
        # unless masked.  TODO(synk): masked padding for arbitrary point counts.
        raise ValueError("number of points N must be a multiple of 128")

    fp, x_d = run_feature_disc(x, p)                          # (B, 1, 1027), (B, 1)
    # grid = torch.rand_like(input) * 2 - 1  (same NCL layout)
    grid_pts = jax.random.uniform(grid_key, (B, 3, N), jnp.float32) * 2.0 - 1.0
    # (B,1,1027) and (B,1027,1) share an identical row-major layout, so this
    # reshape is a zero-cost bitcast; the posterior kernel consumes fp as a
    # per-channel (1027, 1) column bias.
    fp_col = fp.reshape(B, 1027, 1)
    x_r_ncl = run_posterior(grid_pts, fp_col, p)              # (B, 3, N) lane-dense
    x_r = jnp.transpose(x_r_ncl, (0, 2, 1))                   # (B, N, 3) == .transpose(2, 1)
    return x_d, x_r


if __name__ == "__main__":
    key = jax.random.PRNGKey(0)
    kp, kx, kg = jax.random.split(key, 3)
    B, N = 2, 256                                             # small demo point count
    params = init_params(kp)
    x = jax.random.normal(kx, (B, 3, N), jnp.float32)         # PyTorch-style NCL input
    x_d, x_r = discriminator_forward(x, params, kg)
    jax.block_until_ready((x_d, x_r))
    assert x_d.shape == (B, 1) and x_r.shape == (B, N, 3)
    assert bool(jnp.all((x_d >= 0) & (x_d <= 1)))
    assert bool(jnp.all(jnp.isfinite(x_r))) and bool(jnp.all(jnp.abs(x_r) <= 1.0))
    print("KERNEL_OK")
</pallas_src>

<mosaic_0001>
module attributes {stable_mosaic.version = 11 : i64} {
  func.func @feature_disc_kernel(%arg0: i32, %arg1: memref<1x3x256xf32, #tpu.memory_space<vmem>>, %arg2: memref<64x3xbf16, #tpu.memory_space<vmem>>, %arg3: memref<64x1xf32, #tpu.memory_space<vmem>>, %arg4: memref<64x1xf32, #tpu.memory_space<vmem>>, %arg5: memref<64x1xf32, #tpu.memory_space<vmem>>, %arg6: memref<128x64xbf16, #tpu.memory_space<vmem>>, %arg7: memref<128x1xf32, #tpu.memory_space<vmem>>, %arg8: memref<128x1xf32, #tpu.memory_space<vmem>>, %arg9: memref<128x1xf32, #tpu.memory_space<vmem>>, %arg10: memref<1024x128xbf16, #tpu.memory_space<vmem>>, %arg11: memref<1024x1xf32, #tpu.memory_space<vmem>>, %arg12: memref<1024x1027xbf16, #tpu.memory_space<vmem>>, %arg13: memref<1x1027xf32, #tpu.memory_space<vmem>>, %arg14: memref<1024x512xbf16, #tpu.memory_space<vmem>>, %arg15: memref<1x512xf32, #tpu.memory_space<vmem>>, %arg16: memref<1x512xf32, #tpu.memory_space<vmem>>, %arg17: memref<1x512xf32, #tpu.memory_space<vmem>>, %arg18: memref<512x128xbf16, #tpu.memory_space<vmem>>, %arg19: memref<1x128xf32, #tpu.memory_space<vmem>>, %arg20: memref<1x128xf32, #tpu.memory_space<vmem>>, %arg21: memref<1x128xf32, #tpu.memory_space<vmem>>, %arg22: memref<128x64xbf16, #tpu.memory_space<vmem>>, %arg23: memref<1x64xf32, #tpu.memory_space<vmem>>, %arg24: memref<64x1xbf16, #tpu.memory_space<vmem>>, %arg25: memref<1x1xf32, #tpu.memory_space<vmem>>, %arg26: memref<1x1x1027xf32, #tpu.memory_space<vmem>>, %arg27: memref<1x1x1xf32, #tpu.memory_space<vmem>>) attributes {dimension_semantics = [#tpu.dimension_semantics<parallel>], iteration_bounds = array<i64: 2>, scalar_prefetch = 0 : i64, scratch_operands = 0 : i64, tpu.core_type = #tpu.core_type<tc>, window_params = [{transform_indices = @transform_0, window_bounds = array<i64: 1, 3, 256>}, {pipeline_mode = #tpu.pipeline_mode<synchronous>, transform_indices = @transform_1, window_bounds = array<i64: 64, 3>}, {pipeline_mode = #tpu.pipeline_mode<synchronous>, transform_indices = @transform_2, window_bounds = array<i64: 64, 1>}, {pipeline_mode = #tpu.pipeline_mode<synchronous>, transform_indices = @transform_3, window_bounds = array<i64: 64, 1>}, {pipeline_mode = #tpu.pipeline_mode<synchronous>, transform_indices = @transform_4, window_bounds = array<i64: 64, 1>}, {pipeline_mode = #tpu.pipeline_mode<synchronous>, transform_indices = @transform_5, window_bounds = array<i64: 128, 64>}, {pipeline_mode = #tpu.pipeline_mode<synchronous>, transform_indices = @transform_6, window_bounds = array<i64: 128, 1>}, {pipeline_mode = #tpu.pipeline_mode<synchronous>, transform_indices = @transform_7, window_bounds = array<i64: 128, 1>}, {pipeline_mode = #tpu.pipeline_mode<synchronous>, transform_indices = @transform_8, window_bounds = array<i64: 128, 1>}, {pipeline_mode = #tpu.pipeline_mode<synchronous>, transform_indices = @transform_9, window_bounds = array<i64: 1024, 128>}, {pipeline_mode = #tpu.pipeline_mode<synchronous>, transform_indices = @transform_10, window_bounds = array<i64: 1024, 1>}, {pipeline_mode = #tpu.pipeline_mode<synchronous>, transform_indices = @transform_11, window_bounds = array<i64: 1024, 1027>}, {pipeline_mode = #tpu.pipeline_mode<synchronous>, transform_indices = @transform_12, window_bounds = array<i64: 1, 1027>}, {pipeline_mode = #tpu.pipeline_mode<synchronous>, transform_indices = @transform_13, window_bounds = array<i64: 1024, 512>}, {pipeline_mode = #tpu.pipeline_mode<synchronous>, transform_indices = @transform_14, window_bounds = array<i64: 1, 512>}, {pipeline_mode = #tpu.pipeline_mode<synchronous>, transform_indices = @transform_15, window_bounds = array<i64: 1, 512>}, {pipeline_mode = #tpu.pipeline_mode<synchronous>, transform_indices = @transform_16, window_bounds = array<i64: 1, 512>}, {pipeline_mode = #tpu.pipeline_mode<synchronous>, transform_indices = @transform_17, window_bounds = array<i64: 512, 128>}, {pipeline_mode = #tpu.pipeline_mode<synchronous>, transform_indices = @transform_18, window_bounds = array<i64: 1, 128>}, {pipeline_mode = #tpu.pipeline_mode<synchronous>, transform_indices = @transform_19, window_bounds = array<i64: 1, 128>}, {pipeline_mode = #tpu.pipeline_mode<synchronous>, transform_indices = @transform_20, window_bounds = array<i64: 1, 128>}, {pipeline_mode = #tpu.pipeline_mode<synchronous>, transform_indices = @transform_21, window_bounds = array<i64: 128, 64>}, {pipeline_mode = #tpu.pipeline_mode<synchronous>, transform_indices = @transform_22, window_bounds = array<i64: 1, 64>}, {pipeline_mode = #tpu.pipeline_mode<synchronous>, transform_indices = @transform_23, window_bounds = array<i64: 64, 1>}, {pipeline_mode = #tpu.pipeline_mode<synchronous>, transform_indices = @transform_24, window_bounds = array<i64: 1, 1>}, {transform_indices = @transform_25, window_bounds = array<i64: 1, 1, 1027>}, {transform_indices = @transform_26, window_bounds = array<i64: 1, 1, 1>}]} {
    %c0 = arith.constant 0 : index
    %c0_0 = arith.constant 0 : index
    %c0_1 = arith.constant 0 : index
    %0 = vector.load %arg1[%c0, %c0_0, %c0_1] : memref<1x3x256xf32, #tpu.memory_space<vmem>>, vector<1x3x256xf32>
    %1 = vector.shape_cast %0 : vector<1x3x256xf32> to vector<3x256xf32>
    %c0_2 = arith.constant 0 : index
    %c0_3 = arith.constant 0 : index
    %2 = vector.load %arg2[%c0_2, %c0_3] : memref<64x3xbf16, #tpu.memory_space<vmem>>, vector<64x3xbf16>
    %3 = arith.truncf %1 : vector<3x256xf32> to vector<3x256xbf16>
    %cst = arith.constant dense<0.000000e+00> : vector<64x256xf32>
    %4 = tpu.matmul %2, %3, %cst {dimension_numbers = #tpu.dot_dimension_numbers<[1], [0], [0], [1], [0, 0, 1, 1], [], []>} : vector<64x3xbf16>, vector<3x256xbf16>, vector<64x256xf32> -> vector<64x256xf32>
    %c0_4 = arith.constant 0 : index
    %c0_5 = arith.constant 0 : index
    %5 = vector.load %arg3[%c0_4, %c0_5] : memref<64x1xf32, #tpu.memory_space<vmem>>, vector<64x1xf32>
    %6 = vector.broadcast %5 : vector<64x1xf32> to vector<64x256xf32>
    %7 = arith.addf %4, %6 : vector<64x256xf32>
    %c0_6 = arith.constant 0 : index
    %c0_7 = arith.constant 0 : index
    %8 = vector.load %arg4[%c0_6, %c0_7] : memref<64x1xf32, #tpu.memory_space<vmem>>, vector<64x1xf32>
    %c0_8 = arith.constant 0 : index
    %c0_9 = arith.constant 0 : index
    %9 = vector.load %arg5[%c0_8, %c0_9] : memref<64x1xf32, #tpu.memory_space<vmem>>, vector<64x1xf32>
    %cst_10 = arith.constant dense<0.000000e+00> : vector<64xf32>
    %10 = vector.multi_reduction <add>, %7, %cst_10 [1] : vector<64x256xf32> to vector<64xf32>
    %11 = vector.shape_cast %10 : vector<64xf32> to vector<64x1xf32>
    %cst_11 = arith.constant 3.906250e-03 : f32
    %12 = vector.broadcast %cst_11 : f32 to vector<64x1xf32>
    %13 = arith.mulf %11, %12 : vector<64x1xf32>
    %14 = arith.mulf %7, %7 : vector<64x256xf32>
    %cst_12 = arith.constant dense<0.000000e+00> : vector<64xf32>
    %15 = vector.multi_reduction <add>, %14, %cst_12 [1] : vector<64x256xf32> to vector<64xf32>
    %16 = vector.shape_cast %15 : vector<64xf32> to vector<64x1xf32>
    %cst_13 = arith.constant 3.906250e-03 : f32
    %17 = vector.broadcast %cst_13 : f32 to vector<64x1xf32>
    %18 = arith.mulf %16, %17 : vector<64x1xf32>
    %19 = arith.mulf %13, %13 : vector<64x1xf32>
    %20 = arith.subf %18, %19 : vector<64x1xf32>
    %cst_14 = arith.constant 0.000000e+00 : f32
    %21 = vector.broadcast %cst_14 : f32 to vector<64x1xf32>
    %22 = arith.maximumf %20, %21 : vector<64x1xf32>
    %23 = vector.broadcast %13 : vector<64x1xf32> to vector<64x256xf32>
    %24 = arith.subf %7, %23 : vector<64x256xf32>
    %cst_15 = arith.constant 9.99999974E-6 : f32
    %25 = vector.broadcast %cst_15 : f32 to vector<64x1xf32>
    %26 = arith.addf %22, %25 : vector<64x1xf32>
    %27 = math.rsqrt %26 : vector<64x1xf32>
    %28 = vector.broadcast %27 : vector<64x1xf32> to vector<64x256xf32>
    %29 = arith.mulf %24, %28 : vector<64x256xf32>
    %30 = vector.broadcast %8 : vector<64x1xf32> to vector<64x256xf32>
    %31 = arith.mulf %29, %30 : vector<64x256xf32>
    %32 = vector.broadcast %9 : vector<64x1xf32> to vector<64x256xf32>
    %33 = arith.addf %31, %32 : vector<64x256xf32>
    %cst_16 = arith.constant 0.00999999977 : f32
    %34 = vector.broadcast %cst_16 : f32 to vector<64x256xf32>
    %35 = arith.mulf %34, %33 : vector<64x256xf32>
    %36 = arith.maximumf %33, %35 : vector<64x256xf32>
    %37 = arith.truncf %36 : vector<64x256xf32> to vector<64x256xbf16>
    %c0_17 = arith.constant 0 : index
    %c0_18 = arith.constant 0 : index
    %38 = vector.load %arg6[%c0_17, %c0_18] : memref<128x64xbf16, #tpu.memory_space<vmem>>, vector<128x64xbf16>
    %cst_19 = arith.constant dense<0.000000e+00> : vector<128x256xf32>
    %39 = tpu.matmul %38, %37, %cst_19 {dimension_numbers = #tpu.dot_dimension_numbers<[1], [0], [0], [1], [0, 0, 1, 1], [], []>} : vector<128x64xbf16>, vector<64x256xbf16>, vector<128x256xf32> -> vector<128x256xf32>
    %c0_20 = arith.constant 0 : index
    %c0_21 = arith.constant 0 : index
    %40 = vector.load %arg7[%c0_20, %c0_21] : memref<128x1xf32, #tpu.memory_space<vmem>>, vector<128x1xf32>
    %41 = vector.broadcast %40 : vector<128x1xf32> to vector<128x256xf32>
    %42 = arith.addf %39, %41 : vector<128x256xf32>
    %cst_22 = arith.constant 0.00999999977 : f32
    %43 = vector.broadcast %cst_22 : f32 to vector<128x256xf32>
    %44 = arith.mulf %43, %42 : vector<128x256xf32>
    %45 = arith.maximumf %42, %44 : vector<128x256xf32>
    %c0_23 = arith.constant 0 : index
    %c0_24 = arith.constant 0 : index
    %46 = vector.load %arg8[%c0_23, %c0_24] : memref<128x1xf32, #tpu.memory_space<vmem>>, vector<128x1xf32>
    %c0_25 = arith.constant 0 : index
    %c0_26 = arith.constant 0 : index
    %47 = vector.load %arg9[%c0_25, %c0_26] : memref<128x1xf32, #tpu.memory_space<vmem>>, vector<128x1xf32>
    %cst_27 = arith.constant dense<0.000000e+00> : vector<128xf32>
    %48 = vector.multi_reduction <add>, %45, %cst_27 [1] : vector<128x256xf32> to vector<128xf32>
    %49 = vector.shape_cast %48 : vector<128xf32> to vector<128x1xf32>
    %cst_28 = arith.constant 3.906250e-03 : f32
    %50 = vector.broadcast %cst_28 : f32 to vector<128x1xf32>
    %51 = arith.mulf %49, %50 : vector<128x1xf32>
    %52 = arith.mulf %45, %45 : vector<128x256xf32>
    %cst_29 = arith.constant dense<0.000000e+00> : vector<128xf32>
    %53 = vector.multi_reduction <add>, %52, %cst_29 [1] : vector<128x256xf32> to vector<128xf32>
    %54 = vector.shape_cast %53 : vector<128xf32> to vector<128x1xf32>
    %cst_30 = arith.constant 3.906250e-03 : f32
    %55 = vector.broadcast %cst_30 : f32 to vector<128x1xf32>
    %56 = arith.mulf %54, %55 : vector<128x1xf32>
    %57 = arith.mulf %51, %51 : vector<128x1xf32>
    %58 = arith.subf %56, %57 : vector<128x1xf32>
    %cst_31 = arith.constant 0.000000e+00 : f32
    %59 = vector.broadcast %cst_31 : f32 to vector<128x1xf32>
    %60 = arith.maximumf %58, %59 : vector<128x1xf32>
    %61 = vector.broadcast %51 : vector<128x1xf32> to vector<128x256xf32>
    %62 = arith.subf %45, %61 : vector<128x256xf32>
    %cst_32 = arith.constant 9.99999974E-6 : f32
    %63 = vector.broadcast %cst_32 : f32 to vector<128x1xf32>
    %64 = arith.addf %60, %63 : vector<128x1xf32>
    %65 = math.rsqrt %64 : vector<128x1xf32>
    %66 = vector.broadcast %65 : vector<128x1xf32> to vector<128x256xf32>
    %67 = arith.mulf %62, %66 : vector<128x256xf32>
    %68 = vector.broadcast %46 : vector<128x1xf32> to vector<128x256xf32>
    %69 = arith.mulf %67, %68 : vector<128x256xf32>
    %70 = vector.broadcast %47 : vector<128x1xf32> to vector<128x256xf32>
    %71 = arith.addf %69, %70 : vector<128x256xf32>
    %72 = arith.truncf %71 : vector<128x256xf32> to vector<128x256xbf16>
    %c0_33 = arith.constant 0 : index
    %c0_34 = arith.constant 0 : index
    %73 = vector.load %arg10[%c0_33, %c0_34] : memref<1024x128xbf16, #tpu.memory_space<vmem>>, vector<1024x128xbf16>
    %cst_35 = arith.constant dense<0.000000e+00> : vector<1024x256xf32>
    %74 = tpu.matmul %73, %72, %cst_35 {dimension_numbers = #tpu.dot_dimension_numbers<[1], [0], [0], [1], [0, 0, 1, 1], [], []>} : vector<1024x128xbf16>, vector<128x256xbf16>, vector<1024x256xf32> -> vector<1024x256xf32>
    %c0_36 = arith.constant 0 : index
    %c0_37 = arith.constant 0 : index
    %75 = vector.load %arg11[%c0_36, %c0_37] : memref<1024x1xf32, #tpu.memory_space<vmem>>, vector<1024x1xf32>
    %76 = vector.broadcast %75 : vector<1024x1xf32> to vector<1024x256xf32>
    %77 = arith.addf %74, %76 : vector<1024x256xf32>
    %cst_38 = arith.constant dense<0xFF800000> : vector<1024xf32>
    %78 = vector.multi_reduction <maximumf>, %77, %cst_38 [1] : vector<1024x256xf32> to vector<1024xf32>
    %79 = vector.shape_cast %78 : vector<1024xf32> to vector<1024x1xf32>
    %80 = tpu.transpose %79, [1, 0] : vector<1024x1xf32> -> vector<1x1024xf32>
    %81 = arith.truncf %80 : vector<1x1024xf32> to vector<1x1024xbf16>
    %c0_39 = arith.constant 0 : index
    %c0_40 = arith.constant 0 : index
    %82 = vector.load %arg12[%c0_39, %c0_40] : memref<1024x1027xbf16, #tpu.memory_space<vmem>>, vector<1024x1027xbf16>
    %cst_41 = arith.constant dense<0.000000e+00> : vector<1x1027xf32>
    %83 = tpu.matmul %81, %82, %cst_41 {dimension_numbers = #tpu.dot_dimension_numbers<[1], [0], [0], [1], [0, 0, 1, 1], [], []>} : vector<1x1024xbf16>, vector<1024x1027xbf16>, vector<1x1027xf32> -> vector<1x1027xf32>
    %c0_42 = arith.constant 0 : index
    %c0_43 = arith.constant 0 : index
    %84 = vector.load %arg13[%c0_42, %c0_43] : memref<1x1027xf32, #tpu.memory_space<vmem>>, vector<1x1027xf32>
    %85 = arith.addf %83, %84 : vector<1x1027xf32>
    %86 = vector.shape_cast %85 : vector<1x1027xf32> to vector<1x1x1027xf32>
    %c0_44 = arith.constant 0 : index
    %c0_45 = arith.constant 0 : index
    %c0_46 = arith.constant 0 : index
    %87 = vector.load %arg26[%c0_44, %c0_45, %c0_46] : memref<1x1x1027xf32, #tpu.memory_space<vmem>>, vector<1x1x1027xf32>
    tpu.vector_store %arg26[%c0_44, %c0_45, %c0_46], %86 {strides = array<i32>} : memref<1x1x1027xf32, #tpu.memory_space<vmem>>, vector<1x1x1027xf32>,
    %c0_47 = arith.constant 0 : index
    %c0_48 = arith.constant 0 : index
    %88 = vector.load %arg14[%c0_47, %c0_48] : memref<1024x512xbf16, #tpu.memory_space<vmem>>, vector<1024x512xbf16>
    %cst_49 = arith.constant dense<0.000000e+00> : vector<1x512xf32>
    %89 = tpu.matmul %81, %88, %cst_49 {dimension_numbers = #tpu.dot_dimension_numbers<[1], [0], [0], [1], [0, 0, 1, 1], [], []>} : vector<1x1024xbf16>, vector<1024x512xbf16>, vector<1x512xf32> -> vector<1x512xf32>
    %c0_50 = arith.constant 0 : index
    %c0_51 = arith.constant 0 : index
    %90 = vector.load %arg15[%c0_50, %c0_51] : memref<1x512xf32, #tpu.memory_space<vmem>>, vector<1x512xf32>
    %91 = arith.addf %89, %90 : vector<1x512xf32>
    %c0_52 = arith.constant 0 : index
    %c0_53 = arith.constant 0 : index
    %92 = vector.load %arg16[%c0_52, %c0_53] : memref<1x512xf32, #tpu.memory_space<vmem>>, vector<1x512xf32>
    %c0_54 = arith.constant 0 : index
    %c0_55 = arith.constant 0 : index
    %93 = vector.load %arg17[%c0_54, %c0_55] : memref<1x512xf32, #tpu.memory_space<vmem>>, vector<1x512xf32>
    %cst_56 = arith.constant dense<0.000000e+00> : vector<1xf32>
    %94 = vector.multi_reduction <add>, %91, %cst_56 [1] : vector<1x512xf32> to vector<1xf32>
    %95 = vector.shape_cast %94 : vector<1xf32> to vector<1x1xf32>
    %cst_57 = arith.constant 0.001953125 : f32
    %96 = vector.broadcast %cst_57 : f32 to vector<1x1xf32>
    %97 = arith.mulf %95, %96 : vector<1x1xf32>
    %98 = arith.mulf %91, %91 : vector<1x512xf32>
    %cst_58 = arith.constant dense<0.000000e+00> : vector<1xf32>
    %99 = vector.multi_reduction <add>, %98, %cst_58 [1] : vector<1x512xf32> to vector<1xf32>
    %100 = vector.shape_cast %99 : vector<1xf32> to vector<1x1xf32>
    %cst_59 = arith.constant 0.001953125 : f32
    %101 = vector.broadcast %cst_59 : f32 to vector<1x1xf32>
    %102 = arith.mulf %100, %101 : vector<1x1xf32>
    %103 = arith.mulf %97, %97 : vector<1x1xf32>
    %104 = arith.subf %102, %103 : vector<1x1xf32>
    %cst_60 = arith.constant 0.000000e+00 : f32
    %105 = vector.broadcast %cst_60 : f32 to vector<1x1xf32>
    %106 = arith.maximumf %104, %105 : vector<1x1xf32>
    %107 = vector.broadcast %97 : vector<1x1xf32> to vector<1x512xf32>
    %108 = arith.subf %91, %107 : vector<1x512xf32>
    %cst_61 = arith.constant 9.99999974E-6 : f32
    %109 = vector.broadcast %cst_61 : f32 to vector<1x1xf32>
    %110 = arith.addf %106, %109 : vector<1x1xf32>
    %111 = math.rsqrt %110 : vector<1x1xf32>
    %112 = vector.broadcast %111 : vector<1x1xf32> to vector<1x512xf32>
    %113 = arith.mulf %108, %112 : vector<1x512xf32>
    %114 = arith.mulf %113, %92 : vector<1x512xf32>
    %115 = arith.addf %114, %93 : vector<1x512xf32>
    %cst_62 = arith.constant 1.000000e-01 : f32
    %116 = vector.broadcast %cst_62 : f32 to vector<1x512xf32>
    %117 = arith.mulf %116, %115 : vector<1x512xf32>
    %118 = arith.maximumf %115, %117 : vector<1x512xf32>
    %c0_63 = arith.constant 0 : index
    %c0_64 = arith.constant 0 : index
    %119 = vector.load %arg18[%c0_63, %c0_64] : memref<512x128xbf16, #tpu.memory_space<vmem>>, vector<512x128xbf16>
    %120 = arith.truncf %118 : vector<1x512xf32> to vector<1x512xbf16>
    %cst_65 = arith.constant dense<0.000000e+00> : vector<1x128xf32>
    %121 = tpu.matmul %120, %119, %cst_65 {dimension_numbers = #tpu.dot_dimension_numbers<[1], [0], [0], [1], [0, 0, 1, 1], [], []>} : vector<1x512xbf16>, vector<512x128xbf16>, vector<1x128xf32> -> vector<1x128xf32>
    %c0_66 = arith.constant 0 : index
    %c0_67 = arith.constant 0 : index
    %122 = vector.load %arg19[%c0_66, %c0_67] : memref<1x128xf32, #tpu.memory_space<vmem>>, vector<1x128xf32>
    %123 = arith.addf %121, %122 : vector<1x128xf32>
    %c0_68 = arith.constant 0 : index
    %c0_69 = arith.constant 0 : index
    %124 = vector.load %arg20[%c0_68, %c0_69] : memref<1x128xf32, #tpu.memory_space<vmem>>, vector<1x128xf32>
    %c0_70 = arith.constant 0 : index
    %c0_71 = arith.constant 0 : index
    %125 = vector.load %arg21[%c0_70, %c0_71] : memref<1x128xf32, #tpu.memory_space<vmem>>, vector<1x128xf32>
    %cst_72 = arith.constant dense<0.000000e+00> : vector<1xf32>
    %126 = vector.multi_reduction <add>, %123, %cst_72 [1] : vector<1x128xf32> to vector<1xf32>
    %127 = vector.shape_cast %126 : vector<1xf32> to vector<1x1xf32>
    %cst_73 = arith.constant 7.812500e-03 : f32
    %128 = vector.broadcast %cst_73 : f32 to vector<1x1xf32>
    %129 = arith.mulf %127, %128 : vector<1x1xf32>
    %130 = arith.mulf %123, %123 : vector<1x128xf32>
    %cst_74 = arith.constant dense<0.000000e+00> : vector<1xf32>
    %131 = vector.multi_reduction <add>, %130, %cst_74 [1] : vector<1x128xf32> to vector<1xf32>
    %132 = vector.shape_cast %131 : vector<1xf32> to vector<1x1xf32>
    %cst_75 = arith.constant 7.812500e-03 : f32
    %133 = vector.broadcast %cst_75 : f32 to vector<1x1xf32>
    %134 = arith.mulf %132, %133 : vector<1x1xf32>
    %135 = arith.mulf %129, %129 : vector<1x1xf32>
    %136 = arith.subf %134, %135 : vector<1x1xf32>
    %cst_76 = arith.constant 0.000000e+00 : f32
    %137 = vector.broadcast %cst_76 : f32 to vector<1x1xf32>
    %138 = arith.maximumf %136, %137 : vector<1x1xf32>
    %139 = vector.broadcast %129 : vector<1x1xf32> to vector<1x128xf32>
    %140 = arith.subf %123, %139 : vector<1x128xf32>
    %cst_77 = arith.constant 9.99999974E-6 : f32
    %141 = vector.broadcast %cst_77 : f32 to vector<1x1xf32>
    %142 = arith.addf %138, %141 : vector<1x1xf32>
    %143 = math.rsqrt %142 : vector<1x1xf32>
    %144 = vector.broadcast %143 : vector<1x1xf32> to vector<1x128xf32>
    %145 = arith.mulf %140, %144 : vector<1x128xf32>
    %146 = arith.mulf %145, %124 : vector<1x128xf32>
    %147 = arith.addf %146, %125 : vector<1x128xf32>
    %cst_78 = arith.constant 1.000000e-01 : f32
    %148 = vector.broadcast %cst_78 : f32 to vector<1x128xf32>
    %149 = arith.mulf %148, %147 : vector<1x128xf32>
    %150 = arith.maximumf %147, %149 : vector<1x128xf32>
    %c0_79 = arith.constant 0 : index
    %c0_80 = arith.constant 0 : index
    %151 = vector.load %arg22[%c0_79, %c0_80] : memref<128x64xbf16, #tpu.memory_space<vmem>>, vector<128x64xbf16>
    %152 = arith.truncf %150 : vector<1x128xf32> to vector<1x128xbf16>
    %cst_81 = arith.constant dense<0.000000e+00> : vector<1x64xf32>
    %153 = tpu.matmul %152, %151, %cst_81 {dimension_numbers = #tpu.dot_dimension_numbers<[1], [0], [0], [1], [0, 0, 1, 1], [], []>} : vector<1x128xbf16>, vector<128x64xbf16>, vector<1x64xf32> -> vector<1x64xf32>
    %c0_82 = arith.constant 0 : index
    %c0_83 = arith.constant 0 : index
    %154 = vector.load %arg23[%c0_82, %c0_83] : memref<1x64xf32, #tpu.memory_space<vmem>>, vector<1x64xf32>
    %155 = arith.addf %153, %154 : vector<1x64xf32>
    %c0_84 = arith.constant 0 : index
    %c0_85 = arith.constant 0 : index
    %156 = vector.load %arg24[%c0_84, %c0_85] : memref<64x1xbf16, #tpu.memory_space<vmem>>, vector<64x1xbf16>
    %157 = arith.truncf %155 : vector<1x64xf32> to vector<1x64xbf16>
    %cst_86 = arith.constant dense<0.000000e+00> : vector<1x1xf32>
    %158 = tpu.matmul %157, %156, %cst_86 {dimension_numbers = #tpu.dot_dimension_numbers<[1], [0], [0], [1], [0, 0, 1, 1], [], []>} : vector<1x64xbf16>, vector<64x1xbf16>, vector<1x1xf32> -> vector<1x1xf32>
    %c0_87 = arith.constant 0 : index
    %c0_88 = arith.constant 0 : index
    %159 = vector.load %arg25[%c0_87, %c0_88] : memref<1x1xf32, #tpu.memory_space<vmem>>, vector<1x1xf32>
    %160 = arith.addf %158, %159 : vector<1x1xf32>
    %161 = arith.negf %160 : vector<1x1xf32>
    %162 = math.exp %161 : vector<1x1xf32>
    %cst_89 = arith.constant 1.000000e+00 : f32
    %163 = vector.broadcast %cst_89 : f32 to vector<1x1xf32>
    %164 = arith.addf %163, %162 : vector<1x1xf32>
    %165 = arith.divf %163, %164 : vector<1x1xf32>
    %166 = vector.shape_cast %165 : vector<1x1xf32> to vector<1x1x1xf32>
    %c0_90 = arith.constant 0 : index
    %c0_91 = arith.constant 0 : index
    %c0_92 = arith.constant 0 : index
    %167 = vector.load %arg27[%c0_90, %c0_91, %c0_92] : memref<1x1x1xf32, #tpu.memory_space<vmem>>, vector<1x1x1xf32>
    tpu.vector_store %arg27[%c0_90, %c0_91, %c0_92], %166 {strides = array<i32>} : memref<1x1x1xf32, #tpu.memory_space<vmem>>, vector<1x1x1xf32>,
    return
  }
  func.func @transform_0(%arg0: i32) -> (i32, i32, i32) {
    %c0_i32 = arith.constant 0 : i32
    %c0_i32_0 = arith.constant 0 : i32
    %c0_i32_1 = arith.constant 0 : i32
    return %arg0, %c0_i32, %c0_i32_0 : i32, i32, i32
  }
  func.func @transform_1(%arg0: i32) -> (i32, i32) {
    %c0_i32 = arith.constant 0 : i32
    %c0_i32_0 = arith.constant 0 : i32
    %c0_i32_1 = arith.constant 0 : i32
    return %c0_i32, %c0_i32_0 : i32, i32
  }
  func.func @transform_2(%arg0: i32) -> (i32, i32) {
    %c0_i32 = arith.constant 0 : i32
    %c0_i32_0 = arith.constant 0 : i32
    %c0_i32_1 = arith.constant 0 : i32
    return %c0_i32, %c0_i32_0 : i32, i32
  }
  func.func @transform_3(%arg0: i32) -> (i32, i32) {
    %c0_i32 = arith.constant 0 : i32
    %c0_i32_0 = arith.constant 0 : i32
    %c0_i32_1 = arith.constant 0 : i32
    return %c0_i32, %c0_i32_0 : i32, i32
  }
  func.func @transform_4(%arg0: i32) -> (i32, i32) {
    %c0_i32 = arith.constant 0 : i32
    %c0_i32_0 = arith.constant 0 : i32
    %c0_i32_1 = arith.constant 0 : i32
    return %c0_i32, %c0_i32_0 : i32, i32
  }
  func.func @transform_5(%arg0: i32) -> (i32, i32) {
    %c0_i32 = arith.constant 0 : i32
    %c0_i32_0 = arith.constant 0 : i32
    %c0_i32_1 = arith.constant 0 : i32
    return %c0_i32, %c0_i32_0 : i32, i32
  }
  func.func @transform_6(%arg0: i32) -> (i32, i32) {
    %c0_i32 = arith.constant 0 : i32
    %c0_i32_0 = arith.constant 0 : i32
    %c0_i32_1 = arith.constant 0 : i32
    return %c0_i32, %c0_i32_0 : i32, i32
  }
  func.func @transform_7(%arg0: i32) -> (i32, i32) {
    %c0_i32 = arith.constant 0 : i32
    %c0_i32_0 = arith.constant 0 : i32
    %c0_i32_1 = arith.constant 0 : i32
    return %c0_i32, %c0_i32_0 : i32, i32
  }
  func.func @transform_8(%arg0: i32) -> (i32, i32) {
    %c0_i32 = arith.constant 0 : i32
    %c0_i32_0 = arith.constant 0 : i32
    %c0_i32_1 = arith.constant 0 : i32
    return %c0_i32, %c0_i32_0 : i32, i32
  }
  func.func @transform_9(%arg0: i32) -> (i32, i32) {
    %c0_i32 = arith.constant 0 : i32
    %c0_i32_0 = arith.constant 0 : i32
    %c0_i32_1 = arith.constant 0 : i32
    return %c0_i32, %c0_i32_0 : i32, i32
  }
  func.func @transform_10(%arg0: i32) -> (i32, i32) {
    %c0_i32 = arith.constant 0 : i32
    %c0_i32_0 = arith.constant 0 : i32
    %c0_i32_1 = arith.constant 0 : i32
    return %c0_i32, %c0_i32_0 : i32, i32
  }
  func.func @transform_11(%arg0: i32) -> (i32, i32) {
    %c0_i32 = arith.constant 0 : i32
    %c0_i32_0 = arith.constant 0 : i32
    %c0_i32_1 = arith.constant 0 : i32
    return %c0_i32, %c0_i32_0 : i32, i32
  }
  func.func @transform_12(%arg0: i32) -> (i32, i32) {
    %c0_i32 = arith.constant 0 : i32
    %c0_i32_0 = arith.constant 0 : i32
    %c0_i32_1 = arith.constant 0 : i32
    return %c0_i32, %c0_i32_0 : i32, i32
  }
  func.func @transform_13(%arg0: i32) -> (i32, i32) {
    %c0_i32 = arith.constant 0 : i32
    %c0_i32_0 = arith.constant 0 : i32
    %c0_i32_1 = arith.constant 0 : i32
    return %c0_i32, %c0_i32_0 : i32, i32
  }
  func.func @transform_14(%arg0: i32) -> (i32, i32) {
    %c0_i32 = arith.constant 0 : i32
    %c0_i32_0 = arith.constant 0 : i32
    %c0_i32_1 = arith.constant 0 : i32
    return %c0_i32, %c0_i32_0 : i32, i32
  }
  func.func @transform_15(%arg0: i32) -> (i32, i32) {
    %c0_i32 = arith.constant 0 : i32
    %c0_i32_0 = arith.constant 0 : i32
    %c0_i32_1 = arith.constant 0 : i32
    return %c0_i32, %c0_i32_0 : i32, i32
  }
  func.func @transform_16(%arg0: i32) -> (i32, i32) {
    %c0_i32 = arith.constant 0 : i32
    %c0_i32_0 = arith.constant 0 : i32
    %c0_i32_1 = arith.constant 0 : i32
    return %c0_i32, %c0_i32_0 : i32, i32
  }
  func.func @transform_17(%arg0: i32) -> (i32, i32) {
    %c0_i32 = arith.constant 0 : i32
    %c0_i32_0 = arith.constant 0 : i32
    %c0_i32_1 = arith.constant 0 : i32
    return %c0_i32, %c0_i32_0 : i32, i32
  }
  func.func @transform_18(%arg0: i32) -> (i32, i32) {
    %c0_i32 = arith.constant 0 : i32
    %c0_i32_0 = arith.constant 0 : i32
    %c0_i32_1 = arith.constant 0 : i32
    return %c0_i32, %c0_i32_0 : i32, i32
  }
  func.func @transform_19(%arg0: i32) -> (i32, i32) {
    %c0_i32 = arith.constant 0 : i32
    %c0_i32_0 = arith.constant 0 : i32
    %c0_i32_1 = arith.constant 0 : i32
    return %c0_i32, %c0_i32_0 : i32, i32
  }
  func.func @transform_20(%arg0: i32) -> (i32, i32) {
    %c0_i32 = arith.constant 0 : i32
    %c0_i32_0 = arith.constant 0 : i32
    %c0_i32_1 = arith.constant 0 : i32
    return %c0_i32, %c0_i32_0 : i32, i32
  }
  func.func @transform_21(%arg0: i32) -> (i32, i32) {
    %c0_i32 = arith.constant 0 : i32
    %c0_i32_0 = arith.constant 0 : i32
    %c0_i32_1 = arith.constant 0 : i32
    return %c0_i32, %c0_i32_0 : i32, i32
  }
  func.func @transform_22(%arg0: i32) -> (i32, i32) {
    %c0_i32 = arith.constant 0 : i32
    %c0_i32_0 = arith.constant 0 : i32
    %c0_i32_1 = arith.constant 0 : i32
    return %c0_i32, %c0_i32_0 : i32, i32
  }
  func.func @transform_23(%arg0: i32) -> (i32, i32) {
    %c0_i32 = arith.constant 0 : i32
    %c0_i32_0 = arith.constant 0 : i32
    %c0_i32_1 = arith.constant 0 : i32
    return %c0_i32, %c0_i32_0 : i32, i32
  }
  func.func @transform_24(%arg0: i32) -> (i32, i32) {
    %c0_i32 = arith.constant 0 : i32
    %c0_i32_0 = arith.constant 0 : i32
    %c0_i32_1 = arith.constant 0 : i32
    return %c0_i32, %c0_i32_0 : i32, i32
  }
  func.func @transform_25(%arg0: i32) -> (i32, i32, i32) {
    %c0_i32 = arith.constant 0 : i32
    %c0_i32_0 = arith.constant 0 : i32
    %c0_i32_1 = arith.constant 0 : i32
    return %arg0, %c0_i32, %c0_i32_0 : i32, i32, i32
  }
  func.func @transform_26(%arg0: i32) -> (i32, i32, i32) {
    %c0_i32 = arith.constant 0 : i32
    %c0_i32_0 = arith.constant 0 : i32
    %c0_i32_1 = arith.constant 0 : i32
    return %arg0, %c0_i32, %c0_i32_0 : i32, i32, i32
  }
}

</mosaic_0001>

<llo_original>
// kernel: tpu_custom_call.1
$region0: #{tpu_custom_call.1}
  #allocation0 [shape = 'u32[]', space=smem, size = 0x4, offset = 0x4, fixed_abs, tag = 'smem constant byte address 0x4 - core index']
  #allocation1 [shape = 'u32[144,128]{1,0:T(1,128)}', space=vmem, size = 0x12000, scoped, tag = 'internal scratch']
  #allocation2 [shape = 'f32[1,1]{1,0:T(1,128)S(1)}', space=vmem, size = 0x200, scoped, tag = 'scoped memory for tpu_custom_call.1']
  %s0 = inlined_call_operand.vmem [shape: f32[2,3,256], index: 0, kind: input, shape index: {}]
  %s1 = inlined_call_operand.vmem [shape: bf16[64,3], index: 1, kind: input, shape index: {}]
  %s2 = inlined_call_operand.vmem [shape: f32[64,1], index: 2, kind: input, shape index: {}]
  %s3 = inlined_call_operand.vmem [shape: f32[64,1], index: 3, kind: input, shape index: {}]
  %s4 = inlined_call_operand.vmem [shape: f32[64,1], index: 4, kind: input, shape index: {}]
  %s5 = inlined_call_operand.vmem [shape: bf16[128,64], index: 5, kind: input, shape index: {}]
  %s6 = inlined_call_operand.vmem [shape: f32[128,1], index: 6, kind: input, shape index: {}]
  %s7 = inlined_call_operand.vmem [shape: f32[128,1], index: 7, kind: input, shape index: {}]
  %s8 = inlined_call_operand.vmem [shape: f32[128,1], index: 8, kind: input, shape index: {}]
  %s9 = inlined_call_operand.vmem [shape: bf16[1024,128], index: 9, kind: input, shape index: {}]
  %s10 = inlined_call_operand.vmem [shape: f32[1024,1], index: 10, kind: input, shape index: {}]
  %s11 = inlined_call_operand.vmem [shape: bf16[1024,1027], index: 11, kind: input, shape index: {}]
  %s12 = inlined_call_operand.vmem [shape: f32[1,1027], index: 12, kind: input, shape index: {}]
  %s13 = inlined_call_operand.vmem [shape: bf16[1024,512], index: 13, kind: input, shape index: {}]
  %s14 = inlined_call_operand.vmem [shape: f32[1,512], index: 14, kind: input, shape index: {}]
  %s15 = inlined_call_operand.vmem [shape: f32[1,512], index: 15, kind: input, shape index: {}]
  %s16 = inlined_call_operand.vmem [shape: f32[1,512], index: 16, kind: input, shape index: {}]
  %s17 = inlined_call_operand.vmem [shape: bf16[512,128], index: 17, kind: input, shape index: {}]
  %s18 = inlined_call_operand.vmem [shape: f32[1,128], index: 18, kind: input, shape index: {}]
  %s19 = inlined_call_operand.vmem [shape: f32[1,128], index: 19, kind: input, shape index: {}]
  %s20 = inlined_call_operand.vmem [shape: f32[1,128], index: 20, kind: input, shape index: {}]
  %s21 = inlined_call_operand.vmem [shape: bf16[128,64], index: 21, kind: input, shape index: {}]
  %s22 = inlined_call_operand.vmem [shape: f32[1,64], index: 22, kind: input, shape index: {}]
  %s23 = inlined_call_operand.vmem [shape: bf16[64,1], index: 23, kind: input, shape index: {}]
  %s24 = inlined_call_operand.<no memory space> [shape: f32[1,1], index: 24, kind: input, shape index: {}]
  %s25 = inlined_call_operand.hbm [shape: f32[2,1,1027], index: 25, kind: output, shape index: {0}]
  %s26 = inlined_call_operand.vmem [shape: f32[2,1,1], index: 26, kind: output, shape index: {1}]
  %27 = xla_tuple %s25, %s26
  %s28 = sld [smem:[#allocation0]]
  $region141: #{tpu_custom_call.1} parent=0
    _
  %s30 = ssub.s32 1, %s28
  %s31 = scalar_select 0, %s30, %s28
  %v32 = vstv %s24
  %33 = vst [vmem:[#allocation2] sm:$0x1] %v32
  $region1: #{tpu_custom_call.1} parent=0
    #allocation3 [shape = 'u8[9216]{0}', space=vmem, size = 0x2400, scoped, tag = 'output window, operand 0']
    #allocation4 [shape = 's32[2]{0}', space=sflag, size = 0x8, scoped, tag = 'scoped memory for tpu_custom_call.1']
    %34 = vsyncpa [#allocation4], 0
    %s35 = scalar_lea.sflag [#allocation4], 1
    %36 = vsyncpa %s35, 0
    loop: start=0, step=1, limit=4
    $region2: #{tpu_custom_call.1} parent=1 // loop_pre_header
      _
    $region3: #{tpu_custom_call.1} parent=1 // loop_header
      %s38 = sphi 0, %s42
      %p39 = scmp.ge.s32.totalorder %s38, 4
      %s48 = sphi 0, %s50
      %s51 = sphi 0, %s48
      %s52 = sphi 0, %s51
      %s68 = sphi 0, %s52
      %s72 = sphi 0, %s72
      %s74 = sphi 0, %s72
      %s75 = sphi 0, %s74
      %s89 = sphi 0, %s75
      %s93 = sphi 0, %s93
      %s95 = sphi 0, %s93
      %s96 = sphi 0, %s95
      %s110 = sphi 0, %s96
      %s114 = sphi 0, %s114
      %s116 = sphi 0, %s114
      %s117 = sphi 0, %s116
      %s131 = sphi 0, %s117
      %s135 = sphi 0, %s135
      %s137 = sphi 0, %s135
      %s138 = sphi 0, %s137
      %s152 = sphi 0, %s138
      %s156 = sphi 0, %s156
      %s158 = sphi 0, %s156
      %s159 = sphi 0, %s158
      %s173 = sphi 0, %s159
      %s177 = sphi 0, %s177
      %s179 = sphi 0, %s177
      %s180 = sphi 0, %s179
      %s194 = sphi 0, %s180
      %s198 = sphi 0, %s198
      %s200 = sphi 0, %s198
      %s201 = sphi 0, %s200
      %s215 = sphi 0, %s201
      %s219 = sphi 0, %s219
      %s221 = sphi 0, %s219
      %s222 = sphi 0, %s221
      %s236 = sphi 0, %s222
      %s240 = sphi 0, %s240
      %s242 = sphi 0, %s240
      %s243 = sphi 0, %s242
      %s257 = sphi 0, %s243
      %s261 = sphi 0, %s261
      %s263 = sphi 0, %s261
      %s264 = sphi 0, %s263
      %s278 = sphi 0, %s264
      %s282 = sphi 0, %s282
      %s284 = sphi 0, %s282
      %s285 = sphi 0, %s284
      %s299 = sphi 0, %s285
      %s303 = sphi 0, %s303
      %s305 = sphi 0, %s303
      %s306 = sphi 0, %s305
      %s320 = sphi 0, %s306
      %s324 = sphi 0, %s324
      %s326 = sphi 0, %s324
      %s327 = sphi 0, %s326
      %s341 = sphi 0, %s327
      %s345 = sphi 0, %s345
      %s347 = sphi 0, %s345
      %s348 = sphi 0, %s347
      %s362 = sphi 0, %s348
      %s366 = sphi 0, %s366
      %s368 = sphi 0, %s366
      %s369 = sphi 0, %s368
      %s383 = sphi 0, %s369
      %s387 = sphi 0, %s387
      %s389 = sphi 0, %s387
      %s390 = sphi 0, %s389
      %s404 = sphi 0, %s390
      %s408 = sphi 0, %s408
      %s410 = sphi 0, %s408
      %s411 = sphi 0, %s410
      %s425 = sphi 0, %s411
      %s429 = sphi 0, %s429
      %s431 = sphi 0, %s429
      %s432 = sphi 0, %s431
      %s446 = sphi 0, %s432
      %s450 = sphi 0, %s450
      %s452 = sphi 0, %s450
      %s453 = sphi 0, %s452
      %s467 = sphi 0, %s453
      %s471 = sphi 0, %s471
      %s473 = sphi 0, %s471
      %s474 = sphi 0, %s473
      %s488 = sphi 0, %s474
      %s492 = sphi 0, %s492
      %s494 = sphi 0, %s492
      %s495 = sphi 0, %s494
      %s509 = sphi 0, %s495
      %s513 = sphi 0, %s513
      %s515 = sphi 0, %s513
      %s516 = sphi 0, %s515
      %s530 = sphi 0, %s516
      %s534 = sphi 0, %s534
      %s536 = sphi 0, %s534
      %s537 = sphi 0, %s536
      %s551 = sphi 0, %s537
      %s555 = sphi 0, %s555
      %s557 = sphi 0, %s555
      %s558 = sphi 0, %s557
      %s572 = sphi 0, %s558
      %s578 = sphi 0, %s580
      %s581 = sphi 0, %s578
      %s582 = sphi 0, %s581
      %s598 = sphi 0, %s582
      %s604 = sphi 0, %s606
      %s607 = sphi 0, %s604
      %s608 = sphi 0, %s607
      %s624 = sphi 0, %s608
    $region4: #{tpu_custom_call.1} parent=1 // loop_header_branch
      %41 = sbr.rel (%p39) target = $region8
    $region5: #{tpu_custom_call.1} parent=1 // loop_body
      %s43 = ssub.s32 %s38, 1
      %s44 = ssub.s32 %s38, 2
      %s45 = sadd.s32 %s38, 1
      %s46 = ssub.s32 %s38, %s45
      %p47 = scmp.eq.s32.totalorder %s46, 0
      %s49 = sadd.s32 %s48, 1
      %s50 = scalar_select %p47, %s48, %s49
      %p53 = pneg %p47
      %p54 = scmp.eq.s32.totalorder %s38, 1
      %p55 = por %p53, %p54
      %p56 = scmp.ne.s32.totalorder %s48, %s51
      %p57 = scmp.eq.s32.totalorder %s38, 0
      %p58 = por %p56, %p57
      %p59 = scmp.ne.s32.totalorder %s48, %s51
      %p60 = scmp.eq.s32.totalorder %s43, 1
      %p61 = por %p59, %p60
      %p62 = scmp.ne.s32.totalorder %s51, %s52
      %p63 = scmp.eq.s32.totalorder %s43, 0
      %p64 = por %p62, %p63
      %p65 = scmp.ne.s32.totalorder %s51, %s52
      %p66 = scmp.eq.s32.totalorder %s44, 1
      %p67 = por %p65, %p66
      %p69 = scmp.ne.s32.totalorder %s52, %s68
      %p70 = scmp.eq.s32.totalorder %s44, 0
      %p71 = por %p69, %p70
      %s73 = sadd.s32 %s72, 1
      %p76 = scmp.eq.s32.totalorder %s38, 1
      %p77 = scmp.ne.s32.totalorder %s72, %s74
      %p78 = scmp.eq.s32.totalorder %s38, 0
      %p79 = por %p77, %p78
      %p80 = scmp.ne.s32.totalorder %s72, %s74
      %p81 = scmp.eq.s32.totalorder %s43, 1
      %p82 = por %p80, %p81
      %p83 = scmp.ne.s32.totalorder %s74, %s75
      %p84 = scmp.eq.s32.totalorder %s43, 0
      %p85 = por %p83, %p84
      %p86 = scmp.ne.s32.totalorder %s74, %s75
      %p87 = scmp.eq.s32.totalorder %s44, 1
      %p88 = por %p86, %p87
      %p90 = scmp.ne.s32.totalorder %s75, %s89
      %p91 = scmp.eq.s32.totalorder %s44, 0
      %p92 = por %p90, %p91
      %s94 = sadd.s32 %s93, 1
      %p97 = scmp.eq.s32.totalorder %s38, 1
      %p98 = scmp.ne.s32.totalorder %s93, %s95
      %p99 = scmp.eq.s32.totalorder %s38, 0
      %p100 = por %p98, %p99
      %p101 = scmp.ne.s32.totalorder %s93, %s95
      %p102 = scmp.eq.s32.totalorder %s43, 1
      %p103 = por %p101, %p102
      %p104 = scmp.ne.s32.totalorder %s95, %s96
      %p105 = scmp.eq.s32.totalorder %s43, 0
      %p106 = por %p104, %p105
      %p107 = scmp.ne.s32.totalorder %s95, %s96
      %p108 = scmp.eq.s32.totalorder %s44, 1
      %p109 = por %p107, %p108
      %p111 = scmp.ne.s32.totalorder %s96, %s110
      %p112 = scmp.eq.s32.totalorder %s44, 0
      %p113 = por %p111, %p112
      %s115 = sadd.s32 %s114, 1
      %p118 = scmp.eq.s32.totalorder %s38, 1
      %p119 = scmp.ne.s32.totalorder %s114, %s116
      %p120 = scmp.eq.s32.totalorder %s38, 0
      %p121 = por %p119, %p120
      %p122 = scmp.ne.s32.totalorder %s114, %s116
      %p123 = scmp.eq.s32.totalorder %s43, 1
      %p124 = por %p122, %p123
      %p125 = scmp.ne.s32.totalorder %s116, %s117
      %p126 = scmp.eq.s32.totalorder %s43, 0
      %p127 = por %p125, %p126
      %p128 = scmp.ne.s32.totalorder %s116, %s117
      %p129 = scmp.eq.s32.totalorder %s44, 1
      %p130 = por %p128, %p129
      %p132 = scmp.ne.s32.totalorder %s117, %s131
      %p133 = scmp.eq.s32.totalorder %s44, 0
      %p134 = por %p132, %p133
      %s136 = sadd.s32 %s135, 1
      %p139 = scmp.eq.s32.totalorder %s38, 1
      %p140 = scmp.ne.s32.totalorder %s135, %s137
      %p141 = scmp.eq.s32.totalorder %s38, 0
      %p142 = por %p140, %p141
      %p143 = scmp.ne.s32.totalorder %s135, %s137
      %p144 = scmp.eq.s32.totalorder %s43, 1
      %p145 = por %p143, %p144
      %p146 = scmp.ne.s32.totalorder %s137, %s138
      %p147 = scmp.eq.s32.totalorder %s43, 0
      %p148 = por %p146, %p147
      %p149 = scmp.ne.s32.totalorder %s137, %s138
      %p150 = scmp.eq.s32.totalorder %s44, 1
      %p151 = por %p149, %p150
      %p153 = scmp.ne.s32.totalorder %s138, %s152
      %p154 = scmp.eq.s32.totalorder %s44, 0
      %p155 = por %p153, %p154
      %s157 = sadd.s32 %s156, 1
      %p160 = scmp.eq.s32.totalorder %s38, 1
      %p161 = scmp.ne.s32.totalorder %s156, %s158
      %p162 = scmp.eq.s32.totalorder %s38, 0
      %p163 = por %p161, %p162
      %p164 = scmp.ne.s32.totalorder %s156, %s158
      %p165 = scmp.eq.s32.totalorder %s43, 1
      %p166 = por %p164, %p165
      %p167 = scmp.ne.s32.totalorder %s158, %s159
      %p168 = scmp.eq.s32.totalorder %s43, 0
      %p169 = por %p167, %p168
      %p170 = scmp.ne.s32.totalorder %s158, %s159
      %p171 = scmp.eq.s32.totalorder %s44, 1
      %p172 = por %p170, %p171
      %p174 = scmp.ne.s32.totalorder %s159, %s173
      %p175 = scmp.eq.s32.totalorder %s44, 0
      %p176 = por %p174, %p175
      %s178 = sadd.s32 %s177, 1
      %p181 = scmp.eq.s32.totalorder %s38, 1
      %p182 = scmp.ne.s32.totalorder %s177, %s179
      %p183 = scmp.eq.s32.totalorder %s38, 0
      %p184 = por %p182, %p183
      %p185 = scmp.ne.s32.totalorder %s177, %s179
      %p186 = scmp.eq.s32.totalorder %s43, 1
      %p187 = por %p185, %p186
      %p188 = scmp.ne.s32.totalorder %s179, %s180
      %p189 = scmp.eq.s32.totalorder %s43, 0
      %p190 = por %p188, %p189
      %p191 = scmp.ne.s32.totalorder %s179, %s180
      %p192 = scmp.eq.s32.totalorder %s44, 1
      %p193 = por %p191, %p192
      %p195 = scmp.ne.s32.totalorder %s180, %s194
      %p196 = scmp.eq.s32.totalorder %s44, 0
      %p197 = por %p195, %p196
      %s199 = sadd.s32 %s198, 1
      %p202 = scmp.eq.s32.totalorder %s38, 1
      %p203 = scmp.ne.s32.totalorder %s198, %s200
      %p204 = scmp.eq.s32.totalorder %s38, 0
      %p205 = por %p203, %p204
      %p206 = scmp.ne.s32.totalorder %s198, %s200
      %p207 = scmp.eq.s32.totalorder %s43, 1
      %p208 = por %p206, %p207
      %p209 = scmp.ne.s32.totalorder %s200, %s201
      %p210 = scmp.eq.s32.totalorder %s43, 0
      %p211 = por %p209, %p210
      %p212 = scmp.ne.s32.totalorder %s200, %s201
      %p213 = scmp.eq.s32.totalorder %s44, 1
      %p214 = por %p212, %p213
      %p216 = scmp.ne.s32.totalorder %s201, %s215
      %p217 = scmp.eq.s32.totalorder %s44, 0
      %p218 = por %p216, %p217
      %s220 = sadd.s32 %s219, 1
      %p223 = scmp.eq.s32.totalorder %s38, 1
      %p224 = scmp.ne.s32.totalorder %s219, %s221
      %p225 = scmp.eq.s32.totalorder %s38, 0
      %p226 = por %p224, %p225
      %p227 = scmp.ne.s32.totalorder %s219, %s221
      %p228 = scmp.eq.s32.totalorder %s43, 1
      %p229 = por %p227, %p228
      %p230 = scmp.ne.s32.totalorder %s221, %s222
      %p231 = scmp.eq.s32.totalorder %s43, 0
      %p232 = por %p230, %p231
      %p233 = scmp.ne.s32.totalorder %s221, %s222
      %p234 = scmp.eq.s32.totalorder %s44, 1
      %p235 = por %p233, %p234
      %p237 = scmp.ne.s32.totalorder %s222, %s236
      %p238 = scmp.eq.s32.totalorder %s44, 0
      %p239 = por %p237, %p238
      %s241 = sadd.s32 %s240, 1
      %p244 = scmp.eq.s32.totalorder %s38, 1
      %p245 = scmp.ne.s32.totalorder %s240, %s242
      %p246 = scmp.eq.s32.totalorder %s38, 0
      %p247 = por %p245, %p246
      %p248 = scmp.ne.s32.totalorder %s240, %s242
      %p249 = scmp.eq.s32.totalorder %s43, 1
      %p250 = por %p248, %p249
      %p251 = scmp.ne.s32.totalorder %s242, %s243
      %p252 = scmp.eq.s32.totalorder %s43, 0
      %p253 = por %p251, %p252
      %p254 = scmp.ne.s32.totalorder %s242, %s243
      %p255 = scmp.eq.s32.totalorder %s44, 1
      %p256 = por %p254, %p255
      %p258 = scmp.ne.s32.totalorder %s243, %s257
      %p259 = scmp.eq.s32.totalorder %s44, 0
      %p260 = por %p258, %p259
      %s262 = sadd.s32 %s261, 1
      %p265 = scmp.eq.s32.totalorder %s38, 1
      %p266 = scmp.ne.s32.totalorder %s261, %s263
      %p267 = scmp.eq.s32.totalorder %s38, 0
      %p268 = por %p266, %p267
      %p269 = scmp.ne.s32.totalorder %s261, %s263
      %p270 = scmp.eq.s32.totalorder %s43, 1
      %p271 = por %p269, %p270
      %p272 = scmp.ne.s32.totalorder %s263, %s264
      %p273 = scmp.eq.s32.totalorder %s43, 0
      %p274 = por %p272, %p273
      %p275 = scmp.ne.s32.totalorder %s263, %s264
      %p276 = scmp.eq.s32.totalorder %s44, 1
      %p277 = por %p275, %p276
      %p279 = scmp.ne.s32.totalorder %s264, %s278
      %p280 = scmp.eq.s32.totalorder %s44, 0
      %p281 = por %p279, %p280
      %s283 = sadd.s32 %s282, 1
      %p286 = scmp.eq.s32.totalorder %s38, 1
      %p287 = scmp.ne.s32.totalorder %s282, %s284
      %p288 = scmp.eq.s32.totalorder %s38, 0
      %p289 = por %p287, %p288
      %p290 = scmp.ne.s32.totalorder %s282, %s284
      %p291 = scmp.eq.s32.totalorder %s43, 1
      %p292 = por %p290, %p291
      %p293 = scmp.ne.s32.totalorder %s284, %s285
      %p294 = scmp.eq.s32.totalorder %s43, 0
      %p295 = por %p293, %p294
      %p296 = scmp.ne.s32.totalorder %s284, %s285
      %p297 = scmp.eq.s32.totalorder %s44, 1
      %p298 = por %p296, %p297
      %p300 = scmp.ne.s32.totalorder %s285, %s299
      %p301 = scmp.eq.s32.totalorder %s44, 0
      %p302 = por %p300, %p301
      %s304 = sadd.s32 %s303, 1
      %p307 = scmp.eq.s32.totalorder %s38, 1
      %p308 = scmp.ne.s32.totalorder %s303, %s305
      %p309 = scmp.eq.s32.totalorder %s38, 0
      %p310 = por %p308, %p309
      %p311 = scmp.ne.s32.totalorder %s303, %s305
      %p312 = scmp.eq.s32.totalorder %s43, 1
      %p313 = por %p311, %p312
      %p314 = scmp.ne.s32.totalorder %s305, %s306
      %p315 = scmp.eq.s32.totalorder %s43, 0
      %p316 = por %p314, %p315
      %p317 = scmp.ne.s32.totalorder %s305, %s306
      %p318 = scmp.eq.s32.totalorder %s44, 1
      %p319 = por %p317, %p318
      %p321 = scmp.ne.s32.totalorder %s306, %s320
      %p322 = scmp.eq.s32.totalorder %s44, 0
      %p323 = por %p321, %p322
      %s325 = sadd.s32 %s324, 1
      %p328 = scmp.eq.s32.totalorder %s38, 1
      %p329 = scmp.ne.s32.totalorder %s324, %s326
      %p330 = scmp.eq.s32.totalorder %s38, 0
      %p331 = por %p329, %p330
      %p332 = scmp.ne.s32.totalorder %s324, %s326
      %p333 = scmp.eq.s32.totalorder %s43, 1
      %p334 = por %p332, %p333
      %p335 = scmp.ne.s32.totalorder %s326, %s327
      %p336 = scmp.eq.s32.totalorder %s43, 0
      %p337 = por %p335, %p336
      %p338 = scmp.ne.s32.totalorder %s326, %s327
      %p339 = scmp.eq.s32.totalorder %s44, 1
      %p340 = por %p338, %p339
      %p342 = scmp.ne.s32.totalorder %s327, %s341
      %p343 = scmp.eq.s32.totalorder %s44, 0
      %p344 = por %p342, %p343
      %s346 = sadd.s32 %s345, 1
      %p349 = scmp.eq.s32.totalorder %s38, 1
      %p350 = scmp.ne.s32.totalorder %s345, %s347
      %p351 = scmp.eq.s32.totalorder %s38, 0
      %p352 = por %p350, %p351
      %p353 = scmp.ne.s32.totalorder %s345, %s347
      %p354 = scmp.eq.s32.totalorder %s43, 1
      %p355 = por %p353, %p354
      %p356 = scmp.ne.s32.totalorder %s347, %s348
      %p357 = scmp.eq.s32.totalorder %s43, 0
      %p358 = por %p356, %p357
      %p359 = scmp.ne.s32.totalorder %s347, %s348
      %p360 = scmp.eq.s32.totalorder %s44, 1
      %p361 = por %p359, %p360
      %p363 = scmp.ne.s32.totalorder %s348, %s362
      %p364 = scmp.eq.s32.totalorder %s44, 0
      %p365 = por %p363, %p364
      %s367 = sadd.s32 %s366, 1
      %p370 = scmp.eq.s32.totalorder %s38, 1
      %p371 = scmp.ne.s32.totalorder %s366, %s368
      %p372 = scmp.eq.s32.totalorder %s38, 0
      %p373 = por %p371, %p372
      %p374 = scmp.ne.s32.totalorder %s366, %s368
      %p375 = scmp.eq.s32.totalorder %s43, 1
      %p376 = por %p374, %p375
      %p377 = scmp.ne.s32.totalorder %s368, %s369
      %p378 = scmp.eq.s32.totalorder %s43, 0
      %p379 = por %p377, %p378
      %p380 = scmp.ne.s32.totalorder %s368, %s369
      %p381 = scmp.eq.s32.totalorder %s44, 1
      %p382 = por %p380, %p381
      %p384 = scmp.ne.s32.totalorder %s369, %s383
      %p385 = scmp.eq.s32.totalorder %s44, 0
      %p386 = por %p384, %p385
      %s388 = sadd.s32 %s387, 1
      %p391 = scmp.eq.s32.totalorder %s38, 1
      %p392 = scmp.ne.s32.totalorder %s387, %s389
      %p393 = scmp.eq.s32.totalorder %s38, 0
      %p394 = por %p392, %p393
      %p395 = scmp.ne.s32.totalorder %s387, %s389
      %p396 = scmp.eq.s32.totalorder %s43, 1
      %p397 = por %p395, %p396
      %p398 = scmp.ne.s32.totalorder %s389, %s390
      %p399 = scmp.eq.s32.totalorder %s43, 0
      %p400 = por %p398, %p399
      %p401 = scmp.ne.s32.totalorder %s389, %s390
      %p402 = scmp.eq.s32.totalorder %s44, 1
      %p403 = por %p401, %p402
      %p405 = scmp.ne.s32.totalorder %s390, %s404
      %p406 = scmp.eq.s32.totalorder %s44, 0
      %p407 = por %p405, %p406
      %s409 = sadd.s32 %s408, 1
      %p412 = scmp.eq.s32.totalorder %s38, 1
      %p413 = scmp.ne.s32.totalorder %s408, %s410
      %p414 = scmp.eq.s32.totalorder %s38, 0
      %p415 = por %p413, %p414
      %p416 = scmp.ne.s32.totalorder %s408, %s410
      %p417 = scmp.eq.s32.totalorder %s43, 1
      %p418 = por %p416, %p417
      %p419 = scmp.ne.s32.totalorder %s410, %s411
      %p420 = scmp.eq.s32.totalorder %s43, 0
      %p421 = por %p419, %p420
      %p422 = scmp.ne.s32.totalorder %s410, %s411
      %p423 = scmp.eq.s32.totalorder %s44, 1
      %p424 = por %p422, %p423
      %p426 = scmp.ne.s32.totalorder %s411, %s425
      %p427 = scmp.eq.s32.totalorder %s44, 0
      %p428 = por %p426, %p427
      %s430 = sadd.s32 %s429, 1
      %p433 = scmp.eq.s32.totalorder %s38, 1
      %p434 = scmp.ne.s32.totalorder %s429, %s431
      %p435 = scmp.eq.s32.totalorder %s38, 0
      %p436 = por %p434, %p435
      %p437 = scmp.ne.s32.totalorder %s429, %s431
      %p438 = scmp.eq.s32.totalorder %s43, 1
      %p439 = por %p437, %p438
      %p440 = scmp.ne.s32.totalorder %s431, %s432
      %p441 = scmp.eq.s32.totalorder %s43, 0
      %p442 = por %p440, %p441
      %p443 = scmp.ne.s32.totalorder %s431, %s432
      %p444 = scmp.eq.s32.totalorder %s44, 1
      %p445 = por %p443, %p444
      %p447 = scmp.ne.s32.totalorder %s432, %s446
      %p448 = scmp.eq.s32.totalorder %s44, 0
      %p449 = por %p447, %p448
      %s451 = sadd.s32 %s450, 1
      %p454 = scmp.eq.s32.totalorder %s38, 1
      %p455 = scmp.ne.s32.totalorder %s450, %s452
      %p456 = scmp.eq.s32.totalorder %s38, 0
      %p457 = por %p455, %p456
      %p458 = scmp.ne.s32.totalorder %s450, %s452
      %p459 = scmp.eq.s32.totalorder %s43, 1
      %p460 = por %p458, %p459
      %p461 = scmp.ne.s32.totalorder %s452, %s453
      %p462 = scmp.eq.s32.totalorder %s43, 0
      %p463 = por %p461, %p462
      %p464 = scmp.ne.s32.totalorder %s452, %s453
      %p465 = scmp.eq.s32.totalorder %s44, 1
      %p466 = por %p464, %p465
      %p468 = scmp.ne.s32.totalorder %s453, %s467
      %p469 = scmp.eq.s32.totalorder %s44, 0
      %p470 = por %p468, %p469
      %s472 = sadd.s32 %s471, 1
      %p475 = scmp.eq.s32.totalorder %s38, 1
      %p476 = scmp.ne.s32.totalorder %s471, %s473
      %p477 = scmp.eq.s32.totalorder %s38, 0
      %p478 = por %p476, %p477
      %p479 = scmp.ne.s32.totalorder %s471, %s473
      %p480 = scmp.eq.s32.totalorder %s43, 1
      %p481 = por %p479, %p480
      %p482 = scmp.ne.s32.totalorder %s473, %s474
      %p483 = scmp.eq.s32.totalorder %s43, 0
      %p484 = por %p482, %p483
      %p485 = scmp.ne.s32.totalorder %s473, %s474
      %p486 = scmp.eq.s32.totalorder %s44, 1
      %p487 = por %p485, %p486
      %p489 = scmp.ne.s32.totalorder %s474, %s488
      %p490 = scmp.eq.s32.totalorder %s44, 0
      %p491 = por %p489, %p490
      %s493 = sadd.s32 %s492, 1
      %p496 = scmp.eq.s32.totalorder %s38, 1
      %p497 = scmp.ne.s32.totalorder %s492, %s494
      %p498 = scmp.eq.s32.totalorder %s38, 0
      %p499 = por %p497, %p498
      %p500 = scmp.ne.s32.totalorder %s492, %s494
      %p501 = scmp.eq.s32.totalorder %s43, 1
      %p502 = por %p500, %p501
      %p503 = scmp.ne.s32.totalorder %s494, %s495
      %p504 = scmp.eq.s32.totalorder %s43, 0
      %p505 = por %p503, %p504
      %p506 = scmp.ne.s32.totalorder %s494, %s495
      %p507 = scmp.eq.s32.totalorder %s44, 1
      %p508 = por %p506, %p507
      %p510 = scmp.ne.s32.totalorder %s495, %s509
      %p511 = scmp.eq.s32.totalorder %s44, 0
      %p512 = por %p510, %p511
      %s514 = sadd.s32 %s513, 1
      %p517 = scmp.eq.s32.totalorder %s38, 1
      %p518 = scmp.ne.s32.totalorder %s513, %s515
      %p519 = scmp.eq.s32.totalorder %s38, 0
      %p520 = por %p518, %p519
      %p521 = scmp.ne.s32.totalorder %s513, %s515
      %p522 = scmp.eq.s32.totalorder %s43, 1
      %p523 = por %p521, %p522
      %p524 = scmp.ne.s32.totalorder %s515, %s516
      %p525 = scmp.eq.s32.totalorder %s43, 0
      %p526 = por %p524, %p525
      %p527 = scmp.ne.s32.totalorder %s515, %s516
      %p528 = scmp.eq.s32.totalorder %s44, 1
      %p529 = por %p527, %p528
      %p531 = scmp.ne.s32.totalorder %s516, %s530
      %p532 = scmp.eq.s32.totalorder %s44, 0
      %p533 = por %p531, %p532
      %s535 = sadd.s32 %s534, 1
      %p538 = scmp.eq.s32.totalorder %s38, 1
      %p539 = scmp.ne.s32.totalorder %s534, %s536
      %p540 = scmp.eq.s32.totalorder %s38, 0
      %p541 = por %p539, %p540
      %p542 = scmp.ne.s32.totalorder %s534, %s536
      %p543 = scmp.eq.s32.totalorder %s43, 1
      %p544 = por %p542, %p543
      %p545 = scmp.ne.s32.totalorder %s536, %s537
      %p546 = scmp.eq.s32.totalorder %s43, 0
      %p547 = por %p545, %p546
      %p548 = scmp.ne.s32.totalorder %s536, %s537
      %p549 = scmp.eq.s32.totalorder %s44, 1
      %p550 = por %p548, %p549
      %p552 = scmp.ne.s32.totalorder %s537, %s551
      %p553 = scmp.eq.s32.totalorder %s44, 0
      %p554 = por %p552, %p553
      %s556 = sadd.s32 %s555, 1
      %p559 = scmp.eq.s32.totalorder %s38, 1
      %p560 = scmp.ne.s32.totalorder %s555, %s557
      %p561 = scmp.eq.s32.totalorder %s38, 0
      %p562 = por %p560, %p561
      %p563 = scmp.ne.s32.totalorder %s555, %s557
      %p564 = scmp.eq.s32.totalorder %s43, 1
      %p565 = por %p563, %p564
      %p566 = scmp.ne.s32.totalorder %s557, %s558
      %p567 = scmp.eq.s32.totalorder %s43, 0
      %p568 = por %p566, %p567
      %p569 = scmp.ne.s32.totalorder %s557, %s558
      %p570 = scmp.eq.s32.totalorder %s44, 1
      %p571 = por %p569, %p570
      %p573 = scmp.ne.s32.totalorder %s558, %s572
      %p574 = scmp.eq.s32.totalorder %s44, 0
      %p575 = por %p573, %p574
      %s576 = ssub.s32 %s38, %s45
      %p577 = scmp.eq.s32.totalorder %s576, 0
      %s579 = sadd.s32 %s578, 1
      %s580 = scalar_select %p577, %s578, %s579
      %p583 = pneg %p577
      %p584 = scmp.eq.s32.totalorder %s38, 1
      %p585 = por %p583, %p584
      %p586 = scmp.ne.s32.totalorder %s578, %s581
      %p587 = scmp.eq.s32.totalorder %s38, 0
      %p588 = por %p586, %p587
      %p589 = scmp.ne.s32.totalorder %s578, %s581
      %p590 = scmp.eq.s32.totalorder %s43, 1
      %p591 = por %p589, %p590
      %p592 = scmp.ne.s32.totalorder %s581, %s582
      %p593 = scmp.eq.s32.totalorder %s43, 0
      %p594 = por %p592, %p593
      %p595 = scmp.ne.s32.totalorder %s581, %s582
      %p596 = scmp.eq.s32.totalorder %s44, 1
      %p597 = por %p595, %p596
      %p599 = scmp.ne.s32.totalorder %s582, %s598
      %p600 = scmp.eq.s32.totalorder %s44, 0
      %p601 = por %p599, %p600
      %s602 = ssub.s32 %s38, %s45
      %p603 = scmp.eq.s32.totalorder %s602, 0
      %s605 = sadd.s32 %s604, 1
      %s606 = scalar_select %p603, %s604, %s605
      %p609 = pneg %p603
      %p610 = scmp.eq.s32.totalorder %s38, 1
      %p611 = por %p609, %p610
      %p612 = scmp.ne.s32.totalorder %s604, %s607
      %p613 = scmp.eq.s32.totalorder %s38, 0
      %p614 = por %p612, %p613
      %p615 = scmp.ne.s32.totalorder %s604, %s607
      %p616 = scmp.eq.s32.totalorder %s43, 1
      %p617 = por %p615, %p616
      %p618 = scmp.ne.s32.totalorder %s607, %s608
      %p619 = scmp.eq.s32.totalorder %s43, 0
      %p620 = por %p618, %p619
      %p621 = scmp.ne.s32.totalorder %s607, %s608
      %p622 = scmp.eq.s32.totalorder %s44, 1
      %p623 = por %p621, %p622
      %p625 = scmp.ne.s32.totalorder %s608, %s624
      %p626 = scmp.eq.s32.totalorder %s44, 0
      %p627 = por %p625, %p626
      %p628 = scmp.le.s32.totalorder 1, %s38
      %p629 = scmp.lt.s32.totalorder %s38, 3
      %p630 = pnand %p628, %p629
      %p631 = pneg %p630
      // Predicated region
      $region9: #{tpu_custom_call.1} parent=5 // pred_check
        _
      $region10: #{tpu_custom_call.1} parent=5 // pred_check_branch
        %633 = sbr.rel (%p630) target = $region12
      $region11: #{tpu_custom_call.1} parent=5 // pred_region
        %s634 = ssub.s32 %s38, 1
        // Predicated region
        $region13: #{tpu_custom_call.1} parent=11 // pred_check
          %p635 = pneg %p85
        $region14: #{tpu_custom_call.1} parent=11 // pred_check_branch
          %637 = sbr.rel (%p635) target = $region16
        $region15: #{tpu_custom_call.1} parent=11 // pred_region
          _
        $region16: #{tpu_custom_call.1} parent=11 // pred_fallthru
          _
        // Predicated region
        $region17: #{tpu_custom_call.1} parent=11 // pred_check
          %p638 = pneg %p106
        $region18: #{tpu_custom_call.1} parent=11 // pred_check_branch
          %640 = sbr.rel (%p638) target = $region20
        $region19: #{tpu_custom_call.1} parent=11 // pred_region
          _
        $region20: #{tpu_custom_call.1} parent=11 // pred_fallthru
          _
        // Predicated region
        $region21: #{tpu_custom_call.1} parent=11 // pred_check
          %p641 = pneg %p127
        $region22: #{tpu_custom_call.1} parent=11 // pred_check_branch
          %643 = sbr.rel (%p641) target = $region24
        $region23: #{tpu_custom_call.1} parent=11 // pred_region
          _
        $region24: #{tpu_custom_call.1} parent=11 // pred_fallthru
          _
        // Predicated region
        $region25: #{tpu_custom_call.1} parent=11 // pred_check
          %p644 = pneg %p148
        $region26: #{tpu_custom_call.1} parent=11 // pred_check_branch
          %646 = sbr.rel (%p644) target = $region28
        $region27: #{tpu_custom_call.1} parent=11 // pred_region
          _
        $region28: #{tpu_custom_call.1} parent=11 // pred_fallthru
          _
        // Predicated region
        $region29: #{tpu_custom_call.1} parent=11 // pred_check
          %p647 = pneg %p169
        $region30: #{tpu_custom_call.1} parent=11 // pred_check_branch
          %649 = sbr.rel (%p647) target = $region32
        $region31: #{tpu_custom_call.1} parent=11 // pred_region
          _
        $region32: #{tpu_custom_call.1} parent=11 // pred_fallthru
          _
        // Predicated region
        $region33: #{tpu_custom_call.1} parent=11 // pred_check
          %p650 = pneg %p190
        $region34: #{tpu_custom_call.1} parent=11 // pred_check_branch
          %652 = sbr.rel (%p650) target = $region36
        $region35: #{tpu_custom_call.1} parent=11 // pred_region
          _
        $region36: #{tpu_custom_call.1} parent=11 // pred_fallthru
          _
        // Predicated region
        $region37: #{tpu_custom_call.1} parent=11 // pred_check
          %p653 = pneg %p211
        $region38: #{tpu_custom_call.1} parent=11 // pred_check_branch
          %655 = sbr.rel (%p653) target = $region40
        $region39: #{tpu_custom_call.1} parent=11 // pred_region
          _
        $region40: #{tpu_custom_call.1} parent=11 // pred_fallthru
          _
        // Predicated region
        $region41: #{tpu_custom_call.1} parent=11 // pred_check
          %p656 = pneg %p232
        $region42: #{tpu_custom_call.1} parent=11 // pred_check_branch
          %658 = sbr.rel (%p656) target = $region44
        $region43: #{tpu_custom_call.1} parent=11 // pred_region
          _
        $region44: #{tpu_custom_call.1} parent=11 // pred_fallthru
          _
        // Predicated region
        $region45: #{tpu_custom_call.1} parent=11 // pred_check
          %p659 = pneg %p253
        $region46: #{tpu_custom_call.1} parent=11 // pred_check_branch
          %661 = sbr.rel (%p659) target = $region48
        $region47: #{tpu_custom_call.1} parent=11 // pred_region
          _
        $region48: #{tpu_custom_call.1} parent=11 // pred_fallthru
          _
        // Predicated region
        $region49: #{tpu_custom_call.1} parent=11 // pred_check
          %p662 = pneg %p274
        $region50: #{tpu_custom_call.1} parent=11 // pred_check_branch
          %664 = sbr.rel (%p662) target = $region52
        $region51: #{tpu_custom_call.1} parent=11 // pred_region
          _
        $region52: #{tpu_custom_call.1} parent=11 // pred_fallthru
          _
        // Predicated region
        $region53: #{tpu_custom_call.1} parent=11 // pred_check
          %p665 = pneg %p295
        $region54: #{tpu_custom_call.1} parent=11 // pred_check_branch
          %667 = sbr.rel (%p665) target = $region56
        $region55: #{tpu_custom_call.1} parent=11 // pred_region
          _
        $region56: #{tpu_custom_call.1} parent=11 // pred_fallthru
          _
        // Predicated region
        $region57: #{tpu_custom_call.1} parent=11 // pred_check
          %p668 = pneg %p316
        $region58: #{tpu_custom_call.1} parent=11 // pred_check_branch
          %670 = sbr.rel (%p668) target = $region60
        $region59: #{tpu_custom_call.1} parent=11 // pred_region
          _
        $region60: #{tpu_custom_call.1} parent=11 // pred_fallthru
          _
        // Predicated region
        $region61: #{tpu_custom_call.1} parent=11 // pred_check
          %p671 = pneg %p337
        $region62: #{tpu_custom_call.1} parent=11 // pred_check_branch
          %673 = sbr.rel (%p671) target = $region64
        $region63: #{tpu_custom_call.1} parent=11 // pred_region
          _
        $region64: #{tpu_custom_call.1} parent=11 // pred_fallthru
          _
        // Predicated region
        $region65: #{tpu_custom_call.1} parent=11 // pred_check
          %p674 = pneg %p358
        $region66: #{tpu_custom_call.1} parent=11 // pred_check_branch
          %676 = sbr.rel (%p674) target = $region68
        $region67: #{tpu_custom_call.1} parent=11 // pred_region
          _
        $region68: #{tpu_custom_call.1} parent=11 // pred_fallthru
          _
        // Predicated region
        $region69: #{tpu_custom_call.1} parent=11 // pred_check
          %p677 = pneg %p379
        $region70: #{tpu_custom_call.1} parent=11 // pred_check_branch
          %679 = sbr.rel (%p677) target = $region72
        $region71: #{tpu_custom_call.1} parent=11 // pred_region
          _
        $region72: #{tpu_custom_call.1} parent=11 // pred_fallthru
          _
        // Predicated region
        $region73: #{tpu_custom_call.1} parent=11 // pred_check
          %p680 = pneg %p400
        $region74: #{tpu_custom_call.1} parent=11 // pred_check_branch
          %682 = sbr.rel (%p680) target = $region76
        $region75: #{tpu_custom_call.1} parent=11 // pred_region
          _
        $region76: #{tpu_custom_call.1} parent=11 // pred_fallthru
          _
        // Predicated region
        $region77: #{tpu_custom_call.1} parent=11 // pred_check
          %p683 = pneg %p421
        $region78: #{tpu_custom_call.1} parent=11 // pred_check_branch
          %685 = sbr.rel (%p683) target = $region80
        $region79: #{tpu_custom_call.1} parent=11 // pred_region
          _
        $region80: #{tpu_custom_call.1} parent=11 // pred_fallthru
          _
        // Predicated region
        $region81: #{tpu_custom_call.1} parent=11 // pred_check
          %p686 = pneg %p442
        $region82: #{tpu_custom_call.1} parent=11 // pred_check_branch
          %688 = sbr.rel (%p686) target = $region84
        $region83: #{tpu_custom_call.1} parent=11 // pred_region
          _
        $region84: #{tpu_custom_call.1} parent=11 // pred_fallthru
          _
        // Predicated region
        $region85: #{tpu_custom_call.1} parent=11 // pred_check
          %p689 = pneg %p463
        $region86: #{tpu_custom_call.1} parent=11 // pred_check_branch
          %691 = sbr.rel (%p689) target = $region88
        $region87: #{tpu_custom_call.1} parent=11 // pred_region
          _
        $region88: #{tpu_custom_call.1} parent=11 // pred_fallthru
          _
        // Predicated region
        $region89: #{tpu_custom_call.1} parent=11 // pred_check
          %p692 = pneg %p484
        $region90: #{tpu_custom_call.1} parent=11 // pred_check_branch
          %694 = sbr.rel (%p692) target = $region92
        $region91: #{tpu_custom_call.1} parent=11 // pred_region
          _
        $region92: #{tpu_custom_call.1} parent=11 // pred_fallthru
          _
        // Predicated region
        $region93: #{tpu_custom_call.1} parent=11 // pred_check
          %p695 = pneg %p505
        $region94: #{tpu_custom_call.1} parent=11 // pred_check_branch
          %697 = sbr.rel (%p695) target = $region96
        $region95: #{tpu_custom_call.1} parent=11 // pred_region
          _
        $region96: #{tpu_custom_call.1} parent=11 // pred_fallthru
          _
        // Predicated region
        $region97: #{tpu_custom_call.1} parent=11 // pred_check
          %p698 = pneg %p526
        $region98: #{tpu_custom_call.1} parent=11 // pred_check_branch
          %700 = sbr.rel (%p698) target = $region100
        $region99: #{tpu_custom_call.1} parent=11 // pred_region
          _
        $region100: #{tpu_custom_call.1} parent=11 // pred_fallthru
          _
        // Predicated region
        $region101: #{tpu_custom_call.1} parent=11 // pred_check
          %p701 = pneg %p547
        $region102: #{tpu_custom_call.1} parent=11 // pred_check_branch
          %703 = sbr.rel (%p701) target = $region104
        $region103: #{tpu_custom_call.1} parent=11 // pred_region
          _
        $region104: #{tpu_custom_call.1} parent=11 // pred_fallthru
          _
        // Predicated region
        $region105: #{tpu_custom_call.1} parent=11 // pred_check
          %p704 = pneg %p568
        $region106: #{tpu_custom_call.1} parent=11 // pred_check_branch
          %706 = sbr.rel (%p704) target = $region108
        $region107: #{tpu_custom_call.1} parent=11 // pred_region
          _
        $region108: #{tpu_custom_call.1} parent=11 // pred_fallthru
          _
      $region12: #{tpu_custom_call.1} parent=5 // pred_fallthru
        _
      %p707 = scmp.lt.s32.totalorder %s38, 2
      // Predicated region
      $region109: #{tpu_custom_call.1} parent=5 // pred_check
        %p708 = pneg %p707
      $region110: #{tpu_custom_call.1} parent=5 // pred_check_branch
        %710 = sbr.rel (%p708) target = $region112
      $region111: #{tpu_custom_call.1} parent=5 // pred_region
        // Predicated region
        $region113: #{tpu_custom_call.1} parent=111 // pred_check
          %p711 = pneg %p58
        $region114: #{tpu_custom_call.1} parent=111 // pred_check_branch
          %713 = sbr.rel (%p711) target = $region116
        $region115: #{tpu_custom_call.1} parent=111 // pred_region
          %p714 = scmp.lt.s32.totalorder %s38, 1
          %s715 = scalar_select %p714, %s38, 1
          %s716 = smul.addr %s715, 2
          %s717 = smul.addr %s716, 4
          %s718 = scalar_lea.vmem %s0, %s717
        $region116: #{tpu_custom_call.1} parent=111 // pred_fallthru
          _
      $region112: #{tpu_custom_call.1} parent=5 // pred_fallthru
        _
      %p719 = scmp.le.s32.totalorder 1, %s38
      %p720 = scmp.lt.s32.totalorder %s38, 3
      %p721 = pnand %p719, %p720
      %p722 = pneg %p721
      // Predicated region
      $region117: #{tpu_custom_call.1} parent=5 // pred_check
        _
      $region118: #{tpu_custom_call.1} parent=5 // pred_check_branch
        %724 = sbr.rel (%p721) target = $region120
      $region119: #{tpu_custom_call.1} parent=5 // pred_region
        %s725 = ssub.s32 %s38, 1
        %p726 = scmp.lt.s32.totalorder %s43, 1
        %s727 = scalar_select %p726, %s43, 1
        %s728 = smul.addr %s727, 2
        %s729 = smul.addr %s728, 4
        %s730 = scalar_lea.vmem %s0, %s729
        %p731 = pneg %p64
        %p732 = pneg %p61
        %p733 = pneg %p85
        %p734 = pneg %p82
        %p735 = pneg %p106
        %p736 = pneg %p103
        %p737 = pneg %p127
        %p738 = pneg %p124
        %p739 = pneg %p148
        %p740 = pneg %p145
        %p741 = pneg %p169
        %p742 = pneg %p166
        %p743 = pneg %p190
        %p744 = pneg %p187
        %p745 = pneg %p211
        %p746 = pneg %p208
        %p747 = pneg %p232
        %p748 = pneg %p229
        %p749 = pneg %p253
        %p750 = pneg %p250
        %p751 = pneg %p274
        %p752 = pneg %p271
        %p753 = pneg %p295
        %p754 = pneg %p292
        %p755 = pneg %p316
        %p756 = pneg %p313
        %p757 = pneg %p337
        %p758 = pneg %p334
        %p759 = pneg %p358
        %p760 = pneg %p355
        %p761 = pneg %p379
        %p762 = pneg %p376
        %p763 = pneg %p400
        %p764 = pneg %p397
        %p765 = pneg %p421
        %p766 = pneg %p418
        %p767 = pneg %p442
        %p768 = pneg %p439
        %p769 = pneg %p463
        %p770 = pneg %p460
        %p771 = pneg %p484
        %p772 = pneg %p481
        %p773 = pneg %p505
        %p774 = pneg %p502
        %p775 = pneg %p526
        %p776 = pneg %p523
        %p777 = pneg %p547
        %p778 = pneg %p544
        %p779 = pneg %p568
        %p780 = pneg %p565
        %p781 = pneg %p594
        %p782 = pneg %p591
        %s783 = sand.u32 %s581, 1
        %s784 = scalar_lea.sflag [#allocation4], %s783
        %s785 = sand.u32 %s581, 1
        %s786 = smul.addr %s785, 9
        %s787 = scalar_lea.vmem [#allocation3], %s786
        %p788 = pneg %p620
        %p789 = pneg %p617
        %p790 = scmp.lt.s32.totalorder %s43, 1
        %s791 = scalar_select %p790, %s43, 1
        %s792 = scalar_lea.vmem %s26, %s791
        %p793 = scmp.lt.s32.totalorder %s43, 1
        %s794 = scalar_select %p793, %s43, 1
        %s795 = smul.addr %s794, 2
        %s796 = smul.addr %s795, 4
        %s797 = scalar_lea.vmem %s0, %s796
        %p798 = scmp.lt.s32.totalorder %s43, 1
        %s799 = scalar_select %p798, %s43, 1
        %s800 = scalar_lea.vmem %s26, %s799
        %v802 = vld [vmem:[%s797] sm:$0x77]
        %v803 = vld [vmem:[%s1] sm:$0xf]
        %v804 = vld [vmem:[%s1 + $0x4] sm:$0xf]
        %v805 = vld [vmem:[%s1 + $0x8] sm:$0xf]
        %v806 = vld [vmem:[%s1 + $0xc] sm:$0xf]
        %v807 = vld [vmem:[%s1 + $0x10] sm:$0xf]
        %v808 = vld [vmem:[%s1 + $0x14] sm:$0xf]
        %v809 = vld [vmem:[%s1 + $0x18] sm:$0xf]
        %v810 = vld [vmem:[%s1 + $0x1c] sm:$0xf]
        %v812 = vcombine.high %v802, %v802
        %v814 = vpack.c.bf16 %v802, %v802
        %v815 = vpack.c.bf16 %v812, %v812
        %v816 = vld [vmem:[%s2] sm:$0xff]
        %v817 = vld [vmem:[%s2 + $0x8] sm:$0xff]
        %v818 = vld [vmem:[%s2 + $0x10] sm:$0xff]
        %v819 = vld [vmem:[%s2 + $0x18] sm:$0xff]
        %v820 = vld [vmem:[%s2 + $0x20] sm:$0xff]
        %v821 = vld [vmem:[%s2 + $0x28] sm:$0xff]
        %v822 = vld [vmem:[%s2 + $0x30] sm:$0xff]
        %v823 = vld [vmem:[%s2 + $0x38] sm:$0xff]
        %825 = vset.pattern.permute.xlu0 0
        %826 = vperm.xlu0 %825, %v816
        %v827 = vpop.permute.xlu0 %826
        %830 = vset.pattern.permute.xlu0 0
        %831 = vperm.xlu0 %830, %v817
        %v832 = vpop.permute.xlu0 %831
        %835 = vset.pattern.permute.xlu0 0
        %836 = vperm.xlu0 %835, %v818
        %v837 = vpop.permute.xlu0 %836
        %840 = vset.pattern.permute.xlu0 0
        %841 = vperm.xlu0 %840, %v819
        %v842 = vpop.permute.xlu0 %841
        %845 = vset.pattern.permute.xlu0 0
        %846 = vperm.xlu0 %845, %v820
        %v847 = vpop.permute.xlu0 %846
        %850 = vset.pattern.permute.xlu0 0
        %851 = vperm.xlu0 %850, %v821
        %v852 = vpop.permute.xlu0 %851
        %855 = vset.pattern.permute.xlu0 0
        %856 = vperm.xlu0 %855, %v822
        %v857 = vpop.permute.xlu0 %856
        %860 = vset.pattern.permute.xlu0 0
        %861 = vperm.xlu0 %860, %v823
        %v862 = vpop.permute.xlu0 %861
        %v872 = vunpack.c.l.b16 %v803
        %v873 = vunpack.c.l.b16 %v804
        %v874 = vunpack.c.l.b16 %v805
        %v875 = vunpack.c.l.b16 %v806
        %v876 = vunpack.c.l.b16 %v807
        %v877 = vunpack.c.l.b16 %v808
        %v878 = vunpack.c.l.b16 %v809
        %v879 = vunpack.c.l.b16 %v810
        %v880 = vpack.c.b16 %v873, %v872
        %v881 = vpack.c.b16 %v875, %v874
        %v882 = vpack.c.b16 %v877, %v876
        %v883 = vpack.c.b16 %v879, %v878
        %vm884 = vcmask 23552
        %v886 = vsel %vm884, %v880, 0
        %v889 = vsel %vm884, %v881, 0
        %v892 = vsel %vm884, %v882, 0
        %v895 = vsel %vm884, %v883, 0
        %vm897 = vcmask 1040384
        %vm898 = vcmask 1041408
        %v899 = vsel %vm897, 4294967295, 65535
        %v900 = vsel %vm898, %v899, 0
        %v902 = vand.u32 %v814, %v900
        %v905 = vand.u32 %v815, %v900
        %907 = vmatprep.subr.bf16.mxu0 %v905
        %908 = vmatpush1.bf16.msra.mxu0 %v902
        %909 = vmatprep.subr.bf16.mxu0 0
        %910 = vmatpush1.bf16.msra.mxu0 0
        %911 = vmatprep.subr.bf16.mxu0 0
        %912 = vmatpush1.bf16.msra.mxu0 0
        %913 = vmatprep.subr.bf16.mxu0 0
        %914 = vmatpush1.bf16.msra.mxu0 0
        %915 = vmatprep.subr.bf16.mxu0 0
        %916 = vmatpush1.bf16.msra.mxu0 0
        %917 = vmatprep.subr.bf16.mxu0 0
        %918 = vmatpush1.bf16.msra.mxu0 0
        %919 = vmatprep.subr.bf16.mxu0 0
        %920 = vmatpush1.bf16.msra.mxu0 0
        %921 = vmatprep.subr.bf16.mxu0 0
        %922 = vmatpush1.bf16.msra.mxu0 0
        %923 = vmatprep.subr.bf16.mxu0 0
        %924 = vmatpush1.bf16.msra.mxu0 0
        %925 = vmatprep.subr.bf16.mxu0 0
        %926 = vmatpush1.bf16.msra.mxu0 0
        %927 = vmatprep.subr.bf16.mxu0 0
        %928 = vmatpush1.bf16.msra.mxu0 0
        %929 = vmatprep.subr.bf16.mxu0 0
        %930 = vmatpush1.bf16.msra.mxu0 0
        %931 = vmatprep.subr.bf16.mxu0 0
        %932 = vmatpush1.bf16.msra.mxu0 0
        %933 = vmatprep.subr.bf16.mxu0 0
        %934 = vmatpush1.bf16.msra.mxu0 0
        %935 = vmatprep.subr.bf16.mxu0 0
        %936 = vmatpush1.bf16.msra.mxu0 0
        %937 = vmatprep.subr.bf16.mxu0 0
        %938 = vmatpush1.bf16.msra.mxu0 0
        %939 = vmatprep.mubr.bf16.mxu0 0
        %940 = vmatmul.mubr.bf16.gmra.mrb[0].mxu0 %v886
        %v941 = vpop.f32.mrb[0].mxu0
        %v942 = vadd.f32 %v827, %v941
        %v943 = vpop.f32.mrb[0].mxu0
        %v944 = vadd.f32 %v827, %v943
        %v945 = vpop.f32.mrb[0].mxu0
        %v946 = vadd.f32 %v832, %v945
        %v947 = vpop.f32.mrb[0].mxu0
        %v948 = vadd.f32 %v832, %v947
        %949 = vmatprep.mubr.bf16.mxu0 0
        %950 = vmatmul.mubr.bf16.gmra.mrb[0].mxu0 %v889
        %v951 = vpop.f32.mrb[0].mxu0
        %v952 = vadd.f32 %v837, %v951
        %v953 = vpop.f32.mrb[0].mxu0
        %v954 = vadd.f32 %v837, %v953
        %v955 = vpop.f32.mrb[0].mxu0
        %v956 = vadd.f32 %v842, %v955
        %v957 = vpop.f32.mrb[0].mxu0
        %v958 = vadd.f32 %v842, %v957
        %959 = vmatprep.mubr.bf16.mxu0 0
        %960 = vmatmul.mubr.bf16.gmra.mrb[0].mxu0 %v892
        %v961 = vpop.f32.mrb[0].mxu0
        %v962 = vadd.f32 %v847, %v961
        %v963 = vpop.f32.mrb[0].mxu0
        %v964 = vadd.f32 %v847, %v963
        %v965 = vpop.f32.mrb[0].mxu0
        %v966 = vadd.f32 %v852, %v965
        %v967 = vpop.f32.mrb[0].mxu0
        %v968 = vadd.f32 %v852, %v967
        %969 = vmatprep.mubr.bf16.mxu0 0
        %970 = vmatmul.mubr.bf16.gmra.mrb[0].mxu0 %v895
        %v971 = vpop.f32.mrb[0].mxu0
        %v972 = vadd.f32 %v857, %v971
        %v973 = vpop.f32.mrb[0].mxu0
        %v974 = vadd.f32 %v857, %v973
        %v975 = vpop.f32.mrb[0].mxu0
        %v976 = vadd.f32 %v862, %v975
        %v977 = vpop.f32.mrb[0].mxu0
        %v978 = vadd.f32 %v862, %v977
        %979 = vdwg.mxu0
        %v980 = vld [vmem:[%s3] sm:$0xff]
        %v981 = vld [vmem:[%s3 + $0x8] sm:$0xff]
        %v982 = vld [vmem:[%s3 + $0x10] sm:$0xff]
        %v983 = vld [vmem:[%s3 + $0x18] sm:$0xff]
        %v984 = vld [vmem:[%s3 + $0x20] sm:$0xff]
        %v985 = vld [vmem:[%s3 + $0x28] sm:$0xff]
        %v986 = vld [vmem:[%s3 + $0x30] sm:$0xff]
        %v987 = vld [vmem:[%s3 + $0x38] sm:$0xff]
        %v988 = vld [vmem:[%s4] sm:$0xff]
        %v989 = vld [vmem:[%s4 + $0x8] sm:$0xff]
        %v990 = vld [vmem:[%s4 + $0x10] sm:$0xff]
        %v991 = vld [vmem:[%s4 + $0x18] sm:$0xff]
        %v992 = vld [vmem:[%s4 + $0x20] sm:$0xff]
        %v993 = vld [vmem:[%s4 + $0x28] sm:$0xff]
        %v994 = vld [vmem:[%s4 + $0x30] sm:$0xff]
        %v995 = vld [vmem:[%s4 + $0x38] sm:$0xff]
        %v996 = vadd.f32 %v942, %v944
        %997 = vadd.xlane.f32.xlu0 %v996
        %v998 = vpop.xlane.xlu0 %997
        %v999 = vadd.f32 %v946, %v948
        %1000 = vadd.xlane.f32.xlu0 %v999
        %v1001 = vpop.xlane.xlu0 %1000
        %v1002 = vadd.f32 %v952, %v954
        %1003 = vadd.xlane.f32.xlu0 %v1002
        %v1004 = vpop.xlane.xlu0 %1003
        %v1005 = vadd.f32 %v956, %v958
        %1006 = vadd.xlane.f32.xlu0 %v1005
        %v1007 = vpop.xlane.xlu0 %1006
        %v1008 = vadd.f32 %v962, %v964
        %1009 = vadd.xlane.f32.xlu0 %v1008
        %v1010 = vpop.xlane.xlu0 %1009
        %v1011 = vadd.f32 %v966, %v968
        %1012 = vadd.xlane.f32.xlu0 %v1011
        %v1013 = vpop.xlane.xlu0 %1012
        %v1014 = vadd.f32 %v972, %v974
        %1015 = vadd.xlane.f32.xlu0 %v1014
        %v1016 = vpop.xlane.xlu0 %1015
        %v1017 = vadd.f32 %v976, %v978
        %1018 = vadd.xlane.f32.xlu0 %v1017
        %v1019 = vpop.xlane.xlu0 %1018
        %v1020 = vmul.f32 %v998, 0.00390625
        %v1021 = vmul.f32 %v1001, 0.00390625
        %v1022 = vmul.f32 %v1004, 0.00390625
        %v1023 = vmul.f32 %v1007, 0.00390625
        %v1024 = vmul.f32 %v1010, 0.00390625
        %v1025 = vmul.f32 %v1013, 0.00390625
        %v1026 = vmul.f32 %v1016, 0.00390625
        %v1027 = vmul.f32 %v1019, 0.00390625
        %v1028 = vmul.f32 %v942, %v942
        %v1029 = vmul.f32 %v944, %v944
        %v1030 = vmul.f32 %v946, %v946
        %v1031 = vmul.f32 %v948, %v948
        %v1032 = vmul.f32 %v952, %v952
        %v1033 = vmul.f32 %v954, %v954
        %v1034 = vmul.f32 %v956, %v956
        %v1035 = vmul.f32 %v958, %v958
        %v1036 = vmul.f32 %v962, %v962
        %v1037 = vmul.f32 %v964, %v964
        %v1038 = vmul.f32 %v966, %v966
        %v1039 = vmul.f32 %v968, %v968
        %v1040 = vmul.f32 %v972, %v972
        %v1041 = vmul.f32 %v974, %v974
        %v1042 = vmul.f32 %v976, %v976
        %v1043 = vmul.f32 %v978, %v978
        %v1044 = vadd.f32 %v1028, %v1029
        %1045 = vadd.xlane.f32.xlu0 %v1044
        %v1046 = vpop.xlane.xlu0 %1045
        %v1047 = vadd.f32 %v1030, %v1031
        %1048 = vadd.xlane.f32.xlu0 %v1047
        %v1049 = vpop.xlane.xlu0 %1048
        %v1050 = vadd.f32 %v1032, %v1033
        %1051 = vadd.xlane.f32.xlu0 %v1050
        %v1052 = vpop.xlane.xlu0 %1051
        %v1053 = vadd.f32 %v1034, %v1035
        %1054 = vadd.xlane.f32.xlu0 %v1053
        %v1055 = vpop.xlane.xlu0 %1054
        %v1056 = vadd.f32 %v1036, %v1037
        %1057 = vadd.xlane.f32.xlu0 %v1056
        %v1058 = vpop.xlane.xlu0 %1057
        %v1059 = vadd.f32 %v1038, %v1039
        %1060 = vadd.xlane.f32.xlu0 %v1059
        %v1061 = vpop.xlane.xlu0 %1060
        %v1062 = vadd.f32 %v1040, %v1041
        %1063 = vadd.xlane.f32.xlu0 %v1062
        %v1064 = vpop.xlane.xlu0 %1063
        %v1065 = vadd.f32 %v1042, %v1043
        %1066 = vadd.xlane.f32.xlu0 %v1065
        %v1067 = vpop.xlane.xlu0 %1066
        %v1068 = vmul.f32 %v1046, 0.00390625
        %v1069 = vmul.f32 %v1049, 0.00390625
        %v1070 = vmul.f32 %v1052, 0.00390625
        %v1071 = vmul.f32 %v1055, 0.00390625
        %v1072 = vmul.f32 %v1058, 0.00390625
        %v1073 = vmul.f32 %v1061, 0.00390625
        %v1074 = vmul.f32 %v1064, 0.00390625
        %v1075 = vmul.f32 %v1067, 0.00390625
        %v1076 = vmul.f32 %v1020, %v1020
        %v1077 = vmul.f32 %v1021, %v1021
        %v1078 = vmul.f32 %v1022, %v1022
        %v1079 = vmul.f32 %v1023, %v1023
        %v1080 = vmul.f32 %v1024, %v1024
        %v1081 = vmul.f32 %v1025, %v1025
        %v1082 = vmul.f32 %v1026, %v1026
        %v1083 = vmul.f32 %v1027, %v1027
        %v1084 = vsub.f32 %v1068, %v1076
        %v1085 = vsub.f32 %v1069, %v1077
        %v1086 = vsub.f32 %v1070, %v1078
        %v1087 = vsub.f32 %v1071, %v1079
        %v1088 = vsub.f32 %v1072, %v1080
        %v1089 = vsub.f32 %v1073, %v1081
        %v1090 = vsub.f32 %v1074, %v1082
        %v1091 = vsub.f32 %v1075, %v1083
        %v1092 = vmax.f32 %v1084, 0.0
        %v1093 = vmax.f32 %v1085, 0.0
        %v1094 = vmax.f32 %v1086, 0.0
        %v1095 = vmax.f32 %v1087, 0.0
        %v1096 = vmax.f32 %v1088, 0.0
        %v1097 = vmax.f32 %v1089, 0.0
        %v1098 = vmax.f32 %v1090, 0.0
        %v1099 = vmax.f32 %v1091, 0.0
        %v1100 = vsub.f32 %v942, %v1020
        %v1101 = vsub.f32 %v944, %v1020
        %v1102 = vsub.f32 %v946, %v1021
        %v1103 = vsub.f32 %v948, %v1021
        %v1104 = vsub.f32 %v952, %v1022
        %v1105 = vsub.f32 %v954, %v1022
        %v1106 = vsub.f32 %v956, %v1023
        %v1107 = vsub.f32 %v958, %v1023
        %v1108 = vsub.f32 %v962, %v1024
        %v1109 = vsub.f32 %v964, %v1024
        %v1110 = vsub.f32 %v966, %v1025
        %v1111 = vsub.f32 %v968, %v1025
        %v1112 = vsub.f32 %v972, %v1026
        %v1113 = vsub.f32 %v974, %v1026
        %v1114 = vsub.f32 %v976, %v1027
        %v1115 = vsub.f32 %v978, %v1027
        %v1116 = vadd.f32 %v1092, 1e-05
        %v1117 = vadd.f32 %v1093, 1e-05
        %v1118 = vadd.f32 %v1094, 1e-05
        %v1119 = vadd.f32 %v1095, 1e-05
        %v1120 = vadd.f32 %v1096, 1e-05
        %v1121 = vadd.f32 %v1097, 1e-05
        %v1122 = vadd.f32 %v1098, 1e-05
        %v1123 = vadd.f32 %v1099, 1e-05
        %v1124 = vrsqrt.pop %v1116
        %v1125 = vrsqrt.pop %v1117
        %v1126 = vrsqrt.pop %v1118
        %v1127 = vrsqrt.pop %v1119
        %v1128 = vrsqrt.pop %v1120
        %v1129 = vrsqrt.pop %v1121
        %v1130 = vrsqrt.pop %v1122
        %v1131 = vrsqrt.pop %v1123
        %v1132 = vmul.f32 %v1100, %v1124
        %v1133 = vmul.f32 %v1101, %v1124
        %v1134 = vmul.f32 %v1102, %v1125
        %v1135 = vmul.f32 %v1103, %v1125
        %v1136 = vmul.f32 %v1104, %v1126
        %v1137 = vmul.f32 %v1105, %v1126
        %v1138 = vmul.f32 %v1106, %v1127
        %v1139 = vmul.f32 %v1107, %v1127
        %v1140 = vmul.f32 %v1108, %v1128
        %v1141 = vmul.f32 %v1109, %v1128
        %v1142 = vmul.f32 %v1110, %v1129
        %v1143 = vmul.f32 %v1111, %v1129
        %v1144 = vmul.f32 %v1112, %v1130
        %v1145 = vmul.f32 %v1113, %v1130
        %v1146 = vmul.f32 %v1114, %v1131
        %v1147 = vmul.f32 %v1115, %v1131
        %1149 = vset.pattern.permute.xlu0 0
        %1150 = vperm.xlu0 %1149, %v980
        %v1151 = vpop.permute.xlu0 %1150
        %1154 = vset.pattern.permute.xlu0 0
        %1155 = vperm.xlu0 %1154, %v981
        %v1156 = vpop.permute.xlu0 %1155
        %1159 = vset.pattern.permute.xlu0 0
        %1160 = vperm.xlu0 %1159, %v982
        %v1161 = vpop.permute.xlu0 %1160
        %1164 = vset.pattern.permute.xlu0 0
        %1165 = vperm.xlu0 %1164, %v983
        %v1166 = vpop.permute.xlu0 %1165
        %1169 = vset.pattern.permute.xlu0 0
        %1170 = vperm.xlu0 %1169, %v984
        %v1171 = vpop.permute.xlu0 %1170
        %1174 = vset.pattern.permute.xlu0 0
        %1175 = vperm.xlu0 %1174, %v985
        %v1176 = vpop.permute.xlu0 %1175
        %1179 = vset.pattern.permute.xlu0 0
        %1180 = vperm.xlu0 %1179, %v986
        %v1181 = vpop.permute.xlu0 %1180
        %1184 = vset.pattern.permute.xlu0 0
        %1185 = vperm.xlu0 %1184, %v987
        %v1186 = vpop.permute.xlu0 %1185
        %v1188 = vmul.f32 %v1132, %v1151
        %v1189 = vmul.f32 %v1133, %v1151
        %v1190 = vmul.f32 %v1134, %v1156
        %v1191 = vmul.f32 %v1135, %v1156
        %v1192 = vmul.f32 %v1136, %v1161
        %v1193 = vmul.f32 %v1137, %v1161
        %v1194 = vmul.f32 %v1138, %v1166
        %v1195 = vmul.f32 %v1139, %v1166
        %v1196 = vmul.f32 %v1140, %v1171
        %v1197 = vmul.f32 %v1141, %v1171
        %v1198 = vmul.f32 %v1142, %v1176
        %v1199 = vmul.f32 %v1143, %v1176
        %v1200 = vmul.f32 %v1144, %v1181
        %v1201 = vmul.f32 %v1145, %v1181
        %v1202 = vmul.f32 %v1146, %v1186
        %v1203 = vmul.f32 %v1147, %v1186
        %1205 = vset.pattern.permute.xlu0 0
        %1206 = vperm.xlu0 %1205, %v988
        %v1207 = vpop.permute.xlu0 %1206
        %1210 = vset.pattern.permute.xlu0 0
        %1211 = vperm.xlu0 %1210, %v989
        %v1212 = vpop.permute.xlu0 %1211
        %1215 = vset.pattern.permute.xlu0 0
        %1216 = vperm.xlu0 %1215, %v990
        %v1217 = vpop.permute.xlu0 %1216
        %1220 = vset.pattern.permute.xlu0 0
        %1221 = vperm.xlu0 %1220, %v991
        %v1222 = vpop.permute.xlu0 %1221
        %1225 = vset.pattern.permute.xlu0 0
        %1226 = vperm.xlu0 %1225, %v992
        %v1227 = vpop.permute.xlu0 %1226
        %1230 = vset.pattern.permute.xlu0 0
        %1231 = vperm.xlu0 %1230, %v993
        %v1232 = vpop.permute.xlu0 %1231
        %1235 = vset.pattern.permute.xlu0 0
        %1236 = vperm.xlu0 %1235, %v994
        %v1237 = vpop.permute.xlu0 %1236
        %1240 = vset.pattern.permute.xlu0 0
        %1241 = vperm.xlu0 %1240, %v995
        %v1242 = vpop.permute.xlu0 %1241
        %v1244 = vadd.f32 %v1188, %v1207
        %v1245 = vadd.f32 %v1189, %v1207
        %v1246 = vadd.f32 %v1190, %v1212
        %v1247 = vadd.f32 %v1191, %v1212
        %v1248 = vadd.f32 %v1192, %v1217
        %v1249 = vadd.f32 %v1193, %v1217
        %v1250 = vadd.f32 %v1194, %v1222
        %v1251 = vadd.f32 %v1195, %v1222
        %v1252 = vadd.f32 %v1196, %v1227
        %v1253 = vadd.f32 %v1197, %v1227
        %v1254 = vadd.f32 %v1198, %v1232
        %v1255 = vadd.f32 %v1199, %v1232
        %v1256 = vadd.f32 %v1200, %v1237
        %v1257 = vadd.f32 %v1201, %v1237
        %v1258 = vadd.f32 %v1202, %v1242
        %v1259 = vadd.f32 %v1203, %v1242
        %v1260 = vmul.f32 %v1244, 0.01
        %v1261 = vmul.f32 %v1245, 0.01
        %v1262 = vmul.f32 %v1246, 0.01
        %v1263 = vmul.f32 %v1247, 0.01
        %v1264 = vmul.f32 %v1248, 0.01
        %v1265 = vmul.f32 %v1249, 0.01
        %v1266 = vmul.f32 %v1250, 0.01
        %v1267 = vmul.f32 %v1251, 0.01
        %v1268 = vmul.f32 %v1252, 0.01
        %v1269 = vmul.f32 %v1253, 0.01
        %v1270 = vmul.f32 %v1254, 0.01
        %v1271 = vmul.f32 %v1255, 0.01
        %v1272 = vmul.f32 %v1256, 0.01
        %v1273 = vmul.f32 %v1257, 0.01
        %v1274 = vmul.f32 %v1258, 0.01
        %v1275 = vmul.f32 %v1259, 0.01
        %v1276 = vmax.f32 %v1244, %v1260
        %v1277 = vmax.f32 %v1245, %v1261
        %v1278 = vmax.f32 %v1246, %v1262
        %v1279 = vmax.f32 %v1247, %v1263
        %v1280 = vmax.f32 %v1248, %v1264
        %v1281 = vmax.f32 %v1249, %v1265
        %v1282 = vmax.f32 %v1250, %v1266
        %v1283 = vmax.f32 %v1251, %v1267
        %v1284 = vmax.f32 %v1252, %v1268
        %v1285 = vmax.f32 %v1253, %v1269
        %v1286 = vmax.f32 %v1254, %v1270
        %v1287 = vmax.f32 %v1255, %v1271
        %v1288 = vmax.f32 %v1256, %v1272
        %v1289 = vmax.f32 %v1257, %v1273
        %v1290 = vmax.f32 %v1258, %v1274
        %v1291 = vmax.f32 %v1259, %v1275
        %v1292 = vpack.c.bf16 %v1278, %v1276
        %v1293 = vpack.c.bf16 %v1279, %v1277
        %v1294 = vpack.c.bf16 %v1282, %v1280
        %v1295 = vpack.c.bf16 %v1283, %v1281
        %v1296 = vpack.c.bf16 %v1286, %v1284
        %v1297 = vpack.c.bf16 %v1287, %v1285
        %v1298 = vpack.c.bf16 %v1290, %v1288
        %v1299 = vpack.c.bf16 %v1291, %v1289
        %v1300 = vld [vmem:[%s5] sm:$0xf]
        %v1301 = vld [vmem:[%s5 + $0x4] sm:$0xf]
        %v1302 = vld [vmem:[%s5 + $0x8] sm:$0xf]
        %v1303 = vld [vmem:[%s5 + $0xc] sm:$0xf]
        %v1304 = vld [vmem:[%s5 + $0x10] sm:$0xf]
        %v1305 = vld [vmem:[%s5 + $0x14] sm:$0xf]
        %v1306 = vld [vmem:[%s5 + $0x18] sm:$0xf]
        %v1307 = vld [vmem:[%s5 + $0x1c] sm:$0xf]
        %v1308 = vld [vmem:[%s5 + $0x20] sm:$0xf]
        %v1309 = vld [vmem:[%s5 + $0x24] sm:$0xf]
        %v1310 = vld [vmem:[%s5 + $0x28] sm:$0xf]
        %v1311 = vld [vmem:[%s5 + $0x2c] sm:$0xf]
        %v1312 = vld [vmem:[%s5 + $0x30] sm:$0xf]
        %v1313 = vld [vmem:[%s5 + $0x34] sm:$0xf]
        %v1314 = vld [vmem:[%s5 + $0x38] sm:$0xf]
        %v1315 = vld [vmem:[%s5 + $0x3c] sm:$0xf]
        %v1316 = vld [vmem:[%s6] sm:$0xff]
        %v1317 = vld [vmem:[%s6 + $0x8] sm:$0xff]
        %v1318 = vld [vmem:[%s6 + $0x10] sm:$0xff]
        %v1319 = vld [vmem:[%s6 + $0x18] sm:$0xff]
        %v1320 = vld [vmem:[%s6 + $0x20] sm:$0xff]
        %v1321 = vld [vmem:[%s6 + $0x28] sm:$0xff]
        %v1322 = vld [vmem:[%s6 + $0x30] sm:$0xff]
        %v1323 = vld [vmem:[%s6 + $0x38] sm:$0xff]
        %v1324 = vld [vmem:[%s6 + $0x40] sm:$0xff]
        %v1325 = vld [vmem:[%s6 + $0x48] sm:$0xff]
        %v1326 = vld [vmem:[%s6 + $0x50] sm:$0xff]
        %v1327 = vld [vmem:[%s6 + $0x58] sm:$0xff]
        %v1328 = vld [vmem:[%s6 + $0x60] sm:$0xff]
        %v1329 = vld [vmem:[%s6 + $0x68] sm:$0xff]
        %v1330 = vld [vmem:[%s6 + $0x70] sm:$0xff]
        %v1331 = vld [vmem:[%s6 + $0x78] sm:$0xff]
        %1333 = vset.pattern.permute.xlu0 0
        %1334 = vperm.xlu0 %1333, %v1316
        %v1335 = vpop.permute.xlu0 %1334
        %1338 = vset.pattern.permute.xlu0 0
        %1339 = vperm.xlu0 %1338, %v1317
        %v1340 = vpop.permute.xlu0 %1339
        %1343 = vset.pattern.permute.xlu0 0
        %1344 = vperm.xlu0 %1343, %v1318
        %v1345 = vpop.permute.xlu0 %1344
        %1348 = vset.pattern.permute.xlu0 0
        %1349 = vperm.xlu0 %1348, %v1319
        %v1350 = vpop.permute.xlu0 %1349
        %1353 = vset.pattern.permute.xlu0 0
        %1354 = vperm.xlu0 %1353, %v1320
        %v1355 = vpop.permute.xlu0 %1354
        %1358 = vset.pattern.permute.xlu0 0
        %1359 = vperm.xlu0 %1358, %v1321
        %v1360 = vpop.permute.xlu0 %1359
        %1363 = vset.pattern.permute.xlu0 0
        %1364 = vperm.xlu0 %1363, %v1322
        %v1365 = vpop.permute.xlu0 %1364
        %1368 = vset.pattern.permute.xlu0 0
        %1369 = vperm.xlu0 %1368, %v1323
        %v1370 = vpop.permute.xlu0 %1369
        %1373 = vset.pattern.permute.xlu0 0
        %1374 = vperm.xlu0 %1373, %v1324
        %v1375 = vpop.permute.xlu0 %1374
        %1378 = vset.pattern.permute.xlu0 0
        %1379 = vperm.xlu0 %1378, %v1325
        %v1380 = vpop.permute.xlu0 %1379
        %1383 = vset.pattern.permute.xlu0 0
        %1384 = vperm.xlu0 %1383, %v1326
        %v1385 = vpop.permute.xlu0 %1384
        %1388 = vset.pattern.permute.xlu0 0
        %1389 = vperm.xlu0 %1388, %v1327
        %v1390 = vpop.permute.xlu0 %1389
        %1393 = vset.pattern.permute.xlu0 0
        %1394 = vperm.xlu0 %1393, %v1328
        %v1395 = vpop.permute.xlu0 %1394
        %1398 = vset.pattern.permute.xlu0 0
        %1399 = vperm.xlu0 %1398, %v1329
        %v1400 = vpop.permute.xlu0 %1399
        %1403 = vset.pattern.permute.xlu0 0
        %1404 = vperm.xlu0 %1403, %v1330
        %v1405 = vpop.permute.xlu0 %1404
        %1408 = vset.pattern.permute.xlu0 0
        %1409 = vperm.xlu0 %1408, %v1331
        %v1410 = vpop.permute.xlu0 %1409
        %v1428 = vunpack.c.l.b16 %v1300
        %v1429 = vunpack.c.l.b16 %v1301
        %v1430 = vunpack.c.l.b16 %v1302
        %v1431 = vunpack.c.l.b16 %v1303
        %v1432 = vunpack.c.l.b16 %v1304
        %v1433 = vunpack.c.l.b16 %v1305
        %v1434 = vunpack.c.l.b16 %v1306
        %v1435 = vunpack.c.l.b16 %v1307
        %v1436 = vunpack.c.l.b16 %v1308
        %v1437 = vunpack.c.l.b16 %v1309
        %v1438 = vunpack.c.l.b16 %v1310
        %v1439 = vunpack.c.l.b16 %v1311
        %v1440 = vunpack.c.l.b16 %v1312
        %v1441 = vunpack.c.l.b16 %v1313
        %v1442 = vunpack.c.l.b16 %v1314
        %v1443 = vunpack.c.l.b16 %v1315
        %v1444 = vpack.c.b16 %v1429, %v1428
        %v1445 = vpack.c.b16 %v1431, %v1430
        %v1446 = vpack.c.b16 %v1433, %v1432
        %v1447 = vpack.c.b16 %v1435, %v1434
        %v1448 = vpack.c.b16 %v1437, %v1436
        %v1449 = vpack.c.b16 %v1439, %v1438
        %v1450 = vpack.c.b16 %v1441, %v1440
        %v1451 = vpack.c.b16 %v1443, %v1442
        %vm1452 = vcmask 523264
        %v1454 = vsel %vm1452, %v1444, 0
        %v1457 = vsel %vm1452, %v1445, 0
        %v1460 = vsel %vm1452, %v1446, 0
        %v1463 = vsel %vm1452, %v1447, 0
        %v1466 = vsel %vm1452, %v1448, 0
        %v1469 = vsel %vm1452, %v1449, 0
        %v1472 = vsel %vm1452, %v1450, 0
        %v1475 = vsel %vm1452, %v1451, 0
        %1477 = vmatprep.subr.bf16.mxu0 %v1293
        %1478 = vmatpush1.bf16.msra.mxu0 %v1292
        %1479 = vmatprep.subr.bf16.mxu0 %v1295
        %1480 = vmatpush1.bf16.msra.mxu0 %v1294
        %1481 = vmatprep.subr.bf16.mxu0 %v1297
        %1482 = vmatpush1.bf16.msra.mxu0 %v1296
        %1483 = vmatprep.subr.bf16.mxu0 %v1299
        %1484 = vmatpush1.bf16.msra.mxu0 %v1298
        %1485 = vmatprep.subr.bf16.mxu0 0
        %1486 = vmatpush1.bf16.msra.mxu0 0
        %1487 = vmatprep.subr.bf16.mxu0 0
        %1488 = vmatpush1.bf16.msra.mxu0 0
        %1489 = vmatprep.subr.bf16.mxu0 0
        %1490 = vmatpush1.bf16.msra.mxu0 0
        %1491 = vmatprep.subr.bf16.mxu0 0
        %1492 = vmatpush1.bf16.msra.mxu0 0
        %1493 = vmatprep.subr.bf16.mxu0 0
        %1494 = vmatpush1.bf16.msra.mxu0 0
        %1495 = vmatprep.subr.bf16.mxu0 0
        %1496 = vmatpush1.bf16.msra.mxu0 0
        %1497 = vmatprep.subr.bf16.mxu0 0
        %1498 = vmatpush1.bf16.msra.mxu0 0
        %1499 = vmatprep.subr.bf16.mxu0 0
        %1500 = vmatpush1.bf16.msra.mxu0 0
        %1501 = vmatprep.subr.bf16.mxu0 0
        %1502 = vmatpush1.bf16.msra.mxu0 0
        %1503 = vmatprep.subr.bf16.mxu0 0
        %1504 = vmatpush1.bf16.msra.mxu0 0
        %1505 = vmatprep.subr.bf16.mxu0 0
        %1506 = vmatpush1.bf16.msra.mxu0 0
        %1507 = vmatprep.subr.bf16.mxu0 0
        %1508 = vmatpush1.bf16.msra.mxu0 0
        %1509 = vmatprep.mubr.bf16.mxu0 0
        %1510 = vmatmul.mubr.bf16.gmra.mrb[0].mxu0 %v1454
        %v1511 = vpop.f32.mrb[0].mxu0
        %v1512 = vadd.f32 %v1335, %v1511
        %v1513 = vpop.f32.mrb[0].mxu0
        %v1514 = vadd.f32 %v1335, %v1513
        %v1515 = vpop.f32.mrb[0].mxu0
        %v1516 = vadd.f32 %v1340, %v1515
        %v1517 = vpop.f32.mrb[0].mxu0
        %v1518 = vadd.f32 %v1340, %v1517
        %1519 = vmatprep.mubr.bf16.mxu0 0
        %1520 = vmatmul.mubr.bf16.gmra.mrb[0].mxu0 %v1457
        %v1521 = vpop.f32.mrb[0].mxu0
        %v1522 = vadd.f32 %v1345, %v1521
        %v1523 = vpop.f32.mrb[0].mxu0
        %v1524 = vadd.f32 %v1345, %v1523
        %v1525 = vpop.f32.mrb[0].mxu0
        %v1526 = vadd.f32 %v1350, %v1525
        %v1527 = vpop.f32.mrb[0].mxu0
        %v1528 = vadd.f32 %v1350, %v1527
        %1529 = vmatprep.mubr.bf16.mxu0 0
        %1530 = vmatmul.mubr.bf16.gmra.mrb[0].mxu0 %v1460
        %v1531 = vpop.f32.mrb[0].mxu0
        %v1532 = vadd.f32 %v1355, %v1531
        %v1533 = vpop.f32.mrb[0].mxu0
        %v1534 = vadd.f32 %v1355, %v1533
        %v1535 = vpop.f32.mrb[0].mxu0
        %v1536 = vadd.f32 %v1360, %v1535
        %v1537 = vpop.f32.mrb[0].mxu0
        %v1538 = vadd.f32 %v1360, %v1537
        %1539 = vmatprep.mubr.bf16.mxu0 0
        %1540 = vmatmul.mubr.bf16.gmra.mrb[0].mxu0 %v1463
        %v1541 = vpop.f32.mrb[0].mxu0
        %v1542 = vadd.f32 %v1365, %v1541
        %v1543 = vpop.f32.mrb[0].mxu0
        %v1544 = vadd.f32 %v1365, %v1543
        %v1545 = vpop.f32.mrb[0].mxu0
        %v1546 = vadd.f32 %v1370, %v1545
        %v1547 = vpop.f32.mrb[0].mxu0
        %v1548 = vadd.f32 %v1370, %v1547
        %1549 = vmatprep.mubr.bf16.mxu0 0
        %1550 = vmatmul.mubr.bf16.gmra.mrb[0].mxu0 %v1466
        %v1551 = vpop.f32.mrb[0].mxu0
        %v1552 = vadd.f32 %v1375, %v1551
        %v1553 = vpop.f32.mrb[0].mxu0
        %v1554 = vadd.f32 %v1375, %v1553
        %v1555 = vpop.f32.mrb[0].mxu0
        %v1556 = vadd.f32 %v1380, %v1555
        %v1557 = vpop.f32.mrb[0].mxu0
        %v1558 = vadd.f32 %v1380, %v1557
        %1559 = vmatprep.mubr.bf16.mxu0 0
        %1560 = vmatmul.mubr.bf16.gmra.mrb[0].mxu0 %v1469
        %v1561 = vpop.f32.mrb[0].mxu0
        %v1562 = vadd.f32 %v1385, %v1561
        %v1563 = vpop.f32.mrb[0].mxu0
        %v1564 = vadd.f32 %v1385, %v1563
        %v1565 = vpop.f32.mrb[0].mxu0
        %v1566 = vadd.f32 %v1390, %v1565
        %v1567 = vpop.f32.mrb[0].mxu0
        %v1568 = vadd.f32 %v1390, %v1567
        %1569 = vmatprep.mubr.bf16.mxu0 0
        %1570 = vmatmul.mubr.bf16.gmra.mrb[0].mxu0 %v1472
        %v1571 = vpop.f32.mrb[0].mxu0
        %v1572 = vadd.f32 %v1395, %v1571
        %v1573 = vpop.f32.mrb[0].mxu0
        %v1574 = vadd.f32 %v1395, %v1573
        %v1575 = vpop.f32.mrb[0].mxu0
        %v1576 = vadd.f32 %v1400, %v1575
        %v1577 = vpop.f32.mrb[0].mxu0
        %v1578 = vadd.f32 %v1400, %v1577
        %1579 = vmatprep.mubr.bf16.mxu0 0
        %1580 = vmatmul.mubr.bf16.gmra.mrb[0].mxu0 %v1475
        %v1581 = vpop.f32.mrb[0].mxu0
        %v1582 = vadd.f32 %v1405, %v1581
        %v1583 = vpop.f32.mrb[0].mxu0
        %v1584 = vadd.f32 %v1405, %v1583
        %v1585 = vpop.f32.mrb[0].mxu0
        %v1586 = vadd.f32 %v1410, %v1585
        %v1587 = vpop.f32.mrb[0].mxu0
        %v1588 = vadd.f32 %v1410, %v1587
        %1589 = vdwg.mxu0
        %v1590 = vmul.f32 %v1512, 0.01
        %v1591 = vmul.f32 %v1514, 0.01
        %v1592 = vmul.f32 %v1516, 0.01
        %v1593 = vmul.f32 %v1518, 0.01
        %v1594 = vmul.f32 %v1522, 0.01
        %v1595 = vmul.f32 %v1524, 0.01
        %v1596 = vmul.f32 %v1526, 0.01
        %v1597 = vmul.f32 %v1528, 0.01
        %v1598 = vmul.f32 %v1532, 0.01
        %v1599 = vmul.f32 %v1534, 0.01
        %v1600 = vmul.f32 %v1536, 0.01
        %v1601 = vmul.f32 %v1538, 0.01
        %v1602 = vmul.f32 %v1542, 0.01
        %v1603 = vmul.f32 %v1544, 0.01
        %v1604 = vmul.f32 %v1546, 0.01
        %v1605 = vmul.f32 %v1548, 0.01
        %v1606 = vmul.f32 %v1552, 0.01
        %v1607 = vmul.f32 %v1554, 0.01
        %v1608 = vmul.f32 %v1556, 0.01
        %v1609 = vmul.f32 %v1558, 0.01
        %v1610 = vmul.f32 %v1562, 0.01
        %v1611 = vmul.f32 %v1564, 0.01
        %v1612 = vmul.f32 %v1566, 0.01
        %v1613 = vmul.f32 %v1568, 0.01
        %v1614 = vmul.f32 %v1572, 0.01
        %v1615 = vmul.f32 %v1574, 0.01
        %v1616 = vmul.f32 %v1576, 0.01
        %v1617 = vmul.f32 %v1578, 0.01
        %v1618 = vmul.f32 %v1582, 0.01
        %v1619 = vmul.f32 %v1584, 0.01
        %v1620 = vmul.f32 %v1586, 0.01
        %v1621 = vmul.f32 %v1588, 0.01
        %v1622 = vmax.f32 %v1512, %v1590
        %v1623 = vmax.f32 %v1514, %v1591
        %v1624 = vmax.f32 %v1516, %v1592
        %v1625 = vmax.f32 %v1518, %v1593
        %v1626 = vmax.f32 %v1522, %v1594
        %v1627 = vmax.f32 %v1524, %v1595
        %v1628 = vmax.f32 %v1526, %v1596
        %v1629 = vmax.f32 %v1528, %v1597
        %v1630 = vmax.f32 %v1532, %v1598
        %v1631 = vmax.f32 %v1534, %v1599
        %v1632 = vmax.f32 %v1536, %v1600
        %v1633 = vmax.f32 %v1538, %v1601
        %v1634 = vmax.f32 %v1542, %v1602
        %v1635 = vmax.f32 %v1544, %v1603
        %v1636 = vmax.f32 %v1546, %v1604
        %v1637 = vmax.f32 %v1548, %v1605
        %v1638 = vmax.f32 %v1552, %v1606
        %v1639 = vmax.f32 %v1554, %v1607
        %v1640 = vmax.f32 %v1556, %v1608
        %v1641 = vmax.f32 %v1558, %v1609
        %v1642 = vmax.f32 %v1562, %v1610
        %v1643 = vmax.f32 %v1564, %v1611
        %v1644 = vmax.f32 %v1566, %v1612
        %v1645 = vmax.f32 %v1568, %v1613
        %v1646 = vmax.f32 %v1572, %v1614
        %v1647 = vmax.f32 %v1574, %v1615
        %v1648 = vmax.f32 %v1576, %v1616
        %v1649 = vmax.f32 %v1578, %v1617
        %v1650 = vmax.f32 %v1582, %v1618
        %v1651 = vmax.f32 %v1584, %v1619
        %v1652 = vmax.f32 %v1586, %v1620
        %v1653 = vmax.f32 %v1588, %v1621
        %v1654 = vld [vmem:[%s7] sm:$0xff]
        %v1655 = vld [vmem:[%s7 + $0x8] sm:$0xff]
        %v1656 = vld [vmem:[%s7 + $0x10] sm:$0xff]
        %v1657 = vld [vmem:[%s7 + $0x18] sm:$0xff]
        %v1658 = vld [vmem:[%s7 + $0x20] sm:$0xff]
        %v1659 = vld [vmem:[%s7 + $0x28] sm:$0xff]
        %v1660 = vld [vmem:[%s7 + $0x30] sm:$0xff]
        %v1661 = vld [vmem:[%s7 + $0x38] sm:$0xff]
        %v1662 = vld [vmem:[%s7 + $0x40] sm:$0xff]
        %v1663 = vld [vmem:[%s7 + $0x48] sm:$0xff]
        %v1664 = vld [vmem:[%s7 + $0x50] sm:$0xff]
        %v1665 = vld [vmem:[%s7 + $0x58] sm:$0xff]
        %v1666 = vld [vmem:[%s7 + $0x60] sm:$0xff]
        %v1667 = vld [vmem:[%s7 + $0x68] sm:$0xff]
        %v1668 = vld [vmem:[%s7 + $0x70] sm:$0xff]
        %v1669 = vld [vmem:[%s7 + $0x78] sm:$0xff]
        %v1670 = vld [vmem:[%s8] sm:$0xff]
        %v1671 = vld [vmem:[%s8 + $0x8] sm:$0xff]
        %v1672 = vld [vmem:[%s8 + $0x10] sm:$0xff]
        %v1673 = vld [vmem:[%s8 + $0x18] sm:$0xff]
        %v1674 = vld [vmem:[%s8 + $0x20] sm:$0xff]
        %v1675 = vld [vmem:[%s8 + $0x28] sm:$0xff]
        %v1676 = vld [vmem:[%s8 + $0x30] sm:$0xff]
        %v1677 = vld [vmem:[%s8 + $0x38] sm:$0xff]
        %v1678 = vld [vmem:[%s8 + $0x40] sm:$0xff]
        %v1679 = vld [vmem:[%s8 + $0x48] sm:$0xff]
        %v1680 = vld [vmem:[%s8 + $0x50] sm:$0xff]
        %v1681 = vld [vmem:[%s8 + $0x58] sm:$0xff]
        %v1682 = vld [vmem:[%s8 + $0x60] sm:$0xff]
        %v1683 = vld [vmem:[%s8 + $0x68] sm:$0xff]
        %v1684 = vld [vmem:[%s8 + $0x70] sm:$0xff]
        %v1685 = vld [vmem:[%s8 + $0x78] sm:$0xff]
        %v1686 = vadd.f32 %v1622, %v1623
        %1687 = vadd.xlane.f32.xlu0 %v1686
        %v1688 = vpop.xlane.xlu0 %1687
        %v1689 = vadd.f32 %v1624, %v1625
        %1690 = vadd.xlane.f32.xlu0 %v1689
        %v1691 = vpop.xlane.xlu0 %1690
        %v1692 = vadd.f32 %v1626, %v1627
        %1693 = vadd.xlane.f32.xlu0 %v1692
        %v1694 = vpop.xlane.xlu0 %1693
        %v1695 = vadd.f32 %v1628, %v1629
        %1696 = vadd.xlane.f32.xlu0 %v1695
        %v1697 = vpop.xlane.xlu0 %1696
        %v1698 = vadd.f32 %v1630, %v1631
        %1699 = vadd.xlane.f32.xlu0 %v1698
        %v1700 = vpop.xlane.xlu0 %1699
        %v1701 = vadd.f32 %v1632, %v1633
        %1702 = vadd.xlane.f32.xlu0 %v1701
        %v1703 = vpop.xlane.xlu0 %1702
        %v1704 = vadd.f32 %v1634, %v1635
        %1705 = vadd.xlane.f32.xlu0 %v1704
        %v1706 = vpop.xlane.xlu0 %1705
        %v1707 = vadd.f32 %v1636, %v1637
        %1708 = vadd.xlane.f32.xlu0 %v1707
        %v1709 = vpop.xlane.xlu0 %1708
        %v1710 = vadd.f32 %v1638, %v1639
        %1711 = vadd.xlane.f32.xlu0 %v1710
        %v1712 = vpop.xlane.xlu0 %1711
        %v1713 = vadd.f32 %v1640, %v1641
        %1714 = vadd.xlane.f32.xlu0 %v1713
        %v1715 = vpop.xlane.xlu0 %1714
        %v1716 = vadd.f32 %v1642, %v1643
        %1717 = vadd.xlane.f32.xlu0 %v1716
        %v1718 = vpop.xlane.xlu0 %1717
        %v1719 = vadd.f32 %v1644, %v1645
        %1720 = vadd.xlane.f32.xlu0 %v1719
        %v1721 = vpop.xlane.xlu0 %1720
        %v1722 = vadd.f32 %v1646, %v1647
        %1723 = vadd.xlane.f32.xlu0 %v1722
        %v1724 = vpop.xlane.xlu0 %1723
        %v1725 = vadd.f32 %v1648, %v1649
        %1726 = vadd.xlane.f32.xlu0 %v1725
        %v1727 = vpop.xlane.xlu0 %1726
        %v1728 = vadd.f32 %v1650, %v1651
        %1729 = vadd.xlane.f32.xlu0 %v1728
        %v1730 = vpop.xlane.xlu0 %1729
        %v1731 = vadd.f32 %v1652, %v1653
        %1732 = vadd.xlane.f32.xlu0 %v1731
        %v1733 = vpop.xlane.xlu0 %1732
        %v1734 = vmul.f32 %v1688, 0.00390625
        %v1735 = vmul.f32 %v1691, 0.00390625
        %v1736 = vmul.f32 %v1694, 0.00390625
        %v1737 = vmul.f32 %v1697, 0.00390625
        %v1738 = vmul.f32 %v1700, 0.00390625
        %v1739 = vmul.f32 %v1703, 0.00390625
        %v1740 = vmul.f32 %v1706, 0.00390625
        %v1741 = vmul.f32 %v1709, 0.00390625
        %v1742 = vmul.f32 %v1712, 0.00390625
        %v1743 = vmul.f32 %v1715, 0.00390625
        %v1744 = vmul.f32 %v1718, 0.00390625
        %v1745 = vmul.f32 %v1721, 0.00390625
        %v1746 = vmul.f32 %v1724, 0.00390625
        %v1747 = vmul.f32 %v1727, 0.00390625
        %v1748 = vmul.f32 %v1730, 0.00390625
        %v1749 = vmul.f32 %v1733, 0.00390625
        %v1750 = vmul.f32 %v1622, %v1622
        %v1751 = vmul.f32 %v1623, %v1623
        %v1752 = vmul.f32 %v1624, %v1624
        %v1753 = vmul.f32 %v1625, %v1625
        %v1754 = vmul.f32 %v1626, %v1626
        %v1755 = vmul.f32 %v1627, %v1627
        %v1756 = vmul.f32 %v1628, %v1628
        %v1757 = vmul.f32 %v1629, %v1629
        %v1758 = vmul.f32 %v1630, %v1630
        %v1759 = vmul.f32 %v1631, %v1631
        %v1760 = vmul.f32 %v1632, %v1632
        %v1761 = vmul.f32 %v1633, %v1633
        %v1762 = vmul.f32 %v1634, %v1634
        %v1763 = vmul.f32 %v1635, %v1635
        %v1764 = vmul.f32 %v1636, %v1636
        %v1765 = vmul.f32 %v1637, %v1637
        %v1766 = vmul.f32 %v1638, %v1638
        %v1767 = vmul.f32 %v1639, %v1639
        %v1768 = vmul.f32 %v1640, %v1640
        %v1769 = vmul.f32 %v1641, %v1641
        %v1770 = vmul.f32 %v1642, %v1642
        %v1771 = vmul.f32 %v1643, %v1643
        %v1772 = vmul.f32 %v1644, %v1644
        %v1773 = vmul.f32 %v1645, %v1645
        %v1774 = vmul.f32 %v1646, %v1646
        %v1775 = vmul.f32 %v1647, %v1647
        %v1776 = vmul.f32 %v1648, %v1648
        %v1777 = vmul.f32 %v1649, %v1649
        %v1778 = vmul.f32 %v1650, %v1650
        %v1779 = vmul.f32 %v1651, %v1651
        %v1780 = vmul.f32 %v1652, %v1652
        %v1781 = vmul.f32 %v1653, %v1653
        %v1782 = vadd.f32 %v1750, %v1751
        %1783 = vadd.xlane.f32.xlu0 %v1782
        %v1784 = vpop.xlane.xlu0 %1783
        %v1785 = vadd.f32 %v1752, %v1753
        %1786 = vadd.xlane.f32.xlu0 %v1785
        %v1787 = vpop.xlane.xlu0 %1786
        %v1788 = vadd.f32 %v1754, %v1755
        %1789 = vadd.xlane.f32.xlu0 %v1788
        %v1790 = vpop.xlane.xlu0 %1789
        %v1791 = vadd.f32 %v1756, %v1757
        %1792 = vadd.xlane.f32.xlu0 %v1791
        %v1793 = vpop.xlane.xlu0 %1792
        %v1794 = vadd.f32 %v1758, %v1759
        %1795 = vadd.xlane.f32.xlu0 %v1794
        %v1796 = vpop.xlane.xlu0 %1795
        %v1797 = vadd.f32 %v1760, %v1761
        %1798 = vadd.xlane.f32.xlu0 %v1797
        %v1799 = vpop.xlane.xlu0 %1798
        %v1800 = vadd.f32 %v1762, %v1763
        %1801 = vadd.xlane.f32.xlu0 %v1800
        %v1802 = vpop.xlane.xlu0 %1801
        %v1803 = vadd.f32 %v1764, %v1765
        %1804 = vadd.xlane.f32.xlu0 %v1803
        %v1805 = vpop.xlane.xlu0 %1804
        %v1806 = vadd.f32 %v1766, %v1767
        %1807 = vadd.xlane.f32.xlu0 %v1806
        %v1808 = vpop.xlane.xlu0 %1807
        %v1809 = vadd.f32 %v1768, %v1769
        %1810 = vadd.xlane.f32.xlu0 %v1809
        %v1811 = vpop.xlane.xlu0 %1810
        %v1812 = vadd.f32 %v1770, %v1771
        %1813 = vadd.xlane.f32.xlu0 %v1812
        %v1814 = vpop.xlane.xlu0 %1813
        %v1815 = vadd.f32 %v1772, %v1773
        %1816 = vadd.xlane.f32.xlu0 %v1815
        %v1817 = vpop.xlane.xlu0 %1816
        %v1818 = vadd.f32 %v1774, %v1775
        %1819 = vadd.xlane.f32.xlu0 %v1818
        %v1820 = vpop.xlane.xlu0 %1819
        %v1821 = vadd.f32 %v1776, %v1777
        %1822 = vadd.xlane.f32.xlu0 %v1821
        %v1823 = vpop.xlane.xlu0 %1822
        %v1824 = vadd.f32 %v1778, %v1779
        %1825 = vadd.xlane.f32.xlu0 %v1824
        %v1826 = vpop.xlane.xlu0 %1825
        %v1827 = vadd.f32 %v1780, %v1781
        %1828 = vadd.xlane.f32.xlu0 %v1827
        %v1829 = vpop.xlane.xlu0 %1828
        %v1830 = vmul.f32 %v1784, 0.00390625
        %v1831 = vmul.f32 %v1787, 0.00390625
        %v1832 = vmul.f32 %v1790, 0.00390625
        %v1833 = vmul.f32 %v1793, 0.00390625
        %v1834 = vmul.f32 %v1796, 0.00390625
        %v1835 = vmul.f32 %v1799, 0.00390625
        %v1836 = vmul.f32 %v1802, 0.00390625
        %v1837 = vmul.f32 %v1805, 0.00390625
        %v1838 = vmul.f32 %v1808, 0.00390625
        %v1839 = vmul.f32 %v1811, 0.00390625
        %v1840 = vmul.f32 %v1814, 0.00390625
        %v1841 = vmul.f32 %v1817, 0.00390625
        %v1842 = vmul.f32 %v1820, 0.00390625
        %v1843 = vmul.f32 %v1823, 0.00390625
        %v1844 = vmul.f32 %v1826, 0.00390625
        %v1845 = vmul.f32 %v1829, 0.00390625
        %v1846 = vmul.f32 %v1734, %v1734
        %v1847 = vmul.f32 %v1735, %v1735
        %v1848 = vmul.f32 %v1736, %v1736
        %v1849 = vmul.f32 %v1737, %v1737
        %v1850 = vmul.f32 %v1738, %v1738
        %v1851 = vmul.f32 %v1739, %v1739
        %v1852 = vmul.f32 %v1740, %v1740
        %v1853 = vmul.f32 %v1741, %v1741
        %v1854 = vmul.f32 %v1742, %v1742
        %v1855 = vmul.f32 %v1743, %v1743
        %v1856 = vmul.f32 %v1744, %v1744
        %v1857 = vmul.f32 %v1745, %v1745
        %v1858 = vmul.f32 %v1746, %v1746
        %v1859 = vmul.f32 %v1747, %v1747
        %v1860 = vmul.f32 %v1748, %v1748
        %v1861 = vmul.f32 %v1749, %v1749
        %v1862 = vsub.f32 %v1830, %v1846
        %v1863 = vsub.f32 %v1831, %v1847
        %v1864 = vsub.f32 %v1832, %v1848
        %v1865 = vsub.f32 %v1833, %v1849
        %v1866 = vsub.f32 %v1834, %v1850
        %v1867 = vsub.f32 %v1835, %v1851
        %v1868 = vsub.f32 %v1836, %v1852
        %v1869 = vsub.f32 %v1837, %v1853
        %v1870 = vsub.f32 %v1838, %v1854
        %v1871 = vsub.f32 %v1839, %v1855
        %v1872 = vsub.f32 %v1840, %v1856
        %v1873 = vsub.f32 %v1841, %v1857
        %v1874 = vsub.f32 %v1842, %v1858
        %v1875 = vsub.f32 %v1843, %v1859
        %v1876 = vsub.f32 %v1844, %v1860
        %v1877 = vsub.f32 %v1845, %v1861
        %v1878 = vmax.f32 %v1862, 0.0
        %v1879 = vmax.f32 %v1863, 0.0
        %v1880 = vmax.f32 %v1864, 0.0
        %v1881 = vmax.f32 %v1865, 0.0
        %v1882 = vmax.f32 %v1866, 0.0
        %v1883 = vmax.f32 %v1867, 0.0
        %v1884 = vmax.f32 %v1868, 0.0
        %v1885 = vmax.f32 %v1869, 0.0
        %v1886 = vmax.f32 %v1870, 0.0
        %v1887 = vmax.f32 %v1871, 0.0
        %v1888 = vmax.f32 %v1872, 0.0
        %v1889 = vmax.f32 %v1873, 0.0
        %v1890 = vmax.f32 %v1874, 0.0
        %v1891 = vmax.f32 %v1875, 0.0
        %v1892 = vmax.f32 %v1876, 0.0
        %v1893 = vmax.f32 %v1877, 0.0
        %v1894 = vsub.f32 %v1622, %v1734
        %v1895 = vsub.f32 %v1623, %v1734
        %v1896 = vsub.f32 %v1624, %v1735
        %v1897 = vsub.f32 %v1625, %v1735
        %v1898 = vsub.f32 %v1626, %v1736
        %v1899 = vsub.f32 %v1627, %v1736
        %v1900 = vsub.f32 %v1628, %v1737
        %v1901 = vsub.f32 %v1629, %v1737
        %v1902 = vsub.f32 %v1630, %v1738
        %v1903 = vsub.f32 %v1631, %v1738
        %v1904 = vsub.f32 %v1632, %v1739
        %v1905 = vsub.f32 %v1633, %v1739
        %v1906 = vsub.f32 %v1634, %v1740
        %v1907 = vsub.f32 %v1635, %v1740
        %v1908 = vsub.f32 %v1636, %v1741
        %v1909 = vsub.f32 %v1637, %v1741
        %v1910 = vsub.f32 %v1638, %v1742
        %v1911 = vsub.f32 %v1639, %v1742
        %v1912 = vsub.f32 %v1640, %v1743
        %v1913 = vsub.f32 %v1641, %v1743
        %v1914 = vsub.f32 %v1642, %v1744
        %v1915 = vsub.f32 %v1643, %v1744
        %v1916 = vsub.f32 %v1644, %v1745
        %v1917 = vsub.f32 %v1645, %v1745
        %v1918 = vsub.f32 %v1646, %v1746
        %v1919 = vsub.f32 %v1647, %v1746
        %v1920 = vsub.f32 %v1648, %v1747
        %v1921 = vsub.f32 %v1649, %v1747
        %v1922 = vsub.f32 %v1650, %v1748
        %v1923 = vsub.f32 %v1651, %v1748
        %v1924 = vsub.f32 %v1652, %v1749
        %v1925 = vsub.f32 %v1653, %v1749
        %v1926 = vadd.f32 %v1878, 1e-05
        %v1927 = vadd.f32 %v1879, 1e-05
        %v1928 = vadd.f32 %v1880, 1e-05
        %v1929 = vadd.f32 %v1881, 1e-05
        %v1930 = vadd.f32 %v1882, 1e-05
        %v1931 = vadd.f32 %v1883, 1e-05
        %v1932 = vadd.f32 %v1884, 1e-05
        %v1933 = vadd.f32 %v1885, 1e-05
        %v1934 = vadd.f32 %v1886, 1e-05
        %v1935 = vadd.f32 %v1887, 1e-05
        %v1936 = vadd.f32 %v1888, 1e-05
        %v1937 = vadd.f32 %v1889, 1e-05
        %v1938 = vadd.f32 %v1890, 1e-05
        %v1939 = vadd.f32 %v1891, 1e-05
        %v1940 = vadd.f32 %v1892, 1e-05
        %v1941 = vadd.f32 %v1893, 1e-05
        %v1942 = vrsqrt.pop %v1926
        %v1943 = vrsqrt.pop %v1927
        %v1944 = vrsqrt.pop %v1928
        %v1945 = vrsqrt.pop %v1929
        %v1946 = vrsqrt.pop %v1930
        %v1947 = vrsqrt.pop %v1931
        %v1948 = vrsqrt.pop %v1932
        %v1949 = vrsqrt.pop %v1933
        %v1950 = vrsqrt.pop %v1934
        %v1951 = vrsqrt.pop %v1935
        %v1952 = vrsqrt.pop %v1936
        %v1953 = vrsqrt.pop %v1937
        %v1954 = vrsqrt.pop %v1938
        %v1955 = vrsqrt.pop %v1939
        %v1956 = vrsqrt.pop %v1940
        %v1957 = vrsqrt.pop %v1941
        %v1958 = vmul.f32 %v1894, %v1942
        %v1959 = vmul.f32 %v1895, %v1942
        %v1960 = vmul.f32 %v1896, %v1943
        %v1961 = vmul.f32 %v1897, %v1943
        %v1962 = vmul.f32 %v1898, %v1944
        %v1963 = vmul.f32 %v1899, %v1944
        %v1964 = vmul.f32 %v1900, %v1945
        %v1965 = vmul.f32 %v1901, %v1945
        %v1966 = vmul.f32 %v1902, %v1946
        %v1967 = vmul.f32 %v1903, %v1946
        %v1968 = vmul.f32 %v1904, %v1947
        %v1969 = vmul.f32 %v1905, %v1947
        %v1970 = vmul.f32 %v1906, %v1948
        %v1971 = vmul.f32 %v1907, %v1948
        %v1972 = vmul.f32 %v1908, %v1949
        %v1973 = vmul.f32 %v1909, %v1949
        %v1974 = vmul.f32 %v1910, %v1950
        %v1975 = vmul.f32 %v1911, %v1950
        %v1976 = vmul.f32 %v1912, %v1951
        %v1977 = vmul.f32 %v1913, %v1951
        %v1978 = vmul.f32 %v1914, %v1952
        %v1979 = vmul.f32 %v1915, %v1952
        %v1980 = vmul.f32 %v1916, %v1953
        %v1981 = vmul.f32 %v1917, %v1953
        %v1982 = vmul.f32 %v1918, %v1954
        %v1983 = vmul.f32 %v1919, %v1954
        %v1984 = vmul.f32 %v1920, %v1955
        %v1985 = vmul.f32 %v1921, %v1955
        %v1986 = vmul.f32 %v1922, %v1956
        %v1987 = vmul.f32 %v1923, %v1956
        %v1988 = vmul.f32 %v1924, %v1957
        %v1989 = vmul.f32 %v1925, %v1957
        %1991 = vset.pattern.permute.xlu0 0
        %1992 = vperm.xlu0 %1991, %v1654
        %v1993 = vpop.permute.xlu0 %1992
        %1996 = vset.pattern.permute.xlu0 0
        %1997 = vperm.xlu0 %1996, %v1655
        %v1998 = vpop.permute.xlu0 %1997
        %2001 = vset.pattern.permute.xlu0 0
        %2002 = vperm.xlu0 %2001, %v1656
        %v2003 = vpop.permute.xlu0 %2002
        %2006 = vset.pattern.permute.xlu0 0
        %2007 = vperm.xlu0 %2006, %v1657
        %v2008 = vpop.permute.xlu0 %2007
        %2011 = vset.pattern.permute.xlu0 0
        %2012 = vperm.xlu0 %2011, %v1658
        %v2013 = vpop.permute.xlu0 %2012
        %2016 = vset.pattern.permute.xlu0 0
        %2017 = vperm.xlu0 %2016, %v1659
        %v2018 = vpop.permute.xlu0 %2017
        %2021 = vset.pattern.permute.xlu0 0
        %2022 = vperm.xlu0 %2021, %v1660
        %v2023 = vpop.permute.xlu0 %2022
        %2026 = vset.pattern.permute.xlu0 0
        %2027 = vperm.xlu0 %2026, %v1661
        %v2028 = vpop.permute.xlu0 %2027
        %2031 = vset.pattern.permute.xlu0 0
        %2032 = vperm.xlu0 %2031, %v1662
        %v2033 = vpop.permute.xlu0 %2032
        %2036 = vset.pattern.permute.xlu0 0
        %2037 = vperm.xlu0 %2036, %v1663
        %v2038 = vpop.permute.xlu0 %2037
        %2041 = vset.pattern.permute.xlu0 0
        %2042 = vperm.xlu0 %2041, %v1664
        %v2043 = vpop.permute.xlu0 %2042
        %2046 = vset.pattern.permute.xlu0 0
        %2047 = vperm.xlu0 %2046, %v1665
        %v2048 = vpop.permute.xlu0 %2047
        %2051 = vset.pattern.permute.xlu0 0
        %2052 = vperm.xlu0 %2051, %v1666
        %v2053 = vpop.permute.xlu0 %2052
        %2056 = vset.pattern.permute.xlu0 0
        %2057 = vperm.xlu0 %2056, %v1667
        %v2058 = vpop.permute.xlu0 %2057
        %2061 = vset.pattern.permute.xlu0 0
        %2062 = vperm.xlu0 %2061, %v1668
        %v2063 = vpop.permute.xlu0 %2062
        %2066 = vset.pattern.permute.xlu0 0
        %2067 = vperm.xlu0 %2066, %v1669
        %v2068 = vpop.permute.xlu0 %2067
        %v2070 = vmul.f32 %v1958, %v1993
        %v2071 = vmul.f32 %v1959, %v1993
        %v2072 = vmul.f32 %v1960, %v1998
        %v2073 = vmul.f32 %v1961, %v1998
        %v2074 = vmul.f32 %v1962, %v2003
        %v2075 = vmul.f32 %v1963, %v2003
        %v2076 = vmul.f32 %v1964, %v2008
        %v2077 = vmul.f32 %v1965, %v2008
        %v2078 = vmul.f32 %v1966, %v2013
        %v2079 = vmul.f32 %v1967, %v2013
        %v2080 = vmul.f32 %v1968, %v2018
        %v2081 = vmul.f32 %v1969, %v2018
        %v2082 = vmul.f32 %v1970, %v2023
        %v2083 = vmul.f32 %v1971, %v2023
        %v2084 = vmul.f32 %v1972, %v2028
        %v2085 = vmul.f32 %v1973, %v2028
        %v2086 = vmul.f32 %v1974, %v2033
        %v2087 = vmul.f32 %v1975, %v2033
        %v2088 = vmul.f32 %v1976, %v2038
        %v2089 = vmul.f32 %v1977, %v2038
        %v2090 = vmul.f32 %v1978, %v2043
        %v2091 = vmul.f32 %v1979, %v2043
        %v2092 = vmul.f32 %v1980, %v2048
        %v2093 = vmul.f32 %v1981, %v2048
        %v2094 = vmul.f32 %v1982, %v2053
        %v2095 = vmul.f32 %v1983, %v2053
        %v2096 = vmul.f32 %v1984, %v2058
        %v2097 = vmul.f32 %v1985, %v2058
        %v2098 = vmul.f32 %v1986, %v2063
        %v2099 = vmul.f32 %v1987, %v2063
        %v2100 = vmul.f32 %v1988, %v2068
        %v2101 = vmul.f32 %v1989, %v2068
        %2103 = vset.pattern.permute.xlu0 0
        %2104 = vperm.xlu0 %2103, %v1670
        %v2105 = vpop.permute.xlu0 %2104
        %2108 = vset.pattern.permute.xlu0 0
        %2109 = vperm.xlu0 %2108, %v1671
        %v2110 = vpop.permute.xlu0 %2109
        %2113 = vset.pattern.permute.xlu0 0
        %2114 = vperm.xlu0 %2113, %v1672
        %v2115 = vpop.permute.xlu0 %2114
        %2118 = vset.pattern.permute.xlu0 0
        %2119 = vperm.xlu0 %2118, %v1673
        %v2120 = vpop.permute.xlu0 %2119
        %2123 = vset.pattern.permute.xlu0 0
        %2124 = vperm.xlu0 %2123, %v1674
        %v2125 = vpop.permute.xlu0 %2124
        %2128 = vset.pattern.permute.xlu0 0
        %2129 = vperm.xlu0 %2128, %v1675
        %v2130 = vpop.permute.xlu0 %2129
        %2133 = vset.pattern.permute.xlu0 0
        %2134 = vperm.xlu0 %2133, %v1676
        %v2135 = vpop.permute.xlu0 %2134
        %2138 = vset.pattern.permute.xlu0 0
        %2139 = vperm.xlu0 %2138, %v1677
        %v2140 = vpop.permute.xlu0 %2139
        %2143 = vset.pattern.permute.xlu0 0
        %2144 = vperm.xlu0 %2143, %v1678
        %v2145 = vpop.permute.xlu0 %2144
        %2148 = vset.pattern.permute.xlu0 0
        %2149 = vperm.xlu0 %2148, %v1679
        %v2150 = vpop.permute.xlu0 %2149
        %2153 = vset.pattern.permute.xlu0 0
        %2154 = vperm.xlu0 %2153, %v1680
        %v2155 = vpop.permute.xlu0 %2154
        %2158 = vset.pattern.permute.xlu0 0
        %2159 = vperm.xlu0 %2158, %v1681
        %v2160 = vpop.permute.xlu0 %2159
        %2163 = vset.pattern.permute.xlu0 0
        %2164 = vperm.xlu0 %2163, %v1682
        %v2165 = vpop.permute.xlu0 %2164
        %2168 = vset.pattern.permute.xlu0 0
        %2169 = vperm.xlu0 %2168, %v1683
        %v2170 = vpop.permute.xlu0 %2169
        %2173 = vset.pattern.permute.xlu0 0
        %2174 = vperm.xlu0 %2173, %v1684
        %v2175 = vpop.permute.xlu0 %2174
        %2178 = vset.pattern.permute.xlu0 0
        %2179 = vperm.xlu0 %2178, %v1685
        %v2180 = vpop.permute.xlu0 %2179
        %v2182 = vadd.f32 %v2070, %v2105
        %v2183 = vadd.f32 %v2071, %v2105
        %v2184 = vadd.f32 %v2072, %v2110
        %v2185 = vadd.f32 %v2073, %v2110
        %v2186 = vadd.f32 %v2074, %v2115
        %v2187 = vadd.f32 %v2075, %v2115
        %v2188 = vadd.f32 %v2076, %v2120
        %v2189 = vadd.f32 %v2077, %v2120
        %v2190 = vadd.f32 %v2078, %v2125
        %v2191 = vadd.f32 %v2079, %v2125
        %v2192 = vadd.f32 %v2080, %v2130
        %v2193 = vadd.f32 %v2081, %v2130
        %v2194 = vadd.f32 %v2082, %v2135
        %v2195 = vadd.f32 %v2083, %v2135
        %v2196 = vadd.f32 %v2084, %v2140
        %v2197 = vadd.f32 %v2085, %v2140
        %v2198 = vadd.f32 %v2086, %v2145
        %v2199 = vadd.f32 %v2087, %v2145
        %v2200 = vadd.f32 %v2088, %v2150
        %v2201 = vadd.f32 %v2089, %v2150
        %v2202 = vadd.f32 %v2090, %v2155
        %v2203 = vadd.f32 %v2091, %v2155
        %v2204 = vadd.f32 %v2092, %v2160
        %v2205 = vadd.f32 %v2093, %v2160
        %v2206 = vadd.f32 %v2094, %v2165
        %v2207 = vadd.f32 %v2095, %v2165
        %v2208 = vadd.f32 %v2096, %v2170
        %v2209 = vadd.f32 %v2097, %v2170
        %v2210 = vadd.f32 %v2098, %v2175
        %v2211 = vadd.f32 %v2099, %v2175
        %v2212 = vadd.f32 %v2100, %v2180
        %v2213 = vadd.f32 %v2101, %v2180
        %v2214 = vpack.c.bf16 %v2184, %v2182
        %v2215 = vpack.c.bf16 %v2185, %v2183
        %v2216 = vpack.c.bf16 %v2188, %v2186
        %v2217 = vpack.c.bf16 %v2189, %v2187
        %v2218 = vpack.c.bf16 %v2192, %v2190
        %v2219 = vpack.c.bf16 %v2193, %v2191
        %v2220 = vpack.c.bf16 %v2196, %v2194
        %v2221 = vpack.c.bf16 %v2197, %v2195
        %v2222 = vpack.c.bf16 %v2200, %v2198
        %v2223 = vpack.c.bf16 %v2201, %v2199
        %v2224 = vpack.c.bf16 %v2204, %v2202
        %v2225 = vpack.c.bf16 %v2205, %v2203
        %v2226 = vpack.c.bf16 %v2208, %v2206
        %v2227 = vpack.c.bf16 %v2209, %v2207
        %v2228 = vpack.c.bf16 %v2212, %v2210
        %v2229 = vpack.c.bf16 %v2213, %v2211
        %v2230 = vld [vmem:[%s9] sm:$0xf]
        %v2231 = vld [vmem:[%s9 + $0x4] sm:$0xf]
        %v2232 = vld [vmem:[%s9 + $0x8] sm:$0xf]
        %v2233 = vld [vmem:[%s9 + $0xc] sm:$0xf]
        %v2234 = vld [vmem:[%s9 + $0x10] sm:$0xf]
        %v2235 = vld [vmem:[%s9 + $0x14] sm:$0xf]
        %v2236 = vld [vmem:[%s9 + $0x18] sm:$0xf]
        %v2237 = vld [vmem:[%s9 + $0x1c] sm:$0xf]
        %v2238 = vld [vmem:[%s9 + $0x20] sm:$0xf]
        %v2239 = vld [vmem:[%s9 + $0x24] sm:$0xf]
        %v2240 = vld [vmem:[%s9 + $0x28] sm:$0xf]
        %v2241 = vld [vmem:[%s9 + $0x2c] sm:$0xf]
        %v2242 = vld [vmem:[%s9 + $0x30] sm:$0xf]
        %v2243 = vld [vmem:[%s9 + $0x34] sm:$0xf]
        %v2244 = vld [vmem:[%s9 + $0x38] sm:$0xf]
        %v2245 = vld [vmem:[%s9 + $0x3c] sm:$0xf]
        %v2246 = vld [vmem:[%s9 + $0x40] sm:$0xf]
        %v2247 = vld [vmem:[%s9 + $0x44] sm:$0xf]
        %v2248 = vld [vmem:[%s9 + $0x48] sm:$0xf]
        %v2249 = vld [vmem:[%s9 + $0x4c] sm:$0xf]
        %v2250 = vld [vmem:[%s9 + $0x50] sm:$0xf]
        %v2251 = vld [vmem:[%s9 + $0x54] sm:$0xf]
        %v2252 = vld [vmem:[%s9 + $0x58] sm:$0xf]
        %v2253 = vld [vmem:[%s9 + $0x5c] sm:$0xf]
        %v2254 = vld [vmem:[%s9 + $0x60] sm:$0xf]
        %v2255 = vld [vmem:[%s9 + $0x64] sm:$0xf]
        %v2256 = vld [vmem:[%s9 + $0x68] sm:$0xf]
        %v2257 = vld [vmem:[%s9 + $0x6c] sm:$0xf]
        %v2258 = vld [vmem:[%s9 + $0x70] sm:$0xf]
        %v2259 = vld [vmem:[%s9 + $0x74] sm:$0xf]
        %v2260 = vld [vmem:[%s9 + $0x78] sm:$0xf]
        %v2261 = vld [vmem:[%s9 + $0x7c] sm:$0xf]
        %v2262 = vld [vmem:[%s9 + $0x80] sm:$0xf]
        %v2263 = vld [vmem:[%s9 + $0x84] sm:$0xf]
        %v2264 = vld [vmem:[%s9 + $0x88] sm:$0xf]
        %v2265 = vld [vmem:[%s9 + $0x8c] sm:$0xf]
        %v2266 = vld [vmem:[%s9 + $0x90] sm:$0xf]
        %v2267 = vld [vmem:[%s9 + $0x94] sm:$0xf]
        %v2268 = vld [vmem:[%s9 + $0x98] sm:$0xf]
        %v2269 = vld [vmem:[%s9 + $0x9c] sm:$0xf]
        %v2270 = vld [vmem:[%s9 + $0xa0] sm:$0xf]
        %v2271 = vld [vmem:[%s9 + $0xa4] sm:$0xf]
        %v2272 = vld [vmem:[%s9 + $0xa8] sm:$0xf]
        %v2273 = vld [vmem:[%s9 + $0xac] sm:$0xf]
        %v2274 = vld [vmem:[%s9 + $0xb0] sm:$0xf]
        %v2275 = vld [vmem:[%s9 + $0xb4] sm:$0xf]
        %v2276 = vld [vmem:[%s9 + $0xb8] sm:$0xf]
        %v2277 = vld [vmem:[%s9 + $0xbc] sm:$0xf]
        %v2278 = vld [vmem:[%s9 + $0xc0] sm:$0xf]
        %v2279 = vld [vmem:[%s9 + $0xc4] sm:$0xf]
        %v2280 = vld [vmem:[%s9 + $0xc8] sm:$0xf]
        %v2281 = vld [vmem:[%s9 + $0xcc] sm:$0xf]
        %v2282 = vld [vmem:[%s9 + $0xd0] sm:$0xf]
        %v2283 = vld [vmem:[%s9 + $0xd4] sm:$0xf]
        %v2284 = vld [vmem:[%s9 + $0xd8] sm:$0xf]
        %v2285 = vld [vmem:[%s9 + $0xdc] sm:$0xf]
        %v2286 = vld [vmem:[%s9 + $0xe0] sm:$0xf]
        %v2287 = vld [vmem:[%s9 + $0xe4] sm:$0xf]
        %v2288 = vld [vmem:[%s9 + $0xe8] sm:$0xf]
        %v2289 = vld [vmem:[%s9 + $0xec] sm:$0xf]
        %v2290 = vld [vmem:[%s9 + $0xf0] sm:$0xf]
        %v2291 = vld [vmem:[%s9 + $0xf4] sm:$0xf]
        %v2292 = vld [vmem:[%s9 + $0xf8] sm:$0xf]
        %v2293 = vld [vmem:[%s9 + $0xfc] sm:$0xf]
        %v2294 = vld [vmem:[%s9 + $0x100] sm:$0xf]
        %v2295 = vld [vmem:[%s9 + $0x104] sm:$0xf]
        %v2296 = vld [vmem:[%s9 + $0x108] sm:$0xf]
        %v2297 = vld [vmem:[%s9 + $0x10c] sm:$0xf]
        %v2298 = vld [vmem:[%s9 + $0x110] sm:$0xf]
        %v2299 = vld [vmem:[%s9 + $0x114] sm:$0xf]
        %v2300 = vld [vmem:[%s9 + $0x118] sm:$0xf]
        %v2301 = vld [vmem:[%s9 + $0x11c] sm:$0xf]
        %v2302 = vld [vmem:[%s9 + $0x120] sm:$0xf]
        %v2303 = vld [vmem:[%s9 + $0x124] sm:$0xf]
        %v2304 = vld [vmem:[%s9 + $0x128] sm:$0xf]
        %v2305 = vld [vmem:[%s9 + $0x12c] sm:$0xf]
        %v2306 = vld [vmem:[%s9 + $0x130] sm:$0xf]
        %v2307 = vld [vmem:[%s9 + $0x134] sm:$0xf]
        %v2308 = vld [vmem:[%s9 + $0x138] sm:$0xf]
        %v2309 = vld [vmem:[%s9 + $0x13c] sm:$0xf]
        %v2310 = vld [vmem:[%s9 + $0x140] sm:$0xf]
        %v2311 = vld [vmem:[%s9 + $0x144] sm:$0xf]
        %v2312 = vld [vmem:[%s9 + $0x148] sm:$0xf]
        %v2313 = vld [vmem:[%s9 + $0x14c] sm:$0xf]
        %v2314 = vld [vmem:[%s9 + $0x150] sm:$0xf]
        %v2315 = vld [vmem:[%s9 + $0x154] sm:$0xf]
        %v2316 = vld [vmem:[%s9 + $0x158] sm:$0xf]
        %v2317 = vld [vmem:[%s9 + $0x15c] sm:$0xf]
        %v2318 = vld [vmem:[%s9 + $0x160] sm:$0xf]
        %v2319 = vld [vmem:[%s9 + $0x164] sm:$0xf]
        %v2320 = vld [vmem:[%s9 + $0x168] sm:$0xf]
        %v2321 = vld [vmem:[%s9 + $0x16c] sm:$0xf]
        %v2322 = vld [vmem:[%s9 + $0x170] sm:$0xf]
        %v2323 = vld [vmem:[%s9 + $0x174] sm:$0xf]
        %v2324 = vld [vmem:[%s9 + $0x178] sm:$0xf]
        %v2325 = vld [vmem:[%s9 + $0x17c] sm:$0xf]
        %v2326 = vld [vmem:[%s9 + $0x180] sm:$0xf]
        %v2327 = vld [vmem:[%s9 + $0x184] sm:$0xf]
        %v2328 = vld [vmem:[%s9 + $0x188] sm:$0xf]
        %v2329 = vld [vmem:[%s9 + $0x18c] sm:$0xf]
        %v2330 = vld [vmem:[%s9 + $0x190] sm:$0xf]
        %v2331 = vld [vmem:[%s9 + $0x194] sm:$0xf]
        %v2332 = vld [vmem:[%s9 + $0x198] sm:$0xf]
        %v2333 = vld [vmem:[%s9 + $0x19c] sm:$0xf]
        %v2334 = vld [vmem:[%s9 + $0x1a0] sm:$0xf]
        %v2335 = vld [vmem:[%s9 + $0x1a4] sm:$0xf]
        %v2336 = vld [vmem:[%s9 + $0x1a8] sm:$0xf]
        %v2337 = vld [vmem:[%s9 + $0x1ac] sm:$0xf]
        %v2338 = vld [vmem:[%s9 + $0x1b0] sm:$0xf]
        %v2339 = vld [vmem:[%s9 + $0x1b4] sm:$0xf]
        %v2340 = vld [vmem:[%s9 + $0x1b8] sm:$0xf]
        %v2341 = vld [vmem:[%s9 + $0x1bc] sm:$0xf]
        %v2342 = vld [vmem:[%s9 + $0x1c0] sm:$0xf]
        %v2343 = vld [vmem:[%s9 + $0x1c4] sm:$0xf]
        %v2344 = vld [vmem:[%s9 + $0x1c8] sm:$0xf]
        %v2345 = vld [vmem:[%s9 + $0x1cc] sm:$0xf]
        %v2346 = vld [vmem:[%s9 + $0x1d0] sm:$0xf]
        %v2347 = vld [vmem:[%s9 + $0x1d4] sm:$0xf]
        %v2348 = vld [vmem:[%s9 + $0x1d8] sm:$0xf]
        %v2349 = vld [vmem:[%s9 + $0x1dc] sm:$0xf]
        %v2350 = vld [vmem:[%s9 + $0x1e0] sm:$0xf]
        %v2351 = vld [vmem:[%s9 + $0x1e4] sm:$0xf]
        %v2352 = vld [vmem:[%s9 + $0x1e8] sm:$0xf]
        %v2353 = vld [vmem:[%s9 + $0x1ec] sm:$0xf]
        %v2354 = vld [vmem:[%s9 + $0x1f0] sm:$0xf]
        %v2355 = vld [vmem:[%s9 + $0x1f4] sm:$0xf]
        %v2356 = vld [vmem:[%s9 + $0x1f8] sm:$0xf]
        %v2357 = vld [vmem:[%s9 + $0x1fc] sm:$0xf]
        %v2358 = vld [vmem:[%s10] sm:$0xff]
        %v2359 = vld [vmem:[%s10 + $0x8] sm:$0xff]
        %v2360 = vld [vmem:[%s10 + $0x10] sm:$0xff]
        %v2361 = vld [vmem:[%s10 + $0x18] sm:$0xff]
        %v2362 = vld [vmem:[%s10 + $0x20] sm:$0xff]
        %v2363 = vld [vmem:[%s10 + $0x28] sm:$0xff]
        %v2364 = vld [vmem:[%s10 + $0x30] sm:$0xff]
        %v2365 = vld [vmem:[%s10 + $0x38] sm:$0xff]
        %v2366 = vld [vmem:[%s10 + $0x40] sm:$0xff]
        %v2367 = vld [vmem:[%s10 + $0x48] sm:$0xff]
        %v2368 = vld [vmem:[%s10 + $0x50] sm:$0xff]
        %v2369 = vld [vmem:[%s10 + $0x58] sm:$0xff]
        %v2370 = vld [vmem:[%s10 + $0x60] sm:$0xff]
        %v2371 = vld [vmem:[%s10 + $0x68] sm:$0xff]
        %v2372 = vld [vmem:[%s10 + $0x70] sm:$0xff]
        %v2373 = vld [vmem:[%s10 + $0x78] sm:$0xff]
        %v2374 = vld [vmem:[%s10 + $0x80] sm:$0xff]
        %v2375 = vld [vmem:[%s10 + $0x88] sm:$0xff]
        %v2376 = vld [vmem:[%s10 + $0x90] sm:$0xff]
        %v2377 = vld [vmem:[%s10 + $0x98] sm:$0xff]
        %v2378 = vld [vmem:[%s10 + $0xa0] sm:$0xff]
        %v2379 = vld [vmem:[%s10 + $0xa8] sm:$0xff]
        %v2380 = vld [vmem:[%s10 + $0xb0] sm:$0xff]
        %v2381 = vld [vmem:[%s10 + $0xb8] sm:$0xff]
        %v2382 = vld [vmem:[%s10 + $0xc0] sm:$0xff]
        %v2383 = vld [vmem:[%s10 + $0xc8] sm:$0xff]
        %v2384 = vld [vmem:[%s10 + $0xd0] sm:$0xff]
        %v2385 = vld [vmem:[%s10 + $0xd8] sm:$0xff]
        %v2386 = vld [vmem:[%s10 + $0xe0] sm:$0xff]
        %v2387 = vld [vmem:[%s10 + $0xe8] sm:$0xff]
        %v2388 = vld [vmem:[%s10 + $0xf0] sm:$0xff]
        %v2389 = vld [vmem:[%s10 + $0xf8] sm:$0xff]
        %v2390 = vld [vmem:[%s10 + $0x100] sm:$0xff]
        %v2391 = vld [vmem:[%s10 + $0x108] sm:$0xff]
        %v2392 = vld [vmem:[%s10 + $0x110] sm:$0xff]
        %v2393 = vld [vmem:[%s10 + $0x118] sm:$0xff]
        %v2394 = vld [vmem:[%s10 + $0x120] sm:$0xff]
        %v2395 = vld [vmem:[%s10 + $0x128] sm:$0xff]
        %v2396 = vld [vmem:[%s10 + $0x130] sm:$0xff]
        %v2397 = vld [vmem:[%s10 + $0x138] sm:$0xff]
        %v2398 = vld [vmem:[%s10 + $0x140] sm:$0xff]
        %v2399 = vld [vmem:[%s10 + $0x148] sm:$0xff]
        %v2400 = vld [vmem:[%s10 + $0x150] sm:$0xff]
        %v2401 = vld [vmem:[%s10 + $0x158] sm:$0xff]
        %v2402 = vld [vmem:[%s10 + $0x160] sm:$0xff]
        %v2403 = vld [vmem:[%s10 + $0x168] sm:$0xff]
        %v2404 = vld [vmem:[%s10 + $0x170] sm:$0xff]
        %v2405 = vld [vmem:[%s10 + $0x178] sm:$0xff]
        %v2406 = vld [vmem:[%s10 + $0x180] sm:$0xff]
        %v2407 = vld [vmem:[%s10 + $0x188] sm:$0xff]
        %v2408 = vld [vmem:[%s10 + $0x190] sm:$0xff]
        %v2409 = vld [vmem:[%s10 + $0x198] sm:$0xff]
        %v2410 = vld [vmem:[%s10 + $0x1a0] sm:$0xff]
        %v2411 = vld [vmem:[%s10 + $0x1a8] sm:$0xff]
        %v2412 = vld [vmem:[%s10 + $0x1b0] sm:$0xff]
        %v2413 = vld [vmem:[%s10 + $0x1b8] sm:$0xff]
        %v2414 = vld [vmem:[%s10 + $0x1c0] sm:$0xff]
        %v2415 = vld [vmem:[%s10 + $0x1c8] sm:$0xff]
        %v2416 = vld [vmem:[%s10 + $0x1d0] sm:$0xff]
        %v2417 = vld [vmem:[%s10 + $0x1d8] sm:$0xff]
        %v2418 = vld [vmem:[%s10 + $0x1e0] sm:$0xff]
        %v2419 = vld [vmem:[%s10 + $0x1e8] sm:$0xff]
        %v2420 = vld [vmem:[%s10 + $0x1f0] sm:$0xff]
        %v2421 = vld [vmem:[%s10 + $0x1f8] sm:$0xff]
        %v2422 = vld [vmem:[%s10 + $0x200] sm:$0xff]
        %v2423 = vld [vmem:[%s10 + $0x208] sm:$0xff]
        %v2424 = vld [vmem:[%s10 + $0x210] sm:$0xff]
        %v2425 = vld [vmem:[%s10 + $0x218] sm:$0xff]
        %v2426 = vld [vmem:[%s10 + $0x220] sm:$0xff]
        %v2427 = vld [vmem:[%s10 + $0x228] sm:$0xff]
        %v2428 = vld [vmem:[%s10 + $0x230] sm:$0xff]
        %v2429 = vld [vmem:[%s10 + $0x238] sm:$0xff]
        %v2430 = vld [vmem:[%s10 + $0x240] sm:$0xff]
        %v2431 = vld [vmem:[%s10 + $0x248] sm:$0xff]
        %v2432 = vld [vmem:[%s10 + $0x250] sm:$0xff]
        %v2433 = vld [vmem:[%s10 + $0x258] sm:$0xff]
        %v2434 = vld [vmem:[%s10 + $0x260] sm:$0xff]
        %v2435 = vld [vmem:[%s10 + $0x268] sm:$0xff]
        %v2436 = vld [vmem:[%s10 + $0x270] sm:$0xff]
        %v2437 = vld [vmem:[%s10 + $0x278] sm:$0xff]
        %v2438 = vld [vmem:[%s10 + $0x280] sm:$0xff]
        %v2439 = vld [vmem:[%s10 + $0x288] sm:$0xff]
        %v2440 = vld [vmem:[%s10 + $0x290] sm:$0xff]
        %v2441 = vld [vmem:[%s10 + $0x298] sm:$0xff]
        %v2442 = vld [vmem:[%s10 + $0x2a0] sm:$0xff]
        %v2443 = vld [vmem:[%s10 + $0x2a8] sm:$0xff]
        %v2444 = vld [vmem:[%s10 + $0x2b0] sm:$0xff]
        %v2445 = vld [vmem:[%s10 + $0x2b8] sm:$0xff]
        %v2446 = vld [vmem:[%s10 + $0x2c0] sm:$0xff]
        %v2447 = vld [vmem:[%s10 + $0x2c8] sm:$0xff]
        %v2448 = vld [vmem:[%s10 + $0x2d0] sm:$0xff]
        %v2449 = vld [vmem:[%s10 + $0x2d8] sm:$0xff]
        %v2450 = vld [vmem:[%s10 + $0x2e0] sm:$0xff]
        %v2451 = vld [vmem:[%s10 + $0x2e8] sm:$0xff]
        %v2452 = vld [vmem:[%s10 + $0x2f0] sm:$0xff]
        %v2453 = vld [vmem:[%s10 + $0x2f8] sm:$0xff]
        %v2454 = vld [vmem:[%s10 + $0x300] sm:$0xff]
        %v2455 = vld [vmem:[%s10 + $0x308] sm:$0xff]
        %v2456 = vld [vmem:[%s10 + $0x310] sm:$0xff]
        %v2457 = vld [vmem:[%s10 + $0x318] sm:$0xff]
        %v2458 = vld [vmem:[%s10 + $0x320] sm:$0xff]
        %v2459 = vld [vmem:[%s10 + $0x328] sm:$0xff]
        %v2460 = vld [vmem:[%s10 + $0x330] sm:$0xff]
        %v2461 = vld [vmem:[%s10 + $0x338] sm:$0xff]
        %v2462 = vld [vmem:[%s10 + $0x340] sm:$0xff]
        %v2463 = vld [vmem:[%s10 + $0x348] sm:$0xff]
        %v2464 = vld [vmem:[%s10 + $0x350] sm:$0xff]
        %v2465 = vld [vmem:[%s10 + $0x358] sm:$0xff]
        %v2466 = vld [vmem:[%s10 + $0x360] sm:$0xff]
        %v2467 = vld [vmem:[%s10 + $0x368] sm:$0xff]
        %v2468 = vld [vmem:[%s10 + $0x370] sm:$0xff]
        %v2469 = vld [vmem:[%s10 + $0x378] sm:$0xff]
        %v2470 = vld [vmem:[%s10 + $0x380] sm:$0xff]
        %v2471 = vld [vmem:[%s10 + $0x388] sm:$0xff]
        %v2472 = vld [vmem:[%s10 + $0x390] sm:$0xff]
        %v2473 = vld [vmem:[%s10 + $0x398] sm:$0xff]
        %v2474 = vld [vmem:[%s10 + $0x3a0] sm:$0xff]
        %v2475 = vld [vmem:[%s10 + $0x3a8] sm:$0xff]
        %v2476 = vld [vmem:[%s10 + $0x3b0] sm:$0xff]
        %v2477 = vld [vmem:[%s10 + $0x3b8] sm:$0xff]
        %v2478 = vld [vmem:[%s10 + $0x3c0] sm:$0xff]
        %v2479 = vld [vmem:[%s10 + $0x3c8] sm:$0xff]
        %v2480 = vld [vmem:[%s10 + $0x3d0] sm:$0xff]
        %v2481 = vld [vmem:[%s10 + $0x3d8] sm:$0xff]
        %v2482 = vld [vmem:[%s10 + $0x3e0] sm:$0xff]
        %v2483 = vld [vmem:[%s10 + $0x3e8] sm:$0xff]
        %v2484 = vld [vmem:[%s10 + $0x3f0] sm:$0xff]
        %v2485 = vld [vmem:[%s10 + $0x3f8] sm:$0xff]
        %2487 = vset.pattern.permute.xlu0 0
        %2488 = vperm.xlu0 %2487, %v2358
        %v2489 = vpop.permute.xlu0 %2488
        %2492 = vset.pattern.permute.xlu0 0
        %2493 = vperm.xlu0 %2492, %v2359
        %v2494 = vpop.permute.xlu0 %2493
        %2497 = vset.pattern.permute.xlu0 0
        %2498 = vperm.xlu0 %2497, %v2360
        %v2499 = vpop.permute.xlu0 %2498
        %2502 = vset.pattern.permute.xlu0 0
        %2503 = vperm.xlu0 %2502, %v2361
        %v2504 = vpop.permute.xlu0 %2503
        %2507 = vset.pattern.permute.xlu0 0
        %2508 = vperm.xlu0 %2507, %v2362
        %v2509 = vpop.permute.xlu0 %2508
        %2512 = vset.pattern.permute.xlu0 0
        %2513 = vperm.xlu0 %2512, %v2363
        %v2514 = vpop.permute.xlu0 %2513
        %2517 = vset.pattern.permute.xlu0 0
        %2518 = vperm.xlu0 %2517, %v2364
        %v2519 = vpop.permute.xlu0 %2518
        %2522 = vset.pattern.permute.xlu0 0
        %2523 = vperm.xlu0 %2522, %v2365
        %v2524 = vpop.permute.xlu0 %2523
        %2527 = vset.pattern.permute.xlu0 0
        %2528 = vperm.xlu0 %2527, %v2366
        %v2529 = vpop.permute.xlu0 %2528
        %2532 = vset.pattern.permute.xlu0 0
        %2533 = vperm.xlu0 %2532, %v2367
        %v2534 = vpop.permute.xlu0 %2533
        %2537 = vset.pattern.permute.xlu0 0
        %2538 = vperm.xlu0 %2537, %v2368
        %v2539 = vpop.permute.xlu0 %2538
        %2542 = vset.pattern.permute.xlu0 0
        %2543 = vperm.xlu0 %2542, %v2369
        %v2544 = vpop.permute.xlu0 %2543
        %2547 = vset.pattern.permute.xlu0 0
        %2548 = vperm.xlu0 %2547, %v2370
        %v2549 = vpop.permute.xlu0 %2548
        %2552 = vset.pattern.permute.xlu0 0
        %2553 = vperm.xlu0 %2552, %v2371
        %v2554 = vpop.permute.xlu0 %2553
        %2557 = vset.pattern.permute.xlu0 0
        %2558 = vperm.xlu0 %2557, %v2372
        %v2559 = vpop.permute.xlu0 %2558
        %2562 = vset.pattern.permute.xlu0 0
        %2563 = vperm.xlu0 %2562, %v2373
        %v2564 = vpop.permute.xlu0 %2563
        %2567 = vset.pattern.permute.xlu0 0
        %2568 = vperm.xlu0 %2567, %v2374
        %v2569 = vpop.permute.xlu0 %2568
        %2572 = vset.pattern.permute.xlu0 0
        %2573 = vperm.xlu0 %2572, %v2375
        %v2574 = vpop.permute.xlu0 %2573
        %2577 = vset.pattern.permute.xlu0 0
        %2578 = vperm.xlu0 %2577, %v2376
        %v2579 = vpop.permute.xlu0 %2578
        %2582 = vset.pattern.permute.xlu0 0
        %2583 = vperm.xlu0 %2582, %v2377
        %v2584 = vpop.permute.xlu0 %2583
        %2587 = vset.pattern.permute.xlu0 0
        %2588 = vperm.xlu0 %2587, %v2378
        %v2589 = vpop.permute.xlu0 %2588
        %2592 = vset.pattern.permute.xlu0 0
        %2593 = vperm.xlu0 %2592, %v2379
        %v2594 = vpop.permute.xlu0 %2593
        %2597 = vset.pattern.permute.xlu0 0
        %2598 = vperm.xlu0 %2597, %v2380
        %v2599 = vpop.permute.xlu0 %2598
        %2602 = vset.pattern.permute.xlu0 0
        %2603 = vperm.xlu0 %2602, %v2381
        %v2604 = vpop.permute.xlu0 %2603
        %2607 = vset.pattern.permute.xlu0 0
        %2608 = vperm.xlu0 %2607, %v2382
        %v2609 = vpop.permute.xlu0 %2608
        %2612 = vset.pattern.permute.xlu0 0
        %2613 = vperm.xlu0 %2612, %v2383
        %v2614 = vpop.permute.xlu0 %2613
        %2617 = vset.pattern.permute.xlu0 0
        %2618 = vperm.xlu0 %2617, %v2384
        %v2619 = vpop.permute.xlu0 %2618
        %2622 = vset.pattern.permute.xlu0 0
        %2623 = vperm.xlu0 %2622, %v2385
        %v2624 = vpop.permute.xlu0 %2623
        %2627 = vset.pattern.permute.xlu0 0
        %2628 = vperm.xlu0 %2627, %v2386
        %v2629 = vpop.permute.xlu0 %2628
        %2632 = vset.pattern.permute.xlu0 0
        %2633 = vperm.xlu0 %2632, %v2387
        %v2634 = vpop.permute.xlu0 %2633
        %2637 = vset.pattern.permute.xlu0 0
        %2638 = vperm.xlu0 %2637, %v2388
        %v2639 = vpop.permute.xlu0 %2638
        %2642 = vset.pattern.permute.xlu0 0
        %2643 = vperm.xlu0 %2642, %v2389
        %v2644 = vpop.permute.xlu0 %2643
        %2647 = vset.pattern.permute.xlu0 0
        %2648 = vperm.xlu0 %2647, %v2390
        %v2649 = vpop.permute.xlu0 %2648
        %2652 = vset.pattern.permute.xlu0 0
        %2653 = vperm.xlu0 %2652, %v2391
        %v2654 = vpop.permute.xlu0 %2653
        %2657 = vset.pattern.permute.xlu0 0
        %2658 = vperm.xlu0 %2657, %v2392
        %v2659 = vpop.permute.xlu0 %2658
        %2662 = vset.pattern.permute.xlu0 0
        %2663 = vperm.xlu0 %2662, %v2393
        %v2664 = vpop.permute.xlu0 %2663
        %2667 = vset.pattern.permute.xlu0 0
        %2668 = vperm.xlu0 %2667, %v2394
        %v2669 = vpop.permute.xlu0 %2668
        %2672 = vset.pattern.permute.xlu0 0
        %2673 = vperm.xlu0 %2672, %v2395
        %v2674 = vpop.permute.xlu0 %2673
        %2677 = vset.pattern.permute.xlu0 0
        %2678 = vperm.xlu0 %2677, %v2396
        %v2679 = vpop.permute.xlu0 %2678
        %2682 = vset.pattern.permute.xlu0 0
        %2683 = vperm.xlu0 %2682, %v2397
        %v2684 = vpop.permute.xlu0 %2683
        %2687 = vset.pattern.permute.xlu0 0
        %2688 = vperm.xlu0 %2687, %v2398
        %v2689 = vpop.permute.xlu0 %2688
        %2692 = vset.pattern.permute.xlu0 0
        %2693 = vperm.xlu0 %2692, %v2399
        %v2694 = vpop.permute.xlu0 %2693
        %2697 = vset.pattern.permute.xlu0 0
        %2698 = vperm.xlu0 %2697, %v2400
        %v2699 = vpop.permute.xlu0 %2698
        %2702 = vset.pattern.permute.xlu0 0
        %2703 = vperm.xlu0 %2702, %v2401
        %v2704 = vpop.permute.xlu0 %2703
        %2707 = vset.pattern.permute.xlu0 0
        %2708 = vperm.xlu0 %2707, %v2402
        %v2709 = vpop.permute.xlu0 %2708
        %2712 = vset.pattern.permute.xlu0 0
        %2713 = vperm.xlu0 %2712, %v2403
        %v2714 = vpop.permute.xlu0 %2713
        %2717 = vset.pattern.permute.xlu0 0
        %2718 = vperm.xlu0 %2717, %v2404
        %v2719 = vpop.permute.xlu0 %2718
        %2722 = vset.pattern.permute.xlu0 0
        %2723 = vperm.xlu0 %2722, %v2405
        %v2724 = vpop.permute.xlu0 %2723
        %2727 = vset.pattern.permute.xlu0 0
        %2728 = vperm.xlu0 %2727, %v2406
        %v2729 = vpop.permute.xlu0 %2728
        %2732 = vset.pattern.permute.xlu0 0
        %2733 = vperm.xlu0 %2732, %v2407
        %v2734 = vpop.permute.xlu0 %2733
        %2737 = vset.pattern.permute.xlu0 0
        %2738 = vperm.xlu0 %2737, %v2408
        %v2739 = vpop.permute.xlu0 %2738
        %2742 = vset.pattern.permute.xlu0 0
        %2743 = vperm.xlu0 %2742, %v2409
        %v2744 = vpop.permute.xlu0 %2743
        %2747 = vset.pattern.permute.xlu0 0
        %2748 = vperm.xlu0 %2747, %v2410
        %v2749 = vpop.permute.xlu0 %2748
        %2752 = vset.pattern.permute.xlu0 0
        %2753 = vperm.xlu0 %2752, %v2411
        %v2754 = vpop.permute.xlu0 %2753
        %2757 = vset.pattern.permute.xlu0 0
        %2758 = vperm.xlu0 %2757, %v2412
        %v2759 = vpop.permute.xlu0 %2758
        %2762 = vset.pattern.permute.xlu0 0
        %2763 = vperm.xlu0 %2762, %v2413
        %v2764 = vpop.permute.xlu0 %2763
        %2767 = vset.pattern.permute.xlu0 0
        %2768 = vperm.xlu0 %2767, %v2414
        %v2769 = vpop.permute.xlu0 %2768
        %2772 = vset.pattern.permute.xlu0 0
        %2773 = vperm.xlu0 %2772, %v2415
        %v2774 = vpop.permute.xlu0 %2773
        %2777 = vset.pattern.permute.xlu0 0
        %2778 = vperm.xlu0 %2777, %v2416
        %v2779 = vpop.permute.xlu0 %2778
        %2782 = vset.pattern.permute.xlu0 0
        %2783 = vperm.xlu0 %2782, %v2417
        %v2784 = vpop.permute.xlu0 %2783
        %2787 = vset.pattern.permute.xlu0 0
        %2788 = vperm.xlu0 %2787, %v2418
        %v2789 = vpop.permute.xlu0 %2788
        %2792 = vset.pattern.permute.xlu0 0
        %2793 = vperm.xlu0 %2792, %v2419
        %v2794 = vpop.permute.xlu0 %2793
        %2797 = vset.pattern.permute.xlu0 0
        %2798 = vperm.xlu0 %2797, %v2420
        %v2799 = vpop.permute.xlu0 %2798
        %2802 = vset.pattern.permute.xlu0 0
        %2803 = vperm.xlu0 %2802, %v2421
        %v2804 = vpop.permute.xlu0 %2803
        %2807 = vset.pattern.permute.xlu0 0
        %2808 = vperm.xlu0 %2807, %v2422
        %v2809 = vpop.permute.xlu0 %2808
        %2812 = vset.pattern.permute.xlu0 0
        %2813 = vperm.xlu0 %2812, %v2423
        %v2814 = vpop.permute.xlu0 %2813
        %2817 = vset.pattern.permute.xlu0 0
        %2818 = vperm.xlu0 %2817, %v2424
        %v2819 = vpop.permute.xlu0 %2818
        %2822 = vset.pattern.permute.xlu0 0
        %2823 = vperm.xlu0 %2822, %v2425
        %v2824 = vpop.permute.xlu0 %2823
        %2827 = vset.pattern.permute.xlu0 0
        %2828 = vperm.xlu0 %2827, %v2426
        %v2829 = vpop.permute.xlu0 %2828
        %2832 = vset.pattern.permute.xlu0 0
        %2833 = vperm.xlu0 %2832, %v2427
        %v2834 = vpop.permute.xlu0 %2833
        %2837 = vset.pattern.permute.xlu0 0
        %2838 = vperm.xlu0 %2837, %v2428
        %v2839 = vpop.permute.xlu0 %2838
        %2842 = vset.pattern.permute.xlu0 0
        %2843 = vperm.xlu0 %2842, %v2429
        %v2844 = vpop.permute.xlu0 %2843
        %2847 = vset.pattern.permute.xlu0 0
        %2848 = vperm.xlu0 %2847, %v2430
        %v2849 = vpop.permute.xlu0 %2848
        %2852 = vset.pattern.permute.xlu0 0
        %2853 = vperm.xlu0 %2852, %v2431
        %v2854 = vpop.permute.xlu0 %2853
        %2857 = vset.pattern.permute.xlu0 0
        %2858 = vperm.xlu0 %2857, %v2432
        %v2859 = vpop.permute.xlu0 %2858
        %2862 = vset.pattern.permute.xlu0 0
        %2863 = vperm.xlu0 %2862, %v2433
        %v2864 = vpop.permute.xlu0 %2863
        %2867 = vset.pattern.permute.xlu0 0
        %2868 = vperm.xlu0 %2867, %v2434
        %v2869 = vpop.permute.xlu0 %2868
        %2872 = vset.pattern.permute.xlu0 0
        %2873 = vperm.xlu0 %2872, %v2435
        %v2874 = vpop.permute.xlu0 %2873
        %2877 = vset.pattern.permute.xlu0 0
        %2878 = vperm.xlu0 %2877, %v2436
        %v2879 = vpop.permute.xlu0 %2878
        %2882 = vset.pattern.permute.xlu0 0
        %2883 = vperm.xlu0 %2882, %v2437
        %v2884 = vpop.permute.xlu0 %2883
        %2887 = vset.pattern.permute.xlu0 0
        %2888 = vperm.xlu0 %2887, %v2438
        %v2889 = vpop.permute.xlu0 %2888
        %2892 = vset.pattern.permute.xlu0 0
        %2893 = vperm.xlu0 %2892, %v2439
        %v2894 = vpop.permute.xlu0 %2893
        %2897 = vset.pattern.permute.xlu0 0
        %2898 = vperm.xlu0 %2897, %v2440
        %v2899 = vpop.permute.xlu0 %2898
        %2902 = vset.pattern.permute.xlu0 0
        %2903 = vperm.xlu0 %2902, %v2441
        %v2904 = vpop.permute.xlu0 %2903
        %2907 = vset.pattern.permute.xlu0 0
        %2908 = vperm.xlu0 %2907, %v2442
        %v2909 = vpop.permute.xlu0 %2908
        %2912 = vset.pattern.permute.xlu0 0
        %2913 = vperm.xlu0 %2912, %v2443
        %v2914 = vpop.permute.xlu0 %2913
        %2917 = vset.pattern.permute.xlu0 0
        %2918 = vperm.xlu0 %2917, %v2444
        %v2919 = vpop.permute.xlu0 %2918
        %2922 = vset.pattern.permute.xlu0 0
        %2923 = vperm.xlu0 %2922, %v2445
        %v2924 = vpop.permute.xlu0 %2923
        %2927 = vset.pattern.permute.xlu0 0
        %2928 = vperm.xlu0 %2927, %v2446
        %v2929 = vpop.permute.xlu0 %2928
        %2932 = vset.pattern.permute.xlu0 0
        %2933 = vperm.xlu0 %2932, %v2447
        %v2934 = vpop.permute.xlu0 %2933
        %2937 = vset.pattern.permute.xlu0 0
        %2938 = vperm.xlu0 %2937, %v2448
        %v2939 = vpop.permute.xlu0 %2938
        %2942 = vset.pattern.permute.xlu0 0
        %2943 = vperm.xlu0 %2942, %v2449
        %v2944 = vpop.permute.xlu0 %2943
        %2947 = vset.pattern.permute.xlu0 0
        %2948 = vperm.xlu0 %2947, %v2450
        %v2949 = vpop.permute.xlu0 %2948
        %2952 = vset.pattern.permute.xlu0 0
        %2953 = vperm.xlu0 %2952, %v2451
        %v2954 = vpop.permute.xlu0 %2953
        %2957 = vset.pattern.permute.xlu0 0
        %2958 = vperm.xlu0 %2957, %v2452
        %v2959 = vpop.permute.xlu0 %2958
        %2962 = vset.pattern.permute.xlu0 0
        %2963 = vperm.xlu0 %2962, %v2453
        %v2964 = vpop.permute.xlu0 %2963
        %2967 = vset.pattern.permute.xlu0 0
        %2968 = vperm.xlu0 %2967, %v2454
        %v2969 = vpop.permute.xlu0 %2968
        %2972 = vset.pattern.permute.xlu0 0
        %2973 = vperm.xlu0 %2972, %v2455
        %v2974 = vpop.permute.xlu0 %2973
        %2977 = vset.pattern.permute.xlu0 0
        %2978 = vperm.xlu0 %2977, %v2456
        %v2979 = vpop.permute.xlu0 %2978
        %2982 = vset.pattern.permute.xlu0 0
        %2983 = vperm.xlu0 %2982, %v2457
        %v2984 = vpop.permute.xlu0 %2983
        %2987 = vset.pattern.permute.xlu0 0
        %2988 = vperm.xlu0 %2987, %v2458
        %v2989 = vpop.permute.xlu0 %2988
        %2992 = vset.pattern.permute.xlu0 0
        %2993 = vperm.xlu0 %2992, %v2459
        %v2994 = vpop.permute.xlu0 %2993
        %2997 = vset.pattern.permute.xlu0 0
        %2998 = vperm.xlu0 %2997, %v2460
        %v2999 = vpop.permute.xlu0 %2998
        %3002 = vset.pattern.permute.xlu0 0
        %3003 = vperm.xlu0 %3002, %v2461
        %v3004 = vpop.permute.xlu0 %3003
        %3007 = vset.pattern.permute.xlu0 0
        %3008 = vperm.xlu0 %3007, %v2462
        %v3009 = vpop.permute.xlu0 %3008
        %3012 = vset.pattern.permute.xlu0 0
        %3013 = vperm.xlu0 %3012, %v2463
        %v3014 = vpop.permute.xlu0 %3013
        %3017 = vset.pattern.permute.xlu0 0
        %3018 = vperm.xlu0 %3017, %v2464
        %v3019 = vpop.permute.xlu0 %3018
        %3022 = vset.pattern.permute.xlu0 0
        %3023 = vperm.xlu0 %3022, %v2465
        %v3024 = vpop.permute.xlu0 %3023
        %3027 = vset.pattern.permute.xlu0 0
        %3028 = vperm.xlu0 %3027, %v2466
        %v3029 = vpop.permute.xlu0 %3028
        %3032 = vset.pattern.permute.xlu0 0
        %3033 = vperm.xlu0 %3032, %v2467
        %v3034 = vpop.permute.xlu0 %3033
        %3037 = vset.pattern.permute.xlu0 0
        %3038 = vperm.xlu0 %3037, %v2468
        %v3039 = vpop.permute.xlu0 %3038
        %3042 = vset.pattern.permute.xlu0 0
        %3043 = vperm.xlu0 %3042, %v2469
        %v3044 = vpop.permute.xlu0 %3043
        %3047 = vset.pattern.permute.xlu0 0
        %3048 = vperm.xlu0 %3047, %v2470
        %v3049 = vpop.permute.xlu0 %3048
        %3052 = vset.pattern.permute.xlu0 0
        %3053 = vperm.xlu0 %3052, %v2471
        %v3054 = vpop.permute.xlu0 %3053
        %3057 = vset.pattern.permute.xlu0 0
        %3058 = vperm.xlu0 %3057, %v2472
        %v3059 = vpop.permute.xlu0 %3058
        %3062 = vset.pattern.permute.xlu0 0
        %3063 = vperm.xlu0 %3062, %v2473
        %v3064 = vpop.permute.xlu0 %3063
        %3067 = vset.pattern.permute.xlu0 0
        %3068 = vperm.xlu0 %3067, %v2474
        %v3069 = vpop.permute.xlu0 %3068
        %3072 = vset.pattern.permute.xlu0 0
        %3073 = vperm.xlu0 %3072, %v2475
        %v3074 = vpop.permute.xlu0 %3073
        %3077 = vset.pattern.permute.xlu0 0
        %3078 = vperm.xlu0 %3077, %v2476
        %v3079 = vpop.permute.xlu0 %3078
        %3082 = vset.pattern.permute.xlu0 0
        %3083 = vperm.xlu0 %3082, %v2477
        %v3084 = vpop.permute.xlu0 %3083
        %3087 = vset.pattern.permute.xlu0 0
        %3088 = vperm.xlu0 %3087, %v2478
        %v3089 = vpop.permute.xlu0 %3088
        %3092 = vset.pattern.permute.xlu0 0
        %3093 = vperm.xlu0 %3092, %v2479
        %v3094 = vpop.permute.xlu0 %3093
        %3097 = vset.pattern.permute.xlu0 0
        %3098 = vperm.xlu0 %3097, %v2480
        %v3099 = vpop.permute.xlu0 %3098
        %3102 = vset.pattern.permute.xlu0 0
        %3103 = vperm.xlu0 %3102, %v2481
        %v3104 = vpop.permute.xlu0 %3103
        %3107 = vset.pattern.permute.xlu0 0
        %3108 = vperm.xlu0 %3107, %v2482
        %v3109 = vpop.permute.xlu0 %3108
        %3112 = vset.pattern.permute.xlu0 0
        %3113 = vperm.xlu0 %3112, %v2483
        %v3114 = vpop.permute.xlu0 %3113
        %3117 = vset.pattern.permute.xlu0 0
        %3118 = vperm.xlu0 %3117, %v2484
        %v3119 = vpop.permute.xlu0 %3118
        %3122 = vset.pattern.permute.xlu0 0
        %3123 = vperm.xlu0 %3122, %v2485
        %v3124 = vpop.permute.xlu0 %3123
        %v3254 = vunpack.c.l.b16 %v2230
        %v3255 = vunpack.c.l.b16 %v2231
        %v3256 = vunpack.c.l.b16 %v2232
        %v3257 = vunpack.c.l.b16 %v2233
        %v3258 = vunpack.c.l.b16 %v2234
        %v3259 = vunpack.c.l.b16 %v2235
        %v3260 = vunpack.c.l.b16 %v2236
        %v3261 = vunpack.c.l.b16 %v2237
        %v3262 = vunpack.c.l.b16 %v2238
        %v3263 = vunpack.c.l.b16 %v2239
        %v3264 = vunpack.c.l.b16 %v2240
        %v3265 = vunpack.c.l.b16 %v2241
        %v3266 = vunpack.c.l.b16 %v2242
        %v3267 = vunpack.c.l.b16 %v2243
        %v3268 = vunpack.c.l.b16 %v2244
        %v3269 = vunpack.c.l.b16 %v2245
        %v3270 = vunpack.c.l.b16 %v2246
        %v3271 = vunpack.c.l.b16 %v2247
        %v3272 = vunpack.c.l.b16 %v2248
        %v3273 = vunpack.c.l.b16 %v2249
        %v3274 = vunpack.c.l.b16 %v2250
        %v3275 = vunpack.c.l.b16 %v2251
        %v3276 = vunpack.c.l.b16 %v2252
        %v3277 = vunpack.c.l.b16 %v2253
        %v3278 = vunpack.c.l.b16 %v2254
        %v3279 = vunpack.c.l.b16 %v2255
        %v3280 = vunpack.c.l.b16 %v2256
        %v3281 = vunpack.c.l.b16 %v2257
        %v3282 = vunpack.c.l.b16 %v2258
        %v3283 = vunpack.c.l.b16 %v2259
        %v3284 = vunpack.c.l.b16 %v2260
        %v3285 = vunpack.c.l.b16 %v2261
        %v3286 = vunpack.c.l.b16 %v2262
        %v3287 = vunpack.c.l.b16 %v2263
        %v3288 = vunpack.c.l.b16 %v2264
        %v3289 = vunpack.c.l.b16 %v2265
        %v3290 = vunpack.c.l.b16 %v2266
        %v3291 = vunpack.c.l.b16 %v2267
        %v3292 = vunpack.c.l.b16 %v2268
        %v3293 = vunpack.c.l.b16 %v2269
        %v3294 = vunpack.c.l.b16 %v2270
        %v3295 = vunpack.c.l.b16 %v2271
        %v3296 = vunpack.c.l.b16 %v2272
        %v3297 = vunpack.c.l.b16 %v2273
        %v3298 = vunpack.c.l.b16 %v2274
        %v3299 = vunpack.c.l.b16 %v2275
        %v3300 = vunpack.c.l.b16 %v2276
        %v3301 = vunpack.c.l.b16 %v2277
        %v3302 = vunpack.c.l.b16 %v2278
        %v3303 = vunpack.c.l.b16 %v2279
        %v3304 = vunpack.c.l.b16 %v2280
        %v3305 = vunpack.c.l.b16 %v2281
        %v3306 = vunpack.c.l.b16 %v2282
        %v3307 = vunpack.c.l.b16 %v2283
        %v3308 = vunpack.c.l.b16 %v2284
        %v3309 = vunpack.c.l.b16 %v2285
        %v3310 = vunpack.c.l.b16 %v2286
        %v3311 = vunpack.c.l.b16 %v2287
        %v3312 = vunpack.c.l.b16 %v2288
        %v3313 = vunpack.c.l.b16 %v2289
        %v3314 = vunpack.c.l.b16 %v2290
        %v3315 = vunpack.c.l.b16 %v2291
        %v3316 = vunpack.c.l.b16 %v2292
        %v3317 = vunpack.c.l.b16 %v2293
        %v3318 = vunpack.c.l.b16 %v2294
        %v3319 = vunpack.c.l.b16 %v2295
        %v3320 = vunpack.c.l.b16 %v2296
        %v3321 = vunpack.c.l.b16 %v2297
        %v3322 = vunpack.c.l.b16 %v2298
        %v3323 = vunpack.c.l.b16 %v2299
        %v3324 = vunpack.c.l.b16 %v2300
        %v3325 = vunpack.c.l.b16 %v2301
        %v3326 = vunpack.c.l.b16 %v2302
        %v3327 = vunpack.c.l.b16 %v2303
        %v3328 = vunpack.c.l.b16 %v2304
        %v3329 = vunpack.c.l.b16 %v2305
        %v3330 = vunpack.c.l.b16 %v2306
        %v3331 = vunpack.c.l.b16 %v2307
        %v3332 = vunpack.c.l.b16 %v2308
        %v3333 = vunpack.c.l.b16 %v2309
        %v3334 = vunpack.c.l.b16 %v2310
        %v3335 = vunpack.c.l.b16 %v2311
        %v3336 = vunpack.c.l.b16 %v2312
        %v3337 = vunpack.c.l.b16 %v2313
        %v3338 = vunpack.c.l.b16 %v2314
        %v3339 = vunpack.c.l.b16 %v2315
        %v3340 = vunpack.c.l.b16 %v2316
        %v3341 = vunpack.c.l.b16 %v2317
        %v3342 = vunpack.c.l.b16 %v2318
        %v3343 = vunpack.c.l.b16 %v2319
        %v3344 = vunpack.c.l.b16 %v2320
        %v3345 = vunpack.c.l.b16 %v2321
        %v3346 = vunpack.c.l.b16 %v2322
        %v3347 = vunpack.c.l.b16 %v2323
        %v3348 = vunpack.c.l.b16 %v2324
        %v3349 = vunpack.c.l.b16 %v2325
        %v3350 = vunpack.c.l.b16 %v2326
        %v3351 = vunpack.c.l.b16 %v2327
        %v3352 = vunpack.c.l.b16 %v2328
        %v3353 = vunpack.c.l.b16 %v2329
        %v3354 = vunpack.c.l.b16 %v2330
        %v3355 = vunpack.c.l.b16 %v2331
        %v3356 = vunpack.c.l.b16 %v2332
        %v3357 = vunpack.c.l.b16 %v2333
        %v3358 = vunpack.c.l.b16 %v2334
        %v3359 = vunpack.c.l.b16 %v2335
        %v3360 = vunpack.c.l.b16 %v2336
        %v3361 = vunpack.c.l.b16 %v2337
        %v3362 = vunpack.c.l.b16 %v2338
        %v3363 = vunpack.c.l.b16 %v2339
        %v3364 = vunpack.c.l.b16 %v2340
        %v3365 = vunpack.c.l.b16 %v2341
        %v3366 = vunpack.c.l.b16 %v2342
        %v3367 = vunpack.c.l.b16 %v2343
        %v3368 = vunpack.c.l.b16 %v2344
        %v3369 = vunpack.c.l.b16 %v2345
        %v3370 = vunpack.c.l.b16 %v2346
        %v3371 = vunpack.c.l.b16 %v2347
        %v3372 = vunpack.c.l.b16 %v2348
        %v3373 = vunpack.c.l.b16 %v2349
        %v3374 = vunpack.c.l.b16 %v2350
        %v3375 = vunpack.c.l.b16 %v2351
        %v3376 = vunpack.c.l.b16 %v2352
        %v3377 = vunpack.c.l.b16 %v2353
        %v3378 = vunpack.c.l.b16 %v2354
        %v3379 = vunpack.c.l.b16 %v2355
        %v3380 = vunpack.c.l.b16 %v2356
        %v3381 = vunpack.c.l.b16 %v2357
        %v3382 = vpack.c.b16 %v3255, %v3254
        %v3383 = vpack.c.b16 %v3257, %v3256
        %v3384 = vpack.c.b16 %v3259, %v3258
        %v3385 = vpack.c.b16 %v3261, %v3260
        %v3386 = vpack.c.b16 %v3263, %v3262
        %v3387 = vpack.c.b16 %v3265, %v3264
        %v3388 = vpack.c.b16 %v3267, %v3266
        %v3389 = vpack.c.b16 %v3269, %v3268
        %v3390 = vpack.c.b16 %v3271, %v3270
        %v3391 = vpack.c.b16 %v3273, %v3272
        %v3392 = vpack.c.b16 %v3275, %v3274
        %v3393 = vpack.c.b16 %v3277, %v3276
        %v3394 = vpack.c.b16 %v3279, %v3278
        %v3395 = vpack.c.b16 %v3281, %v3280
        %v3396 = vpack.c.b16 %v3283, %v3282
        %v3397 = vpack.c.b16 %v3285, %v3284
        %v3398 = vpack.c.b16 %v3287, %v3286
        %v3399 = vpack.c.b16 %v3289, %v3288
        %v3400 = vpack.c.b16 %v3291, %v3290
        %v3401 = vpack.c.b16 %v3293, %v3292
        %v3402 = vpack.c.b16 %v3295, %v3294
        %v3403 = vpack.c.b16 %v3297, %v3296
        %v3404 = vpack.c.b16 %v3299, %v3298
        %v3405 = vpack.c.b16 %v3301, %v3300
        %v3406 = vpack.c.b16 %v3303, %v3302
        %v3407 = vpack.c.b16 %v3305, %v3304
        %v3408 = vpack.c.b16 %v3307, %v3306
        %v3409 = vpack.c.b16 %v3309, %v3308
        %v3410 = vpack.c.b16 %v3311, %v3310
        %v3411 = vpack.c.b16 %v3313, %v3312
        %v3412 = vpack.c.b16 %v3315, %v3314
        %v3413 = vpack.c.b16 %v3317, %v3316
        %v3414 = vpack.c.b16 %v3319, %v3318
        %v3415 = vpack.c.b16 %v3321, %v3320
        %v3416 = vpack.c.b16 %v3323, %v3322
        %v3417 = vpack.c.b16 %v3325, %v3324
        %v3418 = vpack.c.b16 %v3327, %v3326
        %v3419 = vpack.c.b16 %v3329, %v3328
        %v3420 = vpack.c.b16 %v3331, %v3330
        %v3421 = vpack.c.b16 %v3333, %v3332
        %v3422 = vpack.c.b16 %v3335, %v3334
        %v3423 = vpack.c.b16 %v3337, %v3336
        %v3424 = vpack.c.b16 %v3339, %v3338
        %v3425 = vpack.c.b16 %v3341, %v3340
        %v3426 = vpack.c.b16 %v3343, %v3342
        %v3427 = vpack.c.b16 %v3345, %v3344
        %v3428 = vpack.c.b16 %v3347, %v3346
        %v3429 = vpack.c.b16 %v3349, %v3348
        %v3430 = vpack.c.b16 %v3351, %v3350
        %v3431 = vpack.c.b16 %v3353, %v3352
        %v3432 = vpack.c.b16 %v3355, %v3354
        %v3433 = vpack.c.b16 %v3357, %v3356
        %v3434 = vpack.c.b16 %v3359, %v3358
        %v3435 = vpack.c.b16 %v3361, %v3360
        %v3436 = vpack.c.b16 %v3363, %v3362
        %v3437 = vpack.c.b16 %v3365, %v3364
        %v3438 = vpack.c.b16 %v3367, %v3366
        %v3439 = vpack.c.b16 %v3369, %v3368
        %v3440 = vpack.c.b16 %v3371, %v3370
        %v3441 = vpack.c.b16 %v3373, %v3372
        %v3442 = vpack.c.b16 %v3375, %v3374
        %v3443 = vpack.c.b16 %v3377, %v3376
        %v3444 = vpack.c.b16 %v3379, %v3378
        %v3445 = vpack.c.b16 %v3381, %v3380
        %3510 = vmatprep.subr.bf16.mxu0 %v2215
        %3511 = vmatpush1.bf16.msra.mxu0 %v2214
        %3512 = vmatprep.subr.bf16.mxu0 %v2217
        %3513 = vmatpush1.bf16.msra.mxu0 %v2216
        %3514 = vmatprep.subr.bf16.mxu0 %v2219
        %3515 = vmatpush1.bf16.msra.mxu0 %v2218
        %3516 = vmatprep.subr.bf16.mxu0 %v2221
        %3517 = vmatpush1.bf16.msra.mxu0 %v2220
        %3518 = vmatprep.subr.bf16.mxu0 %v2223
        %3519 = vmatpush1.bf16.msra.mxu0 %v2222
        %3520 = vmatprep.subr.bf16.mxu0 %v2225
        %3521 = vmatpush1.bf16.msra.mxu0 %v2224
        %3522 = vmatprep.subr.bf16.mxu0 %v2227
        %3523 = vmatpush1.bf16.msra.mxu0 %v2226
        %3524 = vmatprep.subr.bf16.mxu0 %v2229
        %3525 = vmatpush1.bf16.msra.mxu0 %v2228
        %3526 = vmatprep.subr.bf16.mxu0 0
        %3527 = vmatpush1.bf16.msra.mxu0 0
        %3528 = vmatprep.subr.bf16.mxu0 0
        %3529 = vmatpush1.bf16.msra.mxu0 0
        %3530 = vmatprep.subr.bf16.mxu0 0
        %3531 = vmatpush1.bf16.msra.mxu0 0
        %3532 = vmatprep.subr.bf16.mxu0 0
        %3533 = vmatpush1.bf16.msra.mxu0 0
        %3534 = vmatprep.subr.bf16.mxu0 0
        %3535 = vmatpush1.bf16.msra.mxu0 0
        %3536 = vmatprep.subr.bf16.mxu0 0
        %3537 = vmatpush1.bf16.msra.mxu0 0
        %3538 = vmatprep.subr.bf16.mxu0 0
        %3539 = vmatpush1.bf16.msra.mxu0 0
        %3540 = vmatprep.subr.bf16.mxu0 0
        %3541 = vmatpush1.bf16.msra.mxu0 0
        %3542 = vmatprep.mubr.bf16.mxu0 0
        %3543 = vmatmul.mubr.bf16.gmra.mrb[0].mxu0 %v3382
        %v3544 = vpop.f32.mrb[0].mxu0
        %v3545 = vadd.f32 %v2489, %v3544
        %v3546 = vpop.f32.mrb[0].mxu0
        %v3547 = vadd.f32 %v2489, %v3546
        %v3548 = vpop.f32.mrb[0].mxu0
        %v3549 = vadd.f32 %v2494, %v3548
        %v3550 = vpop.f32.mrb[0].mxu0
        %v3551 = vadd.f32 %v2494, %v3550
        %3552 = vmatprep.mubr.bf16.mxu0 0
        %3553 = vmatmul.mubr.bf16.gmra.mrb[0].mxu0 %v3383
        %v3554 = vpop.f32.mrb[0].mxu0
        %v3555 = vadd.f32 %v2499, %v3554
        %v3556 = vpop.f32.mrb[0].mxu0
        %v3557 = vadd.f32 %v2499, %v3556
        %v3558 = vpop.f32.mrb[0].mxu0
        %v3559 = vadd.f32 %v2504, %v3558
        %v3560 = vpop.f32.mrb[0].mxu0
        %v3561 = vadd.f32 %v2504, %v3560
        %3562 = vmatprep.mubr.bf16.mxu0 0
        %3563 = vmatmul.mubr.bf16.gmra.mrb[0].mxu0 %v3384
        %v3564 = vpop.f32.mrb[0].mxu0
        %v3565 = vadd.f32 %v2509, %v3564
        %v3566 = vpop.f32.mrb[0].mxu0
        %v3567 = vadd.f32 %v2509, %v3566
        %v3568 = vpop.f32.mrb[0].mxu0
        %v3569 = vadd.f32 %v2514, %v3568
        %v3570 = vpop.f32.mrb[0].mxu0
        %v3571 = vadd.f32 %v2514, %v3570
        %3572 = vmatprep.mubr.bf16.mxu0 0
        %3573 = vmatmul.mubr.bf16.gmra.mrb[0].mxu0 %v3385
        %v3574 = vpop.f32.mrb[0].mxu0
        %v3575 = vadd.f32 %v2519, %v3574
        %v3576 = vpop.f32.mrb[0].mxu0
        %v3577 = vadd.f32 %v2519, %v3576
        %v3578 = vpop.f32.mrb[0].mxu0
        %v3579 = vadd.f32 %v2524, %v3578
        %v3580 = vpop.f32.mrb[0].mxu0
        %v3581 = vadd.f32 %v2524, %v3580
        %3582 = vmatprep.mubr.bf16.mxu0 0
        %3583 = vmatmul.mubr.bf16.gmra.mrb[0].mxu0 %v3386
        %v3584 = vpop.f32.mrb[0].mxu0
        %v3585 = vadd.f32 %v2529, %v3584
        %v3586 = vpop.f32.mrb[0].mxu0
        %v3587 = vadd.f32 %v2529, %v3586
        %v3588 = vpop.f32.mrb[0].mxu0
        %v3589 = vadd.f32 %v2534, %v3588
        %v3590 = vpop.f32.mrb[0].mxu0
        %v3591 = vadd.f32 %v2534, %v3590
        %3592 = vmatprep.mubr.bf16.mxu0 0
        %3593 = vmatmul.mubr.bf16.gmra.mrb[0].mxu0 %v3387
        %v3594 = vpop.f32.mrb[0].mxu0
        %v3595 = vadd.f32 %v2539, %v3594
        %v3596 = vpop.f32.mrb[0].mxu0
        %v3597 = vadd.f32 %v2539, %v3596
        %v3598 = vpop.f32.mrb[0].mxu0
        %v3599 = vadd.f32 %v2544, %v3598
        %v3600 = vpop.f32.mrb[0].mxu0
        %v3601 = vadd.f32 %v2544, %v3600
        %3602 = vmatprep.mubr.bf16.mxu0 0
        %3603 = vmatmul.mubr.bf16.gmra.mrb[0].mxu0 %v3388
        %v3604 = vpop.f32.mrb[0].mxu0
        %v3605 = vadd.f32 %v2549, %v3604
        %v3606 = vpop.f32.mrb[0].mxu0
        %v3607 = vadd.f32 %v2549, %v3606
        %v3608 = vpop.f32.mrb[0].mxu0
        %v3609 = vadd.f32 %v2554, %v3608
        %v3610 = vpop.f32.mrb[0].mxu0
        %v3611 = vadd.f32 %v2554, %v3610
        %3612 = vmatprep.mubr.bf16.mxu0 0
        %3613 = vmatmul.mubr.bf16.gmra.mrb[0].mxu0 %v3389
        %v3614 = vpop.f32.mrb[0].mxu0
        %v3615 = vadd.f32 %v2559, %v3614
        %v3616 = vpop.f32.mrb[0].mxu0
        %v3617 = vadd.f32 %v2559, %v3616
        %v3618 = vpop.f32.mrb[0].mxu0
        %v3619 = vadd.f32 %v2564, %v3618
        %v3620 = vpop.f32.mrb[0].mxu0
        %v3621 = vadd.f32 %v2564, %v3620
        %3622 = vmatprep.mubr.bf16.mxu0 0
        %3623 = vmatmul.mubr.bf16.gmra.mrb[0].mxu0 %v3390
        %v3624 = vpop.f32.mrb[0].mxu0
        %v3625 = vadd.f32 %v2569, %v3624
        %v3626 = vpop.f32.mrb[0].mxu0
        %v3627 = vadd.f32 %v2569, %v3626
        %v3628 = vpop.f32.mrb[0].mxu0
        %v3629 = vadd.f32 %v2574, %v3628
        %v3630 = vpop.f32.mrb[0].mxu0
        %v3631 = vadd.f32 %v2574, %v3630
        %3632 = vmatprep.mubr.bf16.mxu0 0
        %3633 = vmatmul.mubr.bf16.gmra.mrb[0].mxu0 %v3391
        %v3634 = vpop.f32.mrb[0].mxu0
        %v3635 = vadd.f32 %v2579, %v3634
        %v3636 = vpop.f32.mrb[0].mxu0
        %v3637 = vadd.f32 %v2579, %v3636
        %v3638 = vpop.f32.mrb[0].mxu0
        %v3639 = vadd.f32 %v2584, %v3638
        %v3640 = vpop.f32.mrb[0].mxu0
        %v3641 = vadd.f32 %v2584, %v3640
        %3642 = vmatprep.mubr.bf16.mxu0 0
        %3643 = vmatmul.mubr.bf16.gmra.mrb[0].mxu0 %v3392
        %v3644 = vpop.f32.mrb[0].mxu0
        %v3645 = vadd.f32 %v2589, %v3644
        %v3646 = vpop.f32.mrb[0].mxu0
        %v3647 = vadd.f32 %v2589, %v3646
        %v3648 = vpop.f32.mrb[0].mxu0
        %v3649 = vadd.f32 %v2594, %v3648
        %v3650 = vpop.f32.mrb[0].mxu0
        %v3651 = vadd.f32 %v2594, %v3650
        %3652 = vmatprep.mubr.bf16.mxu0 0
        %3653 = vmatmul.mubr.bf16.gmra.mrb[0].mxu0 %v3393
        %v3654 = vpop.f32.mrb[0].mxu0
        %v3655 = vadd.f32 %v2599, %v3654
        %v3656 = vpop.f32.mrb[0].mxu0
        %v3657 = vadd.f32 %v2599, %v3656
        %v3658 = vpop.f32.mrb[0].mxu0
        %v3659 = vadd.f32 %v2604, %v3658
        %v3660 = vpop.f32.mrb[0].mxu0
        %v3661 = vadd.f32 %v2604, %v3660
        %3662 = vmatprep.mubr.bf16.mxu0 0
        %3663 = vmatmul.mubr.bf16.gmra.mrb[0].mxu0 %v3394
        %v3664 = vpop.f32.mrb[0].mxu0
        %v3665 = vadd.f32 %v2609, %v3664
        %v3666 = vpop.f32.mrb[0].mxu0
        %v3667 = vadd.f32 %v2609, %v3666
        %v3668 = vpop.f32.mrb[0].mxu0
        %v3669 = vadd.f32 %v2614, %v3668
        %v3670 = vpop.f32.mrb[0].mxu0
        %v3671 = vadd.f32 %v2614, %v3670
        %3672 = vmatprep.mubr.bf16.mxu0 0
        %3673 = vmatmul.mubr.bf16.gmra.mrb[0].mxu0 %v3395
        %v3674 = vpop.f32.mrb[0].mxu0
        %v3675 = vadd.f32 %v2619, %v3674
        %v3676 = vpop.f32.mrb[0].mxu0
        %v3677 = vadd.f32 %v2619, %v3676
        %v3678 = vpop.f32.mrb[0].mxu0
        %v3679 = vadd.f32 %v2624, %v3678
        %v3680 = vpop.f32.mrb[0].mxu0
        %v3681 = vadd.f32 %v2624, %v3680
        %3682 = vmatprep.mubr.bf16.mxu0 0
        %3683 = vmatmul.mubr.bf16.gmra.mrb[0].mxu0 %v3396
        %v3684 = vpop.f32.mrb[0].mxu0
        %v3685 = vadd.f32 %v2629, %v3684
        %v3686 = vpop.f32.mrb[0].mxu0
        %v3687 = vadd.f32 %v2629, %v3686
        %v3688 = vpop.f32.mrb[0].mxu0
        %v3689 = vadd.f32 %v2634, %v3688
        %v3690 = vpop.f32.mrb[0].mxu0
        %v3691 = vadd.f32 %v2634, %v3690
        %3692 = vmatprep.mubr.bf16.mxu0 0
        %3693 = vmatmul.mubr.bf16.gmra.mrb[0].mxu0 %v3397
        %v3694 = vpop.f32.mrb[0].mxu0
        %v3695 = vadd.f32 %v2639, %v3694
        %v3696 = vpop.f32.mrb[0].mxu0
        %v3697 = vadd.f32 %v2639, %v3696
        %v3698 = vpop.f32.mrb[0].mxu0
        %v3699 = vadd.f32 %v2644, %v3698
        %v3700 = vpop.f32.mrb[0].mxu0
        %v3701 = vadd.f32 %v2644, %v3700
        %3702 = vmatprep.mubr.bf16.mxu0 0
        %3703 = vmatmul.mubr.bf16.gmra.mrb[0].mxu0 %v3398
        %v3704 = vpop.f32.mrb[0].mxu0
        %v3705 = vadd.f32 %v2649, %v3704
        %v3706 = vpop.f32.mrb[0].mxu0
        %v3707 = vadd.f32 %v2649, %v3706
        %v3708 = vpop.f32.mrb[0].mxu0
        %v3709 = vadd.f32 %v2654, %v3708
        %v3710 = vpop.f32.mrb[0].mxu0
        %v3711 = vadd.f32 %v2654, %v3710
        %3712 = vmatprep.mubr.bf16.mxu0 0
        %3713 = vmatmul.mubr.bf16.gmra.mrb[0].mxu0 %v3399
        %v3714 = vpop.f32.mrb[0].mxu0
        %v3715 = vadd.f32 %v2659, %v3714
        %v3716 = vpop.f32.mrb[0].mxu0
        %v3717 = vadd.f32 %v2659, %v3716
        %v3718 = vpop.f32.mrb[0].mxu0
        %v3719 = vadd.f32 %v2664, %v3718
        %v3720 = vpop.f32.mrb[0].mxu0
        %v3721 = vadd.f32 %v2664, %v3720
        %3722 = vmatprep.mubr.bf16.mxu0 0
        %3723 = vmatmul.mubr.bf16.gmra.mrb[0].mxu0 %v3400
        %v3724 = vpop.f32.mrb[0].mxu0
        %v3725 = vadd.f32 %v2669, %v3724
        %v3726 = vpop.f32.mrb[0].mxu0
        %v3727 = vadd.f32 %v2669, %v3726
        %v3728 = vpop.f32.mrb[0].mxu0
        %v3729 = vadd.f32 %v2674, %v3728
        %v3730 = vpop.f32.mrb[0].mxu0
        %v3731 = vadd.f32 %v2674, %v3730
        %3732 = vmatprep.mubr.bf16.mxu0 0
        %3733 = vmatmul.mubr.bf16.gmra.mrb[0].mxu0 %v3401
        %v3734 = vpop.f32.mrb[0].mxu0
        %v3735 = vadd.f32 %v2679, %v3734
        %v3736 = vpop.f32.mrb[0].mxu0
        %v3737 = vadd.f32 %v2679, %v3736
        %v3738 = vpop.f32.mrb[0].mxu0
        %v3739 = vadd.f32 %v2684, %v3738
        %v3740 = vpop.f32.mrb[0].mxu0
        %v3741 = vadd.f32 %v2684, %v3740
        %3742 = vmatprep.mubr.bf16.mxu0 0
        %3743 = vmatmul.mubr.bf16.gmra.mrb[0].mxu0 %v3402
        %v3744 = vpop.f32.mrb[0].mxu0
        %v3745 = vadd.f32 %v2689, %v3744
        %v3746 = vpop.f32.mrb[0].mxu0
        %v3747 = vadd.f32 %v2689, %v3746
        %v3748 = vpop.f32.mrb[0].mxu0
        %v3749 = vadd.f32 %v2694, %v3748
        %v3750 = vpop.f32.mrb[0].mxu0
        %v3751 = vadd.f32 %v2694, %v3750
        %3752 = vmatprep.mubr.bf16.mxu0 0
        %3753 = vmatmul.mubr.bf16.gmra.mrb[0].mxu0 %v3403
        %v3754 = vpop.f32.mrb[0].mxu0
        %v3755 = vadd.f32 %v2699, %v3754
        %v3756 = vpop.f32.mrb[0].mxu0
        %v3757 = vadd.f32 %v2699, %v3756
        %v3758 = vpop.f32.mrb[0].mxu0
        %v3759 = vadd.f32 %v2704, %v3758
        %v3760 = vpop.f32.mrb[0].mxu0
        %v3761 = vadd.f32 %v2704, %v3760
        %3762 = vmatprep.mubr.bf16.mxu0 0
        %3763 = vmatmul.mubr.bf16.gmra.mrb[0].mxu0 %v3404
        %v3764 = vpop.f32.mrb[0].mxu0
        %v3765 = vadd.f32 %v2709, %v3764
        %v3766 = vpop.f32.mrb[0].mxu0
        %v3767 = vadd.f32 %v2709, %v3766
        %v3768 = vpop.f32.mrb[0].mxu0
        %v3769 = vadd.f32 %v2714, %v3768
        %v3770 = vpop.f32.mrb[0].mxu0
        %v3771 = vadd.f32 %v2714, %v3770
        %3772 = vmatprep.mubr.bf16.mxu0 0
        %3773 = vmatmul.mubr.bf16.gmra.mrb[0].mxu0 %v3405
        %v3774 = vpop.f32.mrb[0].mxu0
        %v3775 = vadd.f32 %v2719, %v3774
        %v3776 = vpop.f32.mrb[0].mxu0
        %v3777 = vadd.f32 %v2719, %v3776
        %v3778 = vpop.f32.mrb[0].mxu0
        %v3779 = vadd.f32 %v2724, %v3778
        %v3780 = vpop.f32.mrb[0].mxu0
        %v3781 = vadd.f32 %v2724, %v3780
        %3782 = vmatprep.mubr.bf16.mxu0 0
        %3783 = vmatmul.mubr.bf16.gmra.mrb[0].mxu0 %v3406
        %v3784 = vpop.f32.mrb[0].mxu0
        %v3785 = vadd.f32 %v2729, %v3784
        %v3786 = vpop.f32.mrb[0].mxu0
        %v3787 = vadd.f32 %v2729, %v3786
        %v3788 = vpop.f32.mrb[0].mxu0
        %v3789 = vadd.f32 %v2734, %v3788
        %v3790 = vpop.f32.mrb[0].mxu0
        %v3791 = vadd.f32 %v2734, %v3790
        %3792 = vmatprep.mubr.bf16.mxu0 0
        %3793 = vmatmul.mubr.bf16.gmra.mrb[0].mxu0 %v3407
        %v3794 = vpop.f32.mrb[0].mxu0
        %v3795 = vadd.f32 %v2739, %v3794
        %v3796 = vpop.f32.mrb[0].mxu0
        %v3797 = vadd.f32 %v2739, %v3796
        %v3798 = vpop.f32.mrb[0].mxu0
        %v3799 = vadd.f32 %v2744, %v3798
        %v3800 = vpop.f32.mrb[0].mxu0
        %v3801 = vadd.f32 %v2744, %v3800
        %3802 = vmatprep.mubr.bf16.mxu0 0
        %3803 = vmatmul.mubr.bf16.gmra.mrb[0].mxu0 %v3408
        %v3804 = vpop.f32.mrb[0].mxu0
        %v3805 = vadd.f32 %v2749, %v3804
        %v3806 = vpop.f32.mrb[0].mxu0
        %v3807 = vadd.f32 %v2749, %v3806
        %v3808 = vpop.f32.mrb[0].mxu0
        %v3809 = vadd.f32 %v2754, %v3808
        %v3810 = vpop.f32.mrb[0].mxu0
        %v3811 = vadd.f32 %v2754, %v3810
        %3812 = vmatprep.mubr.bf16.mxu0 0
        %3813 = vmatmul.mubr.bf16.gmra.mrb[0].mxu0 %v3409
        %v3814 = vpop.f32.mrb[0].mxu0
        %v3815 = vadd.f32 %v2759, %v3814
        %v3816 = vpop.f32.mrb[0].mxu0
        %v3817 = vadd.f32 %v2759, %v3816
        %v3818 = vpop.f32.mrb[0].mxu0
        %v3819 = vadd.f32 %v2764, %v3818
        %v3820 = vpop.f32.mrb[0].mxu0
        %v3821 = vadd.f32 %v2764, %v3820
        %3822 = vmatprep.mubr.bf16.mxu0 0
        %3823 = vmatmul.mubr.bf16.gmra.mrb[0].mxu0 %v3410
        %v3824 = vpop.f32.mrb[0].mxu0
        %v3825 = vadd.f32 %v2769, %v3824
        %v3826 = vpop.f32.mrb[0].mxu0
        %v3827 = vadd.f32 %v2769, %v3826
        %v3828 = vpop.f32.mrb[0].mxu0
        %v3829 = vadd.f32 %v2774, %v3828
        %v3830 = vpop.f32.mrb[0].mxu0
        %v3831 = vadd.f32 %v2774, %v3830
        %3832 = vmatprep.mubr.bf16.mxu0 0
        %3833 = vmatmul.mubr.bf16.gmra.mrb[0].mxu0 %v3411
        %v3834 = vpop.f32.mrb[0].mxu0
        %v3835 = vadd.f32 %v2779, %v3834
        %v3836 = vpop.f32.mrb[0].mxu0
        %v3837 = vadd.f32 %v2779, %v3836
        %v3838 = vpop.f32.mrb[0].mxu0
        %v3839 = vadd.f32 %v2784, %v3838
        %v3840 = vpop.f32.mrb[0].mxu0
        %v3841 = vadd.f32 %v2784, %v3840
        %3842 = vmatprep.mubr.bf16.mxu0 0
        %3843 = vmatmul.mubr.bf16.gmra.mrb[0].mxu0 %v3412
        %v3844 = vpop.f32.mrb[0].mxu0
        %v3845 = vadd.f32 %v2789, %v3844
        %v3846 = vpop.f32.mrb[0].mxu0
        %v3847 = vadd.f32 %v2789, %v3846
        %v3848 = vpop.f32.mrb[0].mxu0
        %v3849 = vadd.f32 %v2794, %v3848
        %v3850 = vpop.f32.mrb[0].mxu0
        %v3851 = vadd.f32 %v2794, %v3850
        %3852 = vmatprep.mubr.bf16.mxu0 0
        %3853 = vmatmul.mubr.bf16.gmra.mrb[0].mxu0 %v3413
        %v3854 = vpop.f32.mrb[0].mxu0
        %v3855 = vadd.f32 %v2799, %v3854
        %v3856 = vpop.f32.mrb[0].mxu0
        %v3857 = vadd.f32 %v2799, %v3856
        %v3858 = vpop.f32.mrb[0].mxu0
        %v3859 = vadd.f32 %v2804, %v3858
        %v3860 = vpop.f32.mrb[0].mxu0
        %v3861 = vadd.f32 %v2804, %v3860
        %3862 = vmatprep.mubr.bf16.mxu0 0
        %3863 = vmatmul.mubr.bf16.gmra.mrb[0].mxu0 %v3414
        %v3864 = vpop.f32.mrb[0].mxu0
        %v3865 = vadd.f32 %v2809, %v3864
        %v3866 = vpop.f32.mrb[0].mxu0
        %v3867 = vadd.f32 %v2809, %v3866
        %v3868 = vpop.f32.mrb[0].mxu0
        %v3869 = vadd.f32 %v2814, %v3868
        %v3870 = vpop.f32.mrb[0].mxu0
        %v3871 = vadd.f32 %v2814, %v3870
        %3872 = vmatprep.mubr.bf16.mxu0 0
        %3873 = vmatmul.mubr.bf16.gmra.mrb[0].mxu0 %v3415
        %v3874 = vpop.f32.mrb[0].mxu0
        %v3875 = vadd.f32 %v2819, %v3874
        %v3876 = vpop.f32.mrb[0].mxu0
        %v3877 = vadd.f32 %v2819, %v3876
        %v3878 = vpop.f32.mrb[0].mxu0
        %v3879 = vadd.f32 %v2824, %v3878
        %v3880 = vpop.f32.mrb[0].mxu0
        %v3881 = vadd.f32 %v2824, %v3880
        %3882 = vmatprep.mubr.bf16.mxu0 0
        %3883 = vmatmul.mubr.bf16.gmra.mrb[0].mxu0 %v3416
        %v3884 = vpop.f32.mrb[0].mxu0
        %v3885 = vadd.f32 %v2829, %v3884
        %v3886 = vpop.f32.mrb[0].mxu0
        %v3887 = vadd.f32 %v2829, %v3886
        %v3888 = vpop.f32.mrb[0].mxu0
        %v3889 = vadd.f32 %v2834, %v3888
        %v3890 = vpop.f32.mrb[0].mxu0
        %v3891 = vadd.f32 %v2834, %v3890
        %3892 = vmatprep.mubr.bf16.mxu0 0
        %3893 = vmatmul.mubr.bf16.gmra.mrb[0].mxu0 %v3417
        %v3894 = vpop.f32.mrb[0].mxu0
        %v3895 = vadd.f32 %v2839, %v3894
        %v3896 = vpop.f32.mrb[0].mxu0
        %v3897 = vadd.f32 %v2839, %v3896
        %v3898 = vpop.f32.mrb[0].mxu0
        %v3899 = vadd.f32 %v2844, %v3898
        %v3900 = vpop.f32.mrb[0].mxu0
        %v3901 = vadd.f32 %v2844, %v3900
        %3902 = vmatprep.mubr.bf16.mxu0 0
        %3903 = vmatmul.mubr.bf16.gmra.mrb[0].mxu0 %v3418
        %v3904 = vpop.f32.mrb[0].mxu0
        %v3905 = vadd.f32 %v2849, %v3904
        %v3906 = vpop.f32.mrb[0].mxu0
        %v3907 = vadd.f32 %v2849, %v3906
        %v3908 = vpop.f32.mrb[0].mxu0
        %v3909 = vadd.f32 %v2854, %v3908
        %v3910 = vpop.f32.mrb[0].mxu0
        %v3911 = vadd.f32 %v2854, %v3910
        %3912 = vmatprep.mubr.bf16.mxu0 0
        %3913 = vmatmul.mubr.bf16.gmra.mrb[0].mxu0 %v3419
        %v3914 = vpop.f32.mrb[0].mxu0
        %v3915 = vadd.f32 %v2859, %v3914
        %v3916 = vpop.f32.mrb[0].mxu0
        %v3917 = vadd.f32 %v2859, %v3916
        %v3918 = vpop.f32.mrb[0].mxu0
        %v3919 = vadd.f32 %v2864, %v3918
        %v3920 = vpop.f32.mrb[0].mxu0
        %v3921 = vadd.f32 %v2864, %v3920
        %3922 = vmatprep.mubr.bf16.mxu0 0
        %3923 = vmatmul.mubr.bf16.gmra.mrb[0].mxu0 %v3420
        %v3924 = vpop.f32.mrb[0].mxu0
        %v3925 = vadd.f32 %v2869, %v3924
        %v3926 = vpop.f32.mrb[0].mxu0
        %v3927 = vadd.f32 %v2869, %v3926
        %v3928 = vpop.f32.mrb[0].mxu0
        %v3929 = vadd.f32 %v2874, %v3928
        %v3930 = vpop.f32.mrb[0].mxu0
        %v3931 = vadd.f32 %v2874, %v3930
        %3932 = vmatprep.mubr.bf16.mxu0 0
        %3933 = vmatmul.mubr.bf16.gmra.mrb[0].mxu0 %v3421
        %v3934 = vpop.f32.mrb[0].mxu0
        %v3935 = vadd.f32 %v2879, %v3934
        %v3936 = vpop.f32.mrb[0].mxu0
        %v3937 = vadd.f32 %v2879, %v3936
        %v3938 = vpop.f32.mrb[0].mxu0
        %v3939 = vadd.f32 %v2884, %v3938
        %v3940 = vpop.f32.mrb[0].mxu0
        %v3941 = vadd.f32 %v2884, %v3940
        %3942 = vmatprep.mubr.bf16.mxu0 0
        %3943 = vmatmul.mubr.bf16.gmra.mrb[0].mxu0 %v3422
        %v3944 = vpop.f32.mrb[0].mxu0
        %v3945 = vadd.f32 %v2889, %v3944
        %v3946 = vpop.f32.mrb[0].mxu0
        %v3947 = vadd.f32 %v2889, %v3946
        %v3948 = vpop.f32.mrb[0].mxu0
        %v3949 = vadd.f32 %v2894, %v3948
        %v3950 = vpop.f32.mrb[0].mxu0
        %v3951 = vadd.f32 %v2894, %v3950
        %3952 = vmatprep.mubr.bf16.mxu0 0
        %3953 = vmatmul.mubr.bf16.gmra.mrb[0].mxu0 %v3423
        %v3954 = vpop.f32.mrb[0].mxu0
        %v3955 = vadd.f32 %v2899, %v3954
        %v3956 = vpop.f32.mrb[0].mxu0
        %v3957 = vadd.f32 %v2899, %v3956
        %v3958 = vpop.f32.mrb[0].mxu0
        %v3959 = vadd.f32 %v2904, %v3958
        %v3960 = vpop.f32.mrb[0].mxu0
        %v3961 = vadd.f32 %v2904, %v3960
        %3962 = vmatprep.mubr.bf16.mxu0 0
        %3963 = vmatmul.mubr.bf16.gmra.mrb[0].mxu0 %v3424
        %v3964 = vpop.f32.mrb[0].mxu0
        %v3965 = vadd.f32 %v2909, %v3964
        %v3966 = vpop.f32.mrb[0].mxu0
        %v3967 = vadd.f32 %v2909, %v3966
        %v3968 = vpop.f32.mrb[0].mxu0
        %v3969 = vadd.f32 %v2914, %v3968
        %v3970 = vpop.f32.mrb[0].mxu0
        %v3971 = vadd.f32 %v2914, %v3970
        %3972 = vmatprep.mubr.bf16.mxu0 0
        %3973 = vmatmul.mubr.bf16.gmra.mrb[0].mxu0 %v3425
        %v3974 = vpop.f32.mrb[0].mxu0
        %v3975 = vadd.f32 %v2919, %v3974
        %v3976 = vpop.f32.mrb[0].mxu0
        %v3977 = vadd.f32 %v2919, %v3976
        %v3978 = vpop.f32.mrb[0].mxu0
        %v3979 = vadd.f32 %v2924, %v3978
        %v3980 = vpop.f32.mrb[0].mxu0
        %v3981 = vadd.f32 %v2924, %v3980
        %3982 = vmatprep.mubr.bf16.mxu0 0
        %3983 = vmatmul.mubr.bf16.gmra.mrb[0].mxu0 %v3426
        %v3984 = vpop.f32.mrb[0].mxu0
        %v3985 = vadd.f32 %v2929, %v3984
        %v3986 = vpop.f32.mrb[0].mxu0
        %v3987 = vadd.f32 %v2929, %v3986
        %v3988 = vpop.f32.mrb[0].mxu0
        %v3989 = vadd.f32 %v2934, %v3988
        %v3990 = vpop.f32.mrb[0].mxu0
        %v3991 = vadd.f32 %v2934, %v3990
        %3992 = vmatprep.mubr.bf16.mxu0 0
        %3993 = vmatmul.mubr.bf16.gmra.mrb[0].mxu0 %v3427
        %v3994 = vpop.f32.mrb[0].mxu0
        %v3995 = vadd.f32 %v2939, %v3994
        %v3996 = vpop.f32.mrb[0].mxu0
        %v3997 = vadd.f32 %v2939, %v3996
        %v3998 = vpop.f32.mrb[0].mxu0
        %v3999 = vadd.f32 %v2944, %v3998
        %v4000 = vpop.f32.mrb[0].mxu0
        %v4001 = vadd.f32 %v2944, %v4000
        %4002 = vmatprep.mubr.bf16.mxu0 0
        %4003 = vmatmul.mubr.bf16.gmra.mrb[0].mxu0 %v3428
        %v4004 = vpop.f32.mrb[0].mxu0
        %v4005 = vadd.f32 %v2949, %v4004
        %v4006 = vpop.f32.mrb[0].mxu0
        %v4007 = vadd.f32 %v2949, %v4006
        %v4008 = vpop.f32.mrb[0].mxu0
        %v4009 = vadd.f32 %v2954, %v4008
        %v4010 = vpop.f32.mrb[0].mxu0
        %v4011 = vadd.f32 %v2954, %v4010
        %4012 = vmatprep.mubr.bf16.mxu0 0
        %4013 = vmatmul.mubr.bf16.gmra.mrb[0].mxu0 %v3429
        %v4014 = vpop.f32.mrb[0].mxu0
        %v4015 = vadd.f32 %v2959, %v4014
        %v4016 = vpop.f32.mrb[0].mxu0
        %v4017 = vadd.f32 %v2959, %v4016
        %v4018 = vpop.f32.mrb[0].mxu0
        %v4019 = vadd.f32 %v2964, %v4018
        %v4020 = vpop.f32.mrb[0].mxu0
        %v4021 = vadd.f32 %v2964, %v4020
        %4022 = vmatprep.mubr.bf16.mxu0 0
        %4023 = vmatmul.mubr.bf16.gmra.mrb[0].mxu0 %v3430
        %v4024 = vpop.f32.mrb[0].mxu0
        %v4025 = vadd.f32 %v2969, %v4024
        %v4026 = vpop.f32.mrb[0].mxu0
        %v4027 = vadd.f32 %v2969, %v4026
        %v4028 = vpop.f32.mrb[0].mxu0
        %v4029 = vadd.f32 %v2974, %v4028
        %v4030 = vpop.f32.mrb[0].mxu0
        %v4031 = vadd.f32 %v2974, %v4030
        %4032 = vmatprep.mubr.bf16.mxu0 0
        %4033 = vmatmul.mubr.bf16.gmra.mrb[0].mxu0 %v3431
        %v4034 = vpop.f32.mrb[0].mxu0
        %v4035 = vadd.f32 %v2979, %v4034
        %v4036 = vpop.f32.mrb[0].mxu0
        %v4037 = vadd.f32 %v2979, %v4036
        %v4038 = vpop.f32.mrb[0].mxu0
        %v4039 = vadd.f32 %v2984, %v4038
        %v4040 = vpop.f32.mrb[0].mxu0
        %v4041 = vadd.f32 %v2984, %v4040
        %4042 = vmatprep.mubr.bf16.mxu0 0
        %4043 = vmatmul.mubr.bf16.gmra.mrb[0].mxu0 %v3432
        %v4044 = vpop.f32.mrb[0].mxu0
        %v4045 = vadd.f32 %v2989, %v4044
        %v4046 = vpop.f32.mrb[0].mxu0
        %v4047 = vadd.f32 %v2989, %v4046
        %v4048 = vpop.f32.mrb[0].mxu0
        %v4049 = vadd.f32 %v2994, %v4048
        %v4050 = vpop.f32.mrb[0].mxu0
        %v4051 = vadd.f32 %v2994, %v4050
        %4052 = vmatprep.mubr.bf16.mxu0 0
        %4053 = vmatmul.mubr.bf16.gmra.mrb[0].mxu0 %v3433
        %v4054 = vpop.f32.mrb[0].mxu0
        %v4055 = vadd.f32 %v2999, %v4054
        %v4056 = vpop.f32.mrb[0].mxu0
        %v4057 = vadd.f32 %v2999, %v4056
        %v4058 = vpop.f32.mrb[0].mxu0
        %v4059 = vadd.f32 %v3004, %v4058
        %v4060 = vpop.f32.mrb[0].mxu0
        %v4061 = vadd.f32 %v3004, %v4060
        %4062 = vmatprep.mubr.bf16.mxu0 0
        %4063 = vmatmul.mubr.bf16.gmra.mrb[0].mxu0 %v3434
        %v4064 = vpop.f32.mrb[0].mxu0
        %v4065 = vadd.f32 %v3009, %v4064
        %v4066 = vpop.f32.mrb[0].mxu0
        %v4067 = vadd.f32 %v3009, %v4066
        %v4068 = vpop.f32.mrb[0].mxu0
        %v4069 = vadd.f32 %v3014, %v4068
        %v4070 = vpop.f32.mrb[0].mxu0
        %v4071 = vadd.f32 %v3014, %v4070
        %4072 = vmatprep.mubr.bf16.mxu0 0
        %4073 = vmatmul.mubr.bf16.gmra.mrb[0].mxu0 %v3435
        %v4074 = vpop.f32.mrb[0].mxu0
        %v4075 = vadd.f32 %v3019, %v4074
        %v4076 = vpop.f32.mrb[0].mxu0
        %v4077 = vadd.f32 %v3019, %v4076
        %v4078 = vpop.f32.mrb[0].mxu0
        %v4079 = vadd.f32 %v3024, %v4078
        %v4080 = vpop.f32.mrb[0].mxu0
        %v4081 = vadd.f32 %v3024, %v4080
        %4082 = vmatprep.mubr.bf16.mxu0 0
        %4083 = vmatmul.mubr.bf16.gmra.mrb[0].mxu0 %v3436
        %v4084 = vpop.f32.mrb[0].mxu0
        %v4085 = vadd.f32 %v3029, %v4084
        %v4086 = vpop.f32.mrb[0].mxu0
        %v4087 = vadd.f32 %v3029, %v4086
        %v4088 = vpop.f32.mrb[0].mxu0
        %v4089 = vadd.f32 %v3034, %v4088
        %v4090 = vpop.f32.mrb[0].mxu0
        %v4091 = vadd.f32 %v3034, %v4090
        %4092 = vmatprep.mubr.bf16.mxu0 0
        %4093 = vmatmul.mubr.bf16.gmra.mrb[0].mxu0 %v3437
        %v4094 = vpop.f32.mrb[0].mxu0
        %v4095 = vadd.f32 %v3039, %v4094
        %v4096 = vpop.f32.mrb[0].mxu0
        %v4097 = vadd.f32 %v3039, %v4096
        %v4098 = vpop.f32.mrb[0].mxu0
        %v4099 = vadd.f32 %v3044, %v4098
        %v4100 = vpop.f32.mrb[0].mxu0
        %v4101 = vadd.f32 %v3044, %v4100
        %4102 = vmatprep.mubr.bf16.mxu0 0
        %4103 = vmatmul.mubr.bf16.gmra.mrb[0].mxu0 %v3438
        %v4104 = vpop.f32.mrb[0].mxu0
        %v4105 = vadd.f32 %v3049, %v4104
        %v4106 = vpop.f32.mrb[0].mxu0
        %v4107 = vadd.f32 %v3049, %v4106
        %v4108 = vpop.f32.mrb[0].mxu0
        %v4109 = vadd.f32 %v3054, %v4108
        %v4110 = vpop.f32.mrb[0].mxu0
        %v4111 = vadd.f32 %v3054, %v4110
        %4112 = vmatprep.mubr.bf16.mxu0 0
        %4113 = vmatmul.mubr.bf16.gmra.mrb[0].mxu0 %v3439
        %v4114 = vpop.f32.mrb[0].mxu0
        %v4115 = vadd.f32 %v3059, %v4114
        %v4116 = vpop.f32.mrb[0].mxu0
        %v4117 = vadd.f32 %v3059, %v4116
        %v4118 = vpop.f32.mrb[0].mxu0
        %v4119 = vadd.f32 %v3064, %v4118
        %v4120 = vpop.f32.mrb[0].mxu0
        %v4121 = vadd.f32 %v3064, %v4120
        %4122 = vmatprep.mubr.bf16.mxu0 0
        %4123 = vmatmul.mubr.bf16.gmra.mrb[0].mxu0 %v3440
        %v4124 = vpop.f32.mrb[0].mxu0
        %v4125 = vadd.f32 %v3069, %v4124
        %v4126 = vpop.f32.mrb[0].mxu0
        %v4127 = vadd.f32 %v3069, %v4126
        %v4128 = vpop.f32.mrb[0].mxu0
        %v4129 = vadd.f32 %v3074, %v4128
        %v4130 = vpop.f32.mrb[0].mxu0
        %v4131 = vadd.f32 %v3074, %v4130
        %4132 = vmatprep.mubr.bf16.mxu0 0
        %4133 = vmatmul.mubr.bf16.gmra.mrb[0].mxu0 %v3441
        %v4134 = vpop.f32.mrb[0].mxu0
        %v4135 = vadd.f32 %v3079, %v4134
        %v4136 = vpop.f32.mrb[0].mxu0
        %v4137 = vadd.f32 %v3079, %v4136
        %v4138 = vpop.f32.mrb[0].mxu0
        %v4139 = vadd.f32 %v3084, %v4138
        %v4140 = vpop.f32.mrb[0].mxu0
        %v4141 = vadd.f32 %v3084, %v4140
        %4142 = vmatprep.mubr.bf16.mxu0 0
        %4143 = vmatmul.mubr.bf16.gmra.mrb[0].mxu0 %v3442
        %v4144 = vpop.f32.mrb[0].mxu0
        %v4145 = vadd.f32 %v3089, %v4144
        %v4146 = vpop.f32.mrb[0].mxu0
        %v4147 = vadd.f32 %v3089, %v4146
        %v4148 = vpop.f32.mrb[0].mxu0
        %v4149 = vadd.f32 %v3094, %v4148
        %v4150 = vpop.f32.mrb[0].mxu0
        %v4151 = vadd.f32 %v3094, %v4150
        %4152 = vmatprep.mubr.bf16.mxu0 0
        %4153 = vmatmul.mubr.bf16.gmra.mrb[0].mxu0 %v3443
        %v4154 = vpop.f32.mrb[0].mxu0
        %v4155 = vadd.f32 %v3099, %v4154
        %v4156 = vpop.f32.mrb[0].mxu0
        %v4157 = vadd.f32 %v3099, %v4156
        %v4158 = vpop.f32.mrb[0].mxu0
        %v4159 = vadd.f32 %v3104, %v4158
        %v4160 = vpop.f32.mrb[0].mxu0
        %v4161 = vadd.f32 %v3104, %v4160
        %4162 = vmatprep.mubr.bf16.mxu0 0
        %4163 = vmatmul.mubr.bf16.gmra.mrb[0].mxu0 %v3444
        %v4164 = vpop.f32.mrb[0].mxu0
        %v4165 = vadd.f32 %v3109, %v4164
        %v4166 = vpop.f32.mrb[0].mxu0
        %v4167 = vadd.f32 %v3109, %v4166
        %v4168 = vpop.f32.mrb[0].mxu0
        %v4169 = vadd.f32 %v3114, %v4168
        %v4170 = vpop.f32.mrb[0].mxu0
        %v4171 = vadd.f32 %v3114, %v4170
        %4172 = vmatprep.mubr.bf16.mxu0 0
        %4173 = vmatmul.mubr.bf16.gmra.mrb[0].mxu0 %v3445
        %v4174 = vpop.f32.mrb[0].mxu0
        %v4175 = vadd.f32 %v3119, %v4174
        %v4176 = vpop.f32.mrb[0].mxu0
        %v4177 = vadd.f32 %v3119, %v4176
        %v4178 = vpop.f32.mrb[0].mxu0
        %v4179 = vadd.f32 %v3124, %v4178
        %v4180 = vpop.f32.mrb[0].mxu0
        %v4181 = vadd.f32 %v3124, %v4180
        %4182 = vdwg.mxu0
        %v4183 = vmax.f32 %v3545, %v3547
        %4184 = vmax.xlane.f32.xlu0 %v4183
        %v4185 = vpop.xlane.xlu0 %4184
        %v4186 = vmax.f32 %v3549, %v3551
        %4187 = vmax.xlane.f32.xlu0 %v4186
        %v4188 = vpop.xlane.xlu0 %4187
        %v4189 = vmax.f32 %v3555, %v3557
        %4190 = vmax.xlane.f32.xlu0 %v4189
        %v4191 = vpop.xlane.xlu0 %4190
        %v4192 = vmax.f32 %v3559, %v3561
        %4193 = vmax.xlane.f32.xlu0 %v4192
        %v4194 = vpop.xlane.xlu0 %4193
        %v4195 = vmax.f32 %v3565, %v3567
        %4196 = vmax.xlane.f32.xlu0 %v4195
        %v4197 = vpop.xlane.xlu0 %4196
        %v4198 = vmax.f32 %v3569, %v3571
        %4199 = vmax.xlane.f32.xlu0 %v4198
        %v4200 = vpop.xlane.xlu0 %4199
        %v4201 = vmax.f32 %v3575, %v3577
        %4202 = vmax.xlane.f32.xlu0 %v4201
        %v4203 = vpop.xlane.xlu0 %4202
        %v4204 = vmax.f32 %v3579, %v3581
        %4205 = vmax.xlane.f32.xlu0 %v4204
        %v4206 = vpop.xlane.xlu0 %4205
        %v4207 = vmax.f32 %v3585, %v3587
        %4208 = vmax.xlane.f32.xlu0 %v4207
        %v4209 = vpop.xlane.xlu0 %4208
        %v4210 = vmax.f32 %v3589, %v3591
        %4211 = vmax.xlane.f32.xlu0 %v4210
        %v4212 = vpop.xlane.xlu0 %4211
        %v4213 = vmax.f32 %v3595, %v3597
        %4214 = vmax.xlane.f32.xlu0 %v4213
        %v4215 = vpop.xlane.xlu0 %4214
        %v4216 = vmax.f32 %v3599, %v3601
        %4217 = vmax.xlane.f32.xlu0 %v4216
        %v4218 = vpop.xlane.xlu0 %4217
        %v4219 = vmax.f32 %v3605, %v3607
        %4220 = vmax.xlane.f32.xlu0 %v4219
        %v4221 = vpop.xlane.xlu0 %4220
        %v4222 = vmax.f32 %v3609, %v3611
        %4223 = vmax.xlane.f32.xlu0 %v4222
        %v4224 = vpop.xlane.xlu0 %4223
        %v4225 = vmax.f32 %v3615, %v3617
        %4226 = vmax.xlane.f32.xlu0 %v4225
        %v4227 = vpop.xlane.xlu0 %4226
        %v4228 = vmax.f32 %v3619, %v3621
        %4229 = vmax.xlane.f32.xlu0 %v4228
        %v4230 = vpop.xlane.xlu0 %4229
        %v4231 = vmax.f32 %v3625, %v3627
        %4232 = vmax.xlane.f32.xlu0 %v4231
        %v4233 = vpop.xlane.xlu0 %4232
        %v4234 = vmax.f32 %v3629, %v3631
        %4235 = vmax.xlane.f32.xlu0 %v4234
        %v4236 = vpop.xlane.xlu0 %4235
        %v4237 = vmax.f32 %v3635, %v3637
        %4238 = vmax.xlane.f32.xlu0 %v4237
        %v4239 = vpop.xlane.xlu0 %4238
        %v4240 = vmax.f32 %v3639, %v3641
        %4241 = vmax.xlane.f32.xlu0 %v4240
        %v4242 = vpop.xlane.xlu0 %4241
        %v4243 = vmax.f32 %v3645, %v3647
        %4244 = vmax.xlane.f32.xlu0 %v4243
        %v4245 = vpop.xlane.xlu0 %4244
        %v4246 = vmax.f32 %v3649, %v3651
        %4247 = vmax.xlane.f32.xlu0 %v4246
        %v4248 = vpop.xlane.xlu0 %4247
        %v4249 = vmax.f32 %v3655, %v3657
        %4250 = vmax.xlane.f32.xlu0 %v4249
        %v4251 = vpop.xlane.xlu0 %4250
        %v4252 = vmax.f32 %v3659, %v3661
        %4253 = vmax.xlane.f32.xlu0 %v4252
        %v4254 = vpop.xlane.xlu0 %4253
        %v4255 = vmax.f32 %v3665, %v3667
        %4256 = vmax.xlane.f32.xlu0 %v4255
        %v4257 = vpop.xlane.xlu0 %4256
        %v4258 = vmax.f32 %v3669, %v3671
        %4259 = vmax.xlane.f32.xlu0 %v4258
        %v4260 = vpop.xlane.xlu0 %4259
        %v4261 = vmax.f32 %v3675, %v3677
        %4262 = vmax.xlane.f32.xlu0 %v4261
        %v4263 = vpop.xlane.xlu0 %4262
        %v4264 = vmax.f32 %v3679, %v3681
        %4265 = vmax.xlane.f32.xlu0 %v4264
        %v4266 = vpop.xlane.xlu0 %4265
        %v4267 = vmax.f32 %v3685, %v3687
        %4268 = vmax.xlane.f32.xlu0 %v4267
        %v4269 = vpop.xlane.xlu0 %4268
        %v4270 = vmax.f32 %v3689, %v3691
        %4271 = vmax.xlane.f32.xlu0 %v4270
        %v4272 = vpop.xlane.xlu0 %4271
        %v4273 = vmax.f32 %v3695, %v3697
        %4274 = vmax.xlane.f32.xlu0 %v4273
        %v4275 = vpop.xlane.xlu0 %4274
        %v4276 = vmax.f32 %v3699, %v3701
        %4277 = vmax.xlane.f32.xlu0 %v4276
        %v4278 = vpop.xlane.xlu0 %4277
        %v4279 = vmax.f32 %v3705, %v3707
        %4280 = vmax.xlane.f32.xlu0 %v4279
        %v4281 = vpop.xlane.xlu0 %4280
        %v4282 = vmax.f32 %v3709, %v3711
        %4283 = vmax.xlane.f32.xlu0 %v4282
        %v4284 = vpop.xlane.xlu0 %4283
        %v4285 = vmax.f32 %v3715, %v3717
        %4286 = vmax.xlane.f32.xlu0 %v4285
        %v4287 = vpop.xlane.xlu0 %4286
        %v4288 = vmax.f32 %v3719, %v3721
        %4289 = vmax.xlane.f32.xlu0 %v4288
        %v4290 = vpop.xlane.xlu0 %4289
        %v4291 = vmax.f32 %v3725, %v3727
        %4292 = vmax.xlane.f32.xlu0 %v4291
        %v4293 = vpop.xlane.xlu0 %4292
        %v4294 = vmax.f32 %v3729, %v3731
        %4295 = vmax.xlane.f32.xlu0 %v4294
        %v4296 = vpop.xlane.xlu0 %4295
        %v4297 = vmax.f32 %v3735, %v3737
        %4298 = vmax.xlane.f32.xlu0 %v4297
        %v4299 = vpop.xlane.xlu0 %4298
        %v4300 = vmax.f32 %v3739, %v3741
        %4301 = vmax.xlane.f32.xlu0 %v4300
        %v4302 = vpop.xlane.xlu0 %4301
        %v4303 = vmax.f32 %v3745, %v3747
        %4304 = vmax.xlane.f32.xlu0 %v4303
        %v4305 = vpop.xlane.xlu0 %4304
        %v4306 = vmax.f32 %v3749, %v3751
        %4307 = vmax.xlane.f32.xlu0 %v4306
        %v4308 = vpop.xlane.xlu0 %4307
        %v4309 = vmax.f32 %v3755, %v3757
        %4310 = vmax.xlane.f32.xlu0 %v4309
        %v4311 = vpop.xlane.xlu0 %4310
        %v4312 = vmax.f32 %v3759, %v3761
        %4313 = vmax.xlane.f32.xlu0 %v4312
        %v4314 = vpop.xlane.xlu0 %4313
        %v4315 = vmax.f32 %v3765, %v3767
        %4316 = vmax.xlane.f32.xlu0 %v4315
        %v4317 = vpop.xlane.xlu0 %4316
        %v4318 = vmax.f32 %v3769, %v3771
        %4319 = vmax.xlane.f32.xlu0 %v4318
        %v4320 = vpop.xlane.xlu0 %4319
        %v4321 = vmax.f32 %v3775, %v3777
        %4322 = vmax.xlane.f32.xlu0 %v4321
        %v4323 = vpop.xlane.xlu0 %4322
        %v4324 = vmax.f32 %v3779, %v3781
        %4325 = vmax.xlane.f32.xlu0 %v4324
        %v4326 = vpop.xlane.xlu0 %4325
        %v4327 = vmax.f32 %v3785, %v3787
        %4328 = vmax.xlane.f32.xlu0 %v4327
        %v4329 = vpop.xlane.xlu0 %4328
        %v4330 = vmax.f32 %v3789, %v3791
        %4331 = vmax.xlane.f32.xlu0 %v4330
        %v4332 = vpop.xlane.xlu0 %4331
        %v4333 = vmax.f32 %v3795, %v3797
        %4334 = vmax.xlane.f32.xlu0 %v4333
        %v4335 = vpop.xlane.xlu0 %4334
        %v4336 = vmax.f32 %v3799, %v3801
        %4337 = vmax.xlane.f32.xlu0 %v4336
        %v4338 = vpop.xlane.xlu0 %4337
        %v4339 = vmax.f32 %v3805, %v3807
        %4340 = vmax.xlane.f32.xlu0 %v4339
        %v4341 = vpop.xlane.xlu0 %4340
        %v4342 = vmax.f32 %v3809, %v3811
        %4343 = vmax.xlane.f32.xlu0 %v4342
        %v4344 = vpop.xlane.xlu0 %4343
        %v4345 = vmax.f32 %v3815, %v3817
        %4346 = vmax.xlane.f32.xlu0 %v4345
        %v4347 = vpop.xlane.xlu0 %4346
        %v4348 = vmax.f32 %v3819, %v3821
        %4349 = vmax.xlane.f32.xlu0 %v4348
        %v4350 = vpop.xlane.xlu0 %4349
        %v4351 = vmax.f32 %v3825, %v3827
        %4352 = vmax.xlane.f32.xlu0 %v4351
        %v4353 = vpop.xlane.xlu0 %4352
        %v4354 = vmax.f32 %v3829, %v3831
        %4355 = vmax.xlane.f32.xlu0 %v4354
        %v4356 = vpop.xlane.xlu0 %4355
        %v4357 = vmax.f32 %v3835, %v3837
        %4358 = vmax.xlane.f32.xlu0 %v4357
        %v4359 = vpop.xlane.xlu0 %4358
        %v4360 = vmax.f32 %v3839, %v3841
        %4361 = vmax.xlane.f32.xlu0 %v4360
        %v4362 = vpop.xlane.xlu0 %4361
        %v4363 = vmax.f32 %v3845, %v3847
        %4364 = vmax.xlane.f32.xlu0 %v4363
        %v4365 = vpop.xlane.xlu0 %4364
        %v4366 = vmax.f32 %v3849, %v3851
        %4367 = vmax.xlane.f32.xlu0 %v4366
        %v4368 = vpop.xlane.xlu0 %4367
        %v4369 = vmax.f32 %v3855, %v3857
        %4370 = vmax.xlane.f32.xlu0 %v4369
        %v4371 = vpop.xlane.xlu0 %4370
        %v4372 = vmax.f32 %v3859, %v3861
        %4373 = vmax.xlane.f32.xlu0 %v4372
        %v4374 = vpop.xlane.xlu0 %4373
        %v4375 = vmax.f32 %v3865, %v3867
        %4376 = vmax.xlane.f32.xlu0 %v4375
        %v4377 = vpop.xlane.xlu0 %4376
        %v4378 = vmax.f32 %v3869, %v3871
        %4379 = vmax.xlane.f32.xlu0 %v4378
        %v4380 = vpop.xlane.xlu0 %4379
        %v4381 = vmax.f32 %v3875, %v3877
        %4382 = vmax.xlane.f32.xlu0 %v4381
        %v4383 = vpop.xlane.xlu0 %4382
        %v4384 = vmax.f32 %v3879, %v3881
        %4385 = vmax.xlane.f32.xlu0 %v4384
        %v4386 = vpop.xlane.xlu0 %4385
        %v4387 = vmax.f32 %v3885, %v3887
        %4388 = vmax.xlane.f32.xlu0 %v4387
        %v4389 = vpop.xlane.xlu0 %4388
        %v4390 = vmax.f32 %v3889, %v3891
        %4391 = vmax.xlane.f32.xlu0 %v4390
        %v4392 = vpop.xlane.xlu0 %4391
        %v4393 = vmax.f32 %v3895, %v3897
        %4394 = vmax.xlane.f32.xlu0 %v4393
        %v4395 = vpop.xlane.xlu0 %4394
        %v4396 = vmax.f32 %v3899, %v3901
        %4397 = vmax.xlane.f32.xlu0 %v4396
        %v4398 = vpop.xlane.xlu0 %4397
        %v4399 = vmax.f32 %v3905, %v3907
        %4400 = vmax.xlane.f32.xlu0 %v4399
        %v4401 = vpop.xlane.xlu0 %4400
        %v4402 = vmax.f32 %v3909, %v3911
        %4403 = vmax.xlane.f32.xlu0 %v4402
        %v4404 = vpop.xlane.xlu0 %4403
        %v4405 = vmax.f32 %v3915, %v3917
        %4406 = vmax.xlane.f32.xlu0 %v4405
        %v4407 = vpop.xlane.xlu0 %4406
        %v4408 = vmax.f32 %v3919, %v3921
        %4409 = vmax.xlane.f32.xlu0 %v4408
        %v4410 = vpop.xlane.xlu0 %4409
        %v4411 = vmax.f32 %v3925, %v3927
        %4412 = vmax.xlane.f32.xlu0 %v4411
        %v4413 = vpop.xlane.xlu0 %4412
        %v4414 = vmax.f32 %v3929, %v3931
        %4415 = vmax.xlane.f32.xlu0 %v4414
        %v4416 = vpop.xlane.xlu0 %4415
        %v4417 = vmax.f32 %v3935, %v3937
        %4418 = vmax.xlane.f32.xlu0 %v4417
        %v4419 = vpop.xlane.xlu0 %4418
        %v4420 = vmax.f32 %v3939, %v3941
        %4421 = vmax.xlane.f32.xlu0 %v4420
        %v4422 = vpop.xlane.xlu0 %4421
        %v4423 = vmax.f32 %v3945, %v3947
        %4424 = vmax.xlane.f32.xlu0 %v4423
        %v4425 = vpop.xlane.xlu0 %4424
        %v4426 = vmax.f32 %v3949, %v3951
        %4427 = vmax.xlane.f32.xlu0 %v4426
        %v4428 = vpop.xlane.xlu0 %4427
        %v4429 = vmax.f32 %v3955, %v3957
        %4430 = vmax.xlane.f32.xlu0 %v4429
        %v4431 = vpop.xlane.xlu0 %4430
        %v4432 = vmax.f32 %v3959, %v3961
        %4433 = vmax.xlane.f32.xlu0 %v4432
        %v4434 = vpop.xlane.xlu0 %4433
        %v4435 = vmax.f32 %v3965, %v3967
        %4436 = vmax.xlane.f32.xlu0 %v4435
        %v4437 = vpop.xlane.xlu0 %4436
        %v4438 = vmax.f32 %v3969, %v3971
        %4439 = vmax.xlane.f32.xlu0 %v4438
        %v4440 = vpop.xlane.xlu0 %4439
        %v4441 = vmax.f32 %v3975, %v3977
        %4442 = vmax.xlane.f32.xlu0 %v4441
        %v4443 = vpop.xlane.xlu0 %4442
        %v4444 = vmax.f32 %v3979, %v3981
        %4445 = vmax.xlane.f32.xlu0 %v4444
        %v4446 = vpop.xlane.xlu0 %4445
        %v4447 = vmax.f32 %v3985, %v3987
        %4448 = vmax.xlane.f32.xlu0 %v4447
        %v4449 = vpop.xlane.xlu0 %4448
        %v4450 = vmax.f32 %v3989, %v3991
        %4451 = vmax.xlane.f32.xlu0 %v4450
        %v4452 = vpop.xlane.xlu0 %4451
        %v4453 = vmax.f32 %v3995, %v3997
        %4454 = vmax.xlane.f32.xlu0 %v4453
        %v4455 = vpop.xlane.xlu0 %4454
        %v4456 = vmax.f32 %v3999, %v4001
        %4457 = vmax.xlane.f32.xlu0 %v4456
        %v4458 = vpop.xlane.xlu0 %4457
        %v4459 = vmax.f32 %v4005, %v4007
        %4460 = vmax.xlane.f32.xlu0 %v4459
        %v4461 = vpop.xlane.xlu0 %4460
        %v4462 = vmax.f32 %v4009, %v4011
        %4463 = vmax.xlane.f32.xlu0 %v4462
        %v4464 = vpop.xlane.xlu0 %4463
        %v4465 = vmax.f32 %v4015, %v4017
        %4466 = vmax.xlane.f32.xlu0 %v4465
        %v4467 = vpop.xlane.xlu0 %4466
        %v4468 = vmax.f32 %v4019, %v4021
        %4469 = vmax.xlane.f32.xlu0 %v4468
        %v4470 = vpop.xlane.xlu0 %4469
        %v4471 = vmax.f32 %v4025, %v4027
        %4472 = vmax.xlane.f32.xlu0 %v4471
        %v4473 = vpop.xlane.xlu0 %4472
        %v4474 = vmax.f32 %v4029, %v4031
        %4475 = vmax.xlane.f32.xlu0 %v4474
        %v4476 = vpop.xlane.xlu0 %4475
        %v4477 = vmax.f32 %v4035, %v4037
        %4478 = vmax.xlane.f32.xlu0 %v4477
        %v4479 = vpop.xlane.xlu0 %4478
        %v4480 = vmax.f32 %v4039, %v4041
        %4481 = vmax.xlane.f32.xlu0 %v4480
        %v4482 = vpop.xlane.xlu0 %4481
        %v4483 = vmax.f32 %v4045, %v4047
        %4484 = vmax.xlane.f32.xlu0 %v4483
        %v4485 = vpop.xlane.xlu0 %4484
        %v4486 = vmax.f32 %v4049, %v4051
        %4487 = vmax.xlane.f32.xlu0 %v4486
        %v4488 = vpop.xlane.xlu0 %4487
        %v4489 = vmax.f32 %v4055, %v4057
        %4490 = vmax.xlane.f32.xlu0 %v4489
        %v4491 = vpop.xlane.xlu0 %4490
        %v4492 = vmax.f32 %v4059, %v4061
        %4493 = vmax.xlane.f32.xlu0 %v4492
        %v4494 = vpop.xlane.xlu0 %4493
        %v4495 = vmax.f32 %v4065, %v4067
        %4496 = vmax.xlane.f32.xlu0 %v4495
        %v4497 = vpop.xlane.xlu0 %4496
        %v4498 = vmax.f32 %v4069, %v4071
        %4499 = vmax.xlane.f32.xlu0 %v4498
        %v4500 = vpop.xlane.xlu0 %4499
        %v4501 = vmax.f32 %v4075, %v4077
        %4502 = vmax.xlane.f32.xlu0 %v4501
        %v4503 = vpop.xlane.xlu0 %4502
        %v4504 = vmax.f32 %v4079, %v4081
        %4505 = vmax.xlane.f32.xlu0 %v4504
        %v4506 = vpop.xlane.xlu0 %4505
        %v4507 = vmax.f32 %v4085, %v4087
        %4508 = vmax.xlane.f32.xlu0 %v4507
        %v4509 = vpop.xlane.xlu0 %4508
        %v4510 = vmax.f32 %v4089, %v4091
        %4511 = vmax.xlane.f32.xlu0 %v4510
        %v4512 = vpop.xlane.xlu0 %4511
        %v4513 = vmax.f32 %v4095, %v4097
        %4514 = vmax.xlane.f32.xlu0 %v4513
        %v4515 = vpop.xlane.xlu0 %4514
        %v4516 = vmax.f32 %v4099, %v4101
        %4517 = vmax.xlane.f32.xlu0 %v4516
        %v4518 = vpop.xlane.xlu0 %4517
        %v4519 = vmax.f32 %v4105, %v4107
        %4520 = vmax.xlane.f32.xlu0 %v4519
        %v4521 = vpop.xlane.xlu0 %4520
        %v4522 = vmax.f32 %v4109, %v4111
        %4523 = vmax.xlane.f32.xlu0 %v4522
        %v4524 = vpop.xlane.xlu0 %4523
        %v4525 = vmax.f32 %v4115, %v4117
        %4526 = vmax.xlane.f32.xlu0 %v4525
        %v4527 = vpop.xlane.xlu0 %4526
        %v4528 = vmax.f32 %v4119, %v4121
        %4529 = vmax.xlane.f32.xlu0 %v4528
        %v4530 = vpop.xlane.xlu0 %4529
        %v4531 = vmax.f32 %v4125, %v4127
        %4532 = vmax.xlane.f32.xlu0 %v4531
        %v4533 = vpop.xlane.xlu0 %4532
        %v4534 = vmax.f32 %v4129, %v4131
        %4535 = vmax.xlane.f32.xlu0 %v4534
        %v4536 = vpop.xlane.xlu0 %4535
        %v4537 = vmax.f32 %v4135, %v4137
        %4538 = vmax.xlane.f32.xlu0 %v4537
        %v4539 = vpop.xlane.xlu0 %4538
        %v4540 = vmax.f32 %v4139, %v4141
        %4541 = vmax.xlane.f32.xlu0 %v4540
        %v4542 = vpop.xlane.xlu0 %4541
        %v4543 = vmax.f32 %v4145, %v4147
        %4544 = vmax.xlane.f32.xlu0 %v4543
        %v4545 = vpop.xlane.xlu0 %4544
        %v4546 = vmax.f32 %v4149, %v4151
        %4547 = vmax.xlane.f32.xlu0 %v4546
        %v4548 = vpop.xlane.xlu0 %4547
        %v4549 = vmax.f32 %v4155, %v4157
        %4550 = vmax.xlane.f32.xlu0 %v4549
        %v4551 = vpop.xlane.xlu0 %4550
        %v4552 = vmax.f32 %v4159, %v4161
        %4553 = vmax.xlane.f32.xlu0 %v4552
        %v4554 = vpop.xlane.xlu0 %4553
        %v4555 = vmax.f32 %v4165, %v4167
        %4556 = vmax.xlane.f32.xlu0 %v4555
        %v4557 = vpop.xlane.xlu0 %4556
        %v4558 = vmax.f32 %v4169, %v4171
        %4559 = vmax.xlane.f32.xlu0 %v4558
        %v4560 = vpop.xlane.xlu0 %4559
        %v4561 = vmax.f32 %v4175, %v4177
        %4562 = vmax.xlane.f32.xlu0 %v4561
        %v4563 = vpop.xlane.xlu0 %4562
        %v4564 = vmax.f32 %v4179, %v4181
        %4565 = vmax.xlane.f32.xlu0 %v4564
        %v4566 = vpop.xlane.xlu0 %4565
        %4567 = vxpose.xlu0.b32.start [1/16] %v4185, 128
        %4568 = vxpose.xlu0.b32.cont [2/16] %v4188, 128
        %4569 = vxpose.xlu0.b32.cont [3/16] %v4191, 128
        %4570 = vxpose.xlu0.b32.cont [4/16] %v4194, 128
        %4571 = vxpose.xlu0.b32.cont [5/16] %v4197, 128
        %4572 = vxpose.xlu0.b32.cont [6/16] %v4200, 128
        %4573 = vxpose.xlu0.b32.cont [7/16] %v4203, 128
        %4574 = vxpose.xlu0.b32.cont [8/16] %v4206, 128
        %4575 = vxpose.xlu0.b32.cont [9/16] %v4209, 128
        %4576 = vxpose.xlu0.b32.cont [10/16] %v4212, 128
        %4577 = vxpose.xlu0.b32.cont [11/16] %v4215, 128
        %4578 = vxpose.xlu0.b32.cont [12/16] %v4218, 128
        %4579 = vxpose.xlu0.b32.cont [13/16] %v4221, 128
        %4580 = vxpose.xlu0.b32.cont [14/16] %v4224, 128
        %4581 = vxpose.xlu0.b32.cont [15/16] %v4227, 128
        %4582 = vxpose.xlu0.b32.end [16/16] %v4230, 128
        %v4583 = vpop.trf.xlu0
        %v4584 = vpop.trf.xlu0
        %v4585 = vpop.trf.xlu0
        %v4586 = vpop.trf.xlu0
        %v4587 = vpop.trf.xlu0
        %v4588 = vpop.trf.xlu0
        %v4589 = vpop.trf.xlu0
        %v4590 = vpop.trf.xlu0
        %v4591 = vpop.trf.xlu0
        %v4592 = vpop.trf.xlu0
        %v4593 = vpop.trf.xlu0
        %v4594 = vpop.trf.xlu0
        %v4595 = vpop.trf.xlu0
        %v4596 = vpop.trf.xlu0
        %v4597 = vpop.trf.xlu0
        %v4598 = vpop.trf.xlu0
        %4599 = vxpose.xlu0.b32.start [1/16] %v4233, 128
        %4600 = vxpose.xlu0.b32.cont [2/16] %v4236, 128
        %4601 = vxpose.xlu0.b32.cont [3/16] %v4239, 128
        %4602 = vxpose.xlu0.b32.cont [4/16] %v4242, 128
        %4603 = vxpose.xlu0.b32.cont [5/16] %v4245, 128
        %4604 = vxpose.xlu0.b32.cont [6/16] %v4248, 128
        %4605 = vxpose.xlu0.b32.cont [7/16] %v4251, 128
        %4606 = vxpose.xlu0.b32.cont [8/16] %v4254, 128
        %4607 = vxpose.xlu0.b32.cont [9/16] %v4257, 128
        %4608 = vxpose.xlu0.b32.cont [10/16] %v4260, 128
        %4609 = vxpose.xlu0.b32.cont [11/16] %v4263, 128
        %4610 = vxpose.xlu0.b32.cont [12/16] %v4266, 128
        %4611 = vxpose.xlu0.b32.cont [13/16] %v4269, 128
        %4612 = vxpose.xlu0.b32.cont [14/16] %v4272, 128
        %4613 = vxpose.xlu0.b32.cont [15/16] %v4275, 128
        %4614 = vxpose.xlu0.b32.end [16/16] %v4278, 128
        %v4615 = vpop.trf.xlu0
        %v4616 = vpop.trf.xlu0
        %v4617 = vpop.trf.xlu0
        %v4618 = vpop.trf.xlu0
        %v4619 = vpop.trf.xlu0
        %v4620 = vpop.trf.xlu0
        %v4621 = vpop.trf.xlu0
        %v4622 = vpop.trf.xlu0
        %v4623 = vpop.trf.xlu0
        %v4624 = vpop.trf.xlu0
        %v4625 = vpop.trf.xlu0
        %v4626 = vpop.trf.xlu0
        %v4627 = vpop.trf.xlu0
        %v4628 = vpop.trf.xlu0
        %v4629 = vpop.trf.xlu0
        %v4630 = vpop.trf.xlu0
        %4631 = vxpose.xlu0.b32.start [1/16] %v4281, 128
        %4632 = vxpose.xlu0.b32.cont [2/16] %v4284, 128
        %4633 = vxpose.xlu0.b32.cont [3/16] %v4287, 128
        %4634 = vxpose.xlu0.b32.cont [4/16] %v4290, 128
        %4635 = vxpose.xlu0.b32.cont [5/16] %v4293, 128
        %4636 = vxpose.xlu0.b32.cont [6/16] %v4296, 128
        %4637 = vxpose.xlu0.b32.cont [7/16] %v4299, 128
        %4638 = vxpose.xlu0.b32.cont [8/16] %v4302, 128
        %4639 = vxpose.xlu0.b32.cont [9/16] %v4305, 128
        %4640 = vxpose.xlu0.b32.cont [10/16] %v4308, 128
        %4641 = vxpose.xlu0.b32.cont [11/16] %v4311, 128
        %4642 = vxpose.xlu0.b32.cont [12/16] %v4314, 128
        %4643 = vxpose.xlu0.b32.cont [13/16] %v4317, 128
        %4644 = vxpose.xlu0.b32.cont [14/16] %v4320, 128
        %4645 = vxpose.xlu0.b32.cont [15/16] %v4323, 128
        %4646 = vxpose.xlu0.b32.end [16/16] %v4326, 128
        %v4647 = vpop.trf.xlu0
        %v4648 = vpop.trf.xlu0
        %v4649 = vpop.trf.xlu0
        %v4650 = vpop.trf.xlu0
        %v4651 = vpop.trf.xlu0
        %v4652 = vpop.trf.xlu0
        %v4653 = vpop.trf.xlu0
        %v4654 = vpop.trf.xlu0
        %v4655 = vpop.trf.xlu0
        %v4656 = vpop.trf.xlu0
        %v4657 = vpop.trf.xlu0
        %v4658 = vpop.trf.xlu0
        %v4659 = vpop.trf.xlu0
        %v4660 = vpop.trf.xlu0
        %v4661 = vpop.trf.xlu0
        %v4662 = vpop.trf.xlu0
        %4663 = vxpose.xlu0.b32.start [1/16] %v4329, 128
        %4664 = vxpose.xlu0.b32.cont [2/16] %v4332, 128
        %4665 = vxpose.xlu0.b32.cont [3/16] %v4335, 128
        %4666 = vxpose.xlu0.b32.cont [4/16] %v4338, 128
        %4667 = vxpose.xlu0.b32.cont [5/16] %v4341, 128
        %4668 = vxpose.xlu0.b32.cont [6/16] %v4344, 128
        %4669 = vxpose.xlu0.b32.cont [7/16] %v4347, 128
        %4670 = vxpose.xlu0.b32.cont [8/16] %v4350, 128
        %4671 = vxpose.xlu0.b32.cont [9/16] %v4353, 128
        %4672 = vxpose.xlu0.b32.cont [10/16] %v4356, 128
        %4673 = vxpose.xlu0.b32.cont [11/16] %v4359, 128
        %4674 = vxpose.xlu0.b32.cont [12/16] %v4362, 128
        %4675 = vxpose.xlu0.b32.cont [13/16] %v4365, 128
        %4676 = vxpose.xlu0.b32.cont [14/16] %v4368, 128
        %4677 = vxpose.xlu0.b32.cont [15/16] %v4371, 128
        %4678 = vxpose.xlu0.b32.end [16/16] %v4374, 128
        %v4679 = vpop.trf.xlu0
        %v4680 = vpop.trf.xlu0
        %v4681 = vpop.trf.xlu0
        %v4682 = vpop.trf.xlu0
        %v4683 = vpop.trf.xlu0
        %v4684 = vpop.trf.xlu0
        %v4685 = vpop.trf.xlu0
        %v4686 = vpop.trf.xlu0
        %v4687 = vpop.trf.xlu0
        %v4688 = vpop.trf.xlu0
        %v4689 = vpop.trf.xlu0
        %v4690 = vpop.trf.xlu0
        %v4691 = vpop.trf.xlu0
        %v4692 = vpop.trf.xlu0
        %v4693 = vpop.trf.xlu0
        %v4694 = vpop.trf.xlu0
        %4695 = vxpose.xlu0.b32.start [1/16] %v4377, 128
        %4696 = vxpose.xlu0.b32.cont [2/16] %v4380, 128
        %4697 = vxpose.xlu0.b32.cont [3/16] %v4383, 128
        %4698 = vxpose.xlu0.b32.cont [4/16] %v4386, 128
        %4699 = vxpose.xlu0.b32.cont [5/16] %v4389, 128
        %4700 = vxpose.xlu0.b32.cont [6/16] %v4392, 128
        %4701 = vxpose.xlu0.b32.cont [7/16] %v4395, 128
        %4702 = vxpose.xlu0.b32.cont [8/16] %v4398, 128
        %4703 = vxpose.xlu0.b32.cont [9/16] %v4401, 128
        %4704 = vxpose.xlu0.b32.cont [10/16] %v4404, 128
        %4705 = vxpose.xlu0.b32.cont [11/16] %v4407, 128
        %4706 = vxpose.xlu0.b32.cont [12/16] %v4410, 128
        %4707 = vxpose.xlu0.b32.cont [13/16] %v4413, 128
        %4708 = vxpose.xlu0.b32.cont [14/16] %v4416, 128
        %4709 = vxpose.xlu0.b32.cont [15/16] %v4419, 128
        %4710 = vxpose.xlu0.b32.end [16/16] %v4422, 128
        %v4711 = vpop.trf.xlu0
        %v4712 = vpop.trf.xlu0
        %v4713 = vpop.trf.xlu0
        %v4714 = vpop.trf.xlu0
        %v4715 = vpop.trf.xlu0
        %v4716 = vpop.trf.xlu0
        %v4717 = vpop.trf.xlu0
        %v4718 = vpop.trf.xlu0
        %v4719 = vpop.trf.xlu0
        %v4720 = vpop.trf.xlu0
        %v4721 = vpop.trf.xlu0
        %v4722 = vpop.trf.xlu0
        %v4723 = vpop.trf.xlu0
        %v4724 = vpop.trf.xlu0
        %v4725 = vpop.trf.xlu0
        %v4726 = vpop.trf.xlu0
        %4727 = vxpose.xlu0.b32.start [1/16] %v4425, 128
        %4728 = vxpose.xlu0.b32.cont [2/16] %v4428, 128
        %4729 = vxpose.xlu0.b32.cont [3/16] %v4431, 128
        %4730 = vxpose.xlu0.b32.cont [4/16] %v4434, 128
        %4731 = vxpose.xlu0.b32.cont [5/16] %v4437, 128
        %4732 = vxpose.xlu0.b32.cont [6/16] %v4440, 128
        %4733 = vxpose.xlu0.b32.cont [7/16] %v4443, 128
        %4734 = vxpose.xlu0.b32.cont [8/16] %v4446, 128
        %4735 = vxpose.xlu0.b32.cont [9/16] %v4449, 128
        %4736 = vxpose.xlu0.b32.cont [10/16] %v4452, 128
        %4737 = vxpose.xlu0.b32.cont [11/16] %v4455, 128
        %4738 = vxpose.xlu0.b32.cont [12/16] %v4458, 128
        %4739 = vxpose.xlu0.b32.cont [13/16] %v4461, 128
        %4740 = vxpose.xlu0.b32.cont [14/16] %v4464, 128
        %4741 = vxpose.xlu0.b32.cont [15/16] %v4467, 128
        %4742 = vxpose.xlu0.b32.end [16/16] %v4470, 128
        %v4743 = vpop.trf.xlu0
        %v4744 = vpop.trf.xlu0
        %v4745 = vpop.trf.xlu0
        %v4746 = vpop.trf.xlu0
        %v4747 = vpop.trf.xlu0
        %v4748 = vpop.trf.xlu0
        %v4749 = vpop.trf.xlu0
        %v4750 = vpop.trf.xlu0
        %v4751 = vpop.trf.xlu0
        %v4752 = vpop.trf.xlu0
        %v4753 = vpop.trf.xlu0
        %v4754 = vpop.trf.xlu0
        %v4755 = vpop.trf.xlu0
        %v4756 = vpop.trf.xlu0
        %v4757 = vpop.trf.xlu0
        %v4758 = vpop.trf.xlu0
        %4759 = vxpose.xlu0.b32.start [1/16] %v4473, 128
        %4760 = vxpose.xlu0.b32.cont [2/16] %v4476, 128
        %4761 = vxpose.xlu0.b32.cont [3/16] %v4479, 128
        %4762 = vxpose.xlu0.b32.cont [4/16] %v4482, 128
        %4763 = vxpose.xlu0.b32.cont [5/16] %v4485, 128
        %4764 = vxpose.xlu0.b32.cont [6/16] %v4488, 128
        %4765 = vxpose.xlu0.b32.cont [7/16] %v4491, 128
        %4766 = vxpose.xlu0.b32.cont [8/16] %v4494, 128
        %4767 = vxpose.xlu0.b32.cont [9/16] %v4497, 128
        %4768 = vxpose.xlu0.b32.cont [10/16] %v4500, 128
        %4769 = vxpose.xlu0.b32.cont [11/16] %v4503, 128
        %4770 = vxpose.xlu0.b32.cont [12/16] %v4506, 128
        %4771 = vxpose.xlu0.b32.cont [13/16] %v4509, 128
        %4772 = vxpose.xlu0.b32.cont [14/16] %v4512, 128
        %4773 = vxpose.xlu0.b32.cont [15/16] %v4515, 128
        %4774 = vxpose.xlu0.b32.end [16/16] %v4518, 128
        %v4775 = vpop.trf.xlu0
        %v4776 = vpop.trf.xlu0
        %v4777 = vpop.trf.xlu0
        %v4778 = vpop.trf.xlu0
        %v4779 = vpop.trf.xlu0
        %v4780 = vpop.trf.xlu0
        %v4781 = vpop.trf.xlu0
        %v4782 = vpop.trf.xlu0
        %v4783 = vpop.trf.xlu0
        %v4784 = vpop.trf.xlu0
        %v4785 = vpop.trf.xlu0
        %v4786 = vpop.trf.xlu0
        %v4787 = vpop.trf.xlu0
        %v4788 = vpop.trf.xlu0
        %v4789 = vpop.trf.xlu0
        %v4790 = vpop.trf.xlu0
        %4791 = vxpose.xlu0.b32.start [1/16] %v4521, 128
        %4792 = vxpose.xlu0.b32.cont [2/16] %v4524, 128
        %4793 = vxpose.xlu0.b32.cont [3/16] %v4527, 128
        %4794 = vxpose.xlu0.b32.cont [4/16] %v4530, 128
        %4795 = vxpose.xlu0.b32.cont [5/16] %v4533, 128
        %4796 = vxpose.xlu0.b32.cont [6/16] %v4536, 128
        %4797 = vxpose.xlu0.b32.cont [7/16] %v4539, 128
        %4798 = vxpose.xlu0.b32.cont [8/16] %v4542, 128
        %4799 = vxpose.xlu0.b32.cont [9/16] %v4545, 128
        %4800 = vxpose.xlu0.b32.cont [10/16] %v4548, 128
        %4801 = vxpose.xlu0.b32.cont [11/16] %v4551, 128
        %4802 = vxpose.xlu0.b32.cont [12/16] %v4554, 128
        %4803 = vxpose.xlu0.b32.cont [13/16] %v4557, 128
        %4804 = vxpose.xlu0.b32.cont [14/16] %v4560, 128
        %4805 = vxpose.xlu0.b32.cont [15/16] %v4563, 128
        %4806 = vxpose.xlu0.b32.end [16/16] %v4566, 128
        %v4807 = vpop.trf.xlu0
        %v4808 = vpop.trf.xlu0
        %v4809 = vpop.trf.xlu0
        %v4810 = vpop.trf.xlu0
        %v4811 = vpop.trf.xlu0
        %v4812 = vpop.trf.xlu0
        %v4813 = vpop.trf.xlu0
        %v4814 = vpop.trf.xlu0
        %v4815 = vpop.trf.xlu0
        %v4816 = vpop.trf.xlu0
        %v4817 = vpop.trf.xlu0
        %v4818 = vpop.trf.xlu0
        %v4819 = vpop.trf.xlu0
        %v4820 = vpop.trf.xlu0
        %v4821 = vpop.trf.xlu0
        %v4822 = vpop.trf.xlu0
        %v4823 = vpack.c.bf16 %v4583, %v4583
        %v4824 = vpack.c.bf16 %v4615, %v4615
        %v4825 = vpack.c.bf16 %v4647, %v4647
        %v4826 = vpack.c.bf16 %v4679, %v4679
        %v4827 = vpack.c.bf16 %v4711, %v4711
        %v4828 = vpack.c.bf16 %v4743, %v4743
        %v4829 = vpack.c.bf16 %v4775, %v4775
        %v4830 = vpack.c.bf16 %v4807, %v4807
        %v4831 = vld [vmem:[%s11] sm:$0xff]
        %v4832 = vld [vmem:[%s11 + $0x8] sm:$0xff]
        %v4833 = vld [vmem:[%s11 + $0x10] sm:$0xff]
        %v4834 = vld [vmem:[%s11 + $0x18] sm:$0xff]
        %v4835 = vld [vmem:[%s11 + $0x20] sm:$0xf]
        %v4836 = vld [vmem:[%s11 + $0x24] sm:$0xff]
        %v4837 = vld [vmem:[%s11 + $0x2c] sm:$0xff]
        %v4838 = vld [vmem:[%s11 + $0x34] sm:$0xff]
        %v4839 = vld [vmem:[%s11 + $0x3c] sm:$0xff]
        %v4840 = vld [vmem:[%s11 + $0x44] sm:$0xf]
        %v4841 = vld [vmem:[%s11 + $0x48] sm:$0xff]
        %v4842 = vld [vmem:[%s11 + $0x50] sm:$0xff]
        %v4843 = vld [vmem:[%s11 + $0x58] sm:$0xff]
        %v4844 = vld [vmem:[%s11 + $0x60] sm:$0xff]
        %v4845 = vld [vmem:[%s11 + $0x68] sm:$0xf]
        %v4846 = vld [vmem:[%s11 + $0x6c] sm:$0xff]
        %v4847 = vld [vmem:[%s11 + $0x74] sm:$0xff]
        %v4848 = vld [vmem:[%s11 + $0x7c] sm:$0xff]
        %v4849 = vld [vmem:[%s11 + $0x84] sm:$0xff]
        %v4850 = vld [vmem:[%s11 + $0x8c] sm:$0xf]
        %v4851 = vld [vmem:[%s11 + $0x90] sm:$0xff]
        %v4852 = vld [vmem:[%s11 + $0x98] sm:$0xff]
        %v4853 = vld [vmem:[%s11 + $0xa0] sm:$0xff]
        %v4854 = vld [vmem:[%s11 + $0xa8] sm:$0xff]
        %v4855 = vld [vmem:[%s11 + $0xb0] sm:$0xf]
        %v4856 = vld [vmem:[%s11 + $0xb4] sm:$0xff]
        %v4857 = vld [vmem:[%s11 + $0xbc] sm:$0xff]
        %v4858 = vld [vmem:[%s11 + $0xc4] sm:$0xff]
        %v4859 = vld [vmem:[%s11 + $0xcc] sm:$0xff]
        %v4860 = vld [vmem:[%s11 + $0xd4] sm:$0xf]
        %v4861 = vld [vmem:[%s11 + $0xd8] sm:$0xff]
        %v4862 = vld [vmem:[%s11 + $0xe0] sm:$0xff]
        %v4863 = vld [vmem:[%s11 + $0xe8] sm:$0xff]
        %v4864 = vld [vmem:[%s11 + $0xf0] sm:$0xff]
        %v4865 = vld [vmem:[%s11 + $0xf8] sm:$0xf]
        %v4866 = vld [vmem:[%s11 + $0xfc] sm:$0xff]
        %v4867 = vld [vmem:[%s11 + $0x104] sm:$0xff]
        %v4868 = vld [vmem:[%s11 + $0x10c] sm:$0xff]
        %v4869 = vld [vmem:[%s11 + $0x114] sm:$0xff]
        %v4870 = vld [vmem:[%s11 + $0x11c] sm:$0xf]
        %v4871 = vld [vmem:[%s11 + $0x120] sm:$0xff]
        %v4872 = vld [vmem:[%s11 + $0x128] sm:$0xff]
        %v4873 = vld [vmem:[%s11 + $0x130] sm:$0xff]
        %v4874 = vld [vmem:[%s11 + $0x138] sm:$0xff]
        %v4875 = vld [vmem:[%s11 + $0x140] sm:$0xf]
        %v4876 = vld [vmem:[%s11 + $0x144] sm:$0xff]
        %v4877 = vld [vmem:[%s11 + $0x14c] sm:$0xff]
        %v4878 = vld [vmem:[%s11 + $0x154] sm:$0xff]
        %v4879 = vld [vmem:[%s11 + $0x15c] sm:$0xff]
        %v4880 = vld [vmem:[%s11 + $0x164] sm:$0xf]
        %v4881 = vld [vmem:[%s11 + $0x168] sm:$0xff]
        %v4882 = vld [vmem:[%s11 + $0x170] sm:$0xff]
        %v4883 = vld [vmem:[%s11 + $0x178] sm:$0xff]
        %v4884 = vld [vmem:[%s11 + $0x180] sm:$0xff]
        %v4885 = vld [vmem:[%s11 + $0x188] sm:$0xf]
        %v4886 = vld [vmem:[%s11 + $0x18c] sm:$0xff]
        %v4887 = vld [vmem:[%s11 + $0x194] sm:$0xff]
        %v4888 = vld [vmem:[%s11 + $0x19c] sm:$0xff]
        %v4889 = vld [vmem:[%s11 + $0x1a4] sm:$0xff]
        %v4890 = vld [vmem:[%s11 + $0x1ac] sm:$0xf]
        %v4891 = vld [vmem:[%s11 + $0x1b0] sm:$0xff]
        %v4892 = vld [vmem:[%s11 + $0x1b8] sm:$0xff]
        %v4893 = vld [vmem:[%s11 + $0x1c0] sm:$0xff]
        %v4894 = vld [vmem:[%s11 + $0x1c8] sm:$0xff]
        %v4895 = vld [vmem:[%s11 + $0x1d0] sm:$0xf]
        %v4896 = vld [vmem:[%s11 + $0x1d4] sm:$0xff]
        %v4897 = vld [vmem:[%s11 + $0x1dc] sm:$0xff]
        %v4898 = vld [vmem:[%s11 + $0x1e4] sm:$0xff]
        %v4899 = vld [vmem:[%s11 + $0x1ec] sm:$0xff]
        %v4900 = vld [vmem:[%s11 + $0x1f4] sm:$0xf]
        %v4901 = vld [vmem:[%s11 + $0x1f8] sm:$0xff]
        %v4902 = vld [vmem:[%s11 + $0x200] sm:$0xff]
        %v4903 = vld [vmem:[%s11 + $0x208] sm:$0xff]
        %v4904 = vld [vmem:[%s11 + $0x210] sm:$0xff]
        %v4905 = vld [vmem:[%s11 + $0x218] sm:$0xf]
        %v4906 = vld [vmem:[%s11 + $0x21c] sm:$0xff]
        %v4907 = vld [vmem:[%s11 + $0x224] sm:$0xff]
        %v4908 = vld [vmem:[%s11 + $0x22c] sm:$0xff]
        %v4909 = vld [vmem:[%s11 + $0x234] sm:$0xff]
        %v4910 = vld [vmem:[%s11 + $0x23c] sm:$0xf]
        %v4911 = vld [vmem:[%s11 + $0x240] sm:$0xff]
        %v4912 = vld [vmem:[%s11 + $0x248] sm:$0xff]
        %v4913 = vld [vmem:[%s11 + $0x250] sm:$0xff]
        %v4914 = vld [vmem:[%s11 + $0x258] sm:$0xff]
        %v4915 = vld [vmem:[%s11 + $0x260] sm:$0xf]
        %v4916 = vld [vmem:[%s11 + $0x264] sm:$0xff]
        %v4917 = vld [vmem:[%s11 + $0x26c] sm:$0xff]
        %v4918 = vld [vmem:[%s11 + $0x274] sm:$0xff]
        %v4919 = vld [vmem:[%s11 + $0x27c] sm:$0xff]
        %v4920 = vld [vmem:[%s11 + $0x284] sm:$0xf]
        %v4921 = vld [vmem:[%s11 + $0x288] sm:$0xff]
        %v4922 = vld [vmem:[%s11 + $0x290] sm:$0xff]
        %v4923 = vld [vmem:[%s11 + $0x298] sm:$0xff]
        %v4924 = vld [vmem:[%s11 + $0x2a0] sm:$0xff]
        %v4925 = vld [vmem:[%s11 + $0x2a8] sm:$0xf]
        %v4926 = vld [vmem:[%s11 + $0x2ac] sm:$0xff]
        %v4927 = vld [vmem:[%s11 + $0x2b4] sm:$0xff]
        %v4928 = vld [vmem:[%s11 + $0x2bc] sm:$0xff]
        %v4929 = vld [vmem:[%s11 + $0x2c4] sm:$0xff]
        %v4930 = vld [vmem:[%s11 + $0x2cc] sm:$0xf]
        %v4931 = vld [vmem:[%s11 + $0x2d0] sm:$0xff]
        %v4932 = vld [vmem:[%s11 + $0x2d8] sm:$0xff]
        %v4933 = vld [vmem:[%s11 + $0x2e0] sm:$0xff]
        %v4934 = vld [vmem:[%s11 + $0x2e8] sm:$0xff]
        %v4935 = vld [vmem:[%s11 + $0x2f0] sm:$0xf]
        %v4936 = vld [vmem:[%s11 + $0x2f4] sm:$0xff]
        %v4937 = vld [vmem:[%s11 + $0x2fc] sm:$0xff]
        %v4938 = vld [vmem:[%s11 + $0x304] sm:$0xff]
        %v4939 = vld [vmem:[%s11 + $0x30c] sm:$0xff]
        %v4940 = vld [vmem:[%s11 + $0x314] sm:$0xf]
        %v4941 = vld [vmem:[%s11 + $0x318] sm:$0xff]
        %v4942 = vld [vmem:[%s11 + $0x320] sm:$0xff]
        %v4943 = vld [vmem:[%s11 + $0x328] sm:$0xff]
        %v4944 = vld [vmem:[%s11 + $0x330] sm:$0xff]
        %v4945 = vld [vmem:[%s11 + $0x338] sm:$0xf]
        %v4946 = vld [vmem:[%s11 + $0x33c] sm:$0xff]
        %v4947 = vld [vmem:[%s11 + $0x344] sm:$0xff]
        %v4948 = vld [vmem:[%s11 + $0x34c] sm:$0xff]
        %v4949 = vld [vmem:[%s11 + $0x354] sm:$0xff]
        %v4950 = vld [vmem:[%s11 + $0x35c] sm:$0xf]
        %v4951 = vld [vmem:[%s11 + $0x360] sm:$0xff]
        %v4952 = vld [vmem:[%s11 + $0x368] sm:$0xff]
        %v4953 = vld [vmem:[%s11 + $0x370] sm:$0xff]
        %v4954 = vld [vmem:[%s11 + $0x378] sm:$0xff]
        %v4955 = vld [vmem:[%s11 + $0x380] sm:$0xf]
        %v4956 = vld [vmem:[%s11 + $0x384] sm:$0xff]
        %v4957 = vld [vmem:[%s11 + $0x38c] sm:$0xff]
        %v4958 = vld [vmem:[%s11 + $0x394] sm:$0xff]
        %v4959 = vld [vmem:[%s11 + $0x39c] sm:$0xff]
        %v4960 = vld [vmem:[%s11 + $0x3a4] sm:$0xf]
        %v4961 = vld [vmem:[%s11 + $0x3a8] sm:$0xff]
        %v4962 = vld [vmem:[%s11 + $0x3b0] sm:$0xff]
        %v4963 = vld [vmem:[%s11 + $0x3b8] sm:$0xff]
        %v4964 = vld [vmem:[%s11 + $0x3c0] sm:$0xff]
        %v4965 = vld [vmem:[%s11 + $0x3c8] sm:$0xf]
        %v4966 = vld [vmem:[%s11 + $0x3cc] sm:$0xff]
        %v4967 = vld [vmem:[%s11 + $0x3d4] sm:$0xff]
        %v4968 = vld [vmem:[%s11 + $0x3dc] sm:$0xff]
        %v4969 = vld [vmem:[%s11 + $0x3e4] sm:$0xff]
        %v4970 = vld [vmem:[%s11 + $0x3ec] sm:$0xf]
        %v4971 = vld [vmem:[%s11 + $0x3f0] sm:$0xff]
        %v4972 = vld [vmem:[%s11 + $0x3f8] sm:$0xff]
        %v4973 = vld [vmem:[%s11 + $0x400] sm:$0xff]
        %v4974 = vld [vmem:[%s11 + $0x408] sm:$0xff]
        %v4975 = vld [vmem:[%s11 + $0x410] sm:$0xf]
        %v4976 = vld [vmem:[%s11 + $0x414] sm:$0xff]
        %v4977 = vld [vmem:[%s11 + $0x41c] sm:$0xff]
        %v4978 = vld [vmem:[%s11 + $0x424] sm:$0xff]
        %v4979 = vld [vmem:[%s11 + $0x42c] sm:$0xff]
        %v4980 = vld [vmem:[%s11 + $0x434] sm:$0xf]
        %v4981 = vld [vmem:[%s11 + $0x438] sm:$0xff]
        %v4982 = vld [vmem:[%s11 + $0x440] sm:$0xff]
        %v4983 = vld [vmem:[%s11 + $0x448] sm:$0xff]
        %v4984 = vld [vmem:[%s11 + $0x450] sm:$0xff]
        %v4985 = vld [vmem:[%s11 + $0x458] sm:$0xf]
        %v4986 = vld [vmem:[%s11 + $0x45c] sm:$0xff]
        %v4987 = vld [vmem:[%s11 + $0x464] sm:$0xff]
        %v4988 = vld [vmem:[%s11 + $0x46c] sm:$0xff]
        %v4989 = vld [vmem:[%s11 + $0x474] sm:$0xff]
        %v4990 = vld [vmem:[%s11 + $0x47c] sm:$0xf]
        %v4991 = vld [vmem:[%s11 + $0x480] sm:$0xff]
        %v4992 = vld [vmem:[%s11 + $0x488] sm:$0xff]
        %v4993 = vld [vmem:[%s11 + $0x490] sm:$0xff]
        %v4994 = vld [vmem:[%s11 + $0x498] sm:$0xff]
        %v4995 = vld [vmem:[%s11 + $0x4a0] sm:$0xf]
        %v4996 = vld [vmem:[%s11 + $0x4a4] sm:$0xff]
        %v4997 = vld [vmem:[%s11 + $0x4ac] sm:$0xff]
        %v4998 = vld [vmem:[%s11 + $0x4b4] sm:$0xff]
        %v4999 = vld [vmem:[%s11 + $0x4bc] sm:$0xff]
        %v5000 = vld [vmem:[%s11 + $0x4c4] sm:$0xf]
        %v5001 = vld [vmem:[%s11 + $0x4c8] sm:$0xff]
        %v5002 = vld [vmem:[%s11 + $0x4d0] sm:$0xff]
        %v5003 = vld [vmem:[%s11 + $0x4d8] sm:$0xff]
        %v5004 = vld [vmem:[%s11 + $0x4e0] sm:$0xff]
        %v5005 = vld [vmem:[%s11 + $0x4e8] sm:$0xf]
        %v5006 = vld [vmem:[%s11 + $0x4ec] sm:$0xff]
        %v5007 = vld [vmem:[%s11 + $0x4f4] sm:$0xff]
        %v5008 = vld [vmem:[%s11 + $0x4fc] sm:$0xff]
        %v5009 = vld [vmem:[%s11 + $0x504] sm:$0xff]
        %v5010 = vld [vmem:[%s11 + $0x50c] sm:$0xf]
        %v5011 = vld [vmem:[%s11 + $0x510] sm:$0xff]
        %v5012 = vld [vmem:[%s11 + $0x518] sm:$0xff]
        %v5013 = vld [vmem:[%s11 + $0x520] sm:$0xff]
        %v5014 = vld [vmem:[%s11 + $0x528] sm:$0xff]
        %v5015 = vld [vmem:[%s11 + $0x530] sm:$0xf]
        %v5016 = vld [vmem:[%s11 + $0x534] sm:$0xff]
        %v5017 = vld [vmem:[%s11 + $0x53c] sm:$0xff]
        %v5018 = vld [vmem:[%s11 + $0x544] sm:$0xff]
        %v5019 = vld [vmem:[%s11 + $0x54c] sm:$0xff]
        %v5020 = vld [vmem:[%s11 + $0x554] sm:$0xf]
        %v5021 = vld [vmem:[%s11 + $0x558] sm:$0xff]
        %v5022 = vld [vmem:[%s11 + $0x560] sm:$0xff]
        %v5023 = vld [vmem:[%s11 + $0x568] sm:$0xff]
        %v5024 = vld [vmem:[%s11 + $0x570] sm:$0xff]
        %v5025 = vld [vmem:[%s11 + $0x578] sm:$0xf]
        %v5026 = vld [vmem:[%s11 + $0x57c] sm:$0xff]
        %v5027 = vld [vmem:[%s11 + $0x584] sm:$0xff]
        %v5028 = vld [vmem:[%s11 + $0x58c] sm:$0xff]
        %v5029 = vld [vmem:[%s11 + $0x594] sm:$0xff]
        %v5030 = vld [vmem:[%s11 + $0x59c] sm:$0xf]
        %v5031 = vld [vmem:[%s11 + $0x5a0] sm:$0xff]
        %v5032 = vld [vmem:[%s11 + $0x5a8] sm:$0xff]
        %v5033 = vld [vmem:[%s11 + $0x5b0] sm:$0xff]
        %v5034 = vld [vmem:[%s11 + $0x5b8] sm:$0xff]
        %v5035 = vld [vmem:[%s11 + $0x5c0] sm:$0xf]
        %v5036 = vld [vmem:[%s11 + $0x5c4] sm:$0xff]
        %v5037 = vld [vmem:[%s11 + $0x5cc] sm:$0xff]
        %v5038 = vld [vmem:[%s11 + $0x5d4] sm:$0xff]
        %v5039 = vld [vmem:[%s11 + $0x5dc] sm:$0xff]
        %v5040 = vld [vmem:[%s11 + $0x5e4] sm:$0xf]
        %v5041 = vld [vmem:[%s11 + $0x5e8] sm:$0xff]
        %v5042 = vld [vmem:[%s11 + $0x5f0] sm:$0xff]
        %v5043 = vld [vmem:[%s11 + $0x5f8] sm:$0xff]
        %v5044 = vld [vmem:[%s11 + $0x600] sm:$0xff]
        %v5045 = vld [vmem:[%s11 + $0x608] sm:$0xf]
        %v5046 = vld [vmem:[%s11 + $0x60c] sm:$0xff]
        %v5047 = vld [vmem:[%s11 + $0x614] sm:$0xff]
        %v5048 = vld [vmem:[%s11 + $0x61c] sm:$0xff]
        %v5049 = vld [vmem:[%s11 + $0x624] sm:$0xff]
        %v5050 = vld [vmem:[%s11 + $0x62c] sm:$0xf]
        %v5051 = vld [vmem:[%s11 + $0x630] sm:$0xff]
        %v5052 = vld [vmem:[%s11 + $0x638] sm:$0xff]
        %v5053 = vld [vmem:[%s11 + $0x640] sm:$0xff]
        %v5054 = vld [vmem:[%s11 + $0x648] sm:$0xff]
        %v5055 = vld [vmem:[%s11 + $0x650] sm:$0xf]
        %v5056 = vld [vmem:[%s11 + $0x654] sm:$0xff]
        %v5057 = vld [vmem:[%s11 + $0x65c] sm:$0xff]
        %v5058 = vld [vmem:[%s11 + $0x664] sm:$0xff]
        %v5059 = vld [vmem:[%s11 + $0x66c] sm:$0xff]
        %v5060 = vld [vmem:[%s11 + $0x674] sm:$0xf]
        %v5061 = vld [vmem:[%s11 + $0x678] sm:$0xff]
        %v5062 = vld [vmem:[%s11 + $0x680] sm:$0xff]
        %v5063 = vld [vmem:[%s11 + $0x688] sm:$0xff]
        %v5064 = vld [vmem:[%s11 + $0x690] sm:$0xff]
        %v5065 = vld [vmem:[%s11 + $0x698] sm:$0xf]
        %v5066 = vld [vmem:[%s11 + $0x69c] sm:$0xff]
        %v5067 = vld [vmem:[%s11 + $0x6a4] sm:$0xff]
        %v5068 = vld [vmem:[%s11 + $0x6ac] sm:$0xff]
        %v5069 = vld [vmem:[%s11 + $0x6b4] sm:$0xff]
        %v5070 = vld [vmem:[%s11 + $0x6bc] sm:$0xf]
        %v5071 = vld [vmem:[%s11 + $0x6c0] sm:$0xff]
        %v5072 = vld [vmem:[%s11 + $0x6c8] sm:$0xff]
        %v5073 = vld [vmem:[%s11 + $0x6d0] sm:$0xff]
        %v5074 = vld [vmem:[%s11 + $0x6d8] sm:$0xff]
        %v5075 = vld [vmem:[%s11 + $0x6e0] sm:$0xf]
        %v5076 = vld [vmem:[%s11 + $0x6e4] sm:$0xff]
        %v5077 = vld [vmem:[%s11 + $0x6ec] sm:$0xff]
        %v5078 = vld [vmem:[%s11 + $0x6f4] sm:$0xff]
        %v5079 = vld [vmem:[%s11 + $0x6fc] sm:$0xff]
        %v5080 = vld [vmem:[%s11 + $0x704] sm:$0xf]
        %v5081 = vld [vmem:[%s11 + $0x708] sm:$0xff]
        %v5082 = vld [vmem:[%s11 + $0x710] sm:$0xff]
        %v5083 = vld [vmem:[%s11 + $0x718] sm:$0xff]
        %v5084 = vld [vmem:[%s11 + $0x720] sm:$0xff]
        %v5085 = vld [vmem:[%s11 + $0x728] sm:$0xf]
        %v5086 = vld [vmem:[%s11 + $0x72c] sm:$0xff]
        %v5087 = vld [vmem:[%s11 + $0x734] sm:$0xff]
        %v5088 = vld [vmem:[%s11 + $0x73c] sm:$0xff]
        %v5089 = vld [vmem:[%s11 + $0x744] sm:$0xff]
        %v5090 = vld [vmem:[%s11 + $0x74c] sm:$0xf]
        %v5091 = vld [vmem:[%s11 + $0x750] sm:$0xff]
        %v5092 = vld [vmem:[%s11 + $0x758] sm:$0xff]
        %v5093 = vld [vmem:[%s11 + $0x760] sm:$0xff]
        %v5094 = vld [vmem:[%s11 + $0x768] sm:$0xff]
        %v5095 = vld [vmem:[%s11 + $0x770] sm:$0xf]
        %v5096 = vld [vmem:[%s11 + $0x774] sm:$0xff]
        %v5097 = vld [vmem:[%s11 + $0x77c] sm:$0xff]
        %v5098 = vld [vmem:[%s11 + $0x784] sm:$0xff]
        %v5099 = vld [vmem:[%s11 + $0x78c] sm:$0xff]
        %v5100 = vld [vmem:[%s11 + $0x794] sm:$0xf]
        %v5101 = vld [vmem:[%s11 + $0x798] sm:$0xff]
        %v5102 = vld [vmem:[%s11 + $0x7a0] sm:$0xff]
        %v5103 = vld [vmem:[%s11 + $0x7a8] sm:$0xff]
        %v5104 = vld [vmem:[%s11 + $0x7b0] sm:$0xff]
        %v5105 = vld [vmem:[%s11 + $0x7b8] sm:$0xf]
        %v5106 = vld [vmem:[%s11 + $0x7bc] sm:$0xff]
        %v5107 = vld [vmem:[%s11 + $0x7c4] sm:$0xff]
        %v5108 = vld [vmem:[%s11 + $0x7cc] sm:$0xff]
        %v5109 = vld [vmem:[%s11 + $0x7d4] sm:$0xff]
        %v5110 = vld [vmem:[%s11 + $0x7dc] sm:$0xf]
        %v5111 = vld [vmem:[%s11 + $0x7e0] sm:$0xff]
        %v5112 = vld [vmem:[%s11 + $0x7e8] sm:$0xff]
        %v5113 = vld [vmem:[%s11 + $0x7f0] sm:$0xff]
        %v5114 = vld [vmem:[%s11 + $0x7f8] sm:$0xff]
        %v5115 = vld [vmem:[%s11 + $0x800] sm:$0xf]
        %v5116 = vld [vmem:[%s11 + $0x804] sm:$0xff]
        %v5117 = vld [vmem:[%s11 + $0x80c] sm:$0xff]
        %v5118 = vld [vmem:[%s11 + $0x814] sm:$0xff]
        %v5119 = vld [vmem:[%s11 + $0x81c] sm:$0xff]
        %v5120 = vld [vmem:[%s11 + $0x824] sm:$0xf]
        %v5121 = vld [vmem:[%s11 + $0x828] sm:$0xff]
        %v5122 = vld [vmem:[%s11 + $0x830] sm:$0xff]
        %v5123 = vld [vmem:[%s11 + $0x838] sm:$0xff]
        %v5124 = vld [vmem:[%s11 + $0x840] sm:$0xff]
        %v5125 = vld [vmem:[%s11 + $0x848] sm:$0xf]
        %v5126 = vld [vmem:[%s11 + $0x84c] sm:$0xff]
        %v5127 = vld [vmem:[%s11 + $0x854] sm:$0xff]
        %v5128 = vld [vmem:[%s11 + $0x85c] sm:$0xff]
        %v5129 = vld [vmem:[%s11 + $0x864] sm:$0xff]
        %v5130 = vld [vmem:[%s11 + $0x86c] sm:$0xf]
        %v5131 = vld [vmem:[%s11 + $0x870] sm:$0xff]
        %v5132 = vld [vmem:[%s11 + $0x878] sm:$0xff]
        %v5133 = vld [vmem:[%s11 + $0x880] sm:$0xff]
        %v5134 = vld [vmem:[%s11 + $0x888] sm:$0xff]
        %v5135 = vld [vmem:[%s11 + $0x890] sm:$0xf]
        %v5136 = vld [vmem:[%s11 + $0x894] sm:$0xff]
        %v5137 = vld [vmem:[%s11 + $0x89c] sm:$0xff]
        %v5138 = vld [vmem:[%s11 + $0x8a4] sm:$0xff]
        %v5139 = vld [vmem:[%s11 + $0x8ac] sm:$0xff]
        %v5140 = vld [vmem:[%s11 + $0x8b4] sm:$0xf]
        %v5141 = vld [vmem:[%s11 + $0x8b8] sm:$0xff]
        %v5142 = vld [vmem:[%s11 + $0x8c0] sm:$0xff]
        %v5143 = vld [vmem:[%s11 + $0x8c8] sm:$0xff]
        %v5144 = vld [vmem:[%s11 + $0x8d0] sm:$0xff]
        %v5145 = vld [vmem:[%s11 + $0x8d8] sm:$0xf]
        %v5146 = vld [vmem:[%s11 + $0x8dc] sm:$0xff]
        %v5147 = vld [vmem:[%s11 + $0x8e4] sm:$0xff]
        %v5148 = vld [vmem:[%s11 + $0x8ec] sm:$0xff]
        %v5149 = vld [vmem:[%s11 + $0x8f4] sm:$0xff]
        %v5150 = vld [vmem:[%s11 + $0x8fc] sm:$0xf]
        %v5151 = vld [vmem:[%s11 + $0x900] sm:$0xff]
        %v5152 = vld [vmem:[%s11 + $0x908] sm:$0xff]
        %v5153 = vld [vmem:[%s11 + $0x910] sm:$0xff]
        %v5154 = vld [vmem:[%s11 + $0x918] sm:$0xff]
        %v5155 = vld [vmem:[%s11 + $0x920] sm:$0xf]
        %v5156 = vld [vmem:[%s11 + $0x924] sm:$0xff]
        %v5157 = vld [vmem:[%s11 + $0x92c] sm:$0xff]
        %v5158 = vld [vmem:[%s11 + $0x934] sm:$0xff]
        %v5159 = vld [vmem:[%s11 + $0x93c] sm:$0xff]
        %v5160 = vld [vmem:[%s11 + $0x944] sm:$0xf]
        %v5161 = vld [vmem:[%s11 + $0x948] sm:$0xff]
        %v5162 = vld [vmem:[%s11 + $0x950] sm:$0xff]
        %v5163 = vld [vmem:[%s11 + $0x958] sm:$0xff]
        %v5164 = vld [vmem:[%s11 + $0x960] sm:$0xff]
        %v5165 = vld [vmem:[%s11 + $0x968] sm:$0xf]
        %v5166 = vld [vmem:[%s11 + $0x96c] sm:$0xff]
        %v5167 = vld [vmem:[%s11 + $0x974] sm:$0xff]
        %v5168 = vld [vmem:[%s11 + $0x97c] sm:$0xff]
        %v5169 = vld [vmem:[%s11 + $0x984] sm:$0xff]
        %v5170 = vld [vmem:[%s11 + $0x98c] sm:$0xf]
        %v5171 = vld [vmem:[%s11 + $0x990] sm:$0xff]
        %v5172 = vld [vmem:[%s11 + $0x998] sm:$0xff]
        %v5173 = vld [vmem:[%s11 + $0x9a0] sm:$0xff]
        %v5174 = vld [vmem:[%s11 + $0x9a8] sm:$0xff]
        %v5175 = vld [vmem:[%s11 + $0x9b0] sm:$0xf]
        %v5176 = vld [vmem:[%s11 + $0x9b4] sm:$0xff]
        %v5177 = vld [vmem:[%s11 + $0x9bc] sm:$0xff]
        %v5178 = vld [vmem:[%s11 + $0x9c4] sm:$0xff]
        %v5179 = vld [vmem:[%s11 + $0x9cc] sm:$0xff]
        %v5180 = vld [vmem:[%s11 + $0x9d4] sm:$0xf]
        %v5181 = vld [vmem:[%s11 + $0x9d8] sm:$0xff]
        %v5182 = vld [vmem:[%s11 + $0x9e0] sm:$0xff]
        %v5183 = vld [vmem:[%s11 + $0x9e8] sm:$0xff]
        %v5184 = vld [vmem:[%s11 + $0x9f0] sm:$0xff]
        %v5185 = vld [vmem:[%s11 + $0x9f8] sm:$0xf]
        %v5186 = vld [vmem:[%s11 + $0x9fc] sm:$0xff]
        %v5187 = vld [vmem:[%s11 + $0xa04] sm:$0xff]
        %v5188 = vld [vmem:[%s11 + $0xa0c] sm:$0xff]
        %v5189 = vld [vmem:[%s11 + $0xa14] sm:$0xff]
        %v5190 = vld [vmem:[%s11 + $0xa1c] sm:$0xf]
        %v5191 = vld [vmem:[%s11 + $0xa20] sm:$0xff]
        %v5192 = vld [vmem:[%s11 + $0xa28] sm:$0xff]
        %v5193 = vld [vmem:[%s11 + $0xa30] sm:$0xff]
        %v5194 = vld [vmem:[%s11 + $0xa38] sm:$0xff]
        %v5195 = vld [vmem:[%s11 + $0xa40] sm:$0xf]
        %v5196 = vld [vmem:[%s11 + $0xa44] sm:$0xff]
        %v5197 = vld [vmem:[%s11 + $0xa4c] sm:$0xff]
        %v5198 = vld [vmem:[%s11 + $0xa54] sm:$0xff]
        %v5199 = vld [vmem:[%s11 + $0xa5c] sm:$0xff]
        %v5200 = vld [vmem:[%s11 + $0xa64] sm:$0xf]
        %v5201 = vld [vmem:[%s11 + $0xa68] sm:$0xff]
        %v5202 = vld [vmem:[%s11 + $0xa70] sm:$0xff]
        %v5203 = vld [vmem:[%s11 + $0xa78] sm:$0xff]
        %v5204 = vld [vmem:[%s11 + $0xa80] sm:$0xff]
        %v5205 = vld [vmem:[%s11 + $0xa88] sm:$0xf]
        %v5206 = vld [vmem:[%s11 + $0xa8c] sm:$0xff]
        %v5207 = vld [vmem:[%s11 + $0xa94] sm:$0xff]
        %v5208 = vld [vmem:[%s11 + $0xa9c] sm:$0xff]
        %v5209 = vld [vmem:[%s11 + $0xaa4] sm:$0xff]
        %v5210 = vld [vmem:[%s11 + $0xaac] sm:$0xf]
        %v5211 = vld [vmem:[%s11 + $0xab0] sm:$0xff]
        %v5212 = vld [vmem:[%s11 + $0xab8] sm:$0xff]
        %v5213 = vld [vmem:[%s11 + $0xac0] sm:$0xff]
        %v5214 = vld [vmem:[%s11 + $0xac8] sm:$0xff]
        %v5215 = vld [vmem:[%s11 + $0xad0] sm:$0xf]
        %v5216 = vld [vmem:[%s11 + $0xad4] sm:$0xff]
        %v5217 = vld [vmem:[%s11 + $0xadc] sm:$0xff]
        %v5218 = vld [vmem:[%s11 + $0xae4] sm:$0xff]
        %v5219 = vld [vmem:[%s11 + $0xaec] sm:$0xff]
        %v5220 = vld [vmem:[%s11 + $0xaf4] sm:$0xf]
        %v5221 = vld [vmem:[%s11 + $0xaf8] sm:$0xff]
        %v5222 = vld [vmem:[%s11 + $0xb00] sm:$0xff]
        %v5223 = vld [vmem:[%s11 + $0xb08] sm:$0xff]
        %v5224 = vld [vmem:[%s11 + $0xb10] sm:$0xff]
        %v5225 = vld [vmem:[%s11 + $0xb18] sm:$0xf]
        %v5226 = vld [vmem:[%s11 + $0xb1c] sm:$0xff]
        %v5227 = vld [vmem:[%s11 + $0xb24] sm:$0xff]
        %v5228 = vld [vmem:[%s11 + $0xb2c] sm:$0xff]
        %v5229 = vld [vmem:[%s11 + $0xb34] sm:$0xff]
        %v5230 = vld [vmem:[%s11 + $0xb3c] sm:$0xf]
        %v5231 = vld [vmem:[%s11 + $0xb40] sm:$0xff]
        %v5232 = vld [vmem:[%s11 + $0xb48] sm:$0xff]
        %v5233 = vld [vmem:[%s11 + $0xb50] sm:$0xff]
        %v5234 = vld [vmem:[%s11 + $0xb58] sm:$0xff]
        %v5235 = vld [vmem:[%s11 + $0xb60] sm:$0xf]
        %v5236 = vld [vmem:[%s11 + $0xb64] sm:$0xff]
        %v5237 = vld [vmem:[%s11 + $0xb6c] sm:$0xff]
        %v5238 = vld [vmem:[%s11 + $0xb74] sm:$0xff]
        %v5239 = vld [vmem:[%s11 + $0xb7c] sm:$0xff]
        %v5240 = vld [vmem:[%s11 + $0xb84] sm:$0xf]
        %v5241 = vld [vmem:[%s11 + $0xb88] sm:$0xff]
        %v5242 = vld [vmem:[%s11 + $0xb90] sm:$0xff]
        %v5243 = vld [vmem:[%s11 + $0xb98] sm:$0xff]
        %v5244 = vld [vmem:[%s11 + $0xba0] sm:$0xff]
        %v5245 = vld [vmem:[%s11 + $0xba8] sm:$0xf]
        %v5246 = vld [vmem:[%s11 + $0xbac] sm:$0xff]
        %v5247 = vld [vmem:[%s11 + $0xbb4] sm:$0xff]
        %v5248 = vld [vmem:[%s11 + $0xbbc] sm:$0xff]
        %v5249 = vld [vmem:[%s11 + $0xbc4] sm:$0xff]
        %v5250 = vld [vmem:[%s11 + $0xbcc] sm:$0xf]
        %v5251 = vld [vmem:[%s11 + $0xbd0] sm:$0xff]
        %v5252 = vld [vmem:[%s11 + $0xbd8] sm:$0xff]
        %v5253 = vld [vmem:[%s11 + $0xbe0] sm:$0xff]
        %v5254 = vld [vmem:[%s11 + $0xbe8] sm:$0xff]
        %v5255 = vld [vmem:[%s11 + $0xbf0] sm:$0xf]
        %v5256 = vld [vmem:[%s11 + $0xbf4] sm:$0xff]
        %v5257 = vld [vmem:[%s11 + $0xbfc] sm:$0xff]
        %v5258 = vld [vmem:[%s11 + $0xc04] sm:$0xff]
        %v5259 = vld [vmem:[%s11 + $0xc0c] sm:$0xff]
        %v5260 = vld [vmem:[%s11 + $0xc14] sm:$0xf]
        %v5261 = vld [vmem:[%s11 + $0xc18] sm:$0xff]
        %v5262 = vld [vmem:[%s11 + $0xc20] sm:$0xff]
        %v5263 = vld [vmem:[%s11 + $0xc28] sm:$0xff]
        %v5264 = vld [vmem:[%s11 + $0xc30] sm:$0xff]
        %v5265 = vld [vmem:[%s11 + $0xc38] sm:$0xf]
        %v5266 = vld [vmem:[%s11 + $0xc3c] sm:$0xff]
        %v5267 = vld [vmem:[%s11 + $0xc44] sm:$0xff]
        %v5268 = vld [vmem:[%s11 + $0xc4c] sm:$0xff]
        %v5269 = vld [vmem:[%s11 + $0xc54] sm:$0xff]
        %v5270 = vld [vmem:[%s11 + $0xc5c] sm:$0xf]
        %v5271 = vld [vmem:[%s11 + $0xc60] sm:$0xff]
        %v5272 = vld [vmem:[%s11 + $0xc68] sm:$0xff]
        %v5273 = vld [vmem:[%s11 + $0xc70] sm:$0xff]
        %v5274 = vld [vmem:[%s11 + $0xc78] sm:$0xff]
        %v5275 = vld [vmem:[%s11 + $0xc80] sm:$0xf]
        %v5276 = vld [vmem:[%s11 + $0xc84] sm:$0xff]
        %v5277 = vld [vmem:[%s11 + $0xc8c] sm:$0xff]
        %v5278 = vld [vmem:[%s11 + $0xc94] sm:$0xff]
        %v5279 = vld [vmem:[%s11 + $0xc9c] sm:$0xff]
        %v5280 = vld [vmem:[%s11 + $0xca4] sm:$0xf]
        %v5281 = vld [vmem:[%s11 + $0xca8] sm:$0xff]
        %v5282 = vld [vmem:[%s11 + $0xcb0] sm:$0xff]
        %v5283 = vld [vmem:[%s11 + $0xcb8] sm:$0xff]
        %v5284 = vld [vmem:[%s11 + $0xcc0] sm:$0xff]
        %v5285 = vld [vmem:[%s11 + $0xcc8] sm:$0xf]
        %v5286 = vld [vmem:[%s11 + $0xccc] sm:$0xff]
        %v5287 = vld [vmem:[%s11 + $0xcd4] sm:$0xff]
        %v5288 = vld [vmem:[%s11 + $0xcdc] sm:$0xff]
        %v5289 = vld [vmem:[%s11 + $0xce4] sm:$0xff]
        %v5290 = vld [vmem:[%s11 + $0xcec] sm:$0xf]
        %v5291 = vld [vmem:[%s11 + $0xcf0] sm:$0xff]
        %v5292 = vld [vmem:[%s11 + $0xcf8] sm:$0xff]
        %v5293 = vld [vmem:[%s11 + $0xd00] sm:$0xff]
        %v5294 = vld [vmem:[%s11 + $0xd08] sm:$0xff]
        %v5295 = vld [vmem:[%s11 + $0xd10] sm:$0xf]
        %v5296 = vld [vmem:[%s11 + $0xd14] sm:$0xff]
        %v5297 = vld [vmem:[%s11 + $0xd1c] sm:$0xff]
        %v5298 = vld [vmem:[%s11 + $0xd24] sm:$0xff]
        %v5299 = vld [vmem:[%s11 + $0xd2c] sm:$0xff]
        %v5300 = vld [vmem:[%s11 + $0xd34] sm:$0xf]
        %v5301 = vld [vmem:[%s11 + $0xd38] sm:$0xff]
        %v5302 = vld [vmem:[%s11 + $0xd40] sm:$0xff]
        %v5303 = vld [vmem:[%s11 + $0xd48] sm:$0xff]
        %v5304 = vld [vmem:[%s11 + $0xd50] sm:$0xff]
        %v5305 = vld [vmem:[%s11 + $0xd58] sm:$0xf]
        %v5306 = vld [vmem:[%s11 + $0xd5c] sm:$0xff]
        %v5307 = vld [vmem:[%s11 + $0xd64] sm:$0xff]
        %v5308 = vld [vmem:[%s11 + $0xd6c] sm:$0xff]
        %v5309 = vld [vmem:[%s11 + $0xd74] sm:$0xff]
        %v5310 = vld [vmem:[%s11 + $0xd7c] sm:$0xf]
        %v5311 = vld [vmem:[%s11 + $0xd80] sm:$0xff]
        %v5312 = vld [vmem:[%s11 + $0xd88] sm:$0xff]
        %v5313 = vld [vmem:[%s11 + $0xd90] sm:$0xff]
        %v5314 = vld [vmem:[%s11 + $0xd98] sm:$0xff]
        %v5315 = vld [vmem:[%s11 + $0xda0] sm:$0xf]
        %v5316 = vld [vmem:[%s11 + $0xda4] sm:$0xff]
        %v5317 = vld [vmem:[%s11 + $0xdac] sm:$0xff]
        %v5318 = vld [vmem:[%s11 + $0xdb4] sm:$0xff]
        %v5319 = vld [vmem:[%s11 + $0xdbc] sm:$0xff]
        %v5320 = vld [vmem:[%s11 + $0xdc4] sm:$0xf]
        %v5321 = vld [vmem:[%s11 + $0xdc8] sm:$0xff]
        %v5322 = vld [vmem:[%s11 + $0xdd0] sm:$0xff]
        %v5323 = vld [vmem:[%s11 + $0xdd8] sm:$0xff]
        %v5324 = vld [vmem:[%s11 + $0xde0] sm:$0xff]
        %v5325 = vld [vmem:[%s11 + $0xde8] sm:$0xf]
        %v5326 = vld [vmem:[%s11 + $0xdec] sm:$0xff]
        %v5327 = vld [vmem:[%s11 + $0xdf4] sm:$0xff]
        %v5328 = vld [vmem:[%s11 + $0xdfc] sm:$0xff]
        %v5329 = vld [vmem:[%s11 + $0xe04] sm:$0xff]
        %v5330 = vld [vmem:[%s11 + $0xe0c] sm:$0xf]
        %v5331 = vld [vmem:[%s11 + $0xe10] sm:$0xff]
        %v5332 = vld [vmem:[%s11 + $0xe18] sm:$0xff]
        %v5333 = vld [vmem:[%s11 + $0xe20] sm:$0xff]
        %v5334 = vld [vmem:[%s11 + $0xe28] sm:$0xff]
        %v5335 = vld [vmem:[%s11 + $0xe30] sm:$0xf]
        %v5336 = vld [vmem:[%s11 + $0xe34] sm:$0xff]
        %v5337 = vld [vmem:[%s11 + $0xe3c] sm:$0xff]
        %v5338 = vld [vmem:[%s11 + $0xe44] sm:$0xff]
        %v5339 = vld [vmem:[%s11 + $0xe4c] sm:$0xff]
        %v5340 = vld [vmem:[%s11 + $0xe54] sm:$0xf]
        %v5341 = vld [vmem:[%s11 + $0xe58] sm:$0xff]
        %v5342 = vld [vmem:[%s11 + $0xe60] sm:$0xff]
        %v5343 = vld [vmem:[%s11 + $0xe68] sm:$0xff]
        %v5344 = vld [vmem:[%s11 + $0xe70] sm:$0xff]
        %v5345 = vld [vmem:[%s11 + $0xe78] sm:$0xf]
        %v5346 = vld [vmem:[%s11 + $0xe7c] sm:$0xff]
        %v5347 = vld [vmem:[%s11 + $0xe84] sm:$0xff]
        %v5348 = vld [vmem:[%s11 + $0xe8c] sm:$0xff]
        %v5349 = vld [vmem:[%s11 + $0xe94] sm:$0xff]
        %v5350 = vld [vmem:[%s11 + $0xe9c] sm:$0xf]
        %v5351 = vld [vmem:[%s11 + $0xea0] sm:$0xff]
        %v5352 = vld [vmem:[%s11 + $0xea8] sm:$0xff]
        %v5353 = vld [vmem:[%s11 + $0xeb0] sm:$0xff]
        %v5354 = vld [vmem:[%s11 + $0xeb8] sm:$0xff]
        %v5355 = vld [vmem:[%s11 + $0xec0] sm:$0xf]
        %v5356 = vld [vmem:[%s11 + $0xec4] sm:$0xff]
        %v5357 = vld [vmem:[%s11 + $0xecc] sm:$0xff]
        %v5358 = vld [vmem:[%s11 + $0xed4] sm:$0xff]
        %v5359 = vld [vmem:[%s11 + $0xedc] sm:$0xff]
        %v5360 = vld [vmem:[%s11 + $0xee4] sm:$0xf]
        %v5361 = vld [vmem:[%s11 + $0xee8] sm:$0xff]
        %v5362 = vld [vmem:[%s11 + $0xef0] sm:$0xff]
        %v5363 = vld [vmem:[%s11 + $0xef8] sm:$0xff]
        %v5364 = vld [vmem:[%s11 + $0xf00] sm:$0xff]
        %v5365 = vld [vmem:[%s11 + $0xf08] sm:$0xf]
        %v5366 = vld [vmem:[%s11 + $0xf0c] sm:$0xff]
        %v5367 = vld [vmem:[%s11 + $0xf14] sm:$0xff]
        %v5368 = vld [vmem:[%s11 + $0xf1c] sm:$0xff]
        %v5369 = vld [vmem:[%s11 + $0xf24] sm:$0xff]
        %v5370 = vld [vmem:[%s11 + $0xf2c] sm:$0xf]
        %v5371 = vld [vmem:[%s11 + $0xf30] sm:$0xff]
        %v5372 = vld [vmem:[%s11 + $0xf38] sm:$0xff]
        %v5373 = vld [vmem:[%s11 + $0xf40] sm:$0xff]
        %v5374 = vld [vmem:[%s11 + $0xf48] sm:$0xff]
        %v5375 = vld [vmem:[%s11 + $0xf50] sm:$0xf]
        %v5376 = vld [vmem:[%s11 + $0xf54] sm:$0xff]
        %v5377 = vld [vmem:[%s11 + $0xf5c] sm:$0xff]
        %v5378 = vld [vmem:[%s11 + $0xf64] sm:$0xff]
        %v5379 = vld [vmem:[%s11 + $0xf6c] sm:$0xff]
        %v5380 = vld [vmem:[%s11 + $0xf74] sm:$0xf]
        %v5381 = vld [vmem:[%s11 + $0xf78] sm:$0xff]
        %v5382 = vld [vmem:[%s11 + $0xf80] sm:$0xff]
        %v5383 = vld [vmem:[%s11 + $0xf88] sm:$0xff]
        %v5384 = vld [vmem:[%s11 + $0xf90] sm:$0xff]
        %v5385 = vld [vmem:[%s11 + $0xf98] sm:$0xf]
        %v5386 = vld [vmem:[%s11 + $0xf9c] sm:$0xff]
        %v5387 = vld [vmem:[%s11 + $0xfa4] sm:$0xff]
        %v5388 = vld [vmem:[%s11 + $0xfac] sm:$0xff]
        %v5389 = vld [vmem:[%s11 + $0xfb4] sm:$0xff]
        %v5390 = vld [vmem:[%s11 + $0xfbc] sm:$0xf]
        %v5391 = vld [vmem:[%s11 + $0xfc0] sm:$0xff]
        %v5392 = vld [vmem:[%s11 + $0xfc8] sm:$0xff]
        %v5393 = vld [vmem:[%s11 + $0xfd0] sm:$0xff]
        %v5394 = vld [vmem:[%s11 + $0xfd8] sm:$0xff]
        %v5395 = vld [vmem:[%s11 + $0xfe0] sm:$0xf]
        %v5396 = vld [vmem:[%s11 + $0xfe4] sm:$0xff]
        %v5397 = vld [vmem:[%s11 + $0xfec] sm:$0xff]
        %v5398 = vld [vmem:[%s11 + $0xff4] sm:$0xff]
        %v5399 = vld [vmem:[%s11 + $0xffc] sm:$0xff]
        %v5400 = vld [vmem:[%s11 + $0x1004] sm:$0xf]
        %v5401 = vld [vmem:[%s11 + $0x1008] sm:$0xff]
        %v5402 = vld [vmem:[%s11 + $0x1010] sm:$0xff]
        %v5403 = vld [vmem:[%s11 + $0x1018] sm:$0xff]
        %v5404 = vld [vmem:[%s11 + $0x1020] sm:$0xff]
        %v5405 = vld [vmem:[%s11 + $0x1028] sm:$0xf]
        %v5406 = vld [vmem:[%s11 + $0x102c] sm:$0xff]
        %v5407 = vld [vmem:[%s11 + $0x1034] sm:$0xff]
        %v5408 = vld [vmem:[%s11 + $0x103c] sm:$0xff]
        %v5409 = vld [vmem:[%s11 + $0x1044] sm:$0xff]
        %v5410 = vld [vmem:[%s11 + $0x104c] sm:$0xf]
        %v5411 = vld [vmem:[%s11 + $0x1050] sm:$0xff]
        %v5412 = vld [vmem:[%s11 + $0x1058] sm:$0xff]
        %v5413 = vld [vmem:[%s11 + $0x1060] sm:$0xff]
        %v5414 = vld [vmem:[%s11 + $0x1068] sm:$0xff]
        %v5415 = vld [vmem:[%s11 + $0x1070] sm:$0xf]
        %v5416 = vld [vmem:[%s11 + $0x1074] sm:$0xff]
        %v5417 = vld [vmem:[%s11 + $0x107c] sm:$0xff]
        %v5418 = vld [vmem:[%s11 + $0x1084] sm:$0xff]
        %v5419 = vld [vmem:[%s11 + $0x108c] sm:$0xff]
        %v5420 = vld [vmem:[%s11 + $0x1094] sm:$0xf]
        %v5421 = vld [vmem:[%s11 + $0x1098] sm:$0xff]
        %v5422 = vld [vmem:[%s11 + $0x10a0] sm:$0xff]
        %v5423 = vld [vmem:[%s11 + $0x10a8] sm:$0xff]
        %v5424 = vld [vmem:[%s11 + $0x10b0] sm:$0xff]
        %v5425 = vld [vmem:[%s11 + $0x10b8] sm:$0xf]
        %v5426 = vld [vmem:[%s11 + $0x10bc] sm:$0xff]
        %v5427 = vld [vmem:[%s11 + $0x10c4] sm:$0xff]
        %v5428 = vld [vmem:[%s11 + $0x10cc] sm:$0xff]
        %v5429 = vld [vmem:[%s11 + $0x10d4] sm:$0xff]
        %v5430 = vld [vmem:[%s11 + $0x10dc] sm:$0xf]
        %v5431 = vld [vmem:[%s11 + $0x10e0] sm:$0xff]
        %v5432 = vld [vmem:[%s11 + $0x10e8] sm:$0xff]
        %v5433 = vld [vmem:[%s11 + $0x10f0] sm:$0xff]
        %v5434 = vld [vmem:[%s11 + $0x10f8] sm:$0xff]
        %v5435 = vld [vmem:[%s11 + $0x1100] sm:$0xf]
        %v5436 = vld [vmem:[%s11 + $0x1104] sm:$0xff]
        %v5437 = vld [vmem:[%s11 + $0x110c] sm:$0xff]
        %v5438 = vld [vmem:[%s11 + $0x1114] sm:$0xff]
        %v5439 = vld [vmem:[%s11 + $0x111c] sm:$0xff]
        %v5440 = vld [vmem:[%s11 + $0x1124] sm:$0xf]
        %v5441 = vld [vmem:[%s11 + $0x1128] sm:$0xff]
        %v5442 = vld [vmem:[%s11 + $0x1130] sm:$0xff]
        %v5443 = vld [vmem:[%s11 + $0x1138] sm:$0xff]
        %v5444 = vld [vmem:[%s11 + $0x1140] sm:$0xff]
        %v5445 = vld [vmem:[%s11 + $0x1148] sm:$0xf]
        %v5446 = vld [vmem:[%s11 + $0x114c] sm:$0xff]
        %v5447 = vld [vmem:[%s11 + $0x1154] sm:$0xff]
        %v5448 = vld [vmem:[%s11 + $0x115c] sm:$0xff]
        %v5449 = vld [vmem:[%s11 + $0x1164] sm:$0xff]
        %v5450 = vld [vmem:[%s11 + $0x116c] sm:$0xf]
        %v5451 = vld [vmem:[%s11 + $0x1170] sm:$0xff]
        %v5452 = vld [vmem:[%s11 + $0x1178] sm:$0xff]
        %v5453 = vld [vmem:[%s11 + $0x1180] sm:$0xff]
        %v5454 = vld [vmem:[%s11 + $0x1188] sm:$0xff]
        %v5455 = vld [vmem:[%s11 + $0x1190] sm:$0xf]
        %v5456 = vld [vmem:[%s11 + $0x1194] sm:$0xff]
        %v5457 = vld [vmem:[%s11 + $0x119c] sm:$0xff]
        %v5458 = vld [vmem:[%s11 + $0x11a4] sm:$0xff]
        %v5459 = vld [vmem:[%s11 + $0x11ac] sm:$0xff]
        %v5460 = vld [vmem:[%s11 + $0x11b4] sm:$0xf]
        %v5461 = vld [vmem:[%s11 + $0x11b8] sm:$0xff]
        %v5462 = vld [vmem:[%s11 + $0x11c0] sm:$0xff]
        %v5463 = vld [vmem:[%s11 + $0x11c8] sm:$0xff]
        %v5464 = vld [vmem:[%s11 + $0x11d0] sm:$0xff]
        %v5465 = vld [vmem:[%s11 + $0x11d8] sm:$0xf]
        %v5466 = vld [vmem:[%s11 + $0x11dc] sm:$0xff]
        %v5467 = vld [vmem:[%s11 + $0x11e4] sm:$0xff]
        %v5468 = vld [vmem:[%s11 + $0x11ec] sm:$0xff]
        %v5469 = vld [vmem:[%s11 + $0x11f4] sm:$0xff]
        %v5470 = vld [vmem:[%s11 + $0x11fc] sm:$0xf]
        %v5471 = vld [vmem:[%s12] sm:$0xff]
        %v5472 = vld [vmem:[%s12 + $0x8] sm:$0x1]
        %v6113 = vunpack.c.l.b16 %v4831
        %v6114 = vunpack.c.h.b16 %v4831
        %v6115 = vunpack.c.l.b16 %v4832
        %v6116 = vunpack.c.h.b16 %v4832
        %v6117 = vunpack.c.l.b16 %v4833
        %v6118 = vunpack.c.h.b16 %v4833
        %v6119 = vunpack.c.l.b16 %v4834
        %v6120 = vunpack.c.h.b16 %v4834
        %v6121 = vunpack.c.l.b16 %v4835
        %v6122 = vunpack.c.l.b16 %v4836
        %v6123 = vunpack.c.h.b16 %v4836
        %v6124 = vunpack.c.l.b16 %v4837
        %v6125 = vunpack.c.h.b16 %v4837
        %v6126 = vunpack.c.l.b16 %v4838
        %v6127 = vunpack.c.h.b16 %v4838
        %v6128 = vunpack.c.l.b16 %v4839
        %v6129 = vunpack.c.h.b16 %v4839
        %v6130 = vunpack.c.l.b16 %v4840
        %v6131 = vunpack.c.l.b16 %v4841
        %v6132 = vunpack.c.h.b16 %v4841
        %v6133 = vunpack.c.l.b16 %v4842
        %v6134 = vunpack.c.h.b16 %v4842
        %v6135 = vunpack.c.l.b16 %v4843
        %v6136 = vunpack.c.h.b16 %v4843
        %v6137 = vunpack.c.l.b16 %v4844
        %v6138 = vunpack.c.h.b16 %v4844
        %v6139 = vunpack.c.l.b16 %v4845
        %v6140 = vunpack.c.l.b16 %v4846
        %v6141 = vunpack.c.h.b16 %v4846
        %v6142 = vunpack.c.l.b16 %v4847
        %v6143 = vunpack.c.h.b16 %v4847
        %v6144 = vunpack.c.l.b16 %v4848
        %v6145 = vunpack.c.h.b16 %v4848
        %v6146 = vunpack.c.l.b16 %v4849
        %v6147 = vunpack.c.h.b16 %v4849
        %v6148 = vunpack.c.l.b16 %v4850
        %v6149 = vunpack.c.l.b16 %v4851
        %v6150 = vunpack.c.h.b16 %v4851
        %v6151 = vunpack.c.l.b16 %v4852
        %v6152 = vunpack.c.h.b16 %v4852
        %v6153 = vunpack.c.l.b16 %v4853
        %v6154 = vunpack.c.h.b16 %v4853
        %v6155 = vunpack.c.l.b16 %v4854
        %v6156 = vunpack.c.h.b16 %v4854
        %v6157 = vunpack.c.l.b16 %v4855
        %v6158 = vunpack.c.l.b16 %v4856
        %v6159 = vunpack.c.h.b16 %v4856
        %v6160 = vunpack.c.l.b16 %v4857
        %v6161 = vunpack.c.h.b16 %v4857
        %v6162 = vunpack.c.l.b16 %v4858
        %v6163 = vunpack.c.h.b16 %v4858
        %v6164 = vunpack.c.l.b16 %v4859
        %v6165 = vunpack.c.h.b16 %v4859
        %v6166 = vunpack.c.l.b16 %v4860
        %v6167 = vunpack.c.l.b16 %v4861
        %v6168 = vunpack.c.h.b16 %v4861
        %v6169 = vunpack.c.l.b16 %v4862
        %v6170 = vunpack.c.h.b16 %v4862
        %v6171 = vunpack.c.l.b16 %v4863
        %v6172 = vunpack.c.h.b16 %v4863
        %v6173 = vunpack.c.l.b16 %v4864
        %v6174 = vunpack.c.h.b16 %v4864
        %v6175 = vunpack.c.l.b16 %v4865
        %v6176 = vunpack.c.l.b16 %v4866
        %v6177 = vunpack.c.h.b16 %v4866
        %v6178 = vunpack.c.l.b16 %v4867
        %v6179 = vunpack.c.h.b16 %v4867
        %v6180 = vunpack.c.l.b16 %v4868
        %v6181 = vunpack.c.h.b16 %v4868
        %v6182 = vunpack.c.l.b16 %v4869
        %v6183 = vunpack.c.h.b16 %v4869
        %v6184 = vunpack.c.l.b16 %v4870
        %v6185 = vunpack.c.l.b16 %v4871
        %v6186 = vunpack.c.h.b16 %v4871
        %v6187 = vunpack.c.l.b16 %v4872
        %v6188 = vunpack.c.h.b16 %v4872
        %v6189 = vunpack.c.l.b16 %v4873
        %v6190 = vunpack.c.h.b16 %v4873
        %v6191 = vunpack.c.l.b16 %v4874
        %v6192 = vunpack.c.h.b16 %v4874
        %v6193 = vunpack.c.l.b16 %v4875
        %v6194 = vunpack.c.l.b16 %v4876
        %v6195 = vunpack.c.h.b16 %v4876
        %v6196 = vunpack.c.l.b16 %v4877
        %v6197 = vunpack.c.h.b16 %v4877
        %v6198 = vunpack.c.l.b16 %v4878
        %v6199 = vunpack.c.h.b16 %v4878
        %v6200 = vunpack.c.l.b16 %v4879
        %v6201 = vunpack.c.h.b16 %v4879
        %v6202 = vunpack.c.l.b16 %v4880
        %v6203 = vunpack.c.l.b16 %v4881
        %v6204 = vunpack.c.h.b16 %v4881
        %v6205 = vunpack.c.l.b16 %v4882
        %v6206 = vunpack.c.h.b16 %v4882
        %v6207 = vunpack.c.l.b16 %v4883
        %v6208 = vunpack.c.h.b16 %v4883
        %v6209 = vunpack.c.l.b16 %v4884
        %v6210 = vunpack.c.h.b16 %v4884
        %v6211 = vunpack.c.l.b16 %v4885
        %v6212 = vunpack.c.l.b16 %v4886
        %v6213 = vunpack.c.h.b16 %v4886
        %v6214 = vunpack.c.l.b16 %v4887
        %v6215 = vunpack.c.h.b16 %v4887
        %v6216 = vunpack.c.l.b16 %v4888
        %v6217 = vunpack.c.h.b16 %v4888
        %v6218 = vunpack.c.l.b16 %v4889
        %v6219 = vunpack.c.h.b16 %v4889
        %v6220 = vunpack.c.l.b16 %v4890
        %v6221 = vunpack.c.l.b16 %v4891
        %v6222 = vunpack.c.h.b16 %v4891
        %v6223 = vunpack.c.l.b16 %v4892
        %v6224 = vunpack.c.h.b16 %v4892
        %v6225 = vunpack.c.l.b16 %v4893
        %v6226 = vunpack.c.h.b16 %v4893
        %v6227 = vunpack.c.l.b16 %v4894
        %v6228 = vunpack.c.h.b16 %v4894
        %v6229 = vunpack.c.l.b16 %v4895
        %v6230 = vunpack.c.l.b16 %v4896
        %v6231 = vunpack.c.h.b16 %v4896
        %v6232 = vunpack.c.l.b16 %v4897
        %v6233 = vunpack.c.h.b16 %v4897
        %v6234 = vunpack.c.l.b16 %v4898
        %v6235 = vunpack.c.h.b16 %v4898
        %v6236 = vunpack.c.l.b16 %v4899
        %v6237 = vunpack.c.h.b16 %v4899
        %v6238 = vunpack.c.l.b16 %v4900
        %v6239 = vunpack.c.l.b16 %v4901
        %v6240 = vunpack.c.h.b16 %v4901
        %v6241 = vunpack.c.l.b16 %v4902
        %v6242 = vunpack.c.h.b16 %v4902
        %v6243 = vunpack.c.l.b16 %v4903
        %v6244 = vunpack.c.h.b16 %v4903
        %v6245 = vunpack.c.l.b16 %v4904
        %v6246 = vunpack.c.h.b16 %v4904
        %v6247 = vunpack.c.l.b16 %v4905
        %v6248 = vunpack.c.l.b16 %v4906
        %v6249 = vunpack.c.h.b16 %v4906
        %v6250 = vunpack.c.l.b16 %v4907
        %v6251 = vunpack.c.h.b16 %v4907
        %v6252 = vunpack.c.l.b16 %v4908
        %v6253 = vunpack.c.h.b16 %v4908
        %v6254 = vunpack.c.l.b16 %v4909
        %v6255 = vunpack.c.h.b16 %v4909
        %v6256 = vunpack.c.l.b16 %v4910
        %v6257 = vunpack.c.l.b16 %v4911
        %v6258 = vunpack.c.h.b16 %v4911
        %v6259 = vunpack.c.l.b16 %v4912
        %v6260 = vunpack.c.h.b16 %v4912
        %v6261 = vunpack.c.l.b16 %v4913
        %v6262 = vunpack.c.h.b16 %v4913
        %v6263 = vunpack.c.l.b16 %v4914
        %v6264 = vunpack.c.h.b16 %v4914
        %v6265 = vunpack.c.l.b16 %v4915
        %v6266 = vunpack.c.l.b16 %v4916
        %v6267 = vunpack.c.h.b16 %v4916
        %v6268 = vunpack.c.l.b16 %v4917
        %v6269 = vunpack.c.h.b16 %v4917
        %v6270 = vunpack.c.l.b16 %v4918
        %v6271 = vunpack.c.h.b16 %v4918
        %v6272 = vunpack.c.l.b16 %v4919
        %v6273 = vunpack.c.h.b16 %v4919
        %v6274 = vunpack.c.l.b16 %v4920
        %v6275 = vunpack.c.l.b16 %v4921
        %v6276 = vunpack.c.h.b16 %v4921
        %v6277 = vunpack.c.l.b16 %v4922
        %v6278 = vunpack.c.h.b16 %v4922
        %v6279 = vunpack.c.l.b16 %v4923
        %v6280 = vunpack.c.h.b16 %v4923
        %v6281 = vunpack.c.l.b16 %v4924
        %v6282 = vunpack.c.h.b16 %v4924
        %v6283 = vunpack.c.l.b16 %v4925
        %v6284 = vunpack.c.l.b16 %v4926
        %v6285 = vunpack.c.h.b16 %v4926
        %v6286 = vunpack.c.l.b16 %v4927
        %v6287 = vunpack.c.h.b16 %v4927
        %v6288 = vunpack.c.l.b16 %v4928
        %v6289 = vunpack.c.h.b16 %v4928
        %v6290 = vunpack.c.l.b16 %v4929
        %v6291 = vunpack.c.h.b16 %v4929
        %v6292 = vunpack.c.l.b16 %v4930
        %v6293 = vunpack.c.l.b16 %v4931
        %v6294 = vunpack.c.h.b16 %v4931
        %v6295 = vunpack.c.l.b16 %v4932
        %v6296 = vunpack.c.h.b16 %v4932
        %v6297 = vunpack.c.l.b16 %v4933
        %v6298 = vunpack.c.h.b16 %v4933
        %v6299 = vunpack.c.l.b16 %v4934
        %v6300 = vunpack.c.h.b16 %v4934
        %v6301 = vunpack.c.l.b16 %v4935
        %v6302 = vunpack.c.l.b16 %v4936
        %v6303 = vunpack.c.h.b16 %v4936
        %v6304 = vunpack.c.l.b16 %v4937
        %v6305 = vunpack.c.h.b16 %v4937
        %v6306 = vunpack.c.l.b16 %v4938
        %v6307 = vunpack.c.h.b16 %v4938
        %v6308 = vunpack.c.l.b16 %v4939
        %v6309 = vunpack.c.h.b16 %v4939
        %v6310 = vunpack.c.l.b16 %v4940
        %v6311 = vunpack.c.l.b16 %v4941
        %v6312 = vunpack.c.h.b16 %v4941
        %v6313 = vunpack.c.l.b16 %v4942
        %v6314 = vunpack.c.h.b16 %v4942
        %v6315 = vunpack.c.l.b16 %v4943
        %v6316 = vunpack.c.h.b16 %v4943
        %v6317 = vunpack.c.l.b16 %v4944
        %v6318 = vunpack.c.h.b16 %v4944
        %v6319 = vunpack.c.l.b16 %v4945
        %v6320 = vunpack.c.l.b16 %v4946
        %v6321 = vunpack.c.h.b16 %v4946
        %v6322 = vunpack.c.l.b16 %v4947
        %v6323 = vunpack.c.h.b16 %v4947
        %v6324 = vunpack.c.l.b16 %v4948
        %v6325 = vunpack.c.h.b16 %v4948
        %v6326 = vunpack.c.l.b16 %v4949
        %v6327 = vunpack.c.h.b16 %v4949
        %v6328 = vunpack.c.l.b16 %v4950
        %v6329 = vunpack.c.l.b16 %v4951
        %v6330 = vunpack.c.h.b16 %v4951
        %v6331 = vunpack.c.l.b16 %v4952
        %v6332 = vunpack.c.h.b16 %v4952
        %v6333 = vunpack.c.l.b16 %v4953
        %v6334 = vunpack.c.h.b16 %v4953
        %v6335 = vunpack.c.l.b16 %v4954
        %v6336 = vunpack.c.h.b16 %v4954
        %v6337 = vunpack.c.l.b16 %v4955
        %v6338 = vunpack.c.l.b16 %v4956
        %v6339 = vunpack.c.h.b16 %v4956
        %v6340 = vunpack.c.l.b16 %v4957
        %v6341 = vunpack.c.h.b16 %v4957
        %v6342 = vunpack.c.l.b16 %v4958
        %v6343 = vunpack.c.h.b16 %v4958
        %v6344 = vunpack.c.l.b16 %v4959
        %v6345 = vunpack.c.h.b16 %v4959
        %v6346 = vunpack.c.l.b16 %v4960
        %v6347 = vunpack.c.l.b16 %v4961
        %v6348 = vunpack.c.h.b16 %v4961
        %v6349 = vunpack.c.l.b16 %v4962
        %v6350 = vunpack.c.h.b16 %v4962
        %v6351 = vunpack.c.l.b16 %v4963
        %v6352 = vunpack.c.h.b16 %v4963
        %v6353 = vunpack.c.l.b16 %v4964
        %v6354 = vunpack.c.h.b16 %v4964
        %v6355 = vunpack.c.l.b16 %v4965
        %v6356 = vunpack.c.l.b16 %v4966
        %v6357 = vunpack.c.h.b16 %v4966
        %v6358 = vunpack.c.l.b16 %v4967
        %v6359 = vunpack.c.h.b16 %v4967
        %v6360 = vunpack.c.l.b16 %v4968
        %v6361 = vunpack.c.h.b16 %v4968
        %v6362 = vunpack.c.l.b16 %v4969
        %v6363 = vunpack.c.h.b16 %v4969
        %v6364 = vunpack.c.l.b16 %v4970
        %v6365 = vunpack.c.l.b16 %v4971
        %v6366 = vunpack.c.h.b16 %v4971
        %v6367 = vunpack.c.l.b16 %v4972
        %v6368 = vunpack.c.h.b16 %v4972
        %v6369 = vunpack.c.l.b16 %v4973
        %v6370 = vunpack.c.h.b16 %v4973
        %v6371 = vunpack.c.l.b16 %v4974
        %v6372 = vunpack.c.h.b16 %v4974
        %v6373 = vunpack.c.l.b16 %v4975
        %v6374 = vunpack.c.l.b16 %v4976
        %v6375 = vunpack.c.h.b16 %v4976
        %v6376 = vunpack.c.l.b16 %v4977
        %v6377 = vunpack.c.h.b16 %v4977
        %v6378 = vunpack.c.l.b16 %v4978
        %v6379 = vunpack.c.h.b16 %v4978
        %v6380 = vunpack.c.l.b16 %v4979
        %v6381 = vunpack.c.h.b16 %v4979
        %v6382 = vunpack.c.l.b16 %v4980
        %v6383 = vunpack.c.l.b16 %v4981
        %v6384 = vunpack.c.h.b16 %v4981
        %v6385 = vunpack.c.l.b16 %v4982
        %v6386 = vunpack.c.h.b16 %v4982
        %v6387 = vunpack.c.l.b16 %v4983
        %v6388 = vunpack.c.h.b16 %v4983
        %v6389 = vunpack.c.l.b16 %v4984
        %v6390 = vunpack.c.h.b16 %v4984
        %v6391 = vunpack.c.l.b16 %v4985
        %v6392 = vunpack.c.l.b16 %v4986
        %v6393 = vunpack.c.h.b16 %v4986
        %v6394 = vunpack.c.l.b16 %v4987
        %v6395 = vunpack.c.h.b16 %v4987
        %v6396 = vunpack.c.l.b16 %v4988
        %v6397 = vunpack.c.h.b16 %v4988
        %v6398 = vunpack.c.l.b16 %v4989
        %v6399 = vunpack.c.h.b16 %v4989
        %v6400 = vunpack.c.l.b16 %v4990
        %v6401 = vunpack.c.l.b16 %v4991
        %v6402 = vunpack.c.h.b16 %v4991
        %v6403 = vunpack.c.l.b16 %v4992
        %v6404 = vunpack.c.h.b16 %v4992
        %v6405 = vunpack.c.l.b16 %v4993
        %v6406 = vunpack.c.h.b16 %v4993
        %v6407 = vunpack.c.l.b16 %v4994
        %v6408 = vunpack.c.h.b16 %v4994
        %v6409 = vunpack.c.l.b16 %v4995
        %v6410 = vunpack.c.l.b16 %v4996
        %v6411 = vunpack.c.h.b16 %v4996
        %v6412 = vunpack.c.l.b16 %v4997
        %v6413 = vunpack.c.h.b16 %v4997
        %v6414 = vunpack.c.l.b16 %v4998
        %v6415 = vunpack.c.h.b16 %v4998
        %v6416 = vunpack.c.l.b16 %v4999
        %v6417 = vunpack.c.h.b16 %v4999
        %v6418 = vunpack.c.l.b16 %v5000
        %v6419 = vunpack.c.l.b16 %v5001
        %v6420 = vunpack.c.h.b16 %v5001
        %v6421 = vunpack.c.l.b16 %v5002
        %v6422 = vunpack.c.h.b16 %v5002
        %v6423 = vunpack.c.l.b16 %v5003
        %v6424 = vunpack.c.h.b16 %v5003
        %v6425 = vunpack.c.l.b16 %v5004
        %v6426 = vunpack.c.h.b16 %v5004
        %v6427 = vunpack.c.l.b16 %v5005
        %v6428 = vunpack.c.l.b16 %v5006
        %v6429 = vunpack.c.h.b16 %v5006
        %v6430 = vunpack.c.l.b16 %v5007
        %v6431 = vunpack.c.h.b16 %v5007
        %v6432 = vunpack.c.l.b16 %v5008
        %v6433 = vunpack.c.h.b16 %v5008
        %v6434 = vunpack.c.l.b16 %v5009
        %v6435 = vunpack.c.h.b16 %v5009
        %v6436 = vunpack.c.l.b16 %v5010
        %v6437 = vunpack.c.l.b16 %v5011
        %v6438 = vunpack.c.h.b16 %v5011
        %v6439 = vunpack.c.l.b16 %v5012
        %v6440 = vunpack.c.h.b16 %v5012
        %v6441 = vunpack.c.l.b16 %v5013
        %v6442 = vunpack.c.h.b16 %v5013
        %v6443 = vunpack.c.l.b16 %v5014
        %v6444 = vunpack.c.h.b16 %v5014
        %v6445 = vunpack.c.l.b16 %v5015
        %v6446 = vunpack.c.l.b16 %v5016
        %v6447 = vunpack.c.h.b16 %v5016
        %v6448 = vunpack.c.l.b16 %v5017
        %v6449 = vunpack.c.h.b16 %v5017
        %v6450 = vunpack.c.l.b16 %v5018
        %v6451 = vunpack.c.h.b16 %v5018
        %v6452 = vunpack.c.l.b16 %v5019
        %v6453 = vunpack.c.h.b16 %v5019
        %v6454 = vunpack.c.l.b16 %v5020
        %v6455 = vunpack.c.l.b16 %v5021
        %v6456 = vunpack.c.h.b16 %v5021
        %v6457 = vunpack.c.l.b16 %v5022
        %v6458 = vunpack.c.h.b16 %v5022
        %v6459 = vunpack.c.l.b16 %v5023
        %v6460 = vunpack.c.h.b16 %v5023
        %v6461 = vunpack.c.l.b16 %v5024
        %v6462 = vunpack.c.h.b16 %v5024
        %v6463 = vunpack.c.l.b16 %v5025
        %v6464 = vunpack.c.l.b16 %v5026
        %v6465 = vunpack.c.h.b16 %v5026
        %v6466 = vunpack.c.l.b16 %v5027
        %v6467 = vunpack.c.h.b16 %v5027
        %v6468 = vunpack.c.l.b16 %v5028
        %v6469 = vunpack.c.h.b16 %v5028
        %v6470 = vunpack.c.l.b16 %v5029
        %v6471 = vunpack.c.h.b16 %v5029
        %v6472 = vunpack.c.l.b16 %v5030
        %v6473 = vunpack.c.l.b16 %v5031
        %v6474 = vunpack.c.h.b16 %v5031
        %v6475 = vunpack.c.l.b16 %v5032
        %v6476 = vunpack.c.h.b16 %v5032
        %v6477 = vunpack.c.l.b16 %v5033
        %v6478 = vunpack.c.h.b16 %v5033
        %v6479 = vunpack.c.l.b16 %v5034
        %v6480 = vunpack.c.h.b16 %v5034
        %v6481 = vunpack.c.l.b16 %v5035
        %v6482 = vunpack.c.l.b16 %v5036
        %v6483 = vunpack.c.h.b16 %v5036
        %v6484 = vunpack.c.l.b16 %v5037
        %v6485 = vunpack.c.h.b16 %v5037
        %v6486 = vunpack.c.l.b16 %v5038
        %v6487 = vunpack.c.h.b16 %v5038
        %v6488 = vunpack.c.l.b16 %v5039
        %v6489 = vunpack.c.h.b16 %v5039
        %v6490 = vunpack.c.l.b16 %v5040
        %v6491 = vunpack.c.l.b16 %v5041
        %v6492 = vunpack.c.h.b16 %v5041
        %v6493 = vunpack.c.l.b16 %v5042
        %v6494 = vunpack.c.h.b16 %v5042
        %v6495 = vunpack.c.l.b16 %v5043
        %v6496 = vunpack.c.h.b16 %v5043
        %v6497 = vunpack.c.l.b16 %v5044
        %v6498 = vunpack.c.h.b16 %v5044
        %v6499 = vunpack.c.l.b16 %v5045
        %v6500 = vunpack.c.l.b16 %v5046
        %v6501 = vunpack.c.h.b16 %v5046
        %v6502 = vunpack.c.l.b16 %v5047
        %v6503 = vunpack.c.h.b16 %v5047
        %v6504 = vunpack.c.l.b16 %v5048
        %v6505 = vunpack.c.h.b16 %v5048
        %v6506 = vunpack.c.l.b16 %v5049
        %v6507 = vunpack.c.h.b16 %v5049
        %v6508 = vunpack.c.l.b16 %v5050
        %v6509 = vunpack.c.l.b16 %v5051
        %v6510 = vunpack.c.h.b16 %v5051
        %v6511 = vunpack.c.l.b16 %v5052
        %v6512 = vunpack.c.h.b16 %v5052
        %v6513 = vunpack.c.l.b16 %v5053
        %v6514 = vunpack.c.h.b16 %v5053
        %v6515 = vunpack.c.l.b16 %v5054
        %v6516 = vunpack.c.h.b16 %v5054
        %v6517 = vunpack.c.l.b16 %v5055
        %v6518 = vunpack.c.l.b16 %v5056
        %v6519 = vunpack.c.h.b16 %v5056
        %v6520 = vunpack.c.l.b16 %v5057
        %v6521 = vunpack.c.h.b16 %v5057
        %v6522 = vunpack.c.l.b16 %v5058
        %v6523 = vunpack.c.h.b16 %v5058
        %v6524 = vunpack.c.l.b16 %v5059
        %v6525 = vunpack.c.h.b16 %v5059
        %v6526 = vunpack.c.l.b16 %v5060
        %v6527 = vunpack.c.l.b16 %v5061
        %v6528 = vunpack.c.h.b16 %v5061
        %v6529 = vunpack.c.l.b16 %v5062
        %v6530 = vunpack.c.h.b16 %v5062
        %v6531 = vunpack.c.l.b16 %v5063
        %v6532 = vunpack.c.h.b16 %v5063
        %v6533 = vunpack.c.l.b16 %v5064
        %v6534 = vunpack.c.h.b16 %v5064
        %v6535 = vunpack.c.l.b16 %v5065
        %v6536 = vunpack.c.l.b16 %v5066
        %v6537 = vunpack.c.h.b16 %v5066
        %v6538 = vunpack.c.l.b16 %v5067
        %v6539 = vunpack.c.h.b16 %v5067
        %v6540 = vunpack.c.l.b16 %v5068
        %v6541 = vunpack.c.h.b16 %v5068
        %v6542 = vunpack.c.l.b16 %v5069
        %v6543 = vunpack.c.h.b16 %v5069
        %v6544 = vunpack.c.l.b16 %v5070
        %v6545 = vunpack.c.l.b16 %v5071
        %v6546 = vunpack.c.h.b16 %v5071
        %v6547 = vunpack.c.l.b16 %v5072
        %v6548 = vunpack.c.h.b16 %v5072
        %v6549 = vunpack.c.l.b16 %v5073
        %v6550 = vunpack.c.h.b16 %v5073
        %v6551 = vunpack.c.l.b16 %v5074
        %v6552 = vunpack.c.h.b16 %v5074
        %v6553 = vunpack.c.l.b16 %v5075
        %v6554 = vunpack.c.l.b16 %v5076
        %v6555 = vunpack.c.h.b16 %v5076
        %v6556 = vunpack.c.l.b16 %v5077
        %v6557 = vunpack.c.h.b16 %v5077
        %v6558 = vunpack.c.l.b16 %v5078
        %v6559 = vunpack.c.h.b16 %v5078
        %v6560 = vunpack.c.l.b16 %v5079
        %v6561 = vunpack.c.h.b16 %v5079
        %v6562 = vunpack.c.l.b16 %v5080
        %v6563 = vunpack.c.l.b16 %v5081
        %v6564 = vunpack.c.h.b16 %v5081
        %v6565 = vunpack.c.l.b16 %v5082
        %v6566 = vunpack.c.h.b16 %v5082
        %v6567 = vunpack.c.l.b16 %v5083
        %v6568 = vunpack.c.h.b16 %v5083
        %v6569 = vunpack.c.l.b16 %v5084
        %v6570 = vunpack.c.h.b16 %v5084
        %v6571 = vunpack.c.l.b16 %v5085
        %v6572 = vunpack.c.l.b16 %v5086
        %v6573 = vunpack.c.h.b16 %v5086
        %v6574 = vunpack.c.l.b16 %v5087
        %v6575 = vunpack.c.h.b16 %v5087
        %v6576 = vunpack.c.l.b16 %v5088
        %v6577 = vunpack.c.h.b16 %v5088
        %v6578 = vunpack.c.l.b16 %v5089
        %v6579 = vunpack.c.h.b16 %v5089
        %v6580 = vunpack.c.l.b16 %v5090
        %v6581 = vunpack.c.l.b16 %v5091
        %v6582 = vunpack.c.h.b16 %v5091
        %v6583 = vunpack.c.l.b16 %v5092
        %v6584 = vunpack.c.h.b16 %v5092
        %v6585 = vunpack.c.l.b16 %v5093
        %v6586 = vunpack.c.h.b16 %v5093
        %v6587 = vunpack.c.l.b16 %v5094
        %v6588 = vunpack.c.h.b16 %v5094
        %v6589 = vunpack.c.l.b16 %v5095
        %v6590 = vunpack.c.l.b16 %v5096
        %v6591 = vunpack.c.h.b16 %v5096
        %v6592 = vunpack.c.l.b16 %v5097
        %v6593 = vunpack.c.h.b16 %v5097
        %v6594 = vunpack.c.l.b16 %v5098
        %v6595 = vunpack.c.h.b16 %v5098
        %v6596 = vunpack.c.l.b16 %v5099
        %v6597 = vunpack.c.h.b16 %v5099
        %v6598 = vunpack.c.l.b16 %v5100
        %v6599 = vunpack.c.l.b16 %v5101
        %v6600 = vunpack.c.h.b16 %v5101
        %v6601 = vunpack.c.l.b16 %v5102
        %v6602 = vunpack.c.h.b16 %v5102
        %v6603 = vunpack.c.l.b16 %v5103
        %v6604 = vunpack.c.h.b16 %v5103
        %v6605 = vunpack.c.l.b16 %v5104
        %v6606 = vunpack.c.h.b16 %v5104
        %v6607 = vunpack.c.l.b16 %v5105
        %v6608 = vunpack.c.l.b16 %v5106
        %v6609 = vunpack.c.h.b16 %v5106
        %v6610 = vunpack.c.l.b16 %v5107
        %v6611 = vunpack.c.h.b16 %v5107
        %v6612 = vunpack.c.l.b16 %v5108
        %v6613 = vunpack.c.h.b16 %v5108
        %v6614 = vunpack.c.l.b16 %v5109
        %v6615 = vunpack.c.h.b16 %v5109
        %v6616 = vunpack.c.l.b16 %v5110
        %v6617 = vunpack.c.l.b16 %v5111
        %v6618 = vunpack.c.h.b16 %v5111
        %v6619 = vunpack.c.l.b16 %v5112
        %v6620 = vunpack.c.h.b16 %v5112
        %v6621 = vunpack.c.l.b16 %v5113
        %v6622 = vunpack.c.h.b16 %v5113
        %v6623 = vunpack.c.l.b16 %v5114
        %v6624 = vunpack.c.h.b16 %v5114
        %v6625 = vunpack.c.l.b16 %v5115
        %v6626 = vunpack.c.l.b16 %v5116
        %v6627 = vunpack.c.h.b16 %v5116
        %v6628 = vunpack.c.l.b16 %v5117
        %v6629 = vunpack.c.h.b16 %v5117
        %v6630 = vunpack.c.l.b16 %v5118
        %v6631 = vunpack.c.h.b16 %v5118
        %v6632 = vunpack.c.l.b16 %v5119
        %v6633 = vunpack.c.h.b16 %v5119
        %v6634 = vunpack.c.l.b16 %v5120
        %v6635 = vunpack.c.l.b16 %v5121
        %v6636 = vunpack.c.h.b16 %v5121
        %v6637 = vunpack.c.l.b16 %v5122
        %v6638 = vunpack.c.h.b16 %v5122
        %v6639 = vunpack.c.l.b16 %v5123
        %v6640 = vunpack.c.h.b16 %v5123
        %v6641 = vunpack.c.l.b16 %v5124
        %v6642 = vunpack.c.h.b16 %v5124
        %v6643 = vunpack.c.l.b16 %v5125
        %v6644 = vunpack.c.l.b16 %v5126
        %v6645 = vunpack.c.h.b16 %v5126
        %v6646 = vunpack.c.l.b16 %v5127
        %v6647 = vunpack.c.h.b16 %v5127
        %v6648 = vunpack.c.l.b16 %v5128
        %v6649 = vunpack.c.h.b16 %v5128
        %v6650 = vunpack.c.l.b16 %v5129
        %v6651 = vunpack.c.h.b16 %v5129
        %v6652 = vunpack.c.l.b16 %v5130
        %v6653 = vunpack.c.l.b16 %v5131
        %v6654 = vunpack.c.h.b16 %v5131
        %v6655 = vunpack.c.l.b16 %v5132
        %v6656 = vunpack.c.h.b16 %v5132
        %v6657 = vunpack.c.l.b16 %v5133
        %v6658 = vunpack.c.h.b16 %v5133
        %v6659 = vunpack.c.l.b16 %v5134
        %v6660 = vunpack.c.h.b16 %v5134
        %v6661 = vunpack.c.l.b16 %v5135
        %v6662 = vunpack.c.l.b16 %v5136
        %v6663 = vunpack.c.h.b16 %v5136
        %v6664 = vunpack.c.l.b16 %v5137
        %v6665 = vunpack.c.h.b16 %v5137
        %v6666 = vunpack.c.l.b16 %v5138
        %v6667 = vunpack.c.h.b16 %v5138
        %v6668 = vunpack.c.l.b16 %v5139
        %v6669 = vunpack.c.h.b16 %v5139
        %v6670 = vunpack.c.l.b16 %v5140
        %v6671 = vunpack.c.l.b16 %v5141
        %v6672 = vunpack.c.h.b16 %v5141
        %v6673 = vunpack.c.l.b16 %v5142
        %v6674 = vunpack.c.h.b16 %v5142
        %v6675 = vunpack.c.l.b16 %v5143
        %v6676 = vunpack.c.h.b16 %v5143
        %v6677 = vunpack.c.l.b16 %v5144
        %v6678 = vunpack.c.h.b16 %v5144
        %v6679 = vunpack.c.l.b16 %v5145
        %v6680 = vunpack.c.l.b16 %v5146
        %v6681 = vunpack.c.h.b16 %v5146
        %v6682 = vunpack.c.l.b16 %v5147
        %v6683 = vunpack.c.h.b16 %v5147
        %v6684 = vunpack.c.l.b16 %v5148
        %v6685 = vunpack.c.h.b16 %v5148
        %v6686 = vunpack.c.l.b16 %v5149
        %v6687 = vunpack.c.h.b16 %v5149
        %v6688 = vunpack.c.l.b16 %v5150
        %v6689 = vunpack.c.l.b16 %v5151
        %v6690 = vunpack.c.h.b16 %v5151
        %v6691 = vunpack.c.l.b16 %v5152
        %v6692 = vunpack.c.h.b16 %v5152
        %v6693 = vunpack.c.l.b16 %v5153
        %v6694 = vunpack.c.h.b16 %v5153
        %v6695 = vunpack.c.l.b16 %v5154
        %v6696 = vunpack.c.h.b16 %v5154
        %v6697 = vunpack.c.l.b16 %v5155
        %v6698 = vunpack.c.l.b16 %v5156
        %v6699 = vunpack.c.h.b16 %v5156
        %v6700 = vunpack.c.l.b16 %v5157
        %v6701 = vunpack.c.h.b16 %v5157
        %v6702 = vunpack.c.l.b16 %v5158
        %v6703 = vunpack.c.h.b16 %v5158
        %v6704 = vunpack.c.l.b16 %v5159
        %v6705 = vunpack.c.h.b16 %v5159
        %v6706 = vunpack.c.l.b16 %v5160
        %v6707 = vunpack.c.l.b16 %v5161
        %v6708 = vunpack.c.h.b16 %v5161
        %v6709 = vunpack.c.l.b16 %v5162
        %v6710 = vunpack.c.h.b16 %v5162
        %v6711 = vunpack.c.l.b16 %v5163
        %v6712 = vunpack.c.h.b16 %v5163
        %v6713 = vunpack.c.l.b16 %v5164
        %v6714 = vunpack.c.h.b16 %v5164
        %v6715 = vunpack.c.l.b16 %v5165
        %v6716 = vunpack.c.l.b16 %v5166
        %v6717 = vunpack.c.h.b16 %v5166
        %v6718 = vunpack.c.l.b16 %v5167
        %v6719 = vunpack.c.h.b16 %v5167
        %v6720 = vunpack.c.l.b16 %v5168
        %v6721 = vunpack.c.h.b16 %v5168
        %v6722 = vunpack.c.l.b16 %v5169
        %v6723 = vunpack.c.h.b16 %v5169
        %v6724 = vunpack.c.l.b16 %v5170
        %v6725 = vunpack.c.l.b16 %v5171
        %v6726 = vunpack.c.h.b16 %v5171
        %v6727 = vunpack.c.l.b16 %v5172
        %v6728 = vunpack.c.h.b16 %v5172
        %v6729 = vunpack.c.l.b16 %v5173
        %v6730 = vunpack.c.h.b16 %v5173
        %v6731 = vunpack.c.l.b16 %v5174
        %v6732 = vunpack.c.h.b16 %v5174
        %v6733 = vunpack.c.l.b16 %v5175
        %v6734 = vunpack.c.l.b16 %v5176
        %v6735 = vunpack.c.h.b16 %v5176
        %v6736 = vunpack.c.l.b16 %v5177
        %v6737 = vunpack.c.h.b16 %v5177
        %v6738 = vunpack.c.l.b16 %v5178
        %v6739 = vunpack.c.h.b16 %v5178
        %v6740 = vunpack.c.l.b16 %v5179
        %v6741 = vunpack.c.h.b16 %v5179
        %v6742 = vunpack.c.l.b16 %v5180
        %v6743 = vunpack.c.l.b16 %v5181
        %v6744 = vunpack.c.h.b16 %v5181
        %v6745 = vunpack.c.l.b16 %v5182
        %v6746 = vunpack.c.h.b16 %v5182
        %v6747 = vunpack.c.l.b16 %v5183
        %v6748 = vunpack.c.h.b16 %v5183
        %v6749 = vunpack.c.l.b16 %v5184
        %v6750 = vunpack.c.h.b16 %v5184
        %v6751 = vunpack.c.l.b16 %v5185
        %v6752 = vunpack.c.l.b16 %v5186
        %v6753 = vunpack.c.h.b16 %v5186
        %v6754 = vunpack.c.l.b16 %v5187
        %v6755 = vunpack.c.h.b16 %v5187
        %v6756 = vunpack.c.l.b16 %v5188
        %v6757 = vunpack.c.h.b16 %v5188
        %v6758 = vunpack.c.l.b16 %v5189
        %v6759 = vunpack.c.h.b16 %v5189
        %v6760 = vunpack.c.l.b16 %v5190
        %v6761 = vunpack.c.l.b16 %v5191
        %v6762 = vunpack.c.h.b16 %v5191
        %v6763 = vunpack.c.l.b16 %v5192
        %v6764 = vunpack.c.h.b16 %v5192
        %v6765 = vunpack.c.l.b16 %v5193
        %v6766 = vunpack.c.h.b16 %v5193
        %v6767 = vunpack.c.l.b16 %v5194
        %v6768 = vunpack.c.h.b16 %v5194
        %v6769 = vunpack.c.l.b16 %v5195
        %v6770 = vunpack.c.l.b16 %v5196
        %v6771 = vunpack.c.h.b16 %v5196
        %v6772 = vunpack.c.l.b16 %v5197
        %v6773 = vunpack.c.h.b16 %v5197
        %v6774 = vunpack.c.l.b16 %v5198
        %v6775 = vunpack.c.h.b16 %v5198
        %v6776 = vunpack.c.l.b16 %v5199
        %v6777 = vunpack.c.h.b16 %v5199
        %v6778 = vunpack.c.l.b16 %v5200
        %v6779 = vunpack.c.l.b16 %v5201
        %v6780 = vunpack.c.h.b16 %v5201
        %v6781 = vunpack.c.l.b16 %v5202
        %v6782 = vunpack.c.h.b16 %v5202
        %v6783 = vunpack.c.l.b16 %v5203
        %v6784 = vunpack.c.h.b16 %v5203
        %v6785 = vunpack.c.l.b16 %v5204
        %v6786 = vunpack.c.h.b16 %v5204
        %v6787 = vunpack.c.l.b16 %v5205
        %v6788 = vunpack.c.l.b16 %v5206
        %v6789 = vunpack.c.h.b16 %v5206
        %v6790 = vunpack.c.l.b16 %v5207
        %v6791 = vunpack.c.h.b16 %v5207
        %v6792 = vunpack.c.l.b16 %v5208
        %v6793 = vunpack.c.h.b16 %v5208
        %v6794 = vunpack.c.l.b16 %v5209
        %v6795 = vunpack.c.h.b16 %v5209
        %v6796 = vunpack.c.l.b16 %v5210
        %v6797 = vunpack.c.l.b16 %v5211
        %v6798 = vunpack.c.h.b16 %v5211
        %v6799 = vunpack.c.l.b16 %v5212
        %v6800 = vunpack.c.h.b16 %v5212
        %v6801 = vunpack.c.l.b16 %v5213
        %v6802 = vunpack.c.h.b16 %v5213
        %v6803 = vunpack.c.l.b16 %v5214
        %v6804 = vunpack.c.h.b16 %v5214
        %v6805 = vunpack.c.l.b16 %v5215
        %v6806 = vunpack.c.l.b16 %v5216
        %v6807 = vunpack.c.h.b16 %v5216
        %v6808 = vunpack.c.l.b16 %v5217
        %v6809 = vunpack.c.h.b16 %v5217
        %v6810 = vunpack.c.l.b16 %v5218
        %v6811 = vunpack.c.h.b16 %v5218
        %v6812 = vunpack.c.l.b16 %v5219
        %v6813 = vunpack.c.h.b16 %v5219
        %v6814 = vunpack.c.l.b16 %v5220
        %v6815 = vunpack.c.l.b16 %v5221
        %v6816 = vunpack.c.h.b16 %v5221
        %v6817 = vunpack.c.l.b16 %v5222
        %v6818 = vunpack.c.h.b16 %v5222
        %v6819 = vunpack.c.l.b16 %v5223
        %v6820 = vunpack.c.h.b16 %v5223
        %v6821 = vunpack.c.l.b16 %v5224
        %v6822 = vunpack.c.h.b16 %v5224
        %v6823 = vunpack.c.l.b16 %v5225
        %v6824 = vunpack.c.l.b16 %v5226
        %v6825 = vunpack.c.h.b16 %v5226
        %v6826 = vunpack.c.l.b16 %v5227
        %v6827 = vunpack.c.h.b16 %v5227
        %v6828 = vunpack.c.l.b16 %v5228
        %v6829 = vunpack.c.h.b16 %v5228
        %v6830 = vunpack.c.l.b16 %v5229
        %v6831 = vunpack.c.h.b16 %v5229
        %v6832 = vunpack.c.l.b16 %v5230
        %v6833 = vunpack.c.l.b16 %v5231
        %v6834 = vunpack.c.h.b16 %v5231
        %v6835 = vunpack.c.l.b16 %v5232
        %v6836 = vunpack.c.h.b16 %v5232
        %v6837 = vunpack.c.l.b16 %v5233
        %v6838 = vunpack.c.h.b16 %v5233
        %v6839 = vunpack.c.l.b16 %v5234
        %v6840 = vunpack.c.h.b16 %v5234
        %v6841 = vunpack.c.l.b16 %v5235
        %v6842 = vunpack.c.l.b16 %v5236
        %v6843 = vunpack.c.h.b16 %v5236
        %v6844 = vunpack.c.l.b16 %v5237
        %v6845 = vunpack.c.h.b16 %v5237
        %v6846 = vunpack.c.l.b16 %v5238
        %v6847 = vunpack.c.h.b16 %v5238
        %v6848 = vunpack.c.l.b16 %v5239
        %v6849 = vunpack.c.h.b16 %v5239
        %v6850 = vunpack.c.l.b16 %v5240
        %v6851 = vunpack.c.l.b16 %v5241
        %v6852 = vunpack.c.h.b16 %v5241
        %v6853 = vunpack.c.l.b16 %v5242
        %v6854 = vunpack.c.h.b16 %v5242
        %v6855 = vunpack.c.l.b16 %v5243
        %v6856 = vunpack.c.h.b16 %v5243
        %v6857 = vunpack.c.l.b16 %v5244
        %v6858 = vunpack.c.h.b16 %v5244
        %v6859 = vunpack.c.l.b16 %v5245
        %v6860 = vunpack.c.l.b16 %v5246
        %v6861 = vunpack.c.h.b16 %v5246
        %v6862 = vunpack.c.l.b16 %v5247
        %v6863 = vunpack.c.h.b16 %v5247
        %v6864 = vunpack.c.l.b16 %v5248
        %v6865 = vunpack.c.h.b16 %v5248
        %v6866 = vunpack.c.l.b16 %v5249
        %v6867 = vunpack.c.h.b16 %v5249
        %v6868 = vunpack.c.l.b16 %v5250
        %v6869 = vunpack.c.l.b16 %v5251
        %v6870 = vunpack.c.h.b16 %v5251
        %v6871 = vunpack.c.l.b16 %v5252
        %v6872 = vunpack.c.h.b16 %v5252
        %v6873 = vunpack.c.l.b16 %v5253
        %v6874 = vunpack.c.h.b16 %v5253
        %v6875 = vunpack.c.l.b16 %v5254
        %v6876 = vunpack.c.h.b16 %v5254
        %v6877 = vunpack.c.l.b16 %v5255
        %v6878 = vunpack.c.l.b16 %v5256
        %v6879 = vunpack.c.h.b16 %v5256
        %v6880 = vunpack.c.l.b16 %v5257
        %v6881 = vunpack.c.h.b16 %v5257
        %v6882 = vunpack.c.l.b16 %v5258
        %v6883 = vunpack.c.h.b16 %v5258
        %v6884 = vunpack.c.l.b16 %v5259
        %v6885 = vunpack.c.h.b16 %v5259
        %v6886 = vunpack.c.l.b16 %v5260
        %v6887 = vunpack.c.l.b16 %v5261
        %v6888 = vunpack.c.h.b16 %v5261
        %v6889 = vunpack.c.l.b16 %v5262
        %v6890 = vunpack.c.h.b16 %v5262
        %v6891 = vunpack.c.l.b16 %v5263
        %v6892 = vunpack.c.h.b16 %v5263
        %v6893 = vunpack.c.l.b16 %v5264
        %v6894 = vunpack.c.h.b16 %v5264
        %v6895 = vunpack.c.l.b16 %v5265
        %v6896 = vunpack.c.l.b16 %v5266
        %v6897 = vunpack.c.h.b16 %v5266
        %v6898 = vunpack.c.l.b16 %v5267
        %v6899 = vunpack.c.h.b16 %v5267
        %v6900 = vunpack.c.l.b16 %v5268
        %v6901 = vunpack.c.h.b16 %v5268
        %v6902 = vunpack.c.l.b16 %v5269
        %v6903 = vunpack.c.h.b16 %v5269
        %v6904 = vunpack.c.l.b16 %v5270
        %v6905 = vunpack.c.l.b16 %v5271
        %v6906 = vunpack.c.h.b16 %v5271
        %v6907 = vunpack.c.l.b16 %v5272
        %v6908 = vunpack.c.h.b16 %v5272
        %v6909 = vunpack.c.l.b16 %v5273
        %v6910 = vunpack.c.h.b16 %v5273
        %v6911 = vunpack.c.l.b16 %v5274
        %v6912 = vunpack.c.h.b16 %v5274
        %v6913 = vunpack.c.l.b16 %v5275
        %v6914 = vunpack.c.l.b16 %v5276
        %v6915 = vunpack.c.h.b16 %v5276
        %v6916 = vunpack.c.l.b16 %v5277
        %v6917 = vunpack.c.h.b16 %v5277
        %v6918 = vunpack.c.l.b16 %v5278
        %v6919 = vunpack.c.h.b16 %v5278
        %v6920 = vunpack.c.l.b16 %v5279
        %v6921 = vunpack.c.h.b16 %v5279
        %v6922 = vunpack.c.l.b16 %v5280
        %v6923 = vunpack.c.l.b16 %v5281
        %v6924 = vunpack.c.h.b16 %v5281
        %v6925 = vunpack.c.l.b16 %v5282
        %v6926 = vunpack.c.h.b16 %v5282
        %v6927 = vunpack.c.l.b16 %v5283
        %v6928 = vunpack.c.h.b16 %v5283
        %v6929 = vunpack.c.l.b16 %v5284
        %v6930 = vunpack.c.h.b16 %v5284
        %v6931 = vunpack.c.l.b16 %v5285
        %v6932 = vunpack.c.l.b16 %v5286
        %v6933 = vunpack.c.h.b16 %v5286
        %v6934 = vunpack.c.l.b16 %v5287
        %v6935 = vunpack.c.h.b16 %v5287
        %v6936 = vunpack.c.l.b16 %v5288
        %v6937 = vunpack.c.h.b16 %v5288
        %v6938 = vunpack.c.l.b16 %v5289
        %v6939 = vunpack.c.h.b16 %v5289
        %v6940 = vunpack.c.l.b16 %v5290
        %v6941 = vunpack.c.l.b16 %v5291
        %v6942 = vunpack.c.h.b16 %v5291
        %v6943 = vunpack.c.l.b16 %v5292
        %v6944 = vunpack.c.h.b16 %v5292
        %v6945 = vunpack.c.l.b16 %v5293
        %v6946 = vunpack.c.h.b16 %v5293
        %v6947 = vunpack.c.l.b16 %v5294
        %v6948 = vunpack.c.h.b16 %v5294
        %v6949 = vunpack.c.l.b16 %v5295
        %v6950 = vunpack.c.l.b16 %v5296
        %v6951 = vunpack.c.h.b16 %v5296
        %v6952 = vunpack.c.l.b16 %v5297
        %v6953 = vunpack.c.h.b16 %v5297
        %v6954 = vunpack.c.l.b16 %v5298
        %v6955 = vunpack.c.h.b16 %v5298
        %v6956 = vunpack.c.l.b16 %v5299
        %v6957 = vunpack.c.h.b16 %v5299
        %v6958 = vunpack.c.l.b16 %v5300
        %v6959 = vunpack.c.l.b16 %v5301
        %v6960 = vunpack.c.h.b16 %v5301
        %v6961 = vunpack.c.l.b16 %v5302
        %v6962 = vunpack.c.h.b16 %v5302
        %v6963 = vunpack.c.l.b16 %v5303
        %v6964 = vunpack.c.h.b16 %v5303
        %v6965 = vunpack.c.l.b16 %v5304
        %v6966 = vunpack.c.h.b16 %v5304
        %v6967 = vunpack.c.l.b16 %v5305
        %v6968 = vunpack.c.l.b16 %v5306
        %v6969 = vunpack.c.h.b16 %v5306
        %v6970 = vunpack.c.l.b16 %v5307
        %v6971 = vunpack.c.h.b16 %v5307
        %v6972 = vunpack.c.l.b16 %v5308
        %v6973 = vunpack.c.h.b16 %v5308
        %v6974 = vunpack.c.l.b16 %v5309
        %v6975 = vunpack.c.h.b16 %v5309
        %v6976 = vunpack.c.l.b16 %v5310
        %v6977 = vunpack.c.l.b16 %v5311
        %v6978 = vunpack.c.h.b16 %v5311
        %v6979 = vunpack.c.l.b16 %v5312
        %v6980 = vunpack.c.h.b16 %v5312
        %v6981 = vunpack.c.l.b16 %v5313
        %v6982 = vunpack.c.h.b16 %v5313
        %v6983 = vunpack.c.l.b16 %v5314
        %v6984 = vunpack.c.h.b16 %v5314
        %v6985 = vunpack.c.l.b16 %v5315
        %v6986 = vunpack.c.l.b16 %v5316
        %v6987 = vunpack.c.h.b16 %v5316
        %v6988 = vunpack.c.l.b16 %v5317
        %v6989 = vunpack.c.h.b16 %v5317
        %v6990 = vunpack.c.l.b16 %v5318
        %v6991 = vunpack.c.h.b16 %v5318
        %v6992 = vunpack.c.l.b16 %v5319
        %v6993 = vunpack.c.h.b16 %v5319
        %v6994 = vunpack.c.l.b16 %v5320
        %v6995 = vunpack.c.l.b16 %v5321
        %v6996 = vunpack.c.h.b16 %v5321
        %v6997 = vunpack.c.l.b16 %v5322
        %v6998 = vunpack.c.h.b16 %v5322
        %v6999 = vunpack.c.l.b16 %v5323
        %v7000 = vunpack.c.h.b16 %v5323
        %v7001 = vunpack.c.l.b16 %v5324
        %v7002 = vunpack.c.h.b16 %v5324
        %v7003 = vunpack.c.l.b16 %v5325
        %v7004 = vunpack.c.l.b16 %v5326
        %v7005 = vunpack.c.h.b16 %v5326
        %v7006 = vunpack.c.l.b16 %v5327
        %v7007 = vunpack.c.h.b16 %v5327
        %v7008 = vunpack.c.l.b16 %v5328
        %v7009 = vunpack.c.h.b16 %v5328
        %v7010 = vunpack.c.l.b16 %v5329
        %v7011 = vunpack.c.h.b16 %v5329
        %v7012 = vunpack.c.l.b16 %v5330
        %v7013 = vunpack.c.l.b16 %v5331
        %v7014 = vunpack.c.h.b16 %v5331
        %v7015 = vunpack.c.l.b16 %v5332
        %v7016 = vunpack.c.h.b16 %v5332
        %v7017 = vunpack.c.l.b16 %v5333
        %v7018 = vunpack.c.h.b16 %v5333
        %v7019 = vunpack.c.l.b16 %v5334
        %v7020 = vunpack.c.h.b16 %v5334
        %v7021 = vunpack.c.l.b16 %v5335
        %v7022 = vunpack.c.l.b16 %v5336
        %v7023 = vunpack.c.h.b16 %v5336
        %v7024 = vunpack.c.l.b16 %v5337
        %v7025 = vunpack.c.h.b16 %v5337
        %v7026 = vunpack.c.l.b16 %v5338
        %v7027 = vunpack.c.h.b16 %v5338
        %v7028 = vunpack.c.l.b16 %v5339
        %v7029 = vunpack.c.h.b16 %v5339
        %v7030 = vunpack.c.l.b16 %v5340
        %v7031 = vunpack.c.l.b16 %v5341
        %v7032 = vunpack.c.h.b16 %v5341
        %v7033 = vunpack.c.l.b16 %v5342
        %v7034 = vunpack.c.h.b16 %v5342
        %v7035 = vunpack.c.l.b16 %v5343
        %v7036 = vunpack.c.h.b16 %v5343
        %v7037 = vunpack.c.l.b16 %v5344
        %v7038 = vunpack.c.h.b16 %v5344
        %v7039 = vunpack.c.l.b16 %v5345
        %v7040 = vunpack.c.l.b16 %v5346
        %v7041 = vunpack.c.h.b16 %v5346
        %v7042 = vunpack.c.l.b16 %v5347
        %v7043 = vunpack.c.h.b16 %v5347
        %v7044 = vunpack.c.l.b16 %v5348
        %v7045 = vunpack.c.h.b16 %v5348
        %v7046 = vunpack.c.l.b16 %v5349
        %v7047 = vunpack.c.h.b16 %v5349
        %v7048 = vunpack.c.l.b16 %v5350
        %v7049 = vunpack.c.l.b16 %v5351
        %v7050 = vunpack.c.h.b16 %v5351
        %v7051 = vunpack.c.l.b16 %v5352
        %v7052 = vunpack.c.h.b16 %v5352
        %v7053 = vunpack.c.l.b16 %v5353
        %v7054 = vunpack.c.h.b16 %v5353
        %v7055 = vunpack.c.l.b16 %v5354
        %v7056 = vunpack.c.h.b16 %v5354
        %v7057 = vunpack.c.l.b16 %v5355
        %v7058 = vunpack.c.l.b16 %v5356
        %v7059 = vunpack.c.h.b16 %v5356
        %v7060 = vunpack.c.l.b16 %v5357
        %v7061 = vunpack.c.h.b16 %v5357
        %v7062 = vunpack.c.l.b16 %v5358
        %v7063 = vunpack.c.h.b16 %v5358
        %v7064 = vunpack.c.l.b16 %v5359
        %v7065 = vunpack.c.h.b16 %v5359
        %v7066 = vunpack.c.l.b16 %v5360
        %v7067 = vunpack.c.l.b16 %v5361
        %v7068 = vunpack.c.h.b16 %v5361
        %v7069 = vunpack.c.l.b16 %v5362
        %v7070 = vunpack.c.h.b16 %v5362
        %v7071 = vunpack.c.l.b16 %v5363
        %v7072 = vunpack.c.h.b16 %v5363
        %v7073 = vunpack.c.l.b16 %v5364
        %v7074 = vunpack.c.h.b16 %v5364
        %v7075 = vunpack.c.l.b16 %v5365
        %v7076 = vunpack.c.l.b16 %v5366
        %v7077 = vunpack.c.h.b16 %v5366
        %v7078 = vunpack.c.l.b16 %v5367
        %v7079 = vunpack.c.h.b16 %v5367
        %v7080 = vunpack.c.l.b16 %v5368
        %v7081 = vunpack.c.h.b16 %v5368
        %v7082 = vunpack.c.l.b16 %v5369
        %v7083 = vunpack.c.h.b16 %v5369
        %v7084 = vunpack.c.l.b16 %v5370
        %v7085 = vunpack.c.l.b16 %v5371
        %v7086 = vunpack.c.h.b16 %v5371
        %v7087 = vunpack.c.l.b16 %v5372
        %v7088 = vunpack.c.h.b16 %v5372
        %v7089 = vunpack.c.l.b16 %v5373
        %v7090 = vunpack.c.h.b16 %v5373
        %v7091 = vunpack.c.l.b16 %v5374
        %v7092 = vunpack.c.h.b16 %v5374
        %v7093 = vunpack.c.l.b16 %v5375
        %v7094 = vunpack.c.l.b16 %v5376
        %v7095 = vunpack.c.h.b16 %v5376
        %v7096 = vunpack.c.l.b16 %v5377
        %v7097 = vunpack.c.h.b16 %v5377
        %v7098 = vunpack.c.l.b16 %v5378
        %v7099 = vunpack.c.h.b16 %v5378
        %v7100 = vunpack.c.l.b16 %v5379
        %v7101 = vunpack.c.h.b16 %v5379
        %v7102 = vunpack.c.l.b16 %v5380
        %v7103 = vunpack.c.l.b16 %v5381
        %v7104 = vunpack.c.h.b16 %v5381
        %v7105 = vunpack.c.l.b16 %v5382
        %v7106 = vunpack.c.h.b16 %v5382
        %v7107 = vunpack.c.l.b16 %v5383
        %v7108 = vunpack.c.h.b16 %v5383
        %v7109 = vunpack.c.l.b16 %v5384
        %v7110 = vunpack.c.h.b16 %v5384
        %v7111 = vunpack.c.l.b16 %v5385
        %v7112 = vunpack.c.l.b16 %v5386
        %v7113 = vunpack.c.h.b16 %v5386
        %v7114 = vunpack.c.l.b16 %v5387
        %v7115 = vunpack.c.h.b16 %v5387
        %v7116 = vunpack.c.l.b16 %v5388
        %v7117 = vunpack.c.h.b16 %v5388
        %v7118 = vunpack.c.l.b16 %v5389
        %v7119 = vunpack.c.h.b16 %v5389
        %v7120 = vunpack.c.l.b16 %v5390
        %v7121 = vunpack.c.l.b16 %v5391
        %v7122 = vunpack.c.h.b16 %v5391
        %v7123 = vunpack.c.l.b16 %v5392
        %v7124 = vunpack.c.h.b16 %v5392
        %v7125 = vunpack.c.l.b16 %v5393
        %v7126 = vunpack.c.h.b16 %v5393
        %v7127 = vunpack.c.l.b16 %v5394
        %v7128 = vunpack.c.h.b16 %v5394
        %v7129 = vunpack.c.l.b16 %v5395
        %v7130 = vunpack.c.l.b16 %v5396
        %v7131 = vunpack.c.h.b16 %v5396
        %v7132 = vunpack.c.l.b16 %v5397
        %v7133 = vunpack.c.h.b16 %v5397
        %v7134 = vunpack.c.l.b16 %v5398
        %v7135 = vunpack.c.h.b16 %v5398
        %v7136 = vunpack.c.l.b16 %v5399
        %v7137 = vunpack.c.h.b16 %v5399
        %v7138 = vunpack.c.l.b16 %v5400
        %v7139 = vunpack.c.l.b16 %v5401
        %v7140 = vunpack.c.h.b16 %v5401
        %v7141 = vunpack.c.l.b16 %v5402
        %v7142 = vunpack.c.h.b16 %v5402
        %v7143 = vunpack.c.l.b16 %v5403
        %v7144 = vunpack.c.h.b16 %v5403
        %v7145 = vunpack.c.l.b16 %v5404
        %v7146 = vunpack.c.h.b16 %v5404
        %v7147 = vunpack.c.l.b16 %v5405
        %v7148 = vunpack.c.l.b16 %v5406
        %v7149 = vunpack.c.h.b16 %v5406
        %v7150 = vunpack.c.l.b16 %v5407
        %v7151 = vunpack.c.h.b16 %v5407
        %v7152 = vunpack.c.l.b16 %v5408
        %v7153 = vunpack.c.h.b16 %v5408
        %v7154 = vunpack.c.l.b16 %v5409
        %v7155 = vunpack.c.h.b16 %v5409
        %v7156 = vunpack.c.l.b16 %v5410
        %v7157 = vunpack.c.l.b16 %v5411
        %v7158 = vunpack.c.h.b16 %v5411
        %v7159 = vunpack.c.l.b16 %v5412
        %v7160 = vunpack.c.h.b16 %v5412
        %v7161 = vunpack.c.l.b16 %v5413
        %v7162 = vunpack.c.h.b16 %v5413
        %v7163 = vunpack.c.l.b16 %v5414
        %v7164 = vunpack.c.h.b16 %v5414
        %v7165 = vunpack.c.l.b16 %v5415
        %v7166 = vunpack.c.l.b16 %v5416
        %v7167 = vunpack.c.h.b16 %v5416
        %v7168 = vunpack.c.l.b16 %v5417
        %v7169 = vunpack.c.h.b16 %v5417
        %v7170 = vunpack.c.l.b16 %v5418
        %v7171 = vunpack.c.h.b16 %v5418
        %v7172 = vunpack.c.l.b16 %v5419
        %v7173 = vunpack.c.h.b16 %v5419
        %v7174 = vunpack.c.l.b16 %v5420
        %v7175 = vunpack.c.l.b16 %v5421
        %v7176 = vunpack.c.h.b16 %v5421
        %v7177 = vunpack.c.l.b16 %v5422
        %v7178 = vunpack.c.h.b16 %v5422
        %v7179 = vunpack.c.l.b16 %v5423
        %v7180 = vunpack.c.h.b16 %v5423
        %v7181 = vunpack.c.l.b16 %v5424
        %v7182 = vunpack.c.h.b16 %v5424
        %v7183 = vunpack.c.l.b16 %v5425
        %v7184 = vunpack.c.l.b16 %v5426
        %v7185 = vunpack.c.h.b16 %v5426
        %v7186 = vunpack.c.l.b16 %v5427
        %v7187 = vunpack.c.h.b16 %v5427
        %v7188 = vunpack.c.l.b16 %v5428
        %v7189 = vunpack.c.h.b16 %v5428
        %v7190 = vunpack.c.l.b16 %v5429
        %v7191 = vunpack.c.h.b16 %v5429
        %v7192 = vunpack.c.l.b16 %v5430
        %v7193 = vunpack.c.l.b16 %v5431
        %v7194 = vunpack.c.h.b16 %v5431
        %v7195 = vunpack.c.l.b16 %v5432
        %v7196 = vunpack.c.h.b16 %v5432
        %v7197 = vunpack.c.l.b16 %v5433
        %v7198 = vunpack.c.h.b16 %v5433
        %v7199 = vunpack.c.l.b16 %v5434
        %v7200 = vunpack.c.h.b16 %v5434
        %v7201 = vunpack.c.l.b16 %v5435
        %v7202 = vunpack.c.l.b16 %v5436
        %v7203 = vunpack.c.h.b16 %v5436
        %v7204 = vunpack.c.l.b16 %v5437
        %v7205 = vunpack.c.h.b16 %v5437
        %v7206 = vunpack.c.l.b16 %v5438
        %v7207 = vunpack.c.h.b16 %v5438
        %v7208 = vunpack.c.l.b16 %v5439
        %v7209 = vunpack.c.h.b16 %v5439
        %v7210 = vunpack.c.l.b16 %v5440
        %v7211 = vunpack.c.l.b16 %v5441
        %v7212 = vunpack.c.h.b16 %v5441
        %v7213 = vunpack.c.l.b16 %v5442
        %v7214 = vunpack.c.h.b16 %v5442
        %v7215 = vunpack.c.l.b16 %v5443
        %v7216 = vunpack.c.h.b16 %v5443
        %v7217 = vunpack.c.l.b16 %v5444
        %v7218 = vunpack.c.h.b16 %v5444
        %v7219 = vunpack.c.l.b16 %v5445
        %v7220 = vunpack.c.l.b16 %v5446
        %v7221 = vunpack.c.h.b16 %v5446
        %v7222 = vunpack.c.l.b16 %v5447
        %v7223 = vunpack.c.h.b16 %v5447
        %v7224 = vunpack.c.l.b16 %v5448
        %v7225 = vunpack.c.h.b16 %v5448
        %v7226 = vunpack.c.l.b16 %v5449
        %v7227 = vunpack.c.h.b16 %v5449
        %v7228 = vunpack.c.l.b16 %v5450
        %v7229 = vunpack.c.l.b16 %v5451
        %v7230 = vunpack.c.h.b16 %v5451
        %v7231 = vunpack.c.l.b16 %v5452
        %v7232 = vunpack.c.h.b16 %v5452
        %v7233 = vunpack.c.l.b16 %v5453
        %v7234 = vunpack.c.h.b16 %v5453
        %v7235 = vunpack.c.l.b16 %v5454
        %v7236 = vunpack.c.h.b16 %v5454
        %v7237 = vunpack.c.l.b16 %v5455
        %v7238 = vunpack.c.l.b16 %v5456
        %v7239 = vunpack.c.h.b16 %v5456
        %v7240 = vunpack.c.l.b16 %v5457
        %v7241 = vunpack.c.h.b16 %v5457
        %v7242 = vunpack.c.l.b16 %v5458
        %v7243 = vunpack.c.h.b16 %v5458
        %v7244 = vunpack.c.l.b16 %v5459
        %v7245 = vunpack.c.h.b16 %v5459
        %v7246 = vunpack.c.l.b16 %v5460
        %v7247 = vunpack.c.l.b16 %v5461
        %v7248 = vunpack.c.h.b16 %v5461
        %v7249 = vunpack.c.l.b16 %v5462
        %v7250 = vunpack.c.h.b16 %v5462
        %v7251 = vunpack.c.l.b16 %v5463
        %v7252 = vunpack.c.h.b16 %v5463
        %v7253 = vunpack.c.l.b16 %v5464
        %v7254 = vunpack.c.h.b16 %v5464
        %v7255 = vunpack.c.l.b16 %v5465
        %v7256 = vunpack.c.l.b16 %v5466
        %v7257 = vunpack.c.h.b16 %v5466
        %v7258 = vunpack.c.l.b16 %v5467
        %v7259 = vunpack.c.h.b16 %v5467
        %v7260 = vunpack.c.l.b16 %v5468
        %v7261 = vunpack.c.h.b16 %v5468
        %v7262 = vunpack.c.l.b16 %v5469
        %v7263 = vunpack.c.h.b16 %v5469
        %v7264 = vunpack.c.l.b16 %v5470
        %v7265 = vpack.c.b16 %v6122, %v6113
        %v7266 = vpack.c.b16 %v6123, %v6114
        %v7267 = vpack.c.b16 %v6124, %v6115
        %v7268 = vpack.c.b16 %v6125, %v6116
        %v7269 = vpack.c.b16 %v6126, %v6117
        %v7270 = vpack.c.b16 %v6127, %v6118
        %v7271 = vpack.c.b16 %v6128, %v6119
        %v7272 = vpack.c.b16 %v6129, %v6120
        %v7273 = vpack.c.b16 %v6130, %v6121
        %v7274 = vpack.c.b16 %v6140, %v6131
        %v7275 = vpack.c.b16 %v6141, %v6132
        %v7276 = vpack.c.b16 %v6142, %v6133
        %v7277 = vpack.c.b16 %v6143, %v6134
        %v7278 = vpack.c.b16 %v6144, %v6135
        %v7279 = vpack.c.b16 %v6145, %v6136
        %v7280 = vpack.c.b16 %v6146, %v6137
        %v7281 = vpack.c.b16 %v6147, %v6138
        %v7282 = vpack.c.b16 %v6148, %v6139
        %v7283 = vpack.c.b16 %v6158, %v6149
        %v7284 = vpack.c.b16 %v6159, %v6150
        %v7285 = vpack.c.b16 %v6160, %v6151
        %v7286 = vpack.c.b16 %v6161, %v6152
        %v7287 = vpack.c.b16 %v6162, %v6153
        %v7288 = vpack.c.b16 %v6163, %v6154
        %v7289 = vpack.c.b16 %v6164, %v6155
        %v7290 = vpack.c.b16 %v6165, %v6156
        %v7291 = vpack.c.b16 %v6166, %v6157
        %v7292 = vpack.c.b16 %v6176, %v6167
        %v7293 = vpack.c.b16 %v6177, %v6168
        %v7294 = vpack.c.b16 %v6178, %v6169
        %v7295 = vpack.c.b16 %v6179, %v6170
        %v7296 = vpack.c.b16 %v6180, %v6171
        %v7297 = vpack.c.b16 %v6181, %v6172
        %v7298 = vpack.c.b16 %v6182, %v6173
        %v7299 = vpack.c.b16 %v6183, %v6174
        %v7300 = vpack.c.b16 %v6184, %v6175
        %v7301 = vpack.c.b16 %v6194, %v6185
        %v7302 = vpack.c.b16 %v6195, %v6186
        %v7303 = vpack.c.b16 %v6196, %v6187
        %v7304 = vpack.c.b16 %v6197, %v6188
        %v7305 = vpack.c.b16 %v6198, %v6189
        %v7306 = vpack.c.b16 %v6199, %v6190
        %v7307 = vpack.c.b16 %v6200, %v6191
        %v7308 = vpack.c.b16 %v6201, %v6192
        %v7309 = vpack.c.b16 %v6202, %v6193
        %v7310 = vpack.c.b16 %v6212, %v6203
        %v7311 = vpack.c.b16 %v6213, %v6204
        %v7312 = vpack.c.b16 %v6214, %v6205
        %v7313 = vpack.c.b16 %v6215, %v6206
        %v7314 = vpack.c.b16 %v6216, %v6207
        %v7315 = vpack.c.b16 %v6217, %v6208
        %v7316 = vpack.c.b16 %v6218, %v6209
        %v7317 = vpack.c.b16 %v6219, %v6210
        %v7318 = vpack.c.b16 %v6220, %v6211
        %v7319 = vpack.c.b16 %v6230, %v6221
        %v7320 = vpack.c.b16 %v6231, %v6222
        %v7321 = vpack.c.b16 %v6232, %v6223
        %v7322 = vpack.c.b16 %v6233, %v6224
        %v7323 = vpack.c.b16 %v6234, %v6225
        %v7324 = vpack.c.b16 %v6235, %v6226
        %v7325 = vpack.c.b16 %v6236, %v6227
        %v7326 = vpack.c.b16 %v6237, %v6228
        %v7327 = vpack.c.b16 %v6238, %v6229
        %v7328 = vpack.c.b16 %v6248, %v6239
        %v7329 = vpack.c.b16 %v6249, %v6240
        %v7330 = vpack.c.b16 %v6250, %v6241
        %v7331 = vpack.c.b16 %v6251, %v6242
        %v7332 = vpack.c.b16 %v6252, %v6243
        %v7333 = vpack.c.b16 %v6253, %v6244
        %v7334 = vpack.c.b16 %v6254, %v6245
        %v7335 = vpack.c.b16 %v6255, %v6246
        %v7336 = vpack.c.b16 %v6256, %v6247
        %v7337 = vpack.c.b16 %v6266, %v6257
        %v7338 = vpack.c.b16 %v6267, %v6258
        %v7339 = vpack.c.b16 %v6268, %v6259
        %v7340 = vpack.c.b16 %v6269, %v6260
        %v7341 = vpack.c.b16 %v6270, %v6261
        %v7342 = vpack.c.b16 %v6271, %v6262
        %v7343 = vpack.c.b16 %v6272, %v6263
        %v7344 = vpack.c.b16 %v6273, %v6264
        %v7345 = vpack.c.b16 %v6274, %v6265
        %v7346 = vpack.c.b16 %v6284, %v6275
        %v7347 = vpack.c.b16 %v6285, %v6276
        %v7348 = vpack.c.b16 %v6286, %v6277
        %v7349 = vpack.c.b16 %v6287, %v6278
        %v7350 = vpack.c.b16 %v6288, %v6279
        %v7351 = vpack.c.b16 %v6289, %v6280
        %v7352 = vpack.c.b16 %v6290, %v6281
        %v7353 = vpack.c.b16 %v6291, %v6282
        %v7354 = vpack.c.b16 %v6292, %v6283
        %v7355 = vpack.c.b16 %v6302, %v6293
        %v7356 = vpack.c.b16 %v6303, %v6294
        %v7357 = vpack.c.b16 %v6304, %v6295
        %v7358 = vpack.c.b16 %v6305, %v6296
        %v7359 = vpack.c.b16 %v6306, %v6297
        %v7360 = vpack.c.b16 %v6307, %v6298
        %v7361 = vpack.c.b16 %v6308, %v6299
        %v7362 = vpack.c.b16 %v6309, %v6300
        %v7363 = vpack.c.b16 %v6310, %v6301
        %v7364 = vpack.c.b16 %v6320, %v6311
        %v7365 = vpack.c.b16 %v6321, %v6312
        %v7366 = vpack.c.b16 %v6322, %v6313
        %v7367 = vpack.c.b16 %v6323, %v6314
        %v7368 = vpack.c.b16 %v6324, %v6315
        %v7369 = vpack.c.b16 %v6325, %v6316
        %v7370 = vpack.c.b16 %v6326, %v6317
        %v7371 = vpack.c.b16 %v6327, %v6318
        %v7372 = vpack.c.b16 %v6328, %v6319
        %v7373 = vpack.c.b16 %v6338, %v6329
        %v7374 = vpack.c.b16 %v6339, %v6330
        %v7375 = vpack.c.b16 %v6340, %v6331
        %v7376 = vpack.c.b16 %v6341, %v6332
        %v7377 = vpack.c.b16 %v6342, %v6333
        %v7378 = vpack.c.b16 %v6343, %v6334
        %v7379 = vpack.c.b16 %v6344, %v6335
        %v7380 = vpack.c.b16 %v6345, %v6336
        %v7381 = vpack.c.b16 %v6346, %v6337
        %v7382 = vpack.c.b16 %v6356, %v6347
        %v7383 = vpack.c.b16 %v6357, %v6348
        %v7384 = vpack.c.b16 %v6358, %v6349
        %v7385 = vpack.c.b16 %v6359, %v6350
        %v7386 = vpack.c.b16 %v6360, %v6351
        %v7387 = vpack.c.b16 %v6361, %v6352
        %v7388 = vpack.c.b16 %v6362, %v6353
        %v7389 = vpack.c.b16 %v6363, %v6354
        %v7390 = vpack.c.b16 %v6364, %v6355
        %v7391 = vpack.c.b16 %v6374, %v6365
        %v7392 = vpack.c.b16 %v6375, %v6366
        %v7393 = vpack.c.b16 %v6376, %v6367
        %v7394 = vpack.c.b16 %v6377, %v6368
        %v7395 = vpack.c.b16 %v6378, %v6369
        %v7396 = vpack.c.b16 %v6379, %v6370
        %v7397 = vpack.c.b16 %v6380, %v6371
        %v7398 = vpack.c.b16 %v6381, %v6372
        %v7399 = vpack.c.b16 %v6382, %v6373
        %v7400 = vpack.c.b16 %v6392, %v6383
        %v7401 = vpack.c.b16 %v6393, %v6384
        %v7402 = vpack.c.b16 %v6394, %v6385
        %v7403 = vpack.c.b16 %v6395, %v6386
        %v7404 = vpack.c.b16 %v6396, %v6387
        %v7405 = vpack.c.b16 %v6397, %v6388
        %v7406 = vpack.c.b16 %v6398, %v6389
        %v7407 = vpack.c.b16 %v6399, %v6390
        %v7408 = vpack.c.b16 %v6400, %v6391
        %v7409 = vpack.c.b16 %v6410, %v6401
        %v7410 = vpack.c.b16 %v6411, %v6402
        %v7411 = vpack.c.b16 %v6412, %v6403
        %v7412 = vpack.c.b16 %v6413, %v6404
        %v7413 = vpack.c.b16 %v6414, %v6405
        %v7414 = vpack.c.b16 %v6415, %v6406
        %v7415 = vpack.c.b16 %v6416, %v6407
        %v7416 = vpack.c.b16 %v6417, %v6408
        %v7417 = vpack.c.b16 %v6418, %v6409
        %v7418 = vpack.c.b16 %v6428, %v6419
        %v7419 = vpack.c.b16 %v6429, %v6420
        %v7420 = vpack.c.b16 %v6430, %v6421
        %v7421 = vpack.c.b16 %v6431, %v6422
        %v7422 = vpack.c.b16 %v6432, %v6423
        %v7423 = vpack.c.b16 %v6433, %v6424
        %v7424 = vpack.c.b16 %v6434, %v6425
        %v7425 = vpack.c.b16 %v6435, %v6426
        %v7426 = vpack.c.b16 %v6436, %v6427
        %v7427 = vpack.c.b16 %v6446, %v6437
        %v7428 = vpack.c.b16 %v6447, %v6438
        %v7429 = vpack.c.b16 %v6448, %v6439
        %v7430 = vpack.c.b16 %v6449, %v6440
        %v7431 = vpack.c.b16 %v6450, %v6441
        %v7432 = vpack.c.b16 %v6451, %v6442
        %v7433 = vpack.c.b16 %v6452, %v6443
        %v7434 = vpack.c.b16 %v6453, %v6444
        %v7435 = vpack.c.b16 %v6454, %v6445
        %v7436 = vpack.c.b16 %v6464, %v6455
        %v7437 = vpack.c.b16 %v6465, %v6456
        %v7438 = vpack.c.b16 %v6466, %v6457
        %v7439 = vpack.c.b16 %v6467, %v6458
        %v7440 = vpack.c.b16 %v6468, %v6459
        %v7441 = vpack.c.b16 %v6469, %v6460
        %v7442 = vpack.c.b16 %v6470, %v6461
        %v7443 = vpack.c.b16 %v6471, %v6462
        %v7444 = vpack.c.b16 %v6472, %v6463
        %v7445 = vpack.c.b16 %v6482, %v6473
        %v7446 = vpack.c.b16 %v6483, %v6474
        %v7447 = vpack.c.b16 %v6484, %v6475
        %v7448 = vpack.c.b16 %v6485, %v6476
        %v7449 = vpack.c.b16 %v6486, %v6477
        %v7450 = vpack.c.b16 %v6487, %v6478
        %v7451 = vpack.c.b16 %v6488, %v6479
        %v7452 = vpack.c.b16 %v6489, %v6480
        %v7453 = vpack.c.b16 %v6490, %v6481
        %v7454 = vpack.c.b16 %v6500, %v6491
        %v7455 = vpack.c.b16 %v6501, %v6492
        %v7456 = vpack.c.b16 %v6502, %v6493
        %v7457 = vpack.c.b16 %v6503, %v6494
        %v7458 = vpack.c.b16 %v6504, %v6495
        %v7459 = vpack.c.b16 %v6505, %v6496
        %v7460 = vpack.c.b16 %v6506, %v6497
        %v7461 = vpack.c.b16 %v6507, %v6498
        %v7462 = vpack.c.b16 %v6508, %v6499
        %v7463 = vpack.c.b16 %v6518, %v6509
        %v7464 = vpack.c.b16 %v6519, %v6510
        %v7465 = vpack.c.b16 %v6520, %v6511
        %v7466 = vpack.c.b16 %v6521, %v6512
        %v7467 = vpack.c.b16 %v6522, %v6513
        %v7468 = vpack.c.b16 %v6523, %v6514
        %v7469 = vpack.c.b16 %v6524, %v6515
        %v7470 = vpack.c.b16 %v6525, %v6516
        %v7471 = vpack.c.b16 %v6526, %v6517
        %v7472 = vpack.c.b16 %v6536, %v6527
        %v7473 = vpack.c.b16 %v6537, %v6528
        %v7474 = vpack.c.b16 %v6538, %v6529
        %v7475 = vpack.c.b16 %v6539, %v6530
        %v7476 = vpack.c.b16 %v6540, %v6531
        %v7477 = vpack.c.b16 %v6541, %v6532
        %v7478 = vpack.c.b16 %v6542, %v6533
        %v7479 = vpack.c.b16 %v6543, %v6534
        %v7480 = vpack.c.b16 %v6544, %v6535
        %v7481 = vpack.c.b16 %v6554, %v6545
        %v7482 = vpack.c.b16 %v6555, %v6546
        %v7483 = vpack.c.b16 %v6556, %v6547
        %v7484 = vpack.c.b16 %v6557, %v6548
        %v7485 = vpack.c.b16 %v6558, %v6549
        %v7486 = vpack.c.b16 %v6559, %v6550
        %v7487 = vpack.c.b16 %v6560, %v6551
        %v7488 = vpack.c.b16 %v6561, %v6552
        %v7489 = vpack.c.b16 %v6562, %v6553
        %v7490 = vpack.c.b16 %v6572, %v6563
        %v7491 = vpack.c.b16 %v6573, %v6564
        %v7492 = vpack.c.b16 %v6574, %v6565
        %v7493 = vpack.c.b16 %v6575, %v6566
        %v7494 = vpack.c.b16 %v6576, %v6567
        %v7495 = vpack.c.b16 %v6577, %v6568
        %v7496 = vpack.c.b16 %v6578, %v6569
        %v7497 = vpack.c.b16 %v6579, %v6570
        %v7498 = vpack.c.b16 %v6580, %v6571
        %v7499 = vpack.c.b16 %v6590, %v6581
        %v7500 = vpack.c.b16 %v6591, %v6582
        %v7501 = vpack.c.b16 %v6592, %v6583
        %v7502 = vpack.c.b16 %v6593, %v6584
        %v7503 = vpack.c.b16 %v6594, %v6585
        %v7504 = vpack.c.b16 %v6595, %v6586
        %v7505 = vpack.c.b16 %v6596, %v6587
        %v7506 = vpack.c.b16 %v6597, %v6588
        %v7507 = vpack.c.b16 %v6598, %v6589
        %v7508 = vpack.c.b16 %v6608, %v6599
        %v7509 = vpack.c.b16 %v6609, %v6600
        %v7510 = vpack.c.b16 %v6610, %v6601
        %v7511 = vpack.c.b16 %v6611, %v6602
        %v7512 = vpack.c.b16 %v6612, %v6603
        %v7513 = vpack.c.b16 %v6613, %v6604
        %v7514 = vpack.c.b16 %v6614, %v6605
        %v7515 = vpack.c.b16 %v6615, %v6606
        %v7516 = vpack.c.b16 %v6616, %v6607
        %v7517 = vpack.c.b16 %v6626, %v6617
        %v7518 = vpack.c.b16 %v6627, %v6618
        %v7519 = vpack.c.b16 %v6628, %v6619
        %v7520 = vpack.c.b16 %v6629, %v6620
        %v7521 = vpack.c.b16 %v6630, %v6621
        %v7522 = vpack.c.b16 %v6631, %v6622
        %v7523 = vpack.c.b16 %v6632, %v6623
        %v7524 = vpack.c.b16 %v6633, %v6624
        %v7525 = vpack.c.b16 %v6634, %v6625
        %v7526 = vpack.c.b16 %v6644, %v6635
        %v7527 = vpack.c.b16 %v6645, %v6636
        %v7528 = vpack.c.b16 %v6646, %v6637
        %v7529 = vpack.c.b16 %v6647, %v6638
        %v7530 = vpack.c.b16 %v6648, %v6639
        %v7531 = vpack.c.b16 %v6649, %v6640
        %v7532 = vpack.c.b16 %v6650, %v6641
        %v7533 = vpack.c.b16 %v6651, %v6642
        %v7534 = vpack.c.b16 %v6652, %v6643
        %v7535 = vpack.c.b16 %v6662, %v6653
        %v7536 = vpack.c.b16 %v6663, %v6654
        %v7537 = vpack.c.b16 %v6664, %v6655
        %v7538 = vpack.c.b16 %v6665, %v6656
        %v7539 = vpack.c.b16 %v6666, %v6657
        %v7540 = vpack.c.b16 %v6667, %v6658
        %v7541 = vpack.c.b16 %v6668, %v6659
        %v7542 = vpack.c.b16 %v6669, %v6660
        %v7543 = vpack.c.b16 %v6670, %v6661
        %v7544 = vpack.c.b16 %v6680, %v6671
        %v7545 = vpack.c.b16 %v6681, %v6672
        %v7546 = vpack.c.b16 %v6682, %v6673
        %v7547 = vpack.c.b16 %v6683, %v6674
        %v7548 = vpack.c.b16 %v6684, %v6675
        %v7549 = vpack.c.b16 %v6685, %v6676
        %v7550 = vpack.c.b16 %v6686, %v6677
        %v7551 = vpack.c.b16 %v6687, %v6678
        %v7552 = vpack.c.b16 %v6688, %v6679
        %v7553 = vpack.c.b16 %v6698, %v6689
        %v7554 = vpack.c.b16 %v6699, %v6690
        %v7555 = vpack.c.b16 %v6700, %v6691
        %v7556 = vpack.c.b16 %v6701, %v6692
        %v7557 = vpack.c.b16 %v6702, %v6693
        %v7558 = vpack.c.b16 %v6703, %v6694
        %v7559 = vpack.c.b16 %v6704, %v6695
        %v7560 = vpack.c.b16 %v6705, %v6696
        %v7561 = vpack.c.b16 %v6706, %v6697
        %v7562 = vpack.c.b16 %v6716, %v6707
        %v7563 = vpack.c.b16 %v6717, %v6708
        %v7564 = vpack.c.b16 %v6718, %v6709
        %v7565 = vpack.c.b16 %v6719, %v6710
        %v7566 = vpack.c.b16 %v6720, %v6711
        %v7567 = vpack.c.b16 %v6721, %v6712
        %v7568 = vpack.c.b16 %v6722, %v6713
        %v7569 = vpack.c.b16 %v6723, %v6714
        %v7570 = vpack.c.b16 %v6724, %v6715
        %v7571 = vpack.c.b16 %v6734, %v6725
        %v7572 = vpack.c.b16 %v6735, %v6726
        %v7573 = vpack.c.b16 %v6736, %v6727
        %v7574 = vpack.c.b16 %v6737, %v6728
        %v7575 = vpack.c.b16 %v6738, %v6729
        %v7576 = vpack.c.b16 %v6739, %v6730
        %v7577 = vpack.c.b16 %v6740, %v6731
        %v7578 = vpack.c.b16 %v6741, %v6732
        %v7579 = vpack.c.b16 %v6742, %v6733
        %v7580 = vpack.c.b16 %v6752, %v6743
        %v7581 = vpack.c.b16 %v6753, %v6744
        %v7582 = vpack.c.b16 %v6754, %v6745
        %v7583 = vpack.c.b16 %v6755, %v6746
        %v7584 = vpack.c.b16 %v6756, %v6747
        %v7585 = vpack.c.b16 %v6757, %v6748
        %v7586 = vpack.c.b16 %v6758, %v6749
        %v7587 = vpack.c.b16 %v6759, %v6750
        %v7588 = vpack.c.b16 %v6760, %v6751
        %v7589 = vpack.c.b16 %v6770, %v6761
        %v7590 = vpack.c.b16 %v6771, %v6762
        %v7591 = vpack.c.b16 %v6772, %v6763
        %v7592 = vpack.c.b16 %v6773, %v6764
        %v7593 = vpack.c.b16 %v6774, %v6765
        %v7594 = vpack.c.b16 %v6775, %v6766
        %v7595 = vpack.c.b16 %v6776, %v6767
        %v7596 = vpack.c.b16 %v6777, %v6768
        %v7597 = vpack.c.b16 %v6778, %v6769
        %v7598 = vpack.c.b16 %v6788, %v6779
        %v7599 = vpack.c.b16 %v6789, %v6780
        %v7600 = vpack.c.b16 %v6790, %v6781
        %v7601 = vpack.c.b16 %v6791, %v6782
        %v7602 = vpack.c.b16 %v6792, %v6783
        %v7603 = vpack.c.b16 %v6793, %v6784
        %v7604 = vpack.c.b16 %v6794, %v6785
        %v7605 = vpack.c.b16 %v6795, %v6786
        %v7606 = vpack.c.b16 %v6796, %v6787
        %v7607 = vpack.c.b16 %v6806, %v6797
        %v7608 = vpack.c.b16 %v6807, %v6798
        %v7609 = vpack.c.b16 %v6808, %v6799
        %v7610 = vpack.c.b16 %v6809, %v6800
        %v7611 = vpack.c.b16 %v6810, %v6801
        %v7612 = vpack.c.b16 %v6811, %v6802
        %v7613 = vpack.c.b16 %v6812, %v6803
        %v7614 = vpack.c.b16 %v6813, %v6804
        %v7615 = vpack.c.b16 %v6814, %v6805
        %v7616 = vpack.c.b16 %v6824, %v6815
        %v7617 = vpack.c.b16 %v6825, %v6816
        %v7618 = vpack.c.b16 %v6826, %v6817
        %v7619 = vpack.c.b16 %v6827, %v6818
        %v7620 = vpack.c.b16 %v6828, %v6819
        %v7621 = vpack.c.b16 %v6829, %v6820
        %v7622 = vpack.c.b16 %v6830, %v6821
        %v7623 = vpack.c.b16 %v6831, %v6822
        %v7624 = vpack.c.b16 %v6832, %v6823
        %v7625 = vpack.c.b16 %v6842, %v6833
        %v7626 = vpack.c.b16 %v6843, %v6834
        %v7627 = vpack.c.b16 %v6844, %v6835
        %v7628 = vpack.c.b16 %v6845, %v6836
        %v7629 = vpack.c.b16 %v6846, %v6837
        %v7630 = vpack.c.b16 %v6847, %v6838
        %v7631 = vpack.c.b16 %v6848, %v6839
        %v7632 = vpack.c.b16 %v6849, %v6840
        %v7633 = vpack.c.b16 %v6850, %v6841
        %v7634 = vpack.c.b16 %v6860, %v6851
        %v7635 = vpack.c.b16 %v6861, %v6852
        %v7636 = vpack.c.b16 %v6862, %v6853
        %v7637 = vpack.c.b16 %v6863, %v6854
        %v7638 = vpack.c.b16 %v6864, %v6855
        %v7639 = vpack.c.b16 %v6865, %v6856
        %v7640 = vpack.c.b16 %v6866, %v6857
        %v7641 = vpack.c.b16 %v6867, %v6858
        %v7642 = vpack.c.b16 %v6868, %v6859
        %v7643 = vpack.c.b16 %v6878, %v6869
        %v7644 = vpack.c.b16 %v6879, %v6870
        %v7645 = vpack.c.b16 %v6880, %v6871
        %v7646 = vpack.c.b16 %v6881, %v6872
        %v7647 = vpack.c.b16 %v6882, %v6873
        %v7648 = vpack.c.b16 %v6883, %v6874
        %v7649 = vpack.c.b16 %v6884, %v6875
        %v7650 = vpack.c.b16 %v6885, %v6876
        %v7651 = vpack.c.b16 %v6886, %v6877
        %v7652 = vpack.c.b16 %v6896, %v6887
        %v7653 = vpack.c.b16 %v6897, %v6888
        %v7654 = vpack.c.b16 %v6898, %v6889
        %v7655 = vpack.c.b16 %v6899, %v6890
        %v7656 = vpack.c.b16 %v6900, %v6891
        %v7657 = vpack.c.b16 %v6901, %v6892
        %v7658 = vpack.c.b16 %v6902, %v6893
        %v7659 = vpack.c.b16 %v6903, %v6894
        %v7660 = vpack.c.b16 %v6904, %v6895
        %v7661 = vpack.c.b16 %v6914, %v6905
        %v7662 = vpack.c.b16 %v6915, %v6906
        %v7663 = vpack.c.b16 %v6916, %v6907
        %v7664 = vpack.c.b16 %v6917, %v6908
        %v7665 = vpack.c.b16 %v6918, %v6909
        %v7666 = vpack.c.b16 %v6919, %v6910
        %v7667 = vpack.c.b16 %v6920, %v6911
        %v7668 = vpack.c.b16 %v6921, %v6912
        %v7669 = vpack.c.b16 %v6922, %v6913
        %v7670 = vpack.c.b16 %v6932, %v6923
        %v7671 = vpack.c.b16 %v6933, %v6924
        %v7672 = vpack.c.b16 %v6934, %v6925
        %v7673 = vpack.c.b16 %v6935, %v6926
        %v7674 = vpack.c.b16 %v6936, %v6927
        %v7675 = vpack.c.b16 %v6937, %v6928
        %v7676 = vpack.c.b16 %v6938, %v6929
        %v7677 = vpack.c.b16 %v6939, %v6930
        %v7678 = vpack.c.b16 %v6940, %v6931
        %v7679 = vpack.c.b16 %v6950, %v6941
        %v7680 = vpack.c.b16 %v6951, %v6942
        %v7681 = vpack.c.b16 %v6952, %v6943
        %v7682 = vpack.c.b16 %v6953, %v6944
        %v7683 = vpack.c.b16 %v6954, %v6945
        %v7684 = vpack.c.b16 %v6955, %v6946
        %v7685 = vpack.c.b16 %v6956, %v6947
        %v7686 = vpack.c.b16 %v6957, %v6948
        %v7687 = vpack.c.b16 %v6958, %v6949
        %v7688 = vpack.c.b16 %v6968, %v6959
        %v7689 = vpack.c.b16 %v6969, %v6960
        %v7690 = vpack.c.b16 %v6970, %v6961
        %v7691 = vpack.c.b16 %v6971, %v6962
        %v7692 = vpack.c.b16 %v6972, %v6963
        %v7693 = vpack.c.b16 %v6973, %v6964
        %v7694 = vpack.c.b16 %v6974, %v6965
        %v7695 = vpack.c.b16 %v6975, %v6966
        %v7696 = vpack.c.b16 %v6976, %v6967
        %v7697 = vpack.c.b16 %v6986, %v6977
        %v7698 = vpack.c.b16 %v6987, %v6978
        %v7699 = vpack.c.b16 %v6988, %v6979
        %v7700 = vpack.c.b16 %v6989, %v6980
        %v7701 = vpack.c.b16 %v6990, %v6981
        %v7702 = vpack.c.b16 %v6991, %v6982
        %v7703 = vpack.c.b16 %v6992, %v6983
        %v7704 = vpack.c.b16 %v6993, %v6984
        %v7705 = vpack.c.b16 %v6994, %v6985
        %v7706 = vpack.c.b16 %v7004, %v6995
        %v7707 = vpack.c.b16 %v7005, %v6996
        %v7708 = vpack.c.b16 %v7006, %v6997
        %v7709 = vpack.c.b16 %v7007, %v6998
        %v7710 = vpack.c.b16 %v7008, %v6999
        %v7711 = vpack.c.b16 %v7009, %v7000
        %v7712 = vpack.c.b16 %v7010, %v7001
        %v7713 = vpack.c.b16 %v7011, %v7002
        %v7714 = vpack.c.b16 %v7012, %v7003
        %v7715 = vpack.c.b16 %v7022, %v7013
        %v7716 = vpack.c.b16 %v7023, %v7014
        %v7717 = vpack.c.b16 %v7024, %v7015
        %v7718 = vpack.c.b16 %v7025, %v7016
        %v7719 = vpack.c.b16 %v7026, %v7017
        %v7720 = vpack.c.b16 %v7027, %v7018
        %v7721 = vpack.c.b16 %v7028, %v7019
        %v7722 = vpack.c.b16 %v7029, %v7020
        %v7723 = vpack.c.b16 %v7030, %v7021
        %v7724 = vpack.c.b16 %v7040, %v7031
        %v7725 = vpack.c.b16 %v7041, %v7032
        %v7726 = vpack.c.b16 %v7042, %v7033
        %v7727 = vpack.c.b16 %v7043, %v7034
        %v7728 = vpack.c.b16 %v7044, %v7035
        %v7729 = vpack.c.b16 %v7045, %v7036
        %v7730 = vpack.c.b16 %v7046, %v7037
        %v7731 = vpack.c.b16 %v7047, %v7038
        %v7732 = vpack.c.b16 %v7048, %v7039
        %v7733 = vpack.c.b16 %v7058, %v7049
        %v7734 = vpack.c.b16 %v7059, %v7050
        %v7735 = vpack.c.b16 %v7060, %v7051
        %v7736 = vpack.c.b16 %v7061, %v7052
        %v7737 = vpack.c.b16 %v7062, %v7053
        %v7738 = vpack.c.b16 %v7063, %v7054
        %v7739 = vpack.c.b16 %v7064, %v7055
        %v7740 = vpack.c.b16 %v7065, %v7056
        %v7741 = vpack.c.b16 %v7066, %v7057
        %v7742 = vpack.c.b16 %v7076, %v7067
        %v7743 = vpack.c.b16 %v7077, %v7068
        %v7744 = vpack.c.b16 %v7078, %v7069
        %v7745 = vpack.c.b16 %v7079, %v7070
        %v7746 = vpack.c.b16 %v7080, %v7071
        %v7747 = vpack.c.b16 %v7081, %v7072
        %v7748 = vpack.c.b16 %v7082, %v7073
        %v7749 = vpack.c.b16 %v7083, %v7074
        %v7750 = vpack.c.b16 %v7084, %v7075
        %v7751 = vpack.c.b16 %v7094, %v7085
        %v7752 = vpack.c.b16 %v7095, %v7086
        %v7753 = vpack.c.b16 %v7096, %v7087
        %v7754 = vpack.c.b16 %v7097, %v7088
        %v7755 = vpack.c.b16 %v7098, %v7089
        %v7756 = vpack.c.b16 %v7099, %v7090
        %v7757 = vpack.c.b16 %v7100, %v7091
        %v7758 = vpack.c.b16 %v7101, %v7092
        %v7759 = vpack.c.b16 %v7102, %v7093
        %v7760 = vpack.c.b16 %v7112, %v7103
        %v7761 = vpack.c.b16 %v7113, %v7104
        %v7762 = vpack.c.b16 %v7114, %v7105
        %v7763 = vpack.c.b16 %v7115, %v7106
        %v7764 = vpack.c.b16 %v7116, %v7107
        %v7765 = vpack.c.b16 %v7117, %v7108
        %v7766 = vpack.c.b16 %v7118, %v7109
        %v7767 = vpack.c.b16 %v7119, %v7110
        %v7768 = vpack.c.b16 %v7120, %v7111
        %v7769 = vpack.c.b16 %v7130, %v7121
        %v7770 = vpack.c.b16 %v7131, %v7122
        %v7771 = vpack.c.b16 %v7132, %v7123
        %v7772 = vpack.c.b16 %v7133, %v7124
        %v7773 = vpack.c.b16 %v7134, %v7125
        %v7774 = vpack.c.b16 %v7135, %v7126
        %v7775 = vpack.c.b16 %v7136, %v7127
        %v7776 = vpack.c.b16 %v7137, %v7128
        %v7777 = vpack.c.b16 %v7138, %v7129
        %v7778 = vpack.c.b16 %v7148, %v7139
        %v7779 = vpack.c.b16 %v7149, %v7140
        %v7780 = vpack.c.b16 %v7150, %v7141
        %v7781 = vpack.c.b16 %v7151, %v7142
        %v7782 = vpack.c.b16 %v7152, %v7143
        %v7783 = vpack.c.b16 %v7153, %v7144
        %v7784 = vpack.c.b16 %v7154, %v7145
        %v7785 = vpack.c.b16 %v7155, %v7146
        %v7786 = vpack.c.b16 %v7156, %v7147
        %v7787 = vpack.c.b16 %v7166, %v7157
        %v7788 = vpack.c.b16 %v7167, %v7158
        %v7789 = vpack.c.b16 %v7168, %v7159
        %v7790 = vpack.c.b16 %v7169, %v7160
        %v7791 = vpack.c.b16 %v7170, %v7161
        %v7792 = vpack.c.b16 %v7171, %v7162
        %v7793 = vpack.c.b16 %v7172, %v7163
        %v7794 = vpack.c.b16 %v7173, %v7164
        %v7795 = vpack.c.b16 %v7174, %v7165
        %v7796 = vpack.c.b16 %v7184, %v7175
        %v7797 = vpack.c.b16 %v7185, %v7176
        %v7798 = vpack.c.b16 %v7186, %v7177
        %v7799 = vpack.c.b16 %v7187, %v7178
        %v7800 = vpack.c.b16 %v7188, %v7179
        %v7801 = vpack.c.b16 %v7189, %v7180
        %v7802 = vpack.c.b16 %v7190, %v7181
        %v7803 = vpack.c.b16 %v7191, %v7182
        %v7804 = vpack.c.b16 %v7192, %v7183
        %v7805 = vpack.c.b16 %v7202, %v7193
        %v7806 = vpack.c.b16 %v7203, %v7194
        %v7807 = vpack.c.b16 %v7204, %v7195
        %v7808 = vpack.c.b16 %v7205, %v7196
        %v7809 = vpack.c.b16 %v7206, %v7197
        %v7810 = vpack.c.b16 %v7207, %v7198
        %v7811 = vpack.c.b16 %v7208, %v7199
        %v7812 = vpack.c.b16 %v7209, %v7200
        %v7813 = vpack.c.b16 %v7210, %v7201
        %v7814 = vpack.c.b16 %v7220, %v7211
        %v7815 = vpack.c.b16 %v7221, %v7212
        %v7816 = vpack.c.b16 %v7222, %v7213
        %v7817 = vpack.c.b16 %v7223, %v7214
        %v7818 = vpack.c.b16 %v7224, %v7215
        %v7819 = vpack.c.b16 %v7225, %v7216
        %v7820 = vpack.c.b16 %v7226, %v7217
        %v7821 = vpack.c.b16 %v7227, %v7218
        %v7822 = vpack.c.b16 %v7228, %v7219
        %v7823 = vpack.c.b16 %v7238, %v7229
        %v7824 = vpack.c.b16 %v7239, %v7230
        %v7825 = vpack.c.b16 %v7240, %v7231
        %v7826 = vpack.c.b16 %v7241, %v7232
        %v7827 = vpack.c.b16 %v7242, %v7233
        %v7828 = vpack.c.b16 %v7243, %v7234
        %v7829 = vpack.c.b16 %v7244, %v7235
        %v7830 = vpack.c.b16 %v7245, %v7236
        %v7831 = vpack.c.b16 %v7246, %v7237
        %v7832 = vpack.c.b16 %v7256, %v7247
        %v7833 = vpack.c.b16 %v7257, %v7248
        %v7834 = vpack.c.b16 %v7258, %v7249
        %v7835 = vpack.c.b16 %v7259, %v7250
        %v7836 = vpack.c.b16 %v7260, %v7251
        %v7837 = vpack.c.b16 %v7261, %v7252
        %v7838 = vpack.c.b16 %v7262, %v7253
        %v7839 = vpack.c.b16 %v7263, %v7254
        %v7840 = vpack.c.b16 %v7264, %v7255
        %v8419 = vlaneseq
        %v8420 = vshrl.u32 %v8419, 7
        %v8421 = vsub.s32 0, %v8420
        %v8422 = vrot.slane %v5471, %v8421
        %v8423 = vlaneseq
        %v8424 = vshrl.u32 %v8423, 7
        %v8425 = vsub.s32 1, %v8424
        %v8426 = vrot.slane %v5471, %v8425
        %v8427 = vlaneseq
        %v8428 = vshrl.u32 %v8427, 7
        %v8429 = vsub.s32 2, %v8428
        %v8430 = vrot.slane %v5471, %v8429
        %v8431 = vlaneseq
        %v8432 = vshrl.u32 %v8431, 7
        %v8433 = vsub.s32 3, %v8432
        %v8434 = vrot.slane %v5471, %v8433
        %v8435 = vlaneseq
        %v8436 = vshrl.u32 %v8435, 7
        %v8437 = vsub.s32 4, %v8436
        %v8438 = vrot.slane %v5471, %v8437
        %v8439 = vlaneseq
        %v8440 = vshrl.u32 %v8439, 7
        %v8441 = vsub.s32 5, %v8440
        %v8442 = vrot.slane %v5471, %v8441
        %v8443 = vlaneseq
        %v8444 = vshrl.u32 %v8443, 7
        %v8445 = vsub.s32 6, %v8444
        %v8446 = vrot.slane %v5471, %v8445
        %v8447 = vlaneseq
        %v8448 = vshrl.u32 %v8447, 7
        %v8449 = vsub.s32 7, %v8448
        %v8450 = vrot.slane %v5471, %v8449
        %v8451 = vlaneseq
        %v8452 = vshrl.u32 %v8451, 7
        %v8453 = vsub.s32 0, %v8452
        %v8454 = vrot.slane %v5472, %v8453
        %8464 = vmatprep.subr.bf16.mxu0 %v7266
        %8465 = vmatpush1.bf16.msra.mxu0 %v7265
        %8466 = vmatprep.subr.bf16.mxu0 %v7275
        %8467 = vmatpush1.bf16.msra.mxu0 %v7274
        %8468 = vmatprep.subr.bf16.mxu0 %v7284
        %8469 = vmatpush1.bf16.msra.mxu0 %v7283
        %8470 = vmatprep.subr.bf16.mxu0 %v7293
        %8471 = vmatpush1.bf16.msra.mxu0 %v7292
        %8472 = vmatprep.subr.bf16.mxu0 %v7302
        %8473 = vmatpush1.bf16.msra.mxu0 %v7301
        %8474 = vmatprep.subr.bf16.mxu0 %v7311
        %8475 = vmatpush1.bf16.msra.mxu0 %v7310
        %8476 = vmatprep.subr.bf16.mxu0 %v7320
        %8477 = vmatpush1.bf16.msra.mxu0 %v7319
        %8478 = vmatprep.subr.bf16.mxu0 %v7329
        %8479 = vmatpush1.bf16.msra.mxu0 %v7328
        %8480 = vmatprep.subr.bf16.mxu0 %v7338
        %8481 = vmatpush1.bf16.msra.mxu0 %v7337
        %8482 = vmatprep.subr.bf16.mxu0 %v7347
        %8483 = vmatpush1.bf16.msra.mxu0 %v7346
        %8484 = vmatprep.subr.bf16.mxu0 %v7356
        %8485 = vmatpush1.bf16.msra.mxu0 %v7355
        %8486 = vmatprep.subr.bf16.mxu0 %v7365
        %8487 = vmatpush1.bf16.msra.mxu0 %v7364
        %8488 = vmatprep.subr.bf16.mxu0 %v7374
        %8489 = vmatpush1.bf16.msra.mxu0 %v7373
        %8490 = vmatprep.subr.bf16.mxu0 %v7383
        %8491 = vmatpush1.bf16.msra.mxu0 %v7382
        %8492 = vmatprep.subr.bf16.mxu0 %v7392
        %8493 = vmatpush1.bf16.msra.mxu0 %v7391
        %8494 = vmatprep.subr.bf16.mxu0 %v7401
        %8495 = vmatpush1.bf16.msra.mxu0 %v7400
        %8496 = vmatprep.mubr.bf16.mxu0 %v4824
        %8497 = vmatmul.mubr.bf16.gmra.mrb[0].mxu0 %v4823
        %v8498 = vpop.f32.mrb[0].mxu0
        %v8499 = vadd.f32 %v8422, %v8498
        %v8500 = vpop.f32.mrb[0].mxu0
        %v8501 = vadd.f32 %v8426, %v8500
        %v8502 = vpop.f32.mrb[0].mxu0
        %v8503 = vpop.f32.mrb[0].mxu0
        %8504 = vdwg.mxu0
        %8505 = vmatprep.subr.bf16.mxu0 %v7410
        %8506 = vmatpush1.bf16.msra.mxu0 %v7409
        %8507 = vmatprep.subr.bf16.mxu0 %v7419
        %8508 = vmatpush1.bf16.msra.mxu0 %v7418
        %8509 = vmatprep.subr.bf16.mxu0 %v7428
        %8510 = vmatpush1.bf16.msra.mxu0 %v7427
        %8511 = vmatprep.subr.bf16.mxu0 %v7437
        %8512 = vmatpush1.bf16.msra.mxu0 %v7436
        %8513 = vmatprep.subr.bf16.mxu0 %v7446
        %8514 = vmatpush1.bf16.msra.mxu0 %v7445
        %8515 = vmatprep.subr.bf16.mxu0 %v7455
        %8516 = vmatpush1.bf16.msra.mxu0 %v7454
        %8517 = vmatprep.subr.bf16.mxu0 %v7464
        %8518 = vmatpush1.bf16.msra.mxu0 %v7463
        %8519 = vmatprep.subr.bf16.mxu0 %v7473
        %8520 = vmatpush1.bf16.msra.mxu0 %v7472
        %8521 = vmatprep.subr.bf16.mxu0 %v7482
        %8522 = vmatpush1.bf16.msra.mxu0 %v7481
        %8523 = vmatprep.subr.bf16.mxu0 %v7491
        %8524 = vmatpush1.bf16.msra.mxu0 %v7490
        %8525 = vmatprep.subr.bf16.mxu0 %v7500
        %8526 = vmatpush1.bf16.msra.mxu0 %v7499
        %8527 = vmatprep.subr.bf16.mxu0 %v7509
        %8528 = vmatpush1.bf16.msra.mxu0 %v7508
        %8529 = vmatprep.subr.bf16.mxu0 %v7518
        %8530 = vmatpush1.bf16.msra.mxu0 %v7517
        %8531 = vmatprep.subr.bf16.mxu0 %v7527
        %8532 = vmatpush1.bf16.msra.mxu0 %v7526
        %8533 = vmatprep.subr.bf16.mxu0 %v7536
        %8534 = vmatpush1.bf16.msra.mxu0 %v7535
        %8535 = vmatprep.subr.bf16.mxu0 %v7545
        %8536 = vmatpush1.bf16.msra.mxu0 %v7544
        %8537 = vmatprep.mubr.bf16.mxu0 %v4826
        %8538 = vmatmul.mubr.bf16.gmra.mrb[0].mxu0 %v4825
        %v8539 = vpop.f32.mrb[0].mxu0
        %v8540 = vadd.f32 %v8499, %v8539
        %v8541 = vpop.f32.mrb[0].mxu0
        %v8542 = vadd.f32 %v8501, %v8541
        %v8543 = vpop.f32.mrb[0].mxu0
        %v8544 = vpop.f32.mrb[0].mxu0
        %8545 = vdwg.mxu0
        %8546 = vmatprep.subr.bf16.mxu0 %v7554
        %8547 = vmatpush1.bf16.msra.mxu0 %v7553
        %8548 = vmatprep.subr.bf16.mxu0 %v7563
        %8549 = vmatpush1.bf16.msra.mxu0 %v7562
        %8550 = vmatprep.subr.bf16.mxu0 %v7572
        %8551 = vmatpush1.bf16.msra.mxu0 %v7571
        %8552 = vmatprep.subr.bf16.mxu0 %v7581
        %8553 = vmatpush1.bf16.msra.mxu0 %v7580
        %8554 = vmatprep.subr.bf16.mxu0 %v7590
        %8555 = vmatpush1.bf16.msra.mxu0 %v7589
        %8556 = vmatprep.subr.bf16.mxu0 %v7599
        %8557 = vmatpush1.bf16.msra.mxu0 %v7598
        %8558 = vmatprep.subr.bf16.mxu0 %v7608
        %8559 = vmatpush1.bf16.msra.mxu0 %v7607
        %8560 = vmatprep.subr.bf16.mxu0 %v7617
        %8561 = vmatpush1.bf16.msra.mxu0 %v7616
        %8562 = vmatprep.subr.bf16.mxu0 %v7626
        %8563 = vmatpush1.bf16.msra.mxu0 %v7625
        %8564 = vmatprep.subr.bf16.mxu0 %v7635
        %8565 = vmatpush1.bf16.msra.mxu0 %v7634
        %8566 = vmatprep.subr.bf16.mxu0 %v7644
        %8567 = vmatpush1.bf16.msra.mxu0 %v7643
        %8568 = vmatprep.subr.bf16.mxu0 %v7653
        %8569 = vmatpush1.bf16.msra.mxu0 %v7652
        %8570 = vmatprep.subr.bf16.mxu0 %v7662
        %8571 = vmatpush1.bf16.msra.mxu0 %v7661
        %8572 = vmatprep.subr.bf16.mxu0 %v7671
        %8573 = vmatpush1.bf16.msra.mxu0 %v7670
        %8574 = vmatprep.subr.bf16.mxu0 %v7680
        %8575 = vmatpush1.bf16.msra.mxu0 %v7679
        %8576 = vmatprep.subr.bf16.mxu0 %v7689
        %8577 = vmatpush1.bf16.msra.mxu0 %v7688
        %8578 = vmatprep.mubr.bf16.mxu0 %v4828
        %8579 = vmatmul.mubr.bf16.gmra.mrb[0].mxu0 %v4827
        %v8580 = vpop.f32.mrb[0].mxu0
        %v8581 = vadd.f32 %v8540, %v8580
        %v8582 = vpop.f32.mrb[0].mxu0
        %v8583 = vadd.f32 %v8542, %v8582
        %v8584 = vpop.f32.mrb[0].mxu0
        %v8585 = vpop.f32.mrb[0].mxu0
        %8586 = vdwg.mxu0
        %8587 = vmatprep.subr.bf16.mxu0 %v7698
        %8588 = vmatpush1.bf16.msra.mxu0 %v7697
        %8589 = vmatprep.subr.bf16.mxu0 %v7707
        %8590 = vmatpush1.bf16.msra.mxu0 %v7706
        %8591 = vmatprep.subr.bf16.mxu0 %v7716
        %8592 = vmatpush1.bf16.msra.mxu0 %v7715
        %8593 = vmatprep.subr.bf16.mxu0 %v7725
        %8594 = vmatpush1.bf16.msra.mxu0 %v7724
        %8595 = vmatprep.subr.bf16.mxu0 %v7734
        %8596 = vmatpush1.bf16.msra.mxu0 %v7733
        %8597 = vmatprep.subr.bf16.mxu0 %v7743
        %8598 = vmatpush1.bf16.msra.mxu0 %v7742
        %8599 = vmatprep.subr.bf16.mxu0 %v7752
        %8600 = vmatpush1.bf16.msra.mxu0 %v7751
        %8601 = vmatprep.subr.bf16.mxu0 %v7761
        %8602 = vmatpush1.bf16.msra.mxu0 %v7760
        %8603 = vmatprep.subr.bf16.mxu0 %v7770
        %8604 = vmatpush1.bf16.msra.mxu0 %v7769
        %8605 = vmatprep.subr.bf16.mxu0 %v7779
        %8606 = vmatpush1.bf16.msra.mxu0 %v7778
        %8607 = vmatprep.subr.bf16.mxu0 %v7788
        %8608 = vmatpush1.bf16.msra.mxu0 %v7787
        %8609 = vmatprep.subr.bf16.mxu0 %v7797
        %8610 = vmatpush1.bf16.msra.mxu0 %v7796
        %8611 = vmatprep.subr.bf16.mxu0 %v7806
        %8612 = vmatpush1.bf16.msra.mxu0 %v7805
        %8613 = vmatprep.subr.bf16.mxu0 %v7815
        %8614 = vmatpush1.bf16.msra.mxu0 %v7814
        %8615 = vmatprep.subr.bf16.mxu0 %v7824
        %8616 = vmatpush1.bf16.msra.mxu0 %v7823
        %8617 = vmatprep.subr.bf16.mxu0 %v7833
        %8618 = vmatpush1.bf16.msra.mxu0 %v7832
        %8619 = vmatprep.mubr.bf16.mxu0 %v4830
        %8620 = vmatmul.mubr.bf16.gmra.mrb[0].mxu0 %v4829
        %v8621 = vpop.f32.mrb[0].mxu0
        %v8622 = vadd.f32 %v8581, %v8621
        %v8623 = vpop.f32.mrb[0].mxu0
        %v8624 = vadd.f32 %v8583, %v8623
        %v8625 = vpop.f32.mrb[0].mxu0
        %v8626 = vpop.f32.mrb[0].mxu0
        %8627 = vdwg.mxu0
        %8628 = vmatprep.subr.bf16.mxu0 %v7268
        %8629 = vmatpush1.bf16.msra.mxu0 %v7267
        %8630 = vmatprep.subr.bf16.mxu0 %v7277
        %8631 = vmatpush1.bf16.msra.mxu0 %v7276
        %8632 = vmatprep.subr.bf16.mxu0 %v7286
        %8633 = vmatpush1.bf16.msra.mxu0 %v7285
        %8634 = vmatprep.subr.bf16.mxu0 %v7295
        %8635 = vmatpush1.bf16.msra.mxu0 %v7294
        %8636 = vmatprep.subr.bf16.mxu0 %v7304
        %8637 = vmatpush1.bf16.msra.mxu0 %v7303
        %8638 = vmatprep.subr.bf16.mxu0 %v7313
        %8639 = vmatpush1.bf16.msra.mxu0 %v7312
        %8640 = vmatprep.subr.bf16.mxu0 %v7322
        %8641 = vmatpush1.bf16.msra.mxu0 %v7321
        %8642 = vmatprep.subr.bf16.mxu0 %v7331
        %8643 = vmatpush1.bf16.msra.mxu0 %v7330
        %8644 = vmatprep.subr.bf16.mxu0 %v7340
        %8645 = vmatpush1.bf16.msra.mxu0 %v7339
        %8646 = vmatprep.subr.bf16.mxu0 %v7349
        %8647 = vmatpush1.bf16.msra.mxu0 %v7348
        %8648 = vmatprep.subr.bf16.mxu0 %v7358
        %8649 = vmatpush1.bf16.msra.mxu0 %v7357
        %8650 = vmatprep.subr.bf16.mxu0 %v7367
        %8651 = vmatpush1.bf16.msra.mxu0 %v7366
        %8652 = vmatprep.subr.bf16.mxu0 %v7376
        %8653 = vmatpush1.bf16.msra.mxu0 %v7375
        %8654 = vmatprep.subr.bf16.mxu0 %v7385
        %8655 = vmatpush1.bf16.msra.mxu0 %v7384
        %8656 = vmatprep.subr.bf16.mxu0 %v7394
        %8657 = vmatpush1.bf16.msra.mxu0 %v7393
        %8658 = vmatprep.subr.bf16.mxu0 %v7403
        %8659 = vmatpush1.bf16.msra.mxu0 %v7402
        %8660 = vmatprep.mubr.bf16.mxu0 %v4824
        %8661 = vmatmul.mubr.bf16.gmra.mrb[0].mxu0 %v4823
        %v8662 = vpop.f32.mrb[0].mxu0
        %v8663 = vadd.f32 %v8430, %v8662
        %v8664 = vpop.f32.mrb[0].mxu0
        %v8665 = vadd.f32 %v8434, %v8664
        %v8666 = vpop.f32.mrb[0].mxu0
        %v8667 = vpop.f32.mrb[0].mxu0
        %8668 = vdwg.mxu0
        %8669 = vmatprep.subr.bf16.mxu0 %v7412
        %8670 = vmatpush1.bf16.msra.mxu0 %v7411
        %8671 = vmatprep.subr.bf16.mxu0 %v7421
        %8672 = vmatpush1.bf16.msra.mxu0 %v7420
        %8673 = vmatprep.subr.bf16.mxu0 %v7430
        %8674 = vmatpush1.bf16.msra.mxu0 %v7429
        %8675 = vmatprep.subr.bf16.mxu0 %v7439
        %8676 = vmatpush1.bf16.msra.mxu0 %v7438
        %8677 = vmatprep.subr.bf16.mxu0 %v7448
        %8678 = vmatpush1.bf16.msra.mxu0 %v7447
        %8679 = vmatprep.subr.bf16.mxu0 %v7457
        %8680 = vmatpush1.bf16.msra.mxu0 %v7456
        %8681 = vmatprep.subr.bf16.mxu0 %v7466
        %8682 = vmatpush1.bf16.msra.mxu0 %v7465
        %8683 = vmatprep.subr.bf16.mxu0 %v7475
        %8684 = vmatpush1.bf16.msra.mxu0 %v7474
        %8685 = vmatprep.subr.bf16.mxu0 %v7484
        %8686 = vmatpush1.bf16.msra.mxu0 %v7483
        %8687 = vmatprep.subr.bf16.mxu0 %v7493
        %8688 = vmatpush1.bf16.msra.mxu0 %v7492
        %8689 = vmatprep.subr.bf16.mxu0 %v7502
        %8690 = vmatpush1.bf16.msra.mxu0 %v7501
        %8691 = vmatprep.subr.bf16.mxu0 %v7511
        %8692 = vmatpush1.bf16.msra.mxu0 %v7510
        %8693 = vmatprep.subr.bf16.mxu0 %v7520
        %8694 = vmatpush1.bf16.msra.mxu0 %v7519
        %8695 = vmatprep.subr.bf16.mxu0 %v7529
        %8696 = vmatpush1.bf16.msra.mxu0 %v7528
        %8697 = vmatprep.subr.bf16.mxu0 %v7538
        %8698 = vmatpush1.bf16.msra.mxu0 %v7537
        %8699 = vmatprep.subr.bf16.mxu0 %v7547
        %8700 = vmatpush1.bf16.msra.mxu0 %v7546
        %8701 = vmatprep.mubr.bf16.mxu0 %v4826
        %8702 = vmatmul.mubr.bf16.gmra.mrb[0].mxu0 %v4825
        %v8703 = vpop.f32.mrb[0].mxu0
        %v8704 = vadd.f32 %v8663, %v8703
        %v8705 = vpop.f32.mrb[0].mxu0
        %v8706 = vadd.f32 %v8665, %v8705
        %v8707 = vpop.f32.mrb[0].mxu0
        %v8708 = vpop.f32.mrb[0].mxu0
        %8709 = vdwg.mxu0
        %8710 = vmatprep.subr.bf16.mxu0 %v7556
        %8711 = vmatpush1.bf16.msra.mxu0 %v7555
        %8712 = vmatprep.subr.bf16.mxu0 %v7565
        %8713 = vmatpush1.bf16.msra.mxu0 %v7564
        %8714 = vmatprep.subr.bf16.mxu0 %v7574
        %8715 = vmatpush1.bf16.msra.mxu0 %v7573
        %8716 = vmatprep.subr.bf16.mxu0 %v7583
        %8717 = vmatpush1.bf16.msra.mxu0 %v7582
        %8718 = vmatprep.subr.bf16.mxu0 %v7592
        %8719 = vmatpush1.bf16.msra.mxu0 %v7591
        %8720 = vmatprep.subr.bf16.mxu0 %v7601
        %8721 = vmatpush1.bf16.msra.mxu0 %v7600
        %8722 = vmatprep.subr.bf16.mxu0 %v7610
        %8723 = vmatpush1.bf16.msra.mxu0 %v7609
        %8724 = vmatprep.subr.bf16.mxu0 %v7619
        %8725 = vmatpush1.bf16.msra.mxu0 %v7618
        %8726 = vmatprep.subr.bf16.mxu0 %v7628
        %8727 = vmatpush1.bf16.msra.mxu0 %v7627
        %8728 = vmatprep.subr.bf16.mxu0 %v7637
        %8729 = vmatpush1.bf16.msra.mxu0 %v7636
        %8730 = vmatprep.subr.bf16.mxu0 %v7646
        %8731 = vmatpush1.bf16.msra.mxu0 %v7645
        %8732 = vmatprep.subr.bf16.mxu0 %v7655
        %8733 = vmatpush1.bf16.msra.mxu0 %v7654
        %8734 = vmatprep.subr.bf16.mxu0 %v7664
        %8735 = vmatpush1.bf16.msra.mxu0 %v7663
        %8736 = vmatprep.subr.bf16.mxu0 %v7673
        %8737 = vmatpush1.bf16.msra.mxu0 %v7672
        %8738 = vmatprep.subr.bf16.mxu0 %v7682
        %8739 = vmatpush1.bf16.msra.mxu0 %v7681
        %8740 = vmatprep.subr.bf16.mxu0 %v7691
        %8741 = vmatpush1.bf16.msra.mxu0 %v7690
        %8742 = vmatprep.mubr.bf16.mxu0 %v4828
        %8743 = vmatmul.mubr.bf16.gmra.mrb[0].mxu0 %v4827
        %v8744 = vpop.f32.mrb[0].mxu0
        %v8745 = vadd.f32 %v8704, %v8744
        %v8746 = vpop.f32.mrb[0].mxu0
        %v8747 = vadd.f32 %v8706, %v8746
        %v8748 = vpop.f32.mrb[0].mxu0
        %v8749 = vpop.f32.mrb[0].mxu0
        %8750 = vdwg.mxu0
        %8751 = vmatprep.subr.bf16.mxu0 %v7700
        %8752 = vmatpush1.bf16.msra.mxu0 %v7699
        %8753 = vmatprep.subr.bf16.mxu0 %v7709
        %8754 = vmatpush1.bf16.msra.mxu0 %v7708
        %8755 = vmatprep.subr.bf16.mxu0 %v7718
        %8756 = vmatpush1.bf16.msra.mxu0 %v7717
        %8757 = vmatprep.subr.bf16.mxu0 %v7727
        %8758 = vmatpush1.bf16.msra.mxu0 %v7726
        %8759 = vmatprep.subr.bf16.mxu0 %v7736
        %8760 = vmatpush1.bf16.msra.mxu0 %v7735
        %8761 = vmatprep.subr.bf16.mxu0 %v7745
        %8762 = vmatpush1.bf16.msra.mxu0 %v7744
        %8763 = vmatprep.subr.bf16.mxu0 %v7754
        %8764 = vmatpush1.bf16.msra.mxu0 %v7753
        %8765 = vmatprep.subr.bf16.mxu0 %v7763
        %8766 = vmatpush1.bf16.msra.mxu0 %v7762
        %8767 = vmatprep.subr.bf16.mxu0 %v7772
        %8768 = vmatpush1.bf16.msra.mxu0 %v7771
        %8769 = vmatprep.subr.bf16.mxu0 %v7781
        %8770 = vmatpush1.bf16.msra.mxu0 %v7780
        %8771 = vmatprep.subr.bf16.mxu0 %v7790
        %8772 = vmatpush1.bf16.msra.mxu0 %v7789
        %8773 = vmatprep.subr.bf16.mxu0 %v7799
        %8774 = vmatpush1.bf16.msra.mxu0 %v7798
        %8775 = vmatprep.subr.bf16.mxu0 %v7808
        %8776 = vmatpush1.bf16.msra.mxu0 %v7807
        %8777 = vmatprep.subr.bf16.mxu0 %v7817
        %8778 = vmatpush1.bf16.msra.mxu0 %v7816
        %8779 = vmatprep.subr.bf16.mxu0 %v7826
        %8780 = vmatpush1.bf16.msra.mxu0 %v7825
        %8781 = vmatprep.subr.bf16.mxu0 %v7835
        %8782 = vmatpush1.bf16.msra.mxu0 %v7834
        %8783 = vmatprep.mubr.bf16.mxu0 %v4830
        %8784 = vmatmul.mubr.bf16.gmra.mrb[0].mxu0 %v4829
        %v8785 = vpop.f32.mrb[0].mxu0
        %v8786 = vadd.f32 %v8745, %v8785
        %v8787 = vpop.f32.mrb[0].mxu0
        %v8788 = vadd.f32 %v8747, %v8787
        %v8789 = vpop.f32.mrb[0].mxu0
        %v8790 = vpop.f32.mrb[0].mxu0
        %8791 = vdwg.mxu0
        %8792 = vmatprep.subr.bf16.mxu0 %v7270
        %8793 = vmatpush1.bf16.msra.mxu0 %v7269
        %8794 = vmatprep.subr.bf16.mxu0 %v7279
        %8795 = vmatpush1.bf16.msra.mxu0 %v7278
        %8796 = vmatprep.subr.bf16.mxu0 %v7288
        %8797 = vmatpush1.bf16.msra.mxu0 %v7287
        %8798 = vmatprep.subr.bf16.mxu0 %v7297
        %8799 = vmatpush1.bf16.msra.mxu0 %v7296
        %8800 = vmatprep.subr.bf16.mxu0 %v7306
        %8801 = vmatpush1.bf16.msra.mxu0 %v7305
        %8802 = vmatprep.subr.bf16.mxu0 %v7315
        %8803 = vmatpush1.bf16.msra.mxu0 %v7314
        %8804 = vmatprep.subr.bf16.mxu0 %v7324
        %8805 = vmatpush1.bf16.msra.mxu0 %v7323
        %8806 = vmatprep.subr.bf16.mxu0 %v7333
        %8807 = vmatpush1.bf16.msra.mxu0 %v7332
        %8808 = vmatprep.subr.bf16.mxu0 %v7342
        %8809 = vmatpush1.bf16.msra.mxu0 %v7341
        %8810 = vmatprep.subr.bf16.mxu0 %v7351
        %8811 = vmatpush1.bf16.msra.mxu0 %v7350
        %8812 = vmatprep.subr.bf16.mxu0 %v7360
        %8813 = vmatpush1.bf16.msra.mxu0 %v7359
        %8814 = vmatprep.subr.bf16.mxu0 %v7369
        %8815 = vmatpush1.bf16.msra.mxu0 %v7368
        %8816 = vmatprep.subr.bf16.mxu0 %v7378
        %8817 = vmatpush1.bf16.msra.mxu0 %v7377
        %8818 = vmatprep.subr.bf16.mxu0 %v7387
        %8819 = vmatpush1.bf16.msra.mxu0 %v7386
        %8820 = vmatprep.subr.bf16.mxu0 %v7396
        %8821 = vmatpush1.bf16.msra.mxu0 %v7395
        %8822 = vmatprep.subr.bf16.mxu0 %v7405
        %8823 = vmatpush1.bf16.msra.mxu0 %v7404
        %8824 = vmatprep.mubr.bf16.mxu0 %v4824
        %8825 = vmatmul.mubr.bf16.gmra.mrb[0].mxu0 %v4823
        %v8826 = vpop.f32.mrb[0].mxu0
        %v8827 = vadd.f32 %v8438, %v8826
        %v8828 = vpop.f32.mrb[0].mxu0
        %v8829 = vadd.f32 %v8442, %v8828
        %v8830 = vpop.f32.mrb[0].mxu0
        %v8831 = vpop.f32.mrb[0].mxu0
        %8832 = vdwg.mxu0
        %8833 = vmatprep.subr.bf16.mxu0 %v7414
        %8834 = vmatpush1.bf16.msra.mxu0 %v7413
        %8835 = vmatprep.subr.bf16.mxu0 %v7423
        %8836 = vmatpush1.bf16.msra.mxu0 %v7422
        %8837 = vmatprep.subr.bf16.mxu0 %v7432
        %8838 = vmatpush1.bf16.msra.mxu0 %v7431
        %8839 = vmatprep.subr.bf16.mxu0 %v7441
        %8840 = vmatpush1.bf16.msra.mxu0 %v7440
        %8841 = vmatprep.subr.bf16.mxu0 %v7450
        %8842 = vmatpush1.bf16.msra.mxu0 %v7449
        %8843 = vmatprep.subr.bf16.mxu0 %v7459
        %8844 = vmatpush1.bf16.msra.mxu0 %v7458
        %8845 = vmatprep.subr.bf16.mxu0 %v7468
        %8846 = vmatpush1.bf16.msra.mxu0 %v7467
        %8847 = vmatprep.subr.bf16.mxu0 %v7477
        %8848 = vmatpush1.bf16.msra.mxu0 %v7476
        %8849 = vmatprep.subr.bf16.mxu0 %v7486
        %8850 = vmatpush1.bf16.msra.mxu0 %v7485
        %8851 = vmatprep.subr.bf16.mxu0 %v7495
        %8852 = vmatpush1.bf16.msra.mxu0 %v7494
        %8853 = vmatprep.subr.bf16.mxu0 %v7504
        %8854 = vmatpush1.bf16.msra.mxu0 %v7503
        %8855 = vmatprep.subr.bf16.mxu0 %v7513
        %8856 = vmatpush1.bf16.msra.mxu0 %v7512
        %8857 = vmatprep.subr.bf16.mxu0 %v7522
        %8858 = vmatpush1.bf16.msra.mxu0 %v7521
        %8859 = vmatprep.subr.bf16.mxu0 %v7531
        %8860 = vmatpush1.bf16.msra.mxu0 %v7530
        %8861 = vmatprep.subr.bf16.mxu0 %v7540
        %8862 = vmatpush1.bf16.msra.mxu0 %v7539
        %8863 = vmatprep.subr.bf16.mxu0 %v7549
        %8864 = vmatpush1.bf16.msra.mxu0 %v7548
        %8865 = vmatprep.mubr.bf16.mxu0 %v4826
        %8866 = vmatmul.mubr.bf16.gmra.mrb[0].mxu0 %v4825
        %v8867 = vpop.f32.mrb[0].mxu0
        %v8868 = vadd.f32 %v8827, %v8867
        %v8869 = vpop.f32.mrb[0].mxu0
        %v8870 = vadd.f32 %v8829, %v8869
        %v8871 = vpop.f32.mrb[0].mxu0
        %v8872 = vpop.f32.mrb[0].mxu0
        %8873 = vdwg.mxu0
        %8874 = vmatprep.subr.bf16.mxu0 %v7558
        %8875 = vmatpush1.bf16.msra.mxu0 %v7557
        %8876 = vmatprep.subr.bf16.mxu0 %v7567
        %8877 = vmatpush1.bf16.msra.mxu0 %v7566
        %8878 = vmatprep.subr.bf16.mxu0 %v7576
        %8879 = vmatpush1.bf16.msra.mxu0 %v7575
        %8880 = vmatprep.subr.bf16.mxu0 %v7585
        %8881 = vmatpush1.bf16.msra.mxu0 %v7584
        %8882 = vmatprep.subr.bf16.mxu0 %v7594
        %8883 = vmatpush1.bf16.msra.mxu0 %v7593
        %8884 = vmatprep.subr.bf16.mxu0 %v7603
        %8885 = vmatpush1.bf16.msra.mxu0 %v7602
        %8886 = vmatprep.subr.bf16.mxu0 %v7612
        %8887 = vmatpush1.bf16.msra.mxu0 %v7611
        %8888 = vmatprep.subr.bf16.mxu0 %v7621
        %8889 = vmatpush1.bf16.msra.mxu0 %v7620
        %8890 = vmatprep.subr.bf16.mxu0 %v7630
        %8891 = vmatpush1.bf16.msra.mxu0 %v7629
        %8892 = vmatprep.subr.bf16.mxu0 %v7639
        %8893 = vmatpush1.bf16.msra.mxu0 %v7638
        %8894 = vmatprep.subr.bf16.mxu0 %v7648
        %8895 = vmatpush1.bf16.msra.mxu0 %v7647
        %8896 = vmatprep.subr.bf16.mxu0 %v7657
        %8897 = vmatpush1.bf16.msra.mxu0 %v7656
        %8898 = vmatprep.subr.bf16.mxu0 %v7666
        %8899 = vmatpush1.bf16.msra.mxu0 %v7665
        %8900 = vmatprep.subr.bf16.mxu0 %v7675
        %8901 = vmatpush1.bf16.msra.mxu0 %v7674
        %8902 = vmatprep.subr.bf16.mxu0 %v7684
        %8903 = vmatpush1.bf16.msra.mxu0 %v7683
        %8904 = vmatprep.subr.bf16.mxu0 %v7693
        %8905 = vmatpush1.bf16.msra.mxu0 %v7692
        %8906 = vmatprep.mubr.bf16.mxu0 %v4828
        %8907 = vmatmul.mubr.bf16.gmra.mrb[0].mxu0 %v4827
        %v8908 = vpop.f32.mrb[0].mxu0
        %v8909 = vadd.f32 %v8868, %v8908
        %v8910 = vpop.f32.mrb[0].mxu0
        %v8911 = vadd.f32 %v8870, %v8910
        %v8912 = vpop.f32.mrb[0].mxu0
        %v8913 = vpop.f32.mrb[0].mxu0
        %8914 = vdwg.mxu0
        %8915 = vmatprep.subr.bf16.mxu0 %v7702
        %8916 = vmatpush1.bf16.msra.mxu0 %v7701
        %8917 = vmatprep.subr.bf16.mxu0 %v7711
        %8918 = vmatpush1.bf16.msra.mxu0 %v7710
        %8919 = vmatprep.subr.bf16.mxu0 %v7720
        %8920 = vmatpush1.bf16.msra.mxu0 %v7719
        %8921 = vmatprep.subr.bf16.mxu0 %v7729
        %8922 = vmatpush1.bf16.msra.mxu0 %v7728
        %8923 = vmatprep.subr.bf16.mxu0 %v7738
        %8924 = vmatpush1.bf16.msra.mxu0 %v7737
        %8925 = vmatprep.subr.bf16.mxu0 %v7747
        %8926 = vmatpush1.bf16.msra.mxu0 %v7746
        %8927 = vmatprep.subr.bf16.mxu0 %v7756
        %8928 = vmatpush1.bf16.msra.mxu0 %v7755
        %8929 = vmatprep.subr.bf16.mxu0 %v7765
        %8930 = vmatpush1.bf16.msra.mxu0 %v7764
        %8931 = vmatprep.subr.bf16.mxu0 %v7774
        %8932 = vmatpush1.bf16.msra.mxu0 %v7773
        %8933 = vmatprep.subr.bf16.mxu0 %v7783
        %8934 = vmatpush1.bf16.msra.mxu0 %v7782
        %8935 = vmatprep.subr.bf16.mxu0 %v7792
        %8936 = vmatpush1.bf16.msra.mxu0 %v7791
        %8937 = vmatprep.subr.bf16.mxu0 %v7801
        %8938 = vmatpush1.bf16.msra.mxu0 %v7800
        %8939 = vmatprep.subr.bf16.mxu0 %v7810
        %8940 = vmatpush1.bf16.msra.mxu0 %v7809
        %8941 = vmatprep.subr.bf16.mxu0 %v7819
        %8942 = vmatpush1.bf16.msra.mxu0 %v7818
        %8943 = vmatprep.subr.bf16.mxu0 %v7828
        %8944 = vmatpush1.bf16.msra.mxu0 %v7827
        %8945 = vmatprep.subr.bf16.mxu0 %v7837
        %8946 = vmatpush1.bf16.msra.mxu0 %v7836
        %8947 = vmatprep.mubr.bf16.mxu0 %v4830
        %8948 = vmatmul.mubr.bf16.gmra.mrb[0].mxu0 %v4829
        %v8949 = vpop.f32.mrb[0].mxu0
        %v8950 = vadd.f32 %v8909, %v8949
        %v8951 = vpop.f32.mrb[0].mxu0
        %v8952 = vadd.f32 %v8911, %v8951
        %v8953 = vpop.f32.mrb[0].mxu0
        %v8954 = vpop.f32.mrb[0].mxu0
        %8955 = vdwg.mxu0
        %8956 = vmatprep.subr.bf16.mxu0 %v7272
        %8957 = vmatpush1.bf16.msra.mxu0 %v7271
        %8958 = vmatprep.subr.bf16.mxu0 %v7281
        %8959 = vmatpush1.bf16.msra.mxu0 %v7280
        %8960 = vmatprep.subr.bf16.mxu0 %v7290
        %8961 = vmatpush1.bf16.msra.mxu0 %v7289
        %8962 = vmatprep.subr.bf16.mxu0 %v7299
        %8963 = vmatpush1.bf16.msra.mxu0 %v7298
        %8964 = vmatprep.subr.bf16.mxu0 %v7308
        %8965 = vmatpush1.bf16.msra.mxu0 %v7307
        %8966 = vmatprep.subr.bf16.mxu0 %v7317
        %8967 = vmatpush1.bf16.msra.mxu0 %v7316
        %8968 = vmatprep.subr.bf16.mxu0 %v7326
        %8969 = vmatpush1.bf16.msra.mxu0 %v7325
        %8970 = vmatprep.subr.bf16.mxu0 %v7335
        %8971 = vmatpush1.bf16.msra.mxu0 %v7334
        %8972 = vmatprep.subr.bf16.mxu0 %v7344
        %8973 = vmatpush1.bf16.msra.mxu0 %v7343
        %8974 = vmatprep.subr.bf16.mxu0 %v7353
        %8975 = vmatpush1.bf16.msra.mxu0 %v7352
        %8976 = vmatprep.subr.bf16.mxu0 %v7362
        %8977 = vmatpush1.bf16.msra.mxu0 %v7361
        %8978 = vmatprep.subr.bf16.mxu0 %v7371
        %8979 = vmatpush1.bf16.msra.mxu0 %v7370
        %8980 = vmatprep.subr.bf16.mxu0 %v7380
        %8981 = vmatpush1.bf16.msra.mxu0 %v7379
        %8982 = vmatprep.subr.bf16.mxu0 %v7389
        %8983 = vmatpush1.bf16.msra.mxu0 %v7388
        %8984 = vmatprep.subr.bf16.mxu0 %v7398
        %8985 = vmatpush1.bf16.msra.mxu0 %v7397
        %8986 = vmatprep.subr.bf16.mxu0 %v7407
        %8987 = vmatpush1.bf16.msra.mxu0 %v7406
        %8988 = vmatprep.mubr.bf16.mxu0 %v4824
        %8989 = vmatmul.mubr.bf16.gmra.mrb[0].mxu0 %v4823
        %v8990 = vpop.f32.mrb[0].mxu0
        %v8991 = vadd.f32 %v8446, %v8990
        %v8992 = vpop.f32.mrb[0].mxu0
        %v8993 = vadd.f32 %v8450, %v8992
        %v8994 = vpop.f32.mrb[0].mxu0
        %v8995 = vpop.f32.mrb[0].mxu0
        %8996 = vdwg.mxu0
        %8997 = vmatprep.subr.bf16.mxu0 %v7416
        %8998 = vmatpush1.bf16.msra.mxu0 %v7415
        %8999 = vmatprep.subr.bf16.mxu0 %v7425
        %9000 = vmatpush1.bf16.msra.mxu0 %v7424
        %9001 = vmatprep.subr.bf16.mxu0 %v7434
        %9002 = vmatpush1.bf16.msra.mxu0 %v7433
        %9003 = vmatprep.subr.bf16.mxu0 %v7443
        %9004 = vmatpush1.bf16.msra.mxu0 %v7442
        %9005 = vmatprep.subr.bf16.mxu0 %v7452
        %9006 = vmatpush1.bf16.msra.mxu0 %v7451
        %9007 = vmatprep.subr.bf16.mxu0 %v7461
        %9008 = vmatpush1.bf16.msra.mxu0 %v7460
        %9009 = vmatprep.subr.bf16.mxu0 %v7470
        %9010 = vmatpush1.bf16.msra.mxu0 %v7469
        %9011 = vmatprep.subr.bf16.mxu0 %v7479
        %9012 = vmatpush1.bf16.msra.mxu0 %v7478
        %9013 = vmatprep.subr.bf16.mxu0 %v7488
        %9014 = vmatpush1.bf16.msra.mxu0 %v7487
        %9015 = vmatprep.subr.bf16.mxu0 %v7497
        %9016 = vmatpush1.bf16.msra.mxu0 %v7496
        %9017 = vmatprep.subr.bf16.mxu0 %v7506
        %9018 = vmatpush1.bf16.msra.mxu0 %v7505
        %9019 = vmatprep.subr.bf16.mxu0 %v7515
        %9020 = vmatpush1.bf16.msra.mxu0 %v7514
        %9021 = vmatprep.subr.bf16.mxu0 %v7524
        %9022 = vmatpush1.bf16.msra.mxu0 %v7523
        %9023 = vmatprep.subr.bf16.mxu0 %v7533
        %9024 = vmatpush1.bf16.msra.mxu0 %v7532
        %9025 = vmatprep.subr.bf16.mxu0 %v7542
        %9026 = vmatpush1.bf16.msra.mxu0 %v7541
        %9027 = vmatprep.subr.bf16.mxu0 %v7551
        %9028 = vmatpush1.bf16.msra.mxu0 %v7550
        %9029 = vmatprep.mubr.bf16.mxu0 %v4826
        %9030 = vmatmul.mubr.bf16.gmra.mrb[0].mxu0 %v4825
        %v9031 = vpop.f32.mrb[0].mxu0
        %v9032 = vadd.f32 %v8991, %v9031
        %v9033 = vpop.f32.mrb[0].mxu0
        %v9034 = vadd.f32 %v8993, %v9033
        %v9035 = vpop.f32.mrb[0].mxu0
        %v9036 = vpop.f32.mrb[0].mxu0
        %9037 = vdwg.mxu0
        %9038 = vmatprep.subr.bf16.mxu0 %v7560
        %9039 = vmatpush1.bf16.msra.mxu0 %v7559
        %9040 = vmatprep.subr.bf16.mxu0 %v7569
        %9041 = vmatpush1.bf16.msra.mxu0 %v7568
        %9042 = vmatprep.subr.bf16.mxu0 %v7578
        %9043 = vmatpush1.bf16.msra.mxu0 %v7577
        %9044 = vmatprep.subr.bf16.mxu0 %v7587
        %9045 = vmatpush1.bf16.msra.mxu0 %v7586
        %9046 = vmatprep.subr.bf16.mxu0 %v7596
        %9047 = vmatpush1.bf16.msra.mxu0 %v7595
        %9048 = vmatprep.subr.bf16.mxu0 %v7605
        %9049 = vmatpush1.bf16.msra.mxu0 %v7604
        %9050 = vmatprep.subr.bf16.mxu0 %v7614
        %9051 = vmatpush1.bf16.msra.mxu0 %v7613
        %9052 = vmatprep.subr.bf16.mxu0 %v7623
        %9053 = vmatpush1.bf16.msra.mxu0 %v7622
        %9054 = vmatprep.subr.bf16.mxu0 %v7632
        %9055 = vmatpush1.bf16.msra.mxu0 %v7631
        %9056 = vmatprep.subr.bf16.mxu0 %v7641
        %9057 = vmatpush1.bf16.msra.mxu0 %v7640
        %9058 = vmatprep.subr.bf16.mxu0 %v7650
        %9059 = vmatpush1.bf16.msra.mxu0 %v7649
        %9060 = vmatprep.subr.bf16.mxu0 %v7659
        %9061 = vmatpush1.bf16.msra.mxu0 %v7658
        %9062 = vmatprep.subr.bf16.mxu0 %v7668
        %9063 = vmatpush1.bf16.msra.mxu0 %v7667
        %9064 = vmatprep.subr.bf16.mxu0 %v7677
        %9065 = vmatpush1.bf16.msra.mxu0 %v7676
        %9066 = vmatprep.subr.bf16.mxu0 %v7686
        %9067 = vmatpush1.bf16.msra.mxu0 %v7685
        %9068 = vmatprep.subr.bf16.mxu0 %v7695
        %9069 = vmatpush1.bf16.msra.mxu0 %v7694
        %9070 = vmatprep.mubr.bf16.mxu0 %v4828
        %9071 = vmatmul.mubr.bf16.gmra.mrb[0].mxu0 %v4827
        %v9072 = vpop.f32.mrb[0].mxu0
        %v9073 = vadd.f32 %v9032, %v9072
        %v9074 = vpop.f32.mrb[0].mxu0
        %v9075 = vadd.f32 %v9034, %v9074
        %v9076 = vpop.f32.mrb[0].mxu0
        %v9077 = vpop.f32.mrb[0].mxu0
        %9078 = vdwg.mxu0
        %9079 = vmatprep.subr.bf16.mxu0 %v7704
        %9080 = vmatpush1.bf16.msra.mxu0 %v7703
        %9081 = vmatprep.subr.bf16.mxu0 %v7713
        %9082 = vmatpush1.bf16.msra.mxu0 %v7712
        %9083 = vmatprep.subr.bf16.mxu0 %v7722
        %9084 = vmatpush1.bf16.msra.mxu0 %v7721
        %9085 = vmatprep.subr.bf16.mxu0 %v7731
        %9086 = vmatpush1.bf16.msra.mxu0 %v7730
        %9087 = vmatprep.subr.bf16.mxu0 %v7740
        %9088 = vmatpush1.bf16.msra.mxu0 %v7739
        %9089 = vmatprep.subr.bf16.mxu0 %v7749
        %9090 = vmatpush1.bf16.msra.mxu0 %v7748
        %9091 = vmatprep.subr.bf16.mxu0 %v7758
        %9092 = vmatpush1.bf16.msra.mxu0 %v7757
        %9093 = vmatprep.subr.bf16.mxu0 %v7767
        %9094 = vmatpush1.bf16.msra.mxu0 %v7766
        %9095 = vmatprep.subr.bf16.mxu0 %v7776
        %9096 = vmatpush1.bf16.msra.mxu0 %v7775
        %9097 = vmatprep.subr.bf16.mxu0 %v7785
        %9098 = vmatpush1.bf16.msra.mxu0 %v7784
        %9099 = vmatprep.subr.bf16.mxu0 %v7794
        %9100 = vmatpush1.bf16.msra.mxu0 %v7793
        %9101 = vmatprep.subr.bf16.mxu0 %v7803
        %9102 = vmatpush1.bf16.msra.mxu0 %v7802
        %9103 = vmatprep.subr.bf16.mxu0 %v7812
        %9104 = vmatpush1.bf16.msra.mxu0 %v7811
        %9105 = vmatprep.subr.bf16.mxu0 %v7821
        %9106 = vmatpush1.bf16.msra.mxu0 %v7820
        %9107 = vmatprep.subr.bf16.mxu0 %v7830
        %9108 = vmatpush1.bf16.msra.mxu0 %v7829
        %9109 = vmatprep.subr.bf16.mxu0 %v7839
        %9110 = vmatpush1.bf16.msra.mxu0 %v7838
        %9111 = vmatprep.mubr.bf16.mxu0 %v4830
        %9112 = vmatmul.mubr.bf16.gmra.mrb[0].mxu0 %v4829
        %v9113 = vpop.f32.mrb[0].mxu0
        %v9114 = vadd.f32 %v9073, %v9113
        %v9115 = vpop.f32.mrb[0].mxu0
        %v9116 = vadd.f32 %v9075, %v9115
        %v9117 = vpop.f32.mrb[0].mxu0
        %v9118 = vpop.f32.mrb[0].mxu0
        %9119 = vdwg.mxu0
        %9120 = vmatprep.subr.bf16.mxu0 0
        %9121 = vmatpush1.bf16.msra.mxu0 %v7273
        %9122 = vmatprep.subr.bf16.mxu0 0
        %9123 = vmatpush1.bf16.msra.mxu0 %v7282
        %9124 = vmatprep.subr.bf16.mxu0 0
        %9125 = vmatpush1.bf16.msra.mxu0 %v7291
        %9126 = vmatprep.subr.bf16.mxu0 0
        %9127 = vmatpush1.bf16.msra.mxu0 %v7300
        %9128 = vmatprep.subr.bf16.mxu0 0
        %9129 = vmatpush1.bf16.msra.mxu0 %v7309
        %9130 = vmatprep.subr.bf16.mxu0 0
        %9131 = vmatpush1.bf16.msra.mxu0 %v7318
        %9132 = vmatprep.subr.bf16.mxu0 0
        %9133 = vmatpush1.bf16.msra.mxu0 %v7327
        %9134 = vmatprep.subr.bf16.mxu0 0
        %9135 = vmatpush1.bf16.msra.mxu0 %v7336
        %9136 = vmatprep.subr.bf16.mxu0 0
        %9137 = vmatpush1.bf16.msra.mxu0 %v7345
        %9138 = vmatprep.subr.bf16.mxu0 0
        %9139 = vmatpush1.bf16.msra.mxu0 %v7354
        %9140 = vmatprep.subr.bf16.mxu0 0
        %9141 = vmatpush1.bf16.msra.mxu0 %v7363
        %9142 = vmatprep.subr.bf16.mxu0 0
        %9143 = vmatpush1.bf16.msra.mxu0 %v7372
        %9144 = vmatprep.subr.bf16.mxu0 0
        %9145 = vmatpush1.bf16.msra.mxu0 %v7381
        %9146 = vmatprep.subr.bf16.mxu0 0
        %9147 = vmatpush1.bf16.msra.mxu0 %v7390
        %9148 = vmatprep.subr.bf16.mxu0 0
        %9149 = vmatpush1.bf16.msra.mxu0 %v7399
        %9150 = vmatprep.subr.bf16.mxu0 0
        %9151 = vmatpush1.bf16.msra.mxu0 %v7408
        %9152 = vmatprep.mubr.bf16.mxu0 %v4824
        %9153 = vmatmul.mubr.bf16.gmra.mrb[0].mxu0 %v4823
        %v9154 = vpop.f32.mrb[0].mxu0
        %v9155 = vadd.f32 %v8454, %v9154
        %v9156 = vpop.f32.mrb[0].mxu0
        %v9157 = vpop.f32.mrb[0].mxu0
        %v9158 = vpop.f32.mrb[0].mxu0
        %9159 = vdwg.mxu0
        %9160 = vmatprep.subr.bf16.mxu0 0
        %9161 = vmatpush1.bf16.msra.mxu0 %v7417
        %9162 = vmatprep.subr.bf16.mxu0 0
        %9163 = vmatpush1.bf16.msra.mxu0 %v7426
        %9164 = vmatprep.subr.bf16.mxu0 0
        %9165 = vmatpush1.bf16.msra.mxu0 %v7435
        %9166 = vmatprep.subr.bf16.mxu0 0
        %9167 = vmatpush1.bf16.msra.mxu0 %v7444
        %9168 = vmatprep.subr.bf16.mxu0 0
        %9169 = vmatpush1.bf16.msra.mxu0 %v7453
        %9170 = vmatprep.subr.bf16.mxu0 0
        %9171 = vmatpush1.bf16.msra.mxu0 %v7462
        %9172 = vmatprep.subr.bf16.mxu0 0
        %9173 = vmatpush1.bf16.msra.mxu0 %v7471
        %9174 = vmatprep.subr.bf16.mxu0 0
        %9175 = vmatpush1.bf16.msra.mxu0 %v7480
        %9176 = vmatprep.subr.bf16.mxu0 0
        %9177 = vmatpush1.bf16.msra.mxu0 %v7489
        %9178 = vmatprep.subr.bf16.mxu0 0
        %9179 = vmatpush1.bf16.msra.mxu0 %v7498
        %9180 = vmatprep.subr.bf16.mxu0 0
        %9181 = vmatpush1.bf16.msra.mxu0 %v7507
        %9182 = vmatprep.subr.bf16.mxu0 0
        %9183 = vmatpush1.bf16.msra.mxu0 %v7516
        %9184 = vmatprep.subr.bf16.mxu0 0
        %9185 = vmatpush1.bf16.msra.mxu0 %v7525
        %9186 = vmatprep.subr.bf16.mxu0 0
        %9187 = vmatpush1.bf16.msra.mxu0 %v7534
        %9188 = vmatprep.subr.bf16.mxu0 0
        %9189 = vmatpush1.bf16.msra.mxu0 %v7543
        %9190 = vmatprep.subr.bf16.mxu0 0
        %9191 = vmatpush1.bf16.msra.mxu0 %v7552
        %9192 = vmatprep.mubr.bf16.mxu0 %v4826
        %9193 = vmatmul.mubr.bf16.gmra.mrb[0].mxu0 %v4825
        %v9194 = vpop.f32.mrb[0].mxu0
        %v9195 = vadd.f32 %v9155, %v9194
        %v9196 = vpop.f32.mrb[0].mxu0
        %v9197 = vpop.f32.mrb[0].mxu0
        %v9198 = vpop.f32.mrb[0].mxu0
        %9199 = vdwg.mxu0
        %9200 = vmatprep.subr.bf16.mxu0 0
        %9201 = vmatpush1.bf16.msra.mxu0 %v7561
        %9202 = vmatprep.subr.bf16.mxu0 0
        %9203 = vmatpush1.bf16.msra.mxu0 %v7570
        %9204 = vmatprep.subr.bf16.mxu0 0
        %9205 = vmatpush1.bf16.msra.mxu0 %v7579
        %9206 = vmatprep.subr.bf16.mxu0 0
        %9207 = vmatpush1.bf16.msra.mxu0 %v7588
        %9208 = vmatprep.subr.bf16.mxu0 0
        %9209 = vmatpush1.bf16.msra.mxu0 %v7597
        %9210 = vmatprep.subr.bf16.mxu0 0
        %9211 = vmatpush1.bf16.msra.mxu0 %v7606
        %9212 = vmatprep.subr.bf16.mxu0 0
        %9213 = vmatpush1.bf16.msra.mxu0 %v7615
        %9214 = vmatprep.subr.bf16.mxu0 0
        %9215 = vmatpush1.bf16.msra.mxu0 %v7624
        %9216 = vmatprep.subr.bf16.mxu0 0
        %9217 = vmatpush1.bf16.msra.mxu0 %v7633
        %9218 = vmatprep.subr.bf16.mxu0 0
        %9219 = vmatpush1.bf16.msra.mxu0 %v7642
        %9220 = vmatprep.subr.bf16.mxu0 0
        %9221 = vmatpush1.bf16.msra.mxu0 %v7651
        %9222 = vmatprep.subr.bf16.mxu0 0
        %9223 = vmatpush1.bf16.msra.mxu0 %v7660
        %9224 = vmatprep.subr.bf16.mxu0 0
        %9225 = vmatpush1.bf16.msra.mxu0 %v7669
        %9226 = vmatprep.subr.bf16.mxu0 0
        %9227 = vmatpush1.bf16.msra.mxu0 %v7678
        %9228 = vmatprep.subr.bf16.mxu0 0
        %9229 = vmatpush1.bf16.msra.mxu0 %v7687
        %9230 = vmatprep.subr.bf16.mxu0 0
        %9231 = vmatpush1.bf16.msra.mxu0 %v7696
        %9232 = vmatprep.mubr.bf16.mxu0 %v4828
        %9233 = vmatmul.mubr.bf16.gmra.mrb[0].mxu0 %v4827
        %v9234 = vpop.f32.mrb[0].mxu0
        %v9235 = vadd.f32 %v9195, %v9234
        %v9236 = vpop.f32.mrb[0].mxu0
        %v9237 = vpop.f32.mrb[0].mxu0
        %v9238 = vpop.f32.mrb[0].mxu0
        %9239 = vdwg.mxu0
        %9240 = vmatprep.subr.bf16.mxu0 0
        %9241 = vmatpush1.bf16.msra.mxu0 %v7705
        %9242 = vmatprep.subr.bf16.mxu0 0
        %9243 = vmatpush1.bf16.msra.mxu0 %v7714
        %9244 = vmatprep.subr.bf16.mxu0 0
        %9245 = vmatpush1.bf16.msra.mxu0 %v7723
        %9246 = vmatprep.subr.bf16.mxu0 0
        %9247 = vmatpush1.bf16.msra.mxu0 %v7732
        %9248 = vmatprep.subr.bf16.mxu0 0
        %9249 = vmatpush1.bf16.msra.mxu0 %v7741
        %9250 = vmatprep.subr.bf16.mxu0 0
        %9251 = vmatpush1.bf16.msra.mxu0 %v7750
        %9252 = vmatprep.subr.bf16.mxu0 0
        %9253 = vmatpush1.bf16.msra.mxu0 %v7759
        %9254 = vmatprep.subr.bf16.mxu0 0
        %9255 = vmatpush1.bf16.msra.mxu0 %v7768
        %9256 = vmatprep.subr.bf16.mxu0 0
        %9257 = vmatpush1.bf16.msra.mxu0 %v7777
        %9258 = vmatprep.subr.bf16.mxu0 0
        %9259 = vmatpush1.bf16.msra.mxu0 %v7786
        %9260 = vmatprep.subr.bf16.mxu0 0
        %9261 = vmatpush1.bf16.msra.mxu0 %v7795
        %9262 = vmatprep.subr.bf16.mxu0 0
        %9263 = vmatpush1.bf16.msra.mxu0 %v7804
        %9264 = vmatprep.subr.bf16.mxu0 0
        %9265 = vmatpush1.bf16.msra.mxu0 %v7813
        %9266 = vmatprep.subr.bf16.mxu0 0
        %9267 = vmatpush1.bf16.msra.mxu0 %v7822
        %9268 = vmatprep.subr.bf16.mxu0 0
        %9269 = vmatpush1.bf16.msra.mxu0 %v7831
        %9270 = vmatprep.subr.bf16.mxu0 0
        %9271 = vmatpush1.bf16.msra.mxu0 %v7840
        %9272 = vmatprep.mubr.bf16.mxu0 %v4830
        %9273 = vmatmul.mubr.bf16.gmra.mrb[0].mxu0 %v4829
        %v9274 = vpop.f32.mrb[0].mxu0
        %v9275 = vadd.f32 %v9235, %v9274
        %v9276 = vpop.f32.mrb[0].mxu0
        %v9277 = vpop.f32.mrb[0].mxu0
        %v9278 = vpop.f32.mrb[0].mxu0
        %9279 = vdwg.mxu0
        %v9289 = vcombine.low %v8622, %v8624
        %v9290 = vcombine.low %v8786, %v8788
        %v9291 = vcombine.low %v8950, %v8952
        %v9292 = vcombine.low %v9114, %v9116
        %v9294 = vunpack.c.l.s4 1966171168
        %v9295 = vunpack.c.0.s8 %v9294
        %v9296 = vlaneseq
        %v9297 = vshrl.u32 %v9296, 7
        %v9298 = vsub.s32 %v9295, %v9297
        %v9299 = vrot.slane %v9289, %v9298
        %v9301 = vunpack.c.l.s4 1966171168
        %v9302 = vunpack.c.0.s8 %v9301
        %v9303 = vlaneseq
        %v9304 = vshrl.u32 %v9303, 7
        %v9305 = vsub.s32 %v9302, %v9304
        %v9306 = vrot.slane %v9290, %v9305
        %v9308 = vunpack.c.l.s4 1966171168
        %v9309 = vunpack.c.0.s8 %v9308
        %v9310 = vlaneseq
        %v9311 = vshrl.u32 %v9310, 7
        %v9312 = vsub.s32 %v9309, %v9311
        %v9313 = vrot.slane %v9291, %v9312
        %v9315 = vunpack.c.l.s4 1966171168
        %v9316 = vunpack.c.0.s8 %v9315
        %v9317 = vlaneseq
        %v9318 = vshrl.u32 %v9317, 7
        %v9319 = vsub.s32 %v9316, %v9318
        %v9320 = vrot.slane %v9292, %v9319
        %v9321 = vcombine.low %v9299, %v9306
        %v9322 = vcombine.low %v9313, %v9320
        %v9324 = vunpack.c.l.s4 1966171168
        %v9325 = vunpack.c.0.s8 %v9324
        %v9326 = vlaneseq
        %v9327 = vshrl.u32 %v9326, 7
        %v9328 = vsub.s32 %v9325, %v9327
        %v9329 = vrot.slane %v9321, %v9328
        %v9331 = vunpack.c.l.s4 1966171168
        %v9332 = vunpack.c.0.s8 %v9331
        %v9333 = vlaneseq
        %v9334 = vshrl.u32 %v9333, 7
        %v9335 = vsub.s32 %v9332, %v9334
        %v9336 = vrot.slane %v9322, %v9335
        %v9337 = vcombine.low %v9329, %v9336
        %v9339 = vunpack.c.l.s4 1966171168
        %v9340 = vunpack.c.0.s8 %v9339
        %v9341 = vlaneseq
        %v9342 = vshrl.u32 %v9341, 7
        %v9343 = vsub.s32 %v9340, %v9342
        %v9344 = vrot.slane %v9275, %v9343
        %v9346 = vunpack.c.l.s4 1966171168
        %v9347 = vunpack.c.0.s8 %v9346
        %v9348 = vlaneseq
        %v9349 = vshrl.u32 %v9348, 7
        %v9350 = vsub.s32 %v9347, %v9349
        %v9351 = vrot.slane %v9344, %v9350
        %9354 = vst [vmem:[%s787] sm:$0xff] %v9337
        %v9355 = vlaneseq
        %vm9356 = vcmp.ge.s32.totalorder %v9355, 0
        %vm9357 = vcmp.lt.s32.totalorder %v9355, 3
        %vm9358 = vmand %vm9356, %vm9357
        %9359 = vst.msk [vmem:[%s787 + $0x8] sm:$0x1] %vm9358, %v9351
        %v9360 = vld [vmem:[%s13] sm:$0xff]
        %v9361 = vld [vmem:[%s13 + $0x8] sm:$0xff]
        %v9362 = vld [vmem:[%s13 + $0x10] sm:$0xff]
        %v9363 = vld [vmem:[%s13 + $0x18] sm:$0xff]
        %v9364 = vld [vmem:[%s13 + $0x20] sm:$0xff]
        %v9365 = vld [vmem:[%s13 + $0x28] sm:$0xff]
        %v9366 = vld [vmem:[%s13 + $0x30] sm:$0xff]
        %v9367 = vld [vmem:[%s13 + $0x38] sm:$0xff]
        %v9368 = vld [vmem:[%s13 + $0x40] sm:$0xff]
        %v9369 = vld [vmem:[%s13 + $0x48] sm:$0xff]
        %v9370 = vld [vmem:[%s13 + $0x50] sm:$0xff]
        %v9371 = vld [vmem:[%s13 + $0x58] sm:$0xff]
        %v9372 = vld [vmem:[%s13 + $0x60] sm:$0xff]
        %v9373 = vld [vmem:[%s13 + $0x68] sm:$0xff]
        %v9374 = vld [vmem:[%s13 + $0x70] sm:$0xff]
        %v9375 = vld [vmem:[%s13 + $0x78] sm:$0xff]
        %v9376 = vld [vmem:[%s13 + $0x80] sm:$0xff]
        %v9377 = vld [vmem:[%s13 + $0x88] sm:$0xff]
        %v9378 = vld [vmem:[%s13 + $0x90] sm:$0xff]
        %v9379 = vld [vmem:[%s13 + $0x98] sm:$0xff]
        %v9380 = vld [vmem:[%s13 + $0xa0] sm:$0xff]
        %v9381 = vld [vmem:[%s13 + $0xa8] sm:$0xff]
        %v9382 = vld [vmem:[%s13 + $0xb0] sm:$0xff]
        %v9383 = vld [vmem:[%s13 + $0xb8] sm:$0xff]
        %v9384 = vld [vmem:[%s13 + $0xc0] sm:$0xff]
        %v9385 = vld [vmem:[%s13 + $0xc8] sm:$0xff]
        %v9386 = vld [vmem:[%s13 + $0xd0] sm:$0xff]
        %v9387 = vld [vmem:[%s13 + $0xd8] sm:$0xff]
        %v9388 = vld [vmem:[%s13 + $0xe0] sm:$0xff]
        %v9389 = vld [vmem:[%s13 + $0xe8] sm:$0xff]
        %v9390 = vld [vmem:[%s13 + $0xf0] sm:$0xff]
        %v9391 = vld [vmem:[%s13 + $0xf8] sm:$0xff]
        %v9392 = vld [vmem:[%s13 + $0x100] sm:$0xff]
        %v9393 = vld [vmem:[%s13 + $0x108] sm:$0xff]
        %v9394 = vld [vmem:[%s13 + $0x110] sm:$0xff]
        %v9395 = vld [vmem:[%s13 + $0x118] sm:$0xff]
        %v9396 = vld [vmem:[%s13 + $0x120] sm:$0xff]
        %v9397 = vld [vmem:[%s13 + $0x128] sm:$0xff]
        %v9398 = vld [vmem:[%s13 + $0x130] sm:$0xff]
        %v9399 = vld [vmem:[%s13 + $0x138] sm:$0xff]
        %v9400 = vld [vmem:[%s13 + $0x140] sm:$0xff]
        %v9401 = vld [vmem:[%s13 + $0x148] sm:$0xff]
        %v9402 = vld [vmem:[%s13 + $0x150] sm:$0xff]
        %v9403 = vld [vmem:[%s13 + $0x158] sm:$0xff]
        %v9404 = vld [vmem:[%s13 + $0x160] sm:$0xff]
        %v9405 = vld [vmem:[%s13 + $0x168] sm:$0xff]
        %v9406 = vld [vmem:[%s13 + $0x170] sm:$0xff]
        %v9407 = vld [vmem:[%s13 + $0x178] sm:$0xff]
        %v9408 = vld [vmem:[%s13 + $0x180] sm:$0xff]
        %v9409 = vld [vmem:[%s13 + $0x188] sm:$0xff]
        %v9410 = vld [vmem:[%s13 + $0x190] sm:$0xff]
        %v9411 = vld [vmem:[%s13 + $0x198] sm:$0xff]
        %v9412 = vld [vmem:[%s13 + $0x1a0] sm:$0xff]
        %v9413 = vld [vmem:[%s13 + $0x1a8] sm:$0xff]
        %v9414 = vld [vmem:[%s13 + $0x1b0] sm:$0xff]
        %v9415 = vld [vmem:[%s13 + $0x1b8] sm:$0xff]
        %v9416 = vld [vmem:[%s13 + $0x1c0] sm:$0xff]
        %v9417 = vld [vmem:[%s13 + $0x1c8] sm:$0xff]
        %v9418 = vld [vmem:[%s13 + $0x1d0] sm:$0xff]
        %v9419 = vld [vmem:[%s13 + $0x1d8] sm:$0xff]
        %v9420 = vld [vmem:[%s13 + $0x1e0] sm:$0xff]
        %v9421 = vld [vmem:[%s13 + $0x1e8] sm:$0xff]
        %v9422 = vld [vmem:[%s13 + $0x1f0] sm:$0xff]
        %v9423 = vld [vmem:[%s13 + $0x1f8] sm:$0xff]
        %v9424 = vld [vmem:[%s13 + $0x200] sm:$0xff]
        %v9425 = vld [vmem:[%s13 + $0x208] sm:$0xff]
        %v9426 = vld [vmem:[%s13 + $0x210] sm:$0xff]
        %v9427 = vld [vmem:[%s13 + $0x218] sm:$0xff]
        %v9428 = vld [vmem:[%s13 + $0x220] sm:$0xff]
        %v9429 = vld [vmem:[%s13 + $0x228] sm:$0xff]
        %v9430 = vld [vmem:[%s13 + $0x230] sm:$0xff]
        %v9431 = vld [vmem:[%s13 + $0x238] sm:$0xff]
        %v9432 = vld [vmem:[%s13 + $0x240] sm:$0xff]
        %v9433 = vld [vmem:[%s13 + $0x248] sm:$0xff]
        %v9434 = vld [vmem:[%s13 + $0x250] sm:$0xff]
        %v9435 = vld [vmem:[%s13 + $0x258] sm:$0xff]
        %v9436 = vld [vmem:[%s13 + $0x260] sm:$0xff]
        %v9437 = vld [vmem:[%s13 + $0x268] sm:$0xff]
        %v9438 = vld [vmem:[%s13 + $0x270] sm:$0xff]
        %v9439 = vld [vmem:[%s13 + $0x278] sm:$0xff]
        %v9440 = vld [vmem:[%s13 + $0x280] sm:$0xff]
        %v9441 = vld [vmem:[%s13 + $0x288] sm:$0xff]
        %v9442 = vld [vmem:[%s13 + $0x290] sm:$0xff]
        %v9443 = vld [vmem:[%s13 + $0x298] sm:$0xff]
        %v9444 = vld [vmem:[%s13 + $0x2a0] sm:$0xff]
        %v9445 = vld [vmem:[%s13 + $0x2a8] sm:$0xff]
        %v9446 = vld [vmem:[%s13 + $0x2b0] sm:$0xff]
        %v9447 = vld [vmem:[%s13 + $0x2b8] sm:$0xff]
        %v9448 = vld [vmem:[%s13 + $0x2c0] sm:$0xff]
        %v9449 = vld [vmem:[%s13 + $0x2c8] sm:$0xff]
        %v9450 = vld [vmem:[%s13 + $0x2d0] sm:$0xff]
        %v9451 = vld [vmem:[%s13 + $0x2d8] sm:$0xff]
        %v9452 = vld [vmem:[%s13 + $0x2e0] sm:$0xff]
        %v9453 = vld [vmem:[%s13 + $0x2e8] sm:$0xff]
        %v9454 = vld [vmem:[%s13 + $0x2f0] sm:$0xff]
        %v9455 = vld [vmem:[%s13 + $0x2f8] sm:$0xff]
        %v9456 = vld [vmem:[%s13 + $0x300] sm:$0xff]
        %v9457 = vld [vmem:[%s13 + $0x308] sm:$0xff]
        %v9458 = vld [vmem:[%s13 + $0x310] sm:$0xff]
        %v9459 = vld [vmem:[%s13 + $0x318] sm:$0xff]
        %v9460 = vld [vmem:[%s13 + $0x320] sm:$0xff]
        %v9461 = vld [vmem:[%s13 + $0x328] sm:$0xff]
        %v9462 = vld [vmem:[%s13 + $0x330] sm:$0xff]
        %v9463 = vld [vmem:[%s13 + $0x338] sm:$0xff]
        %v9464 = vld [vmem:[%s13 + $0x340] sm:$0xff]
        %v9465 = vld [vmem:[%s13 + $0x348] sm:$0xff]
        %v9466 = vld [vmem:[%s13 + $0x350] sm:$0xff]
        %v9467 = vld [vmem:[%s13 + $0x358] sm:$0xff]
        %v9468 = vld [vmem:[%s13 + $0x360] sm:$0xff]
        %v9469 = vld [vmem:[%s13 + $0x368] sm:$0xff]
        %v9470 = vld [vmem:[%s13 + $0x370] sm:$0xff]
        %v9471 = vld [vmem:[%s13 + $0x378] sm:$0xff]
        %v9472 = vld [vmem:[%s13 + $0x380] sm:$0xff]
        %v9473 = vld [vmem:[%s13 + $0x388] sm:$0xff]
        %v9474 = vld [vmem:[%s13 + $0x390] sm:$0xff]
        %v9475 = vld [vmem:[%s13 + $0x398] sm:$0xff]
        %v9476 = vld [vmem:[%s13 + $0x3a0] sm:$0xff]
        %v9477 = vld [vmem:[%s13 + $0x3a8] sm:$0xff]
        %v9478 = vld [vmem:[%s13 + $0x3b0] sm:$0xff]
        %v9479 = vld [vmem:[%s13 + $0x3b8] sm:$0xff]
        %v9480 = vld [vmem:[%s13 + $0x3c0] sm:$0xff]
        %v9481 = vld [vmem:[%s13 + $0x3c8] sm:$0xff]
        %v9482 = vld [vmem:[%s13 + $0x3d0] sm:$0xff]
        %v9483 = vld [vmem:[%s13 + $0x3d8] sm:$0xff]
        %v9484 = vld [vmem:[%s13 + $0x3e0] sm:$0xff]
        %v9485 = vld [vmem:[%s13 + $0x3e8] sm:$0xff]
        %v9486 = vld [vmem:[%s13 + $0x3f0] sm:$0xff]
        %v9487 = vld [vmem:[%s13 + $0x3f8] sm:$0xff]
        %v9488 = vld [vmem:[%s13 + $0x400] sm:$0xff]
        %v9489 = vld [vmem:[%s13 + $0x408] sm:$0xff]
        %v9490 = vld [vmem:[%s13 + $0x410] sm:$0xff]
        %v9491 = vld [vmem:[%s13 + $0x418] sm:$0xff]
        %v9492 = vld [vmem:[%s13 + $0x420] sm:$0xff]
        %v9493 = vld [vmem:[%s13 + $0x428] sm:$0xff]
        %v9494 = vld [vmem:[%s13 + $0x430] sm:$0xff]
        %v9495 = vld [vmem:[%s13 + $0x438] sm:$0xff]
        %v9496 = vld [vmem:[%s13 + $0x440] sm:$0xff]
        %v9497 = vld [vmem:[%s13 + $0x448] sm:$0xff]
        %v9498 = vld [vmem:[%s13 + $0x450] sm:$0xff]
        %v9499 = vld [vmem:[%s13 + $0x458] sm:$0xff]
        %v9500 = vld [vmem:[%s13 + $0x460] sm:$0xff]
        %v9501 = vld [vmem:[%s13 + $0x468] sm:$0xff]
        %v9502 = vld [vmem:[%s13 + $0x470] sm:$0xff]
        %v9503 = vld [vmem:[%s13 + $0x478] sm:$0xff]
        %v9504 = vld [vmem:[%s13 + $0x480] sm:$0xff]
        %v9505 = vld [vmem:[%s13 + $0x488] sm:$0xff]
        %v9506 = vld [vmem:[%s13 + $0x490] sm:$0xff]
        %v9507 = vld [vmem:[%s13 + $0x498] sm:$0xff]
        %v9508 = vld [vmem:[%s13 + $0x4a0] sm:$0xff]
        %v9509 = vld [vmem:[%s13 + $0x4a8] sm:$0xff]
        %v9510 = vld [vmem:[%s13 + $0x4b0] sm:$0xff]
        %v9511 = vld [vmem:[%s13 + $0x4b8] sm:$0xff]
        %v9512 = vld [vmem:[%s13 + $0x4c0] sm:$0xff]
        %v9513 = vld [vmem:[%s13 + $0x4c8] sm:$0xff]
        %v9514 = vld [vmem:[%s13 + $0x4d0] sm:$0xff]
        %v9515 = vld [vmem:[%s13 + $0x4d8] sm:$0xff]
        %v9516 = vld [vmem:[%s13 + $0x4e0] sm:$0xff]
        %v9517 = vld [vmem:[%s13 + $0x4e8] sm:$0xff]
        %v9518 = vld [vmem:[%s13 + $0x4f0] sm:$0xff]
        %v9519 = vld [vmem:[%s13 + $0x4f8] sm:$0xff]
        %v9520 = vld [vmem:[%s13 + $0x500] sm:$0xff]
        %v9521 = vld [vmem:[%s13 + $0x508] sm:$0xff]
        %v9522 = vld [vmem:[%s13 + $0x510] sm:$0xff]
        %v9523 = vld [vmem:[%s13 + $0x518] sm:$0xff]
        %v9524 = vld [vmem:[%s13 + $0x520] sm:$0xff]
        %v9525 = vld [vmem:[%s13 + $0x528] sm:$0xff]
        %v9526 = vld [vmem:[%s13 + $0x530] sm:$0xff]
        %v9527 = vld [vmem:[%s13 + $0x538] sm:$0xff]
        %v9528 = vld [vmem:[%s13 + $0x540] sm:$0xff]
        %v9529 = vld [vmem:[%s13 + $0x548] sm:$0xff]
        %v9530 = vld [vmem:[%s13 + $0x550] sm:$0xff]
        %v9531 = vld [vmem:[%s13 + $0x558] sm:$0xff]
        %v9532 = vld [vmem:[%s13 + $0x560] sm:$0xff]
        %v9533 = vld [vmem:[%s13 + $0x568] sm:$0xff]
        %v9534 = vld [vmem:[%s13 + $0x570] sm:$0xff]
        %v9535 = vld [vmem:[%s13 + $0x578] sm:$0xff]
        %v9536 = vld [vmem:[%s13 + $0x580] sm:$0xff]
        %v9537 = vld [vmem:[%s13 + $0x588] sm:$0xff]
        %v9538 = vld [vmem:[%s13 + $0x590] sm:$0xff]
        %v9539 = vld [vmem:[%s13 + $0x598] sm:$0xff]
        %v9540 = vld [vmem:[%s13 + $0x5a0] sm:$0xff]
        %v9541 = vld [vmem:[%s13 + $0x5a8] sm:$0xff]
        %v9542 = vld [vmem:[%s13 + $0x5b0] sm:$0xff]
        %v9543 = vld [vmem:[%s13 + $0x5b8] sm:$0xff]
        %v9544 = vld [vmem:[%s13 + $0x5c0] sm:$0xff]
        %v9545 = vld [vmem:[%s13 + $0x5c8] sm:$0xff]
        %v9546 = vld [vmem:[%s13 + $0x5d0] sm:$0xff]
        %v9547 = vld [vmem:[%s13 + $0x5d8] sm:$0xff]
        %v9548 = vld [vmem:[%s13 + $0x5e0] sm:$0xff]
        %v9549 = vld [vmem:[%s13 + $0x5e8] sm:$0xff]
        %v9550 = vld [vmem:[%s13 + $0x5f0] sm:$0xff]
        %v9551 = vld [vmem:[%s13 + $0x5f8] sm:$0xff]
        %v9552 = vld [vmem:[%s13 + $0x600] sm:$0xff]
        %v9553 = vld [vmem:[%s13 + $0x608] sm:$0xff]
        %v9554 = vld [vmem:[%s13 + $0x610] sm:$0xff]
        %v9555 = vld [vmem:[%s13 + $0x618] sm:$0xff]
        %v9556 = vld [vmem:[%s13 + $0x620] sm:$0xff]
        %v9557 = vld [vmem:[%s13 + $0x628] sm:$0xff]
        %v9558 = vld [vmem:[%s13 + $0x630] sm:$0xff]
        %v9559 = vld [vmem:[%s13 + $0x638] sm:$0xff]
        %v9560 = vld [vmem:[%s13 + $0x640] sm:$0xff]
        %v9561 = vld [vmem:[%s13 + $0x648] sm:$0xff]
        %v9562 = vld [vmem:[%s13 + $0x650] sm:$0xff]
        %v9563 = vld [vmem:[%s13 + $0x658] sm:$0xff]
        %v9564 = vld [vmem:[%s13 + $0x660] sm:$0xff]
        %v9565 = vld [vmem:[%s13 + $0x668] sm:$0xff]
        %v9566 = vld [vmem:[%s13 + $0x670] sm:$0xff]
        %v9567 = vld [vmem:[%s13 + $0x678] sm:$0xff]
        %v9568 = vld [vmem:[%s13 + $0x680] sm:$0xff]
        %v9569 = vld [vmem:[%s13 + $0x688] sm:$0xff]
        %v9570 = vld [vmem:[%s13 + $0x690] sm:$0xff]
        %v9571 = vld [vmem:[%s13 + $0x698] sm:$0xff]
        %v9572 = vld [vmem:[%s13 + $0x6a0] sm:$0xff]
        %v9573 = vld [vmem:[%s13 + $0x6a8] sm:$0xff]
        %v9574 = vld [vmem:[%s13 + $0x6b0] sm:$0xff]
        %v9575 = vld [vmem:[%s13 + $0x6b8] sm:$0xff]
        %v9576 = vld [vmem:[%s13 + $0x6c0] sm:$0xff]
        %v9577 = vld [vmem:[%s13 + $0x6c8] sm:$0xff]
        %v9578 = vld [vmem:[%s13 + $0x6d0] sm:$0xff]
        %v9579 = vld [vmem:[%s13 + $0x6d8] sm:$0xff]
        %v9580 = vld [vmem:[%s13 + $0x6e0] sm:$0xff]
        %v9581 = vld [vmem:[%s13 + $0x6e8] sm:$0xff]
        %v9582 = vld [vmem:[%s13 + $0x6f0] sm:$0xff]
        %v9583 = vld [vmem:[%s13 + $0x6f8] sm:$0xff]
        %v9584 = vld [vmem:[%s13 + $0x700] sm:$0xff]
        %v9585 = vld [vmem:[%s13 + $0x708] sm:$0xff]
        %v9586 = vld [vmem:[%s13 + $0x710] sm:$0xff]
        %v9587 = vld [vmem:[%s13 + $0x718] sm:$0xff]
        %v9588 = vld [vmem:[%s13 + $0x720] sm:$0xff]
        %v9589 = vld [vmem:[%s13 + $0x728] sm:$0xff]
        %v9590 = vld [vmem:[%s13 + $0x730] sm:$0xff]
        %v9591 = vld [vmem:[%s13 + $0x738] sm:$0xff]
        %v9592 = vld [vmem:[%s13 + $0x740] sm:$0xff]
        %v9593 = vld [vmem:[%s13 + $0x748] sm:$0xff]
        %v9594 = vld [vmem:[%s13 + $0x750] sm:$0xff]
        %v9595 = vld [vmem:[%s13 + $0x758] sm:$0xff]
        %v9596 = vld [vmem:[%s13 + $0x760] sm:$0xff]
        %v9597 = vld [vmem:[%s13 + $0x768] sm:$0xff]
        %v9598 = vld [vmem:[%s13 + $0x770] sm:$0xff]
        %v9599 = vld [vmem:[%s13 + $0x778] sm:$0xff]
        %v9600 = vld [vmem:[%s13 + $0x780] sm:$0xff]
        %v9601 = vld [vmem:[%s13 + $0x788] sm:$0xff]
        %v9602 = vld [vmem:[%s13 + $0x790] sm:$0xff]
        %v9603 = vld [vmem:[%s13 + $0x798] sm:$0xff]
        %v9604 = vld [vmem:[%s13 + $0x7a0] sm:$0xff]
        %v9605 = vld [vmem:[%s13 + $0x7a8] sm:$0xff]
        %v9606 = vld [vmem:[%s13 + $0x7b0] sm:$0xff]
        %v9607 = vld [vmem:[%s13 + $0x7b8] sm:$0xff]
        %v9608 = vld [vmem:[%s13 + $0x7c0] sm:$0xff]
        %v9609 = vld [vmem:[%s13 + $0x7c8] sm:$0xff]
        %v9610 = vld [vmem:[%s13 + $0x7d0] sm:$0xff]
        %v9611 = vld [vmem:[%s13 + $0x7d8] sm:$0xff]
        %v9612 = vld [vmem:[%s13 + $0x7e0] sm:$0xff]
        %v9613 = vld [vmem:[%s13 + $0x7e8] sm:$0xff]
        %v9614 = vld [vmem:[%s13 + $0x7f0] sm:$0xff]
        %v9615 = vld [vmem:[%s13 + $0x7f8] sm:$0xff]
        %v9616 = vld [vmem:[%s14] sm:$0xf]
        %v9873 = vunpack.c.l.b16 %v9360
        %v9874 = vunpack.c.h.b16 %v9360
        %v9875 = vunpack.c.l.b16 %v9361
        %v9876 = vunpack.c.h.b16 %v9361
        %v9877 = vunpack.c.l.b16 %v9362
        %v9878 = vunpack.c.h.b16 %v9362
        %v9879 = vunpack.c.l.b16 %v9363
        %v9880 = vunpack.c.h.b16 %v9363
        %v9881 = vunpack.c.l.b16 %v9364
        %v9882 = vunpack.c.h.b16 %v9364
        %v9883 = vunpack.c.l.b16 %v9365
        %v9884 = vunpack.c.h.b16 %v9365
        %v9885 = vunpack.c.l.b16 %v9366
        %v9886 = vunpack.c.h.b16 %v9366
        %v9887 = vunpack.c.l.b16 %v9367
        %v9888 = vunpack.c.h.b16 %v9367
        %v9889 = vunpack.c.l.b16 %v9368
        %v9890 = vunpack.c.h.b16 %v9368
        %v9891 = vunpack.c.l.b16 %v9369
        %v9892 = vunpack.c.h.b16 %v9369
        %v9893 = vunpack.c.l.b16 %v9370
        %v9894 = vunpack.c.h.b16 %v9370
        %v9895 = vunpack.c.l.b16 %v9371
        %v9896 = vunpack.c.h.b16 %v9371
        %v9897 = vunpack.c.l.b16 %v9372
        %v9898 = vunpack.c.h.b16 %v9372
        %v9899 = vunpack.c.l.b16 %v9373
        %v9900 = vunpack.c.h.b16 %v9373
        %v9901 = vunpack.c.l.b16 %v9374
        %v9902 = vunpack.c.h.b16 %v9374
        %v9903 = vunpack.c.l.b16 %v9375
        %v9904 = vunpack.c.h.b16 %v9375
        %v9905 = vunpack.c.l.b16 %v9376
        %v9906 = vunpack.c.h.b16 %v9376
        %v9907 = vunpack.c.l.b16 %v9377
        %v9908 = vunpack.c.h.b16 %v9377
        %v9909 = vunpack.c.l.b16 %v9378
        %v9910 = vunpack.c.h.b16 %v9378
        %v9911 = vunpack.c.l.b16 %v9379
        %v9912 = vunpack.c.h.b16 %v9379
        %v9913 = vunpack.c.l.b16 %v9380
        %v9914 = vunpack.c.h.b16 %v9380
        %v9915 = vunpack.c.l.b16 %v9381
        %v9916 = vunpack.c.h.b16 %v9381
        %v9917 = vunpack.c.l.b16 %v9382
        %v9918 = vunpack.c.h.b16 %v9382
        %v9919 = vunpack.c.l.b16 %v9383
        %v9920 = vunpack.c.h.b16 %v9383
        %v9921 = vunpack.c.l.b16 %v9384
        %v9922 = vunpack.c.h.b16 %v9384
        %v9923 = vunpack.c.l.b16 %v9385
        %v9924 = vunpack.c.h.b16 %v9385
        %v9925 = vunpack.c.l.b16 %v9386
        %v9926 = vunpack.c.h.b16 %v9386
        %v9927 = vunpack.c.l.b16 %v9387
        %v9928 = vunpack.c.h.b16 %v9387
        %v9929 = vunpack.c.l.b16 %v9388
        %v9930 = vunpack.c.h.b16 %v9388
        %v9931 = vunpack.c.l.b16 %v9389
        %v9932 = vunpack.c.h.b16 %v9389
        %v9933 = vunpack.c.l.b16 %v9390
        %v9934 = vunpack.c.h.b16 %v9390
        %v9935 = vunpack.c.l.b16 %v9391
        %v9936 = vunpack.c.h.b16 %v9391
        %v9937 = vunpack.c.l.b16 %v9392
        %v9938 = vunpack.c.h.b16 %v9392
        %v9939 = vunpack.c.l.b16 %v9393
        %v9940 = vunpack.c.h.b16 %v9393
        %v9941 = vunpack.c.l.b16 %v9394
        %v9942 = vunpack.c.h.b16 %v9394
        %v9943 = vunpack.c.l.b16 %v9395
        %v9944 = vunpack.c.h.b16 %v9395
        %v9945 = vunpack.c.l.b16 %v9396
        %v9946 = vunpack.c.h.b16 %v9396
        %v9947 = vunpack.c.l.b16 %v9397
        %v9948 = vunpack.c.h.b16 %v9397
        %v9949 = vunpack.c.l.b16 %v9398
        %v9950 = vunpack.c.h.b16 %v9398
        %v9951 = vunpack.c.l.b16 %v9399
        %v9952 = vunpack.c.h.b16 %v9399
        %v9953 = vunpack.c.l.b16 %v9400
        %v9954 = vunpack.c.h.b16 %v9400
        %v9955 = vunpack.c.l.b16 %v9401
        %v9956 = vunpack.c.h.b16 %v9401
        %v9957 = vunpack.c.l.b16 %v9402
        %v9958 = vunpack.c.h.b16 %v9402
        %v9959 = vunpack.c.l.b16 %v9403
        %v9960 = vunpack.c.h.b16 %v9403
        %v9961 = vunpack.c.l.b16 %v9404
        %v9962 = vunpack.c.h.b16 %v9404
        %v9963 = vunpack.c.l.b16 %v9405
        %v9964 = vunpack.c.h.b16 %v9405
        %v9965 = vunpack.c.l.b16 %v9406
        %v9966 = vunpack.c.h.b16 %v9406
        %v9967 = vunpack.c.l.b16 %v9407
        %v9968 = vunpack.c.h.b16 %v9407
        %v9969 = vunpack.c.l.b16 %v9408
        %v9970 = vunpack.c.h.b16 %v9408
        %v9971 = vunpack.c.l.b16 %v9409
        %v9972 = vunpack.c.h.b16 %v9409
        %v9973 = vunpack.c.l.b16 %v9410
        %v9974 = vunpack.c.h.b16 %v9410
        %v9975 = vunpack.c.l.b16 %v9411
        %v9976 = vunpack.c.h.b16 %v9411
        %v9977 = vunpack.c.l.b16 %v9412
        %v9978 = vunpack.c.h.b16 %v9412
        %v9979 = vunpack.c.l.b16 %v9413
        %v9980 = vunpack.c.h.b16 %v9413
        %v9981 = vunpack.c.l.b16 %v9414
        %v9982 = vunpack.c.h.b16 %v9414
        %v9983 = vunpack.c.l.b16 %v9415
        %v9984 = vunpack.c.h.b16 %v9415
        %v9985 = vunpack.c.l.b16 %v9416
        %v9986 = vunpack.c.h.b16 %v9416
        %v9987 = vunpack.c.l.b16 %v9417
        %v9988 = vunpack.c.h.b16 %v9417
        %v9989 = vunpack.c.l.b16 %v9418
        %v9990 = vunpack.c.h.b16 %v9418
        %v9991 = vunpack.c.l.b16 %v9419
        %v9992 = vunpack.c.h.b16 %v9419
        %v9993 = vunpack.c.l.b16 %v9420
        %v9994 = vunpack.c.h.b16 %v9420
        %v9995 = vunpack.c.l.b16 %v9421
        %v9996 = vunpack.c.h.b16 %v9421
        %v9997 = vunpack.c.l.b16 %v9422
        %v9998 = vunpack.c.h.b16 %v9422
        %v9999 = vunpack.c.l.b16 %v9423
        %v10000 = vunpack.c.h.b16 %v9423
        %v10001 = vunpack.c.l.b16 %v9424
        %v10002 = vunpack.c.h.b16 %v9424
        %v10003 = vunpack.c.l.b16 %v9425
        %v10004 = vunpack.c.h.b16 %v9425
        %v10005 = vunpack.c.l.b16 %v9426
        %v10006 = vunpack.c.h.b16 %v9426
        %v10007 = vunpack.c.l.b16 %v9427
        %v10008 = vunpack.c.h.b16 %v9427
        %v10009 = vunpack.c.l.b16 %v9428
        %v10010 = vunpack.c.h.b16 %v9428
        %v10011 = vunpack.c.l.b16 %v9429
        %v10012 = vunpack.c.h.b16 %v9429
        %v10013 = vunpack.c.l.b16 %v9430
        %v10014 = vunpack.c.h.b16 %v9430
        %v10015 = vunpack.c.l.b16 %v9431
        %v10016 = vunpack.c.h.b16 %v9431
        %v10017 = vunpack.c.l.b16 %v9432
        %v10018 = vunpack.c.h.b16 %v9432
        %v10019 = vunpack.c.l.b16 %v9433
        %v10020 = vunpack.c.h.b16 %v9433
        %v10021 = vunpack.c.l.b16 %v9434
        %v10022 = vunpack.c.h.b16 %v9434
        %v10023 = vunpack.c.l.b16 %v9435
        %v10024 = vunpack.c.h.b16 %v9435
        %v10025 = vunpack.c.l.b16 %v9436
        %v10026 = vunpack.c.h.b16 %v9436
        %v10027 = vunpack.c.l.b16 %v9437
        %v10028 = vunpack.c.h.b16 %v9437
        %v10029 = vunpack.c.l.b16 %v9438
        %v10030 = vunpack.c.h.b16 %v9438
        %v10031 = vunpack.c.l.b16 %v9439
        %v10032 = vunpack.c.h.b16 %v9439
        %v10033 = vunpack.c.l.b16 %v9440
        %v10034 = vunpack.c.h.b16 %v9440
        %v10035 = vunpack.c.l.b16 %v9441
        %v10036 = vunpack.c.h.b16 %v9441
        %v10037 = vunpack.c.l.b16 %v9442
        %v10038 = vunpack.c.h.b16 %v9442
        %v10039 = vunpack.c.l.b16 %v9443
        %v10040 = vunpack.c.h.b16 %v9443
        %v10041 = vunpack.c.l.b16 %v9444
        %v10042 = vunpack.c.h.b16 %v9444
        %v10043 = vunpack.c.l.b16 %v9445
        %v10044 = vunpack.c.h.b16 %v9445
        %v10045 = vunpack.c.l.b16 %v9446
        %v10046 = vunpack.c.h.b16 %v9446
        %v10047 = vunpack.c.l.b16 %v9447
        %v10048 = vunpack.c.h.b16 %v9447
        %v10049 = vunpack.c.l.b16 %v9448
        %v10050 = vunpack.c.h.b16 %v9448
        %v10051 = vunpack.c.l.b16 %v9449
        %v10052 = vunpack.c.h.b16 %v9449
        %v10053 = vunpack.c.l.b16 %v9450
        %v10054 = vunpack.c.h.b16 %v9450
        %v10055 = vunpack.c.l.b16 %v9451
        %v10056 = vunpack.c.h.b16 %v9451
        %v10057 = vunpack.c.l.b16 %v9452
        %v10058 = vunpack.c.h.b16 %v9452
        %v10059 = vunpack.c.l.b16 %v9453
        %v10060 = vunpack.c.h.b16 %v9453
        %v10061 = vunpack.c.l.b16 %v9454
        %v10062 = vunpack.c.h.b16 %v9454
        %v10063 = vunpack.c.l.b16 %v9455
        %v10064 = vunpack.c.h.b16 %v9455
        %v10065 = vunpack.c.l.b16 %v9456
        %v10066 = vunpack.c.h.b16 %v9456
        %v10067 = vunpack.c.l.b16 %v9457
        %v10068 = vunpack.c.h.b16 %v9457
        %v10069 = vunpack.c.l.b16 %v9458
        %v10070 = vunpack.c.h.b16 %v9458
        %v10071 = vunpack.c.l.b16 %v9459
        %v10072 = vunpack.c.h.b16 %v9459
        %v10073 = vunpack.c.l.b16 %v9460
        %v10074 = vunpack.c.h.b16 %v9460
        %v10075 = vunpack.c.l.b16 %v9461
        %v10076 = vunpack.c.h.b16 %v9461
        %v10077 = vunpack.c.l.b16 %v9462
        %v10078 = vunpack.c.h.b16 %v9462
        %v10079 = vunpack.c.l.b16 %v9463
        %v10080 = vunpack.c.h.b16 %v9463
        %v10081 = vunpack.c.l.b16 %v9464
        %v10082 = vunpack.c.h.b16 %v9464
        %v10083 = vunpack.c.l.b16 %v9465
        %v10084 = vunpack.c.h.b16 %v9465
        %v10085 = vunpack.c.l.b16 %v9466
        %v10086 = vunpack.c.h.b16 %v9466
        %v10087 = vunpack.c.l.b16 %v9467
        %v10088 = vunpack.c.h.b16 %v9467
        %v10089 = vunpack.c.l.b16 %v9468
        %v10090 = vunpack.c.h.b16 %v9468
        %v10091 = vunpack.c.l.b16 %v9469
        %v10092 = vunpack.c.h.b16 %v9469
        %v10093 = vunpack.c.l.b16 %v9470
        %v10094 = vunpack.c.h.b16 %v9470
        %v10095 = vunpack.c.l.b16 %v9471
        %v10096 = vunpack.c.h.b16 %v9471
        %v10097 = vunpack.c.l.b16 %v9472
        %v10098 = vunpack.c.h.b16 %v9472
        %v10099 = vunpack.c.l.b16 %v9473
        %v10100 = vunpack.c.h.b16 %v9473
        %v10101 = vunpack.c.l.b16 %v9474
        %v10102 = vunpack.c.h.b16 %v9474
        %v10103 = vunpack.c.l.b16 %v9475
        %v10104 = vunpack.c.h.b16 %v9475
        %v10105 = vunpack.c.l.b16 %v9476
        %v10106 = vunpack.c.h.b16 %v9476
        %v10107 = vunpack.c.l.b16 %v9477
        %v10108 = vunpack.c.h.b16 %v9477
        %v10109 = vunpack.c.l.b16 %v9478
        %v10110 = vunpack.c.h.b16 %v9478
        %v10111 = vunpack.c.l.b16 %v9479
        %v10112 = vunpack.c.h.b16 %v9479
        %v10113 = vunpack.c.l.b16 %v9480
        %v10114 = vunpack.c.h.b16 %v9480
        %v10115 = vunpack.c.l.b16 %v9481
        %v10116 = vunpack.c.h.b16 %v9481
        %v10117 = vunpack.c.l.b16 %v9482
        %v10118 = vunpack.c.h.b16 %v9482
        %v10119 = vunpack.c.l.b16 %v9483
        %v10120 = vunpack.c.h.b16 %v9483
        %v10121 = vunpack.c.l.b16 %v9484
        %v10122 = vunpack.c.h.b16 %v9484
        %v10123 = vunpack.c.l.b16 %v9485
        %v10124 = vunpack.c.h.b16 %v9485
        %v10125 = vunpack.c.l.b16 %v9486
        %v10126 = vunpack.c.h.b16 %v9486
        %v10127 = vunpack.c.l.b16 %v9487
        %v10128 = vunpack.c.h.b16 %v9487
        %v10129 = vunpack.c.l.b16 %v9488
        %v10130 = vunpack.c.h.b16 %v9488
        %v10131 = vunpack.c.l.b16 %v9489
        %v10132 = vunpack.c.h.b16 %v9489
        %v10133 = vunpack.c.l.b16 %v9490
        %v10134 = vunpack.c.h.b16 %v9490
        %v10135 = vunpack.c.l.b16 %v9491
        %v10136 = vunpack.c.h.b16 %v9491
        %v10137 = vunpack.c.l.b16 %v9492
        %v10138 = vunpack.c.h.b16 %v9492
        %v10139 = vunpack.c.l.b16 %v9493
        %v10140 = vunpack.c.h.b16 %v9493
        %v10141 = vunpack.c.l.b16 %v9494
        %v10142 = vunpack.c.h.b16 %v9494
        %v10143 = vunpack.c.l.b16 %v9495
        %v10144 = vunpack.c.h.b16 %v9495
        %v10145 = vunpack.c.l.b16 %v9496
        %v10146 = vunpack.c.h.b16 %v9496
        %v10147 = vunpack.c.l.b16 %v9497
        %v10148 = vunpack.c.h.b16 %v9497
        %v10149 = vunpack.c.l.b16 %v9498
        %v10150 = vunpack.c.h.b16 %v9498
        %v10151 = vunpack.c.l.b16 %v9499
        %v10152 = vunpack.c.h.b16 %v9499
        %v10153 = vunpack.c.l.b16 %v9500
        %v10154 = vunpack.c.h.b16 %v9500
        %v10155 = vunpack.c.l.b16 %v9501
        %v10156 = vunpack.c.h.b16 %v9501
        %v10157 = vunpack.c.l.b16 %v9502
        %v10158 = vunpack.c.h.b16 %v9502
        %v10159 = vunpack.c.l.b16 %v9503
        %v10160 = vunpack.c.h.b16 %v9503
        %v10161 = vunpack.c.l.b16 %v9504
        %v10162 = vunpack.c.h.b16 %v9504
        %v10163 = vunpack.c.l.b16 %v9505
        %v10164 = vunpack.c.h.b16 %v9505
        %v10165 = vunpack.c.l.b16 %v9506
        %v10166 = vunpack.c.h.b16 %v9506
        %v10167 = vunpack.c.l.b16 %v9507
        %v10168 = vunpack.c.h.b16 %v9507
        %v10169 = vunpack.c.l.b16 %v9508
        %v10170 = vunpack.c.h.b16 %v9508
        %v10171 = vunpack.c.l.b16 %v9509
        %v10172 = vunpack.c.h.b16 %v9509
        %v10173 = vunpack.c.l.b16 %v9510
        %v10174 = vunpack.c.h.b16 %v9510
        %v10175 = vunpack.c.l.b16 %v9511
        %v10176 = vunpack.c.h.b16 %v9511
        %v10177 = vunpack.c.l.b16 %v9512
        %v10178 = vunpack.c.h.b16 %v9512
        %v10179 = vunpack.c.l.b16 %v9513
        %v10180 = vunpack.c.h.b16 %v9513
        %v10181 = vunpack.c.l.b16 %v9514
        %v10182 = vunpack.c.h.b16 %v9514
        %v10183 = vunpack.c.l.b16 %v9515
        %v10184 = vunpack.c.h.b16 %v9515
        %v10185 = vunpack.c.l.b16 %v9516
        %v10186 = vunpack.c.h.b16 %v9516
        %v10187 = vunpack.c.l.b16 %v9517
        %v10188 = vunpack.c.h.b16 %v9517
        %v10189 = vunpack.c.l.b16 %v9518
        %v10190 = vunpack.c.h.b16 %v9518
        %v10191 = vunpack.c.l.b16 %v9519
        %v10192 = vunpack.c.h.b16 %v9519
        %v10193 = vunpack.c.l.b16 %v9520
        %v10194 = vunpack.c.h.b16 %v9520
        %v10195 = vunpack.c.l.b16 %v9521
        %v10196 = vunpack.c.h.b16 %v9521
        %v10197 = vunpack.c.l.b16 %v9522
        %v10198 = vunpack.c.h.b16 %v9522
        %v10199 = vunpack.c.l.b16 %v9523
        %v10200 = vunpack.c.h.b16 %v9523
        %v10201 = vunpack.c.l.b16 %v9524
        %v10202 = vunpack.c.h.b16 %v9524
        %v10203 = vunpack.c.l.b16 %v9525
        %v10204 = vunpack.c.h.b16 %v9525
        %v10205 = vunpack.c.l.b16 %v9526
        %v10206 = vunpack.c.h.b16 %v9526
        %v10207 = vunpack.c.l.b16 %v9527
        %v10208 = vunpack.c.h.b16 %v9527
        %v10209 = vunpack.c.l.b16 %v9528
        %v10210 = vunpack.c.h.b16 %v9528
        %v10211 = vunpack.c.l.b16 %v9529
        %v10212 = vunpack.c.h.b16 %v9529
        %v10213 = vunpack.c.l.b16 %v9530
        %v10214 = vunpack.c.h.b16 %v9530
        %v10215 = vunpack.c.l.b16 %v9531
        %v10216 = vunpack.c.h.b16 %v9531
        %v10217 = vunpack.c.l.b16 %v9532
        %v10218 = vunpack.c.h.b16 %v9532
        %v10219 = vunpack.c.l.b16 %v9533
        %v10220 = vunpack.c.h.b16 %v9533
        %v10221 = vunpack.c.l.b16 %v9534
        %v10222 = vunpack.c.h.b16 %v9534
        %v10223 = vunpack.c.l.b16 %v9535
        %v10224 = vunpack.c.h.b16 %v9535
        %v10225 = vunpack.c.l.b16 %v9536
        %v10226 = vunpack.c.h.b16 %v9536
        %v10227 = vunpack.c.l.b16 %v9537
        %v10228 = vunpack.c.h.b16 %v9537
        %v10229 = vunpack.c.l.b16 %v9538
        %v10230 = vunpack.c.h.b16 %v9538
        %v10231 = vunpack.c.l.b16 %v9539
        %v10232 = vunpack.c.h.b16 %v9539
        %v10233 = vunpack.c.l.b16 %v9540
        %v10234 = vunpack.c.h.b16 %v9540
        %v10235 = vunpack.c.l.b16 %v9541
        %v10236 = vunpack.c.h.b16 %v9541
        %v10237 = vunpack.c.l.b16 %v9542
        %v10238 = vunpack.c.h.b16 %v9542
        %v10239 = vunpack.c.l.b16 %v9543
        %v10240 = vunpack.c.h.b16 %v9543
        %v10241 = vunpack.c.l.b16 %v9544
        %v10242 = vunpack.c.h.b16 %v9544
        %v10243 = vunpack.c.l.b16 %v9545
        %v10244 = vunpack.c.h.b16 %v9545
        %v10245 = vunpack.c.l.b16 %v9546
        %v10246 = vunpack.c.h.b16 %v9546
        %v10247 = vunpack.c.l.b16 %v9547
        %v10248 = vunpack.c.h.b16 %v9547
        %v10249 = vunpack.c.l.b16 %v9548
        %v10250 = vunpack.c.h.b16 %v9548
        %v10251 = vunpack.c.l.b16 %v9549
        %v10252 = vunpack.c.h.b16 %v9549
        %v10253 = vunpack.c.l.b16 %v9550
        %v10254 = vunpack.c.h.b16 %v9550
        %v10255 = vunpack.c.l.b16 %v9551
        %v10256 = vunpack.c.h.b16 %v9551
        %v10257 = vunpack.c.l.b16 %v9552
        %v10258 = vunpack.c.h.b16 %v9552
        %v10259 = vunpack.c.l.b16 %v9553
        %v10260 = vunpack.c.h.b16 %v9553
        %v10261 = vunpack.c.l.b16 %v9554
        %v10262 = vunpack.c.h.b16 %v9554
        %v10263 = vunpack.c.l.b16 %v9555
        %v10264 = vunpack.c.h.b16 %v9555
        %v10265 = vunpack.c.l.b16 %v9556
        %v10266 = vunpack.c.h.b16 %v9556
        %v10267 = vunpack.c.l.b16 %v9557
        %v10268 = vunpack.c.h.b16 %v9557
        %v10269 = vunpack.c.l.b16 %v9558
        %v10270 = vunpack.c.h.b16 %v9558
        %v10271 = vunpack.c.l.b16 %v9559
        %v10272 = vunpack.c.h.b16 %v9559
        %v10273 = vunpack.c.l.b16 %v9560
        %v10274 = vunpack.c.h.b16 %v9560
        %v10275 = vunpack.c.l.b16 %v9561
        %v10276 = vunpack.c.h.b16 %v9561
        %v10277 = vunpack.c.l.b16 %v9562
        %v10278 = vunpack.c.h.b16 %v9562
        %v10279 = vunpack.c.l.b16 %v9563
        %v10280 = vunpack.c.h.b16 %v9563
        %v10281 = vunpack.c.l.b16 %v9564
        %v10282 = vunpack.c.h.b16 %v9564
        %v10283 = vunpack.c.l.b16 %v9565
        %v10284 = vunpack.c.h.b16 %v9565
        %v10285 = vunpack.c.l.b16 %v9566
        %v10286 = vunpack.c.h.b16 %v9566
        %v10287 = vunpack.c.l.b16 %v9567
        %v10288 = vunpack.c.h.b16 %v9567
        %v10289 = vunpack.c.l.b16 %v9568
        %v10290 = vunpack.c.h.b16 %v9568
        %v10291 = vunpack.c.l.b16 %v9569
        %v10292 = vunpack.c.h.b16 %v9569
        %v10293 = vunpack.c.l.b16 %v9570
        %v10294 = vunpack.c.h.b16 %v9570
        %v10295 = vunpack.c.l.b16 %v9571
        %v10296 = vunpack.c.h.b16 %v9571
        %v10297 = vunpack.c.l.b16 %v9572
        %v10298 = vunpack.c.h.b16 %v9572
        %v10299 = vunpack.c.l.b16 %v9573
        %v10300 = vunpack.c.h.b16 %v9573
        %v10301 = vunpack.c.l.b16 %v9574
        %v10302 = vunpack.c.h.b16 %v9574
        %v10303 = vunpack.c.l.b16 %v9575
        %v10304 = vunpack.c.h.b16 %v9575
        %v10305 = vunpack.c.l.b16 %v9576
        %v10306 = vunpack.c.h.b16 %v9576
        %v10307 = vunpack.c.l.b16 %v9577
        %v10308 = vunpack.c.h.b16 %v9577
        %v10309 = vunpack.c.l.b16 %v9578
        %v10310 = vunpack.c.h.b16 %v9578
        %v10311 = vunpack.c.l.b16 %v9579
        %v10312 = vunpack.c.h.b16 %v9579
        %v10313 = vunpack.c.l.b16 %v9580
        %v10314 = vunpack.c.h.b16 %v9580
        %v10315 = vunpack.c.l.b16 %v9581
        %v10316 = vunpack.c.h.b16 %v9581
        %v10317 = vunpack.c.l.b16 %v9582
        %v10318 = vunpack.c.h.b16 %v9582
        %v10319 = vunpack.c.l.b16 %v9583
        %v10320 = vunpack.c.h.b16 %v9583
        %v10321 = vunpack.c.l.b16 %v9584
        %v10322 = vunpack.c.h.b16 %v9584
        %v10323 = vunpack.c.l.b16 %v9585
        %v10324 = vunpack.c.h.b16 %v9585
        %v10325 = vunpack.c.l.b16 %v9586
        %v10326 = vunpack.c.h.b16 %v9586
        %v10327 = vunpack.c.l.b16 %v9587
        %v10328 = vunpack.c.h.b16 %v9587
        %v10329 = vunpack.c.l.b16 %v9588
        %v10330 = vunpack.c.h.b16 %v9588
        %v10331 = vunpack.c.l.b16 %v9589
        %v10332 = vunpack.c.h.b16 %v9589
        %v10333 = vunpack.c.l.b16 %v9590
        %v10334 = vunpack.c.h.b16 %v9590
        %v10335 = vunpack.c.l.b16 %v9591
        %v10336 = vunpack.c.h.b16 %v9591
        %v10337 = vunpack.c.l.b16 %v9592
        %v10338 = vunpack.c.h.b16 %v9592
        %v10339 = vunpack.c.l.b16 %v9593
        %v10340 = vunpack.c.h.b16 %v9593
        %v10341 = vunpack.c.l.b16 %v9594
        %v10342 = vunpack.c.h.b16 %v9594
        %v10343 = vunpack.c.l.b16 %v9595
        %v10344 = vunpack.c.h.b16 %v9595
        %v10345 = vunpack.c.l.b16 %v9596
        %v10346 = vunpack.c.h.b16 %v9596
        %v10347 = vunpack.c.l.b16 %v9597
        %v10348 = vunpack.c.h.b16 %v9597
        %v10349 = vunpack.c.l.b16 %v9598
        %v10350 = vunpack.c.h.b16 %v9598
        %v10351 = vunpack.c.l.b16 %v9599
        %v10352 = vunpack.c.h.b16 %v9599
        %v10353 = vunpack.c.l.b16 %v9600
        %v10354 = vunpack.c.h.b16 %v9600
        %v10355 = vunpack.c.l.b16 %v9601
        %v10356 = vunpack.c.h.b16 %v9601
        %v10357 = vunpack.c.l.b16 %v9602
        %v10358 = vunpack.c.h.b16 %v9602
        %v10359 = vunpack.c.l.b16 %v9603
        %v10360 = vunpack.c.h.b16 %v9603
        %v10361 = vunpack.c.l.b16 %v9604
        %v10362 = vunpack.c.h.b16 %v9604
        %v10363 = vunpack.c.l.b16 %v9605
        %v10364 = vunpack.c.h.b16 %v9605
        %v10365 = vunpack.c.l.b16 %v9606
        %v10366 = vunpack.c.h.b16 %v9606
        %v10367 = vunpack.c.l.b16 %v9607
        %v10368 = vunpack.c.h.b16 %v9607
        %v10369 = vunpack.c.l.b16 %v9608
        %v10370 = vunpack.c.h.b16 %v9608
        %v10371 = vunpack.c.l.b16 %v9609
        %v10372 = vunpack.c.h.b16 %v9609
        %v10373 = vunpack.c.l.b16 %v9610
        %v10374 = vunpack.c.h.b16 %v9610
        %v10375 = vunpack.c.l.b16 %v9611
        %v10376 = vunpack.c.h.b16 %v9611
        %v10377 = vunpack.c.l.b16 %v9612
        %v10378 = vunpack.c.h.b16 %v9612
        %v10379 = vunpack.c.l.b16 %v9613
        %v10380 = vunpack.c.h.b16 %v9613
        %v10381 = vunpack.c.l.b16 %v9614
        %v10382 = vunpack.c.h.b16 %v9614
        %v10383 = vunpack.c.l.b16 %v9615
        %v10384 = vunpack.c.h.b16 %v9615
        %v10385 = vpack.c.b16 %v9877, %v9873
        %v10386 = vpack.c.b16 %v9878, %v9874
        %v10387 = vpack.c.b16 %v9879, %v9875
        %v10388 = vpack.c.b16 %v9880, %v9876
        %v10389 = vpack.c.b16 %v9885, %v9881
        %v10390 = vpack.c.b16 %v9886, %v9882
        %v10391 = vpack.c.b16 %v9887, %v9883
        %v10392 = vpack.c.b16 %v9888, %v9884
        %v10393 = vpack.c.b16 %v9893, %v9889
        %v10394 = vpack.c.b16 %v9894, %v9890
        %v10395 = vpack.c.b16 %v9895, %v9891
        %v10396 = vpack.c.b16 %v9896, %v9892
        %v10397 = vpack.c.b16 %v9901, %v9897
        %v10398 = vpack.c.b16 %v9902, %v9898
        %v10399 = vpack.c.b16 %v9903, %v9899
        %v10400 = vpack.c.b16 %v9904, %v9900
        %v10401 = vpack.c.b16 %v9909, %v9905
        %v10402 = vpack.c.b16 %v9910, %v9906
        %v10403 = vpack.c.b16 %v9911, %v9907
        %v10404 = vpack.c.b16 %v9912, %v9908
        %v10405 = vpack.c.b16 %v9917, %v9913
        %v10406 = vpack.c.b16 %v9918, %v9914
        %v10407 = vpack.c.b16 %v9919, %v9915
        %v10408 = vpack.c.b16 %v9920, %v9916
        %v10409 = vpack.c.b16 %v9925, %v9921
        %v10410 = vpack.c.b16 %v9926, %v9922
        %v10411 = vpack.c.b16 %v9927, %v9923
        %v10412 = vpack.c.b16 %v9928, %v9924
        %v10413 = vpack.c.b16 %v9933, %v9929
        %v10414 = vpack.c.b16 %v9934, %v9930
        %v10415 = vpack.c.b16 %v9935, %v9931
        %v10416 = vpack.c.b16 %v9936, %v9932
        %v10417 = vpack.c.b16 %v9941, %v9937
        %v10418 = vpack.c.b16 %v9942, %v9938
        %v10419 = vpack.c.b16 %v9943, %v9939
        %v10420 = vpack.c.b16 %v9944, %v9940
        %v10421 = vpack.c.b16 %v9949, %v9945
        %v10422 = vpack.c.b16 %v9950, %v9946
        %v10423 = vpack.c.b16 %v9951, %v9947
        %v10424 = vpack.c.b16 %v9952, %v9948
        %v10425 = vpack.c.b16 %v9957, %v9953
        %v10426 = vpack.c.b16 %v9958, %v9954
        %v10427 = vpack.c.b16 %v9959, %v9955
        %v10428 = vpack.c.b16 %v9960, %v9956
        %v10429 = vpack.c.b16 %v9965, %v9961
        %v10430 = vpack.c.b16 %v9966, %v9962
        %v10431 = vpack.c.b16 %v9967, %v9963
        %v10432 = vpack.c.b16 %v9968, %v9964
        %v10433 = vpack.c.b16 %v9973, %v9969
        %v10434 = vpack.c.b16 %v9974, %v9970
        %v10435 = vpack.c.b16 %v9975, %v9971
        %v10436 = vpack.c.b16 %v9976, %v9972
        %v10437 = vpack.c.b16 %v9981, %v9977
        %v10438 = vpack.c.b16 %v9982, %v9978
        %v10439 = vpack.c.b16 %v9983, %v9979
        %v10440 = vpack.c.b16 %v9984, %v9980
        %v10441 = vpack.c.b16 %v9989, %v9985
        %v10442 = vpack.c.b16 %v9990, %v9986
        %v10443 = vpack.c.b16 %v9991, %v9987
        %v10444 = vpack.c.b16 %v9992, %v9988
        %v10445 = vpack.c.b16 %v9997, %v9993
        %v10446 = vpack.c.b16 %v9998, %v9994
        %v10447 = vpack.c.b16 %v9999, %v9995
        %v10448 = vpack.c.b16 %v10000, %v9996
        %v10449 = vpack.c.b16 %v10005, %v10001
        %v10450 = vpack.c.b16 %v10006, %v10002
        %v10451 = vpack.c.b16 %v10007, %v10003
        %v10452 = vpack.c.b16 %v10008, %v10004
        %v10453 = vpack.c.b16 %v10013, %v10009
        %v10454 = vpack.c.b16 %v10014, %v10010
        %v10455 = vpack.c.b16 %v10015, %v10011
        %v10456 = vpack.c.b16 %v10016, %v10012
        %v10457 = vpack.c.b16 %v10021, %v10017
        %v10458 = vpack.c.b16 %v10022, %v10018
        %v10459 = vpack.c.b16 %v10023, %v10019
        %v10460 = vpack.c.b16 %v10024, %v10020
        %v10461 = vpack.c.b16 %v10029, %v10025
        %v10462 = vpack.c.b16 %v10030, %v10026
        %v10463 = vpack.c.b16 %v10031, %v10027
        %v10464 = vpack.c.b16 %v10032, %v10028
        %v10465 = vpack.c.b16 %v10037, %v10033
        %v10466 = vpack.c.b16 %v10038, %v10034
        %v10467 = vpack.c.b16 %v10039, %v10035
        %v10468 = vpack.c.b16 %v10040, %v10036
        %v10469 = vpack.c.b16 %v10045, %v10041
        %v10470 = vpack.c.b16 %v10046, %v10042
        %v10471 = vpack.c.b16 %v10047, %v10043
        %v10472 = vpack.c.b16 %v10048, %v10044
        %v10473 = vpack.c.b16 %v10053, %v10049
        %v10474 = vpack.c.b16 %v10054, %v10050
        %v10475 = vpack.c.b16 %v10055, %v10051
        %v10476 = vpack.c.b16 %v10056, %v10052
        %v10477 = vpack.c.b16 %v10061, %v10057
        %v10478 = vpack.c.b16 %v10062, %v10058
        %v10479 = vpack.c.b16 %v10063, %v10059
        %v10480 = vpack.c.b16 %v10064, %v10060
        %v10481 = vpack.c.b16 %v10069, %v10065
        %v10482 = vpack.c.b16 %v10070, %v10066
        %v10483 = vpack.c.b16 %v10071, %v10067
        %v10484 = vpack.c.b16 %v10072, %v10068
        %v10485 = vpack.c.b16 %v10077, %v10073
        %v10486 = vpack.c.b16 %v10078, %v10074
        %v10487 = vpack.c.b16 %v10079, %v10075
        %v10488 = vpack.c.b16 %v10080, %v10076
        %v10489 = vpack.c.b16 %v10085, %v10081
        %v10490 = vpack.c.b16 %v10086, %v10082
        %v10491 = vpack.c.b16 %v10087, %v10083
        %v10492 = vpack.c.b16 %v10088, %v10084
        %v10493 = vpack.c.b16 %v10093, %v10089
        %v10494 = vpack.c.b16 %v10094, %v10090
        %v10495 = vpack.c.b16 %v10095, %v10091
        %v10496 = vpack.c.b16 %v10096, %v10092
        %v10497 = vpack.c.b16 %v10101, %v10097
        %v10498 = vpack.c.b16 %v10102, %v10098
        %v10499 = vpack.c.b16 %v10103, %v10099
        %v10500 = vpack.c.b16 %v10104, %v10100
        %v10501 = vpack.c.b16 %v10109, %v10105
        %v10502 = vpack.c.b16 %v10110, %v10106
        %v10503 = vpack.c.b16 %v10111, %v10107
        %v10504 = vpack.c.b16 %v10112, %v10108
        %v10505 = vpack.c.b16 %v10117, %v10113
        %v10506 = vpack.c.b16 %v10118, %v10114
        %v10507 = vpack.c.b16 %v10119, %v10115
        %v10508 = vpack.c.b16 %v10120, %v10116
        %v10509 = vpack.c.b16 %v10125, %v10121
        %v10510 = vpack.c.b16 %v10126, %v10122
        %v10511 = vpack.c.b16 %v10127, %v10123
        %v10512 = vpack.c.b16 %v10128, %v10124
        %v10513 = vpack.c.b16 %v10133, %v10129
        %v10514 = vpack.c.b16 %v10134, %v10130
        %v10515 = vpack.c.b16 %v10135, %v10131
        %v10516 = vpack.c.b16 %v10136, %v10132
        %v10517 = vpack.c.b16 %v10141, %v10137
        %v10518 = vpack.c.b16 %v10142, %v10138
        %v10519 = vpack.c.b16 %v10143, %v10139
        %v10520 = vpack.c.b16 %v10144, %v10140
        %v10521 = vpack.c.b16 %v10149, %v10145
        %v10522 = vpack.c.b16 %v10150, %v10146
        %v10523 = vpack.c.b16 %v10151, %v10147
        %v10524 = vpack.c.b16 %v10152, %v10148
        %v10525 = vpack.c.b16 %v10157, %v10153
        %v10526 = vpack.c.b16 %v10158, %v10154
        %v10527 = vpack.c.b16 %v10159, %v10155
        %v10528 = vpack.c.b16 %v10160, %v10156
        %v10529 = vpack.c.b16 %v10165, %v10161
        %v10530 = vpack.c.b16 %v10166, %v10162
        %v10531 = vpack.c.b16 %v10167, %v10163
        %v10532 = vpack.c.b16 %v10168, %v10164
        %v10533 = vpack.c.b16 %v10173, %v10169
        %v10534 = vpack.c.b16 %v10174, %v10170
        %v10535 = vpack.c.b16 %v10175, %v10171
        %v10536 = vpack.c.b16 %v10176, %v10172
        %v10537 = vpack.c.b16 %v10181, %v10177
        %v10538 = vpack.c.b16 %v10182, %v10178
        %v10539 = vpack.c.b16 %v10183, %v10179
        %v10540 = vpack.c.b16 %v10184, %v10180
        %v10541 = vpack.c.b16 %v10189, %v10185
        %v10542 = vpack.c.b16 %v10190, %v10186
        %v10543 = vpack.c.b16 %v10191, %v10187
        %v10544 = vpack.c.b16 %v10192, %v10188
        %v10545 = vpack.c.b16 %v10197, %v10193
        %v10546 = vpack.c.b16 %v10198, %v10194
        %v10547 = vpack.c.b16 %v10199, %v10195
        %v10548 = vpack.c.b16 %v10200, %v10196
        %v10549 = vpack.c.b16 %v10205, %v10201
        %v10550 = vpack.c.b16 %v10206, %v10202
        %v10551 = vpack.c.b16 %v10207, %v10203
        %v10552 = vpack.c.b16 %v10208, %v10204
        %v10553 = vpack.c.b16 %v10213, %v10209
        %v10554 = vpack.c.b16 %v10214, %v10210
        %v10555 = vpack.c.b16 %v10215, %v10211
        %v10556 = vpack.c.b16 %v10216, %v10212
        %v10557 = vpack.c.b16 %v10221, %v10217
        %v10558 = vpack.c.b16 %v10222, %v10218
        %v10559 = vpack.c.b16 %v10223, %v10219
        %v10560 = vpack.c.b16 %v10224, %v10220
        %v10561 = vpack.c.b16 %v10229, %v10225
        %v10562 = vpack.c.b16 %v10230, %v10226
        %v10563 = vpack.c.b16 %v10231, %v10227
        %v10564 = vpack.c.b16 %v10232, %v10228
        %v10565 = vpack.c.b16 %v10237, %v10233
        %v10566 = vpack.c.b16 %v10238, %v10234
        %v10567 = vpack.c.b16 %v10239, %v10235
        %v10568 = vpack.c.b16 %v10240, %v10236
        %v10569 = vpack.c.b16 %v10245, %v10241
        %v10570 = vpack.c.b16 %v10246, %v10242
        %v10571 = vpack.c.b16 %v10247, %v10243
        %v10572 = vpack.c.b16 %v10248, %v10244
        %v10573 = vpack.c.b16 %v10253, %v10249
        %v10574 = vpack.c.b16 %v10254, %v10250
        %v10575 = vpack.c.b16 %v10255, %v10251
        %v10576 = vpack.c.b16 %v10256, %v10252
        %v10577 = vpack.c.b16 %v10261, %v10257
        %v10578 = vpack.c.b16 %v10262, %v10258
        %v10579 = vpack.c.b16 %v10263, %v10259
        %v10580 = vpack.c.b16 %v10264, %v10260
        %v10581 = vpack.c.b16 %v10269, %v10265
        %v10582 = vpack.c.b16 %v10270, %v10266
        %v10583 = vpack.c.b16 %v10271, %v10267
        %v10584 = vpack.c.b16 %v10272, %v10268
        %v10585 = vpack.c.b16 %v10277, %v10273
        %v10586 = vpack.c.b16 %v10278, %v10274
        %v10587 = vpack.c.b16 %v10279, %v10275
        %v10588 = vpack.c.b16 %v10280, %v10276
        %v10589 = vpack.c.b16 %v10285, %v10281
        %v10590 = vpack.c.b16 %v10286, %v10282
        %v10591 = vpack.c.b16 %v10287, %v10283
        %v10592 = vpack.c.b16 %v10288, %v10284
        %v10593 = vpack.c.b16 %v10293, %v10289
        %v10594 = vpack.c.b16 %v10294, %v10290
        %v10595 = vpack.c.b16 %v10295, %v10291
        %v10596 = vpack.c.b16 %v10296, %v10292
        %v10597 = vpack.c.b16 %v10301, %v10297
        %v10598 = vpack.c.b16 %v10302, %v10298
        %v10599 = vpack.c.b16 %v10303, %v10299
        %v10600 = vpack.c.b16 %v10304, %v10300
        %v10601 = vpack.c.b16 %v10309, %v10305
        %v10602 = vpack.c.b16 %v10310, %v10306
        %v10603 = vpack.c.b16 %v10311, %v10307
        %v10604 = vpack.c.b16 %v10312, %v10308
        %v10605 = vpack.c.b16 %v10317, %v10313
        %v10606 = vpack.c.b16 %v10318, %v10314
        %v10607 = vpack.c.b16 %v10319, %v10315
        %v10608 = vpack.c.b16 %v10320, %v10316
        %v10609 = vpack.c.b16 %v10325, %v10321
        %v10610 = vpack.c.b16 %v10326, %v10322
        %v10611 = vpack.c.b16 %v10327, %v10323
        %v10612 = vpack.c.b16 %v10328, %v10324
        %v10613 = vpack.c.b16 %v10333, %v10329
        %v10614 = vpack.c.b16 %v10334, %v10330
        %v10615 = vpack.c.b16 %v10335, %v10331
        %v10616 = vpack.c.b16 %v10336, %v10332
        %v10617 = vpack.c.b16 %v10341, %v10337
        %v10618 = vpack.c.b16 %v10342, %v10338
        %v10619 = vpack.c.b16 %v10343, %v10339
        %v10620 = vpack.c.b16 %v10344, %v10340
        %v10621 = vpack.c.b16 %v10349, %v10345
        %v10622 = vpack.c.b16 %v10350, %v10346
        %v10623 = vpack.c.b16 %v10351, %v10347
        %v10624 = vpack.c.b16 %v10352, %v10348
        %v10625 = vpack.c.b16 %v10357, %v10353
        %v10626 = vpack.c.b16 %v10358, %v10354
        %v10627 = vpack.c.b16 %v10359, %v10355
        %v10628 = vpack.c.b16 %v10360, %v10356
        %v10629 = vpack.c.b16 %v10365, %v10361
        %v10630 = vpack.c.b16 %v10366, %v10362
        %v10631 = vpack.c.b16 %v10367, %v10363
        %v10632 = vpack.c.b16 %v10368, %v10364
        %v10633 = vpack.c.b16 %v10373, %v10369
        %v10634 = vpack.c.b16 %v10374, %v10370
        %v10635 = vpack.c.b16 %v10375, %v10371
        %v10636 = vpack.c.b16 %v10376, %v10372
        %v10637 = vpack.c.b16 %v10381, %v10377
        %v10638 = vpack.c.b16 %v10382, %v10378
        %v10639 = vpack.c.b16 %v10383, %v10379
        %v10640 = vpack.c.b16 %v10384, %v10380
        %v10898 = vlaneseq
        %v10899 = vshrl.u32 %v10898, 7
        %v10900 = vsub.s32 0, %v10899
        %v10901 = vrot.slane %v9616, %v10900
        %v10902 = vlaneseq
        %v10903 = vshrl.u32 %v10902, 7
        %v10904 = vsub.s32 1, %v10903
        %v10905 = vrot.slane %v9616, %v10904
        %v10906 = vlaneseq
        %v10907 = vshrl.u32 %v10906, 7
        %v10908 = vsub.s32 2, %v10907
        %v10909 = vrot.slane %v9616, %v10908
        %v10910 = vlaneseq
        %v10911 = vshrl.u32 %v10910, 7
        %v10912 = vsub.s32 3, %v10911
        %v10913 = vrot.slane %v9616, %v10912
        %10918 = vmatprep.subr.bf16.mxu0 %v10386
        %10919 = vmatpush1.bf16.msra.mxu0 %v10385
        %10920 = vmatprep.subr.bf16.mxu0 %v10390
        %10921 = vmatpush1.bf16.msra.mxu0 %v10389
        %10922 = vmatprep.subr.bf16.mxu0 %v10394
        %10923 = vmatpush1.bf16.msra.mxu0 %v10393
        %10924 = vmatprep.subr.bf16.mxu0 %v10398
        %10925 = vmatpush1.bf16.msra.mxu0 %v10397
        %10926 = vmatprep.subr.bf16.mxu0 %v10402
        %10927 = vmatpush1.bf16.msra.mxu0 %v10401
        %10928 = vmatprep.subr.bf16.mxu0 %v10406
        %10929 = vmatpush1.bf16.msra.mxu0 %v10405
        %10930 = vmatprep.subr.bf16.mxu0 %v10410
        %10931 = vmatpush1.bf16.msra.mxu0 %v10409
        %10932 = vmatprep.subr.bf16.mxu0 %v10414
        %10933 = vmatpush1.bf16.msra.mxu0 %v10413
        %10934 = vmatprep.subr.bf16.mxu0 %v10418
        %10935 = vmatpush1.bf16.msra.mxu0 %v10417
        %10936 = vmatprep.subr.bf16.mxu0 %v10422
        %10937 = vmatpush1.bf16.msra.mxu0 %v10421
        %10938 = vmatprep.subr.bf16.mxu0 %v10426
        %10939 = vmatpush1.bf16.msra.mxu0 %v10425
        %10940 = vmatprep.subr.bf16.mxu0 %v10430
        %10941 = vmatpush1.bf16.msra.mxu0 %v10429
        %10942 = vmatprep.subr.bf16.mxu0 %v10434
        %10943 = vmatpush1.bf16.msra.mxu0 %v10433
        %10944 = vmatprep.subr.bf16.mxu0 %v10438
        %10945 = vmatpush1.bf16.msra.mxu0 %v10437
        %10946 = vmatprep.subr.bf16.mxu0 %v10442
        %10947 = vmatpush1.bf16.msra.mxu0 %v10441
        %10948 = vmatprep.subr.bf16.mxu0 %v10446
        %10949 = vmatpush1.bf16.msra.mxu0 %v10445
        %10950 = vmatprep.mubr.bf16.mxu0 %v4824
        %10951 = vmatmul.mubr.bf16.gmra.mrb[0].mxu0 %v4823
        %v10952 = vpop.f32.mrb[0].mxu0
        %v10953 = vadd.f32 %v10901, %v10952
        %v10954 = vpop.f32.mrb[0].mxu0
        %v10955 = vadd.f32 %v10905, %v10954
        %v10956 = vpop.f32.mrb[0].mxu0
        %v10957 = vpop.f32.mrb[0].mxu0
        %10958 = vdwg.mxu0
        %10959 = vmatprep.subr.bf16.mxu0 %v10450
        %10960 = vmatpush1.bf16.msra.mxu0 %v10449
        %10961 = vmatprep.subr.bf16.mxu0 %v10454
        %10962 = vmatpush1.bf16.msra.mxu0 %v10453
        %10963 = vmatprep.subr.bf16.mxu0 %v10458
        %10964 = vmatpush1.bf16.msra.mxu0 %v10457
        %10965 = vmatprep.subr.bf16.mxu0 %v10462
        %10966 = vmatpush1.bf16.msra.mxu0 %v10461
        %10967 = vmatprep.subr.bf16.mxu0 %v10466
        %10968 = vmatpush1.bf16.msra.mxu0 %v10465
        %10969 = vmatprep.subr.bf16.mxu0 %v10470
        %10970 = vmatpush1.bf16.msra.mxu0 %v10469
        %10971 = vmatprep.subr.bf16.mxu0 %v10474
        %10972 = vmatpush1.bf16.msra.mxu0 %v10473
        %10973 = vmatprep.subr.bf16.mxu0 %v10478
        %10974 = vmatpush1.bf16.msra.mxu0 %v10477
        %10975 = vmatprep.subr.bf16.mxu0 %v10482
        %10976 = vmatpush1.bf16.msra.mxu0 %v10481
        %10977 = vmatprep.subr.bf16.mxu0 %v10486
        %10978 = vmatpush1.bf16.msra.mxu0 %v10485
        %10979 = vmatprep.subr.bf16.mxu0 %v10490
        %10980 = vmatpush1.bf16.msra.mxu0 %v10489
        %10981 = vmatprep.subr.bf16.mxu0 %v10494
        %10982 = vmatpush1.bf16.msra.mxu0 %v10493
        %10983 = vmatprep.subr.bf16.mxu0 %v10498
        %10984 = vmatpush1.bf16.msra.mxu0 %v10497
        %10985 = vmatprep.subr.bf16.mxu0 %v10502
        %10986 = vmatpush1.bf16.msra.mxu0 %v10501
        %10987 = vmatprep.subr.bf16.mxu0 %v10506
        %10988 = vmatpush1.bf16.msra.mxu0 %v10505
        %10989 = vmatprep.subr.bf16.mxu0 %v10510
        %10990 = vmatpush1.bf16.msra.mxu0 %v10509
        %10991 = vmatprep.mubr.bf16.mxu0 %v4826
        %10992 = vmatmul.mubr.bf16.gmra.mrb[0].mxu0 %v4825
        %v10993 = vpop.f32.mrb[0].mxu0
        %v10994 = vadd.f32 %v10953, %v10993
        %v10995 = vpop.f32.mrb[0].mxu0
        %v10996 = vadd.f32 %v10955, %v10995
        %v10997 = vpop.f32.mrb[0].mxu0
        %v10998 = vpop.f32.mrb[0].mxu0
        %10999 = vdwg.mxu0
        %11000 = vmatprep.subr.bf16.mxu0 %v10514
        %11001 = vmatpush1.bf16.msra.mxu0 %v10513
        %11002 = vmatprep.subr.bf16.mxu0 %v10518
        %11003 = vmatpush1.bf16.msra.mxu0 %v10517
        %11004 = vmatprep.subr.bf16.mxu0 %v10522
        %11005 = vmatpush1.bf16.msra.mxu0 %v10521
        %11006 = vmatprep.subr.bf16.mxu0 %v10526
        %11007 = vmatpush1.bf16.msra.mxu0 %v10525
        %11008 = vmatprep.subr.bf16.mxu0 %v10530
        %11009 = vmatpush1.bf16.msra.mxu0 %v10529
        %11010 = vmatprep.subr.bf16.mxu0 %v10534
        %11011 = vmatpush1.bf16.msra.mxu0 %v10533
        %11012 = vmatprep.subr.bf16.mxu0 %v10538
        %11013 = vmatpush1.bf16.msra.mxu0 %v10537
        %11014 = vmatprep.subr.bf16.mxu0 %v10542
        %11015 = vmatpush1.bf16.msra.mxu0 %v10541
        %11016 = vmatprep.subr.bf16.mxu0 %v10546
        %11017 = vmatpush1.bf16.msra.mxu0 %v10545
        %11018 = vmatprep.subr.bf16.mxu0 %v10550
        %11019 = vmatpush1.bf16.msra.mxu0 %v10549
        %11020 = vmatprep.subr.bf16.mxu0 %v10554
        %11021 = vmatpush1.bf16.msra.mxu0 %v10553
        %11022 = vmatprep.subr.bf16.mxu0 %v10558
        %11023 = vmatpush1.bf16.msra.mxu0 %v10557
        %11024 = vmatprep.subr.bf16.mxu0 %v10562
        %11025 = vmatpush1.bf16.msra.mxu0 %v10561
        %11026 = vmatprep.subr.bf16.mxu0 %v10566
        %11027 = vmatpush1.bf16.msra.mxu0 %v10565
        %11028 = vmatprep.subr.bf16.mxu0 %v10570
        %11029 = vmatpush1.bf16.msra.mxu0 %v10569
        %11030 = vmatprep.subr.bf16.mxu0 %v10574
        %11031 = vmatpush1.bf16.msra.mxu0 %v10573
        %11032 = vmatprep.mubr.bf16.mxu0 %v4828
        %11033 = vmatmul.mubr.bf16.gmra.mrb[0].mxu0 %v4827
        %v11034 = vpop.f32.mrb[0].mxu0
        %v11035 = vadd.f32 %v10994, %v11034
        %v11036 = vpop.f32.mrb[0].mxu0
        %v11037 = vadd.f32 %v10996, %v11036
        %v11038 = vpop.f32.mrb[0].mxu0
        %v11039 = vpop.f32.mrb[0].mxu0
        %11040 = vdwg.mxu0
        %11041 = vmatprep.subr.bf16.mxu0 %v10578
        %11042 = vmatpush1.bf16.msra.mxu0 %v10577
        %11043 = vmatprep.subr.bf16.mxu0 %v10582
        %11044 = vmatpush1.bf16.msra.mxu0 %v10581
        %11045 = vmatprep.subr.bf16.mxu0 %v10586
        %11046 = vmatpush1.bf16.msra.mxu0 %v10585
        %11047 = vmatprep.subr.bf16.mxu0 %v10590
        %11048 = vmatpush1.bf16.msra.mxu0 %v10589
        %11049 = vmatprep.subr.bf16.mxu0 %v10594
        %11050 = vmatpush1.bf16.msra.mxu0 %v10593
        %11051 = vmatprep.subr.bf16.mxu0 %v10598
        %11052 = vmatpush1.bf16.msra.mxu0 %v10597
        %11053 = vmatprep.subr.bf16.mxu0 %v10602
        %11054 = vmatpush1.bf16.msra.mxu0 %v10601
        %11055 = vmatprep.subr.bf16.mxu0 %v10606
        %11056 = vmatpush1.bf16.msra.mxu0 %v10605
        %11057 = vmatprep.subr.bf16.mxu0 %v10610
        %11058 = vmatpush1.bf16.msra.mxu0 %v10609
        %11059 = vmatprep.subr.bf16.mxu0 %v10614
        %11060 = vmatpush1.bf16.msra.mxu0 %v10613
        %11061 = vmatprep.subr.bf16.mxu0 %v10618
        %11062 = vmatpush1.bf16.msra.mxu0 %v10617
        %11063 = vmatprep.subr.bf16.mxu0 %v10622
        %11064 = vmatpush1.bf16.msra.mxu0 %v10621
        %11065 = vmatprep.subr.bf16.mxu0 %v10626
        %11066 = vmatpush1.bf16.msra.mxu0 %v10625
        %11067 = vmatprep.subr.bf16.mxu0 %v10630
        %11068 = vmatpush1.bf16.msra.mxu0 %v10629
        %11069 = vmatprep.subr.bf16.mxu0 %v10634
        %11070 = vmatpush1.bf16.msra.mxu0 %v10633
        %11071 = vmatprep.subr.bf16.mxu0 %v10638
        %11072 = vmatpush1.bf16.msra.mxu0 %v10637
        %11073 = vmatprep.mubr.bf16.mxu0 %v4830
        %11074 = vmatmul.mubr.bf16.gmra.mrb[0].mxu0 %v4829
        %v11075 = vpop.f32.mrb[0].mxu0
        %v11076 = vadd.f32 %v11035, %v11075
        %v11077 = vpop.f32.mrb[0].mxu0
        %v11078 = vadd.f32 %v11037, %v11077
        %v11079 = vpop.f32.mrb[0].mxu0
        %v11080 = vpop.f32.mrb[0].mxu0
        %11081 = vdwg.mxu0
        %11082 = vmatprep.subr.bf16.mxu0 %v10388
        %11083 = vmatpush1.bf16.msra.mxu0 %v10387
        %11084 = vmatprep.subr.bf16.mxu0 %v10392
        %11085 = vmatpush1.bf16.msra.mxu0 %v10391
        %11086 = vmatprep.subr.bf16.mxu0 %v10396
        %11087 = vmatpush1.bf16.msra.mxu0 %v10395
        %11088 = vmatprep.subr.bf16.mxu0 %v10400
        %11089 = vmatpush1.bf16.msra.mxu0 %v10399
        %11090 = vmatprep.subr.bf16.mxu0 %v10404
        %11091 = vmatpush1.bf16.msra.mxu0 %v10403
        %11092 = vmatprep.subr.bf16.mxu0 %v10408
        %11093 = vmatpush1.bf16.msra.mxu0 %v10407
        %11094 = vmatprep.subr.bf16.mxu0 %v10412
        %11095 = vmatpush1.bf16.msra.mxu0 %v10411
        %11096 = vmatprep.subr.bf16.mxu0 %v10416
        %11097 = vmatpush1.bf16.msra.mxu0 %v10415
        %11098 = vmatprep.subr.bf16.mxu0 %v10420
        %11099 = vmatpush1.bf16.msra.mxu0 %v10419
        %11100 = vmatprep.subr.bf16.mxu0 %v10424
        %11101 = vmatpush1.bf16.msra.mxu0 %v10423
        %11102 = vmatprep.subr.bf16.mxu0 %v10428
        %11103 = vmatpush1.bf16.msra.mxu0 %v10427
        %11104 = vmatprep.subr.bf16.mxu0 %v10432
        %11105 = vmatpush1.bf16.msra.mxu0 %v10431
        %11106 = vmatprep.subr.bf16.mxu0 %v10436
        %11107 = vmatpush1.bf16.msra.mxu0 %v10435
        %11108 = vmatprep.subr.bf16.mxu0 %v10440
        %11109 = vmatpush1.bf16.msra.mxu0 %v10439
        %11110 = vmatprep.subr.bf16.mxu0 %v10444
        %11111 = vmatpush1.bf16.msra.mxu0 %v10443
        %11112 = vmatprep.subr.bf16.mxu0 %v10448
        %11113 = vmatpush1.bf16.msra.mxu0 %v10447
        %11114 = vmatprep.mubr.bf16.mxu0 %v4824
        %11115 = vmatmul.mubr.bf16.gmra.mrb[0].mxu0 %v4823
        %v11116 = vpop.f32.mrb[0].mxu0
        %v11117 = vadd.f32 %v10909, %v11116
        %v11118 = vpop.f32.mrb[0].mxu0
        %v11119 = vadd.f32 %v10913, %v11118
        %v11120 = vpop.f32.mrb[0].mxu0
        %v11121 = vpop.f32.mrb[0].mxu0
        %11122 = vdwg.mxu0
        %11123 = vmatprep.subr.bf16.mxu0 %v10452
        %11124 = vmatpush1.bf16.msra.mxu0 %v10451
        %11125 = vmatprep.subr.bf16.mxu0 %v10456
        %11126 = vmatpush1.bf16.msra.mxu0 %v10455
        %11127 = vmatprep.subr.bf16.mxu0 %v10460
        %11128 = vmatpush1.bf16.msra.mxu0 %v10459
        %11129 = vmatprep.subr.bf16.mxu0 %v10464
        %11130 = vmatpush1.bf16.msra.mxu0 %v10463
        %11131 = vmatprep.subr.bf16.mxu0 %v10468
        %11132 = vmatpush1.bf16.msra.mxu0 %v10467
        %11133 = vmatprep.subr.bf16.mxu0 %v10472
        %11134 = vmatpush1.bf16.msra.mxu0 %v10471
        %11135 = vmatprep.subr.bf16.mxu0 %v10476
        %11136 = vmatpush1.bf16.msra.mxu0 %v10475
        %11137 = vmatprep.subr.bf16.mxu0 %v10480
        %11138 = vmatpush1.bf16.msra.mxu0 %v10479
        %11139 = vmatprep.subr.bf16.mxu0 %v10484
        %11140 = vmatpush1.bf16.msra.mxu0 %v10483
        %11141 = vmatprep.subr.bf16.mxu0 %v10488
        %11142 = vmatpush1.bf16.msra.mxu0 %v10487
        %11143 = vmatprep.subr.bf16.mxu0 %v10492
        %11144 = vmatpush1.bf16.msra.mxu0 %v10491
        %11145 = vmatprep.subr.bf16.mxu0 %v10496
        %11146 = vmatpush1.bf16.msra.mxu0 %v10495
        %11147 = vmatprep.subr.bf16.mxu0 %v10500
        %11148 = vmatpush1.bf16.msra.mxu0 %v10499
        %11149 = vmatprep.subr.bf16.mxu0 %v10504
        %11150 = vmatpush1.bf16.msra.mxu0 %v10503
        %11151 = vmatprep.subr.bf16.mxu0 %v10508
        %11152 = vmatpush1.bf16.msra.mxu0 %v10507
        %11153 = vmatprep.subr.bf16.mxu0 %v10512
        %11154 = vmatpush1.bf16.msra.mxu0 %v10511
        %11155 = vmatprep.mubr.bf16.mxu0 %v4826
        %11156 = vmatmul.mubr.bf16.gmra.mrb[0].mxu0 %v4825
        %v11157 = vpop.f32.mrb[0].mxu0
        %v11158 = vadd.f32 %v11117, %v11157
        %v11159 = vpop.f32.mrb[0].mxu0
        %v11160 = vadd.f32 %v11119, %v11159
        %v11161 = vpop.f32.mrb[0].mxu0
        %v11162 = vpop.f32.mrb[0].mxu0
        %11163 = vdwg.mxu0
        %11164 = vmatprep.subr.bf16.mxu0 %v10516
        %11165 = vmatpush1.bf16.msra.mxu0 %v10515
        %11166 = vmatprep.subr.bf16.mxu0 %v10520
        %11167 = vmatpush1.bf16.msra.mxu0 %v10519
        %11168 = vmatprep.subr.bf16.mxu0 %v10524
        %11169 = vmatpush1.bf16.msra.mxu0 %v10523
        %11170 = vmatprep.subr.bf16.mxu0 %v10528
        %11171 = vmatpush1.bf16.msra.mxu0 %v10527
        %11172 = vmatprep.subr.bf16.mxu0 %v10532
        %11173 = vmatpush1.bf16.msra.mxu0 %v10531
        %11174 = vmatprep.subr.bf16.mxu0 %v10536
        %11175 = vmatpush1.bf16.msra.mxu0 %v10535
        %11176 = vmatprep.subr.bf16.mxu0 %v10540
        %11177 = vmatpush1.bf16.msra.mxu0 %v10539
        %11178 = vmatprep.subr.bf16.mxu0 %v10544
        %11179 = vmatpush1.bf16.msra.mxu0 %v10543
        %11180 = vmatprep.subr.bf16.mxu0 %v10548
        %11181 = vmatpush1.bf16.msra.mxu0 %v10547
        %11182 = vmatprep.subr.bf16.mxu0 %v10552
        %11183 = vmatpush1.bf16.msra.mxu0 %v10551
        %11184 = vmatprep.subr.bf16.mxu0 %v10556
        %11185 = vmatpush1.bf16.msra.mxu0 %v10555
        %11186 = vmatprep.subr.bf16.mxu0 %v10560
        %11187 = vmatpush1.bf16.msra.mxu0 %v10559
        %11188 = vmatprep.subr.bf16.mxu0 %v10564
        %11189 = vmatpush1.bf16.msra.mxu0 %v10563
        %11190 = vmatprep.subr.bf16.mxu0 %v10568
        %11191 = vmatpush1.bf16.msra.mxu0 %v10567
        %11192 = vmatprep.subr.bf16.mxu0 %v10572
        %11193 = vmatpush1.bf16.msra.mxu0 %v10571
        %11194 = vmatprep.subr.bf16.mxu0 %v10576
        %11195 = vmatpush1.bf16.msra.mxu0 %v10575
        %11196 = vmatprep.mubr.bf16.mxu0 %v4828
        %11197 = vmatmul.mubr.bf16.gmra.mrb[0].mxu0 %v4827
        %v11198 = vpop.f32.mrb[0].mxu0
        %v11199 = vadd.f32 %v11158, %v11198
        %v11200 = vpop.f32.mrb[0].mxu0
        %v11201 = vadd.f32 %v11160, %v11200
        %v11202 = vpop.f32.mrb[0].mxu0
        %v11203 = vpop.f32.mrb[0].mxu0
        %11204 = vdwg.mxu0
        %11205 = vmatprep.subr.bf16.mxu0 %v10580
        %11206 = vmatpush1.bf16.msra.mxu0 %v10579
        %11207 = vmatprep.subr.bf16.mxu0 %v10584
        %11208 = vmatpush1.bf16.msra.mxu0 %v10583
        %11209 = vmatprep.subr.bf16.mxu0 %v10588
        %11210 = vmatpush1.bf16.msra.mxu0 %v10587
        %11211 = vmatprep.subr.bf16.mxu0 %v10592
        %11212 = vmatpush1.bf16.msra.mxu0 %v10591
        %11213 = vmatprep.subr.bf16.mxu0 %v10596
        %11214 = vmatpush1.bf16.msra.mxu0 %v10595
        %11215 = vmatprep.subr.bf16.mxu0 %v10600
        %11216 = vmatpush1.bf16.msra.mxu0 %v10599
        %11217 = vmatprep.subr.bf16.mxu0 %v10604
        %11218 = vmatpush1.bf16.msra.mxu0 %v10603
        %11219 = vmatprep.subr.bf16.mxu0 %v10608
        %11220 = vmatpush1.bf16.msra.mxu0 %v10607
        %11221 = vmatprep.subr.bf16.mxu0 %v10612
        %11222 = vmatpush1.bf16.msra.mxu0 %v10611
        %11223 = vmatprep.subr.bf16.mxu0 %v10616
        %11224 = vmatpush1.bf16.msra.mxu0 %v10615
        %11225 = vmatprep.subr.bf16.mxu0 %v10620
        %11226 = vmatpush1.bf16.msra.mxu0 %v10619
        %11227 = vmatprep.subr.bf16.mxu0 %v10624
        %11228 = vmatpush1.bf16.msra.mxu0 %v10623
        %11229 = vmatprep.subr.bf16.mxu0 %v10628
        %11230 = vmatpush1.bf16.msra.mxu0 %v10627
        %11231 = vmatprep.subr.bf16.mxu0 %v10632
        %11232 = vmatpush1.bf16.msra.mxu0 %v10631
        %11233 = vmatprep.subr.bf16.mxu0 %v10636
        %11234 = vmatpush1.bf16.msra.mxu0 %v10635
        %11235 = vmatprep.subr.bf16.mxu0 %v10640
        %11236 = vmatpush1.bf16.msra.mxu0 %v10639
        %11237 = vmatprep.mubr.bf16.mxu0 %v4830
        %11238 = vmatmul.mubr.bf16.gmra.mrb[0].mxu0 %v4829
        %v11239 = vpop.f32.mrb[0].mxu0
        %v11240 = vadd.f32 %v11199, %v11239
        %v11241 = vpop.f32.mrb[0].mxu0
        %v11242 = vadd.f32 %v11201, %v11241
        %v11243 = vpop.f32.mrb[0].mxu0
        %v11244 = vpop.f32.mrb[0].mxu0
        %11245 = vdwg.mxu0
        %v11246 = vld [vmem:[%s15] sm:$0xf]
        %v11247 = vld [vmem:[%s16] sm:$0xf]
        %v11248 = vsel %vm897, %v11076, 0.0
        %v11249 = vsel %vm897, %v11078, 0.0
        %v11250 = vadd.f32 %v11248, %v11249
        %v11251 = vsel %vm897, %v11240, 0.0
        %v11252 = vadd.f32 %v11250, %v11251
        %v11253 = vsel %vm897, %v11242, 0.0
        %v11254 = vadd.f32 %v11252, %v11253
        %11255 = vadd.xlane.f32.xlu0 %v11254
        %v11256 = vpop.xlane.xlu0 %11255
        %v11257 = vmul.f32 %v11256, 0.001953125
        %v11258 = vmul.f32 %v11076, %v11076
        %v11259 = vmul.f32 %v11078, %v11078
        %v11260 = vmul.f32 %v11240, %v11240
        %v11261 = vmul.f32 %v11242, %v11242
        %v11262 = vsel %vm897, %v11258, 0.0
        %v11263 = vsel %vm897, %v11259, 0.0
        %v11264 = vadd.f32 %v11262, %v11263
        %v11265 = vsel %vm897, %v11260, 0.0
        %v11266 = vadd.f32 %v11264, %v11265
        %v11267 = vsel %vm897, %v11261, 0.0
        %v11268 = vadd.f32 %v11266, %v11267
        %11269 = vadd.xlane.f32.xlu0 %v11268
        %v11270 = vpop.xlane.xlu0 %11269
        %v11271 = vmul.f32 %v11270, 0.001953125
        %v11272 = vmul.f32 %v11257, %v11257
        %v11273 = vsub.f32 %v11271, %v11272
        %v11274 = vmax.f32 %v11273, 0.0
        %v11275 = vsub.f32 %v11076, %v11257
        %v11276 = vsub.f32 %v11078, %v11257
        %v11277 = vsub.f32 %v11240, %v11257
        %v11278 = vsub.f32 %v11242, %v11257
        %v11279 = vadd.f32 %v11274, 1e-05
        %v11280 = vrsqrt.pop %v11279
        %v11281 = vmul.f32 %v11275, %v11280
        %v11282 = vmul.f32 %v11276, %v11280
        %v11283 = vmul.f32 %v11277, %v11280
        %v11284 = vmul.f32 %v11278, %v11280
        %v11286 = vlaneseq
        %v11287 = vshrl.u32 %v11286, 7
        %v11288 = vsub.s32 0, %v11287
        %v11289 = vrot.slane %v11246, %v11288
        %v11290 = vlaneseq
        %v11291 = vshrl.u32 %v11290, 7
        %v11292 = vsub.s32 1, %v11291
        %v11293 = vrot.slane %v11246, %v11292
        %v11294 = vlaneseq
        %v11295 = vshrl.u32 %v11294, 7
        %v11296 = vsub.s32 2, %v11295
        %v11297 = vrot.slane %v11246, %v11296
        %v11298 = vlaneseq
        %v11299 = vshrl.u32 %v11298, 7
        %v11300 = vsub.s32 3, %v11299
        %v11301 = vrot.slane %v11246, %v11300
        %v11306 = vmul.f32 %v11281, %v11289
        %v11307 = vmul.f32 %v11282, %v11293
        %v11308 = vmul.f32 %v11283, %v11297
        %v11309 = vmul.f32 %v11284, %v11301
        %v11311 = vlaneseq
        %v11312 = vshrl.u32 %v11311, 7
        %v11313 = vsub.s32 0, %v11312
        %v11314 = vrot.slane %v11247, %v11313
        %v11315 = vlaneseq
        %v11316 = vshrl.u32 %v11315, 7
        %v11317 = vsub.s32 1, %v11316
        %v11318 = vrot.slane %v11247, %v11317
        %v11319 = vlaneseq
        %v11320 = vshrl.u32 %v11319, 7
        %v11321 = vsub.s32 2, %v11320
        %v11322 = vrot.slane %v11247, %v11321
        %v11323 = vlaneseq
        %v11324 = vshrl.u32 %v11323, 7
        %v11325 = vsub.s32 3, %v11324
        %v11326 = vrot.slane %v11247, %v11325
        %v11331 = vadd.f32 %v11306, %v11314
        %v11332 = vadd.f32 %v11307, %v11318
        %v11333 = vadd.f32 %v11308, %v11322
        %v11334 = vadd.f32 %v11309, %v11326
        %v11335 = vmul.f32 %v11331, 0.1
        %v11336 = vmul.f32 %v11332, 0.1
        %v11337 = vmul.f32 %v11333, 0.1
        %v11338 = vmul.f32 %v11334, 0.1
        %v11339 = vmax.f32 %v11331, %v11335
        %v11340 = vmax.f32 %v11332, %v11336
        %v11341 = vmax.f32 %v11333, %v11337
        %v11342 = vmax.f32 %v11334, %v11338
        %v11343 = vld [vmem:[%s17] sm:$0xf]
        %v11344 = vld [vmem:[%s17 + $0x4] sm:$0xf]
        %v11345 = vld [vmem:[%s17 + $0x8] sm:$0xf]
        %v11346 = vld [vmem:[%s17 + $0xc] sm:$0xf]
        %v11347 = vld [vmem:[%s17 + $0x10] sm:$0xf]
        %v11348 = vld [vmem:[%s17 + $0x14] sm:$0xf]
        %v11349 = vld [vmem:[%s17 + $0x18] sm:$0xf]
        %v11350 = vld [vmem:[%s17 + $0x1c] sm:$0xf]
        %v11351 = vld [vmem:[%s17 + $0x20] sm:$0xf]
        %v11352 = vld [vmem:[%s17 + $0x24] sm:$0xf]
        %v11353 = vld [vmem:[%s17 + $0x28] sm:$0xf]
        %v11354 = vld [vmem:[%s17 + $0x2c] sm:$0xf]
        %v11355 = vld [vmem:[%s17 + $0x30] sm:$0xf]
        %v11356 = vld [vmem:[%s17 + $0x34] sm:$0xf]
        %v11357 = vld [vmem:[%s17 + $0x38] sm:$0xf]
        %v11358 = vld [vmem:[%s17 + $0x3c] sm:$0xf]
        %v11359 = vld [vmem:[%s17 + $0x40] sm:$0xf]
        %v11360 = vld [vmem:[%s17 + $0x44] sm:$0xf]
        %v11361 = vld [vmem:[%s17 + $0x48] sm:$0xf]
        %v11362 = vld [vmem:[%s17 + $0x4c] sm:$0xf]
        %v11363 = vld [vmem:[%s17 + $0x50] sm:$0xf]
        %v11364 = vld [vmem:[%s17 + $0x54] sm:$0xf]
        %v11365 = vld [vmem:[%s17 + $0x58] sm:$0xf]
        %v11366 = vld [vmem:[%s17 + $0x5c] sm:$0xf]
        %v11367 = vld [vmem:[%s17 + $0x60] sm:$0xf]
        %v11368 = vld [vmem:[%s17 + $0x64] sm:$0xf]
        %v11369 = vld [vmem:[%s17 + $0x68] sm:$0xf]
        %v11370 = vld [vmem:[%s17 + $0x6c] sm:$0xf]
        %v11371 = vld [vmem:[%s17 + $0x70] sm:$0xf]
        %v11372 = vld [vmem:[%s17 + $0x74] sm:$0xf]
        %v11373 = vld [vmem:[%s17 + $0x78] sm:$0xf]
        %v11374 = vld [vmem:[%s17 + $0x7c] sm:$0xf]
        %v11375 = vld [vmem:[%s17 + $0x80] sm:$0xf]
        %v11376 = vld [vmem:[%s17 + $0x84] sm:$0xf]
        %v11377 = vld [vmem:[%s17 + $0x88] sm:$0xf]
        %v11378 = vld [vmem:[%s17 + $0x8c] sm:$0xf]
        %v11379 = vld [vmem:[%s17 + $0x90] sm:$0xf]
        %v11380 = vld [vmem:[%s17 + $0x94] sm:$0xf]
        %v11381 = vld [vmem:[%s17 + $0x98] sm:$0xf]
        %v11382 = vld [vmem:[%s17 + $0x9c] sm:$0xf]
        %v11383 = vld [vmem:[%s17 + $0xa0] sm:$0xf]
        %v11384 = vld [vmem:[%s17 + $0xa4] sm:$0xf]
        %v11385 = vld [vmem:[%s17 + $0xa8] sm:$0xf]
        %v11386 = vld [vmem:[%s17 + $0xac] sm:$0xf]
        %v11387 = vld [vmem:[%s17 + $0xb0] sm:$0xf]
        %v11388 = vld [vmem:[%s17 + $0xb4] sm:$0xf]
        %v11389 = vld [vmem:[%s17 + $0xb8] sm:$0xf]
        %v11390 = vld [vmem:[%s17 + $0xbc] sm:$0xf]
        %v11391 = vld [vmem:[%s17 + $0xc0] sm:$0xf]
        %v11392 = vld [vmem:[%s17 + $0xc4] sm:$0xf]
        %v11393 = vld [vmem:[%s17 + $0xc8] sm:$0xf]
        %v11394 = vld [vmem:[%s17 + $0xcc] sm:$0xf]
        %v11395 = vld [vmem:[%s17 + $0xd0] sm:$0xf]
        %v11396 = vld [vmem:[%s17 + $0xd4] sm:$0xf]
        %v11397 = vld [vmem:[%s17 + $0xd8] sm:$0xf]
        %v11398 = vld [vmem:[%s17 + $0xdc] sm:$0xf]
        %v11399 = vld [vmem:[%s17 + $0xe0] sm:$0xf]
        %v11400 = vld [vmem:[%s17 + $0xe4] sm:$0xf]
        %v11401 = vld [vmem:[%s17 + $0xe8] sm:$0xf]
        %v11402 = vld [vmem:[%s17 + $0xec] sm:$0xf]
        %v11403 = vld [vmem:[%s17 + $0xf0] sm:$0xf]
        %v11404 = vld [vmem:[%s17 + $0xf4] sm:$0xf]
        %v11405 = vld [vmem:[%s17 + $0xf8] sm:$0xf]
        %v11406 = vld [vmem:[%s17 + $0xfc] sm:$0xf]
        %v11407 = vpack.c.bf16 %v11339, %v11339
        %v11408 = vpack.c.bf16 %v11340, %v11340
        %v11409 = vpack.c.bf16 %v11341, %v11341
        %v11410 = vpack.c.bf16 %v11342, %v11342
        %v11411 = vld [vmem:[%s18] sm:$0x1]
        %v11476 = vunpack.c.l.b16 %v11343
        %v11477 = vunpack.c.l.b16 %v11344
        %v11478 = vunpack.c.l.b16 %v11345
        %v11479 = vunpack.c.l.b16 %v11346
        %v11480 = vunpack.c.l.b16 %v11347
        %v11481 = vunpack.c.l.b16 %v11348
        %v11482 = vunpack.c.l.b16 %v11349
        %v11483 = vunpack.c.l.b16 %v11350
        %v11484 = vunpack.c.l.b16 %v11351
        %v11485 = vunpack.c.l.b16 %v11352
        %v11486 = vunpack.c.l.b16 %v11353
        %v11487 = vunpack.c.l.b16 %v11354
        %v11488 = vunpack.c.l.b16 %v11355
        %v11489 = vunpack.c.l.b16 %v11356
        %v11490 = vunpack.c.l.b16 %v11357
        %v11491 = vunpack.c.l.b16 %v11358
        %v11492 = vunpack.c.l.b16 %v11359
        %v11493 = vunpack.c.l.b16 %v11360
        %v11494 = vunpack.c.l.b16 %v11361
        %v11495 = vunpack.c.l.b16 %v11362
        %v11496 = vunpack.c.l.b16 %v11363
        %v11497 = vunpack.c.l.b16 %v11364
        %v11498 = vunpack.c.l.b16 %v11365
        %v11499 = vunpack.c.l.b16 %v11366
        %v11500 = vunpack.c.l.b16 %v11367
        %v11501 = vunpack.c.l.b16 %v11368
        %v11502 = vunpack.c.l.b16 %v11369
        %v11503 = vunpack.c.l.b16 %v11370
        %v11504 = vunpack.c.l.b16 %v11371
        %v11505 = vunpack.c.l.b16 %v11372
        %v11506 = vunpack.c.l.b16 %v11373
        %v11507 = vunpack.c.l.b16 %v11374
        %v11508 = vunpack.c.l.b16 %v11375
        %v11509 = vunpack.c.l.b16 %v11376
        %v11510 = vunpack.c.l.b16 %v11377
        %v11511 = vunpack.c.l.b16 %v11378
        %v11512 = vunpack.c.l.b16 %v11379
        %v11513 = vunpack.c.l.b16 %v11380
        %v11514 = vunpack.c.l.b16 %v11381
        %v11515 = vunpack.c.l.b16 %v11382
        %v11516 = vunpack.c.l.b16 %v11383
        %v11517 = vunpack.c.l.b16 %v11384
        %v11518 = vunpack.c.l.b16 %v11385
        %v11519 = vunpack.c.l.b16 %v11386
        %v11520 = vunpack.c.l.b16 %v11387
        %v11521 = vunpack.c.l.b16 %v11388
        %v11522 = vunpack.c.l.b16 %v11389
        %v11523 = vunpack.c.l.b16 %v11390
        %v11524 = vunpack.c.l.b16 %v11391
        %v11525 = vunpack.c.l.b16 %v11392
        %v11526 = vunpack.c.l.b16 %v11393
        %v11527 = vunpack.c.l.b16 %v11394
        %v11528 = vunpack.c.l.b16 %v11395
        %v11529 = vunpack.c.l.b16 %v11396
        %v11530 = vunpack.c.l.b16 %v11397
        %v11531 = vunpack.c.l.b16 %v11398
        %v11532 = vunpack.c.l.b16 %v11399
        %v11533 = vunpack.c.l.b16 %v11400
        %v11534 = vunpack.c.l.b16 %v11401
        %v11535 = vunpack.c.l.b16 %v11402
        %v11536 = vunpack.c.l.b16 %v11403
        %v11537 = vunpack.c.l.b16 %v11404
        %v11538 = vunpack.c.l.b16 %v11405
        %v11539 = vunpack.c.l.b16 %v11406
        %v11540 = vpack.c.b16 %v11477, %v11476
        %v11541 = vpack.c.b16 %v11479, %v11478
        %v11542 = vpack.c.b16 %v11481, %v11480
        %v11543 = vpack.c.b16 %v11483, %v11482
        %v11544 = vpack.c.b16 %v11485, %v11484
        %v11545 = vpack.c.b16 %v11487, %v11486
        %v11546 = vpack.c.b16 %v11489, %v11488
        %v11547 = vpack.c.b16 %v11491, %v11490
        %v11548 = vpack.c.b16 %v11493, %v11492
        %v11549 = vpack.c.b16 %v11495, %v11494
        %v11550 = vpack.c.b16 %v11497, %v11496
        %v11551 = vpack.c.b16 %v11499, %v11498
        %v11552 = vpack.c.b16 %v11501, %v11500
        %v11553 = vpack.c.b16 %v11503, %v11502
        %v11554 = vpack.c.b16 %v11505, %v11504
        %v11555 = vpack.c.b16 %v11507, %v11506
        %v11556 = vpack.c.b16 %v11509, %v11508
        %v11557 = vpack.c.b16 %v11511, %v11510
        %v11558 = vpack.c.b16 %v11513, %v11512
        %v11559 = vpack.c.b16 %v11515, %v11514
        %v11560 = vpack.c.b16 %v11517, %v11516
        %v11561 = vpack.c.b16 %v11519, %v11518
        %v11562 = vpack.c.b16 %v11521, %v11520
        %v11563 = vpack.c.b16 %v11523, %v11522
        %v11564 = vpack.c.b16 %v11525, %v11524
        %v11565 = vpack.c.b16 %v11527, %v11526
        %v11566 = vpack.c.b16 %v11529, %v11528
        %v11567 = vpack.c.b16 %v11531, %v11530
        %v11568 = vpack.c.b16 %v11533, %v11532
        %v11569 = vpack.c.b16 %v11535, %v11534
        %v11570 = vpack.c.b16 %v11537, %v11536
        %v11571 = vpack.c.b16 %v11539, %v11538
        %11604 = vmatprep.subr.bf16.mxu0 0
        %11605 = vmatpush1.bf16.msra.mxu0 %v11540
        %11606 = vmatprep.subr.bf16.mxu0 0
        %11607 = vmatpush1.bf16.msra.mxu0 %v11541
        %11608 = vmatprep.subr.bf16.mxu0 0
        %11609 = vmatpush1.bf16.msra.mxu0 %v11542
        %11610 = vmatprep.subr.bf16.mxu0 0
        %11611 = vmatpush1.bf16.msra.mxu0 %v11543
        %11612 = vmatprep.subr.bf16.mxu0 0
        %11613 = vmatpush1.bf16.msra.mxu0 %v11544
        %11614 = vmatprep.subr.bf16.mxu0 0
        %11615 = vmatpush1.bf16.msra.mxu0 %v11545
        %11616 = vmatprep.subr.bf16.mxu0 0
        %11617 = vmatpush1.bf16.msra.mxu0 %v11546
        %11618 = vmatprep.subr.bf16.mxu0 0
        %11619 = vmatpush1.bf16.msra.mxu0 %v11547
        %11620 = vmatprep.subr.bf16.mxu0 0
        %11621 = vmatpush1.bf16.msra.mxu0 %v11548
        %11622 = vmatprep.subr.bf16.mxu0 0
        %11623 = vmatpush1.bf16.msra.mxu0 %v11549
        %11624 = vmatprep.subr.bf16.mxu0 0
        %11625 = vmatpush1.bf16.msra.mxu0 %v11550
        %11626 = vmatprep.subr.bf16.mxu0 0
        %11627 = vmatpush1.bf16.msra.mxu0 %v11551
        %11628 = vmatprep.subr.bf16.mxu0 0
        %11629 = vmatpush1.bf16.msra.mxu0 %v11552
        %11630 = vmatprep.subr.bf16.mxu0 0
        %11631 = vmatpush1.bf16.msra.mxu0 %v11553
        %11632 = vmatprep.subr.bf16.mxu0 0
        %11633 = vmatpush1.bf16.msra.mxu0 %v11554
        %11634 = vmatprep.subr.bf16.mxu0 0
        %11635 = vmatpush1.bf16.msra.mxu0 %v11555
        %11636 = vmatprep.mubr.bf16.mxu0 %v11408
        %11637 = vmatmul.mubr.bf16.gmra.mrb[0].mxu0 %v11407
        %v11638 = vpop.f32.mrb[0].mxu0
        %v11639 = vadd.f32 %v11411, %v11638
        %v11640 = vpop.f32.mrb[0].mxu0
        %v11641 = vpop.f32.mrb[0].mxu0
        %v11642 = vpop.f32.mrb[0].mxu0
        %11643 = vdwg.mxu0
        %11644 = vmatprep.subr.bf16.mxu0 0
        %11645 = vmatpush1.bf16.msra.mxu0 %v11556
        %11646 = vmatprep.subr.bf16.mxu0 0
        %11647 = vmatpush1.bf16.msra.mxu0 %v11557
        %11648 = vmatprep.subr.bf16.mxu0 0
        %11649 = vmatpush1.bf16.msra.mxu0 %v11558
        %11650 = vmatprep.subr.bf16.mxu0 0
        %11651 = vmatpush1.bf16.msra.mxu0 %v11559
        %11652 = vmatprep.subr.bf16.mxu0 0
        %11653 = vmatpush1.bf16.msra.mxu0 %v11560
        %11654 = vmatprep.subr.bf16.mxu0 0
        %11655 = vmatpush1.bf16.msra.mxu0 %v11561
        %11656 = vmatprep.subr.bf16.mxu0 0
        %11657 = vmatpush1.bf16.msra.mxu0 %v11562
        %11658 = vmatprep.subr.bf16.mxu0 0
        %11659 = vmatpush1.bf16.msra.mxu0 %v11563
        %11660 = vmatprep.subr.bf16.mxu0 0
        %11661 = vmatpush1.bf16.msra.mxu0 %v11564
        %11662 = vmatprep.subr.bf16.mxu0 0
        %11663 = vmatpush1.bf16.msra.mxu0 %v11565
        %11664 = vmatprep.subr.bf16.mxu0 0
        %11665 = vmatpush1.bf16.msra.mxu0 %v11566
        %11666 = vmatprep.subr.bf16.mxu0 0
        %11667 = vmatpush1.bf16.msra.mxu0 %v11567
        %11668 = vmatprep.subr.bf16.mxu0 0
        %11669 = vmatpush1.bf16.msra.mxu0 %v11568
        %11670 = vmatprep.subr.bf16.mxu0 0
        %11671 = vmatpush1.bf16.msra.mxu0 %v11569
        %11672 = vmatprep.subr.bf16.mxu0 0
        %11673 = vmatpush1.bf16.msra.mxu0 %v11570
        %11674 = vmatprep.subr.bf16.mxu0 0
        %11675 = vmatpush1.bf16.msra.mxu0 %v11571
        %11676 = vmatprep.mubr.bf16.mxu0 %v11410
        %11677 = vmatmul.mubr.bf16.gmra.mrb[0].mxu0 %v11409
        %v11678 = vpop.f32.mrb[0].mxu0
        %v11679 = vadd.f32 %v11639, %v11678
        %v11680 = vpop.f32.mrb[0].mxu0
        %v11681 = vpop.f32.mrb[0].mxu0
        %v11682 = vpop.f32.mrb[0].mxu0
        %11683 = vdwg.mxu0
        %v11684 = vld [vmem:[%s19] sm:$0x1]
        %v11685 = vld [vmem:[%s20] sm:$0x1]
        %v11686 = vsel %vm897, %v11679, 0.0
        %11687 = vadd.xlane.f32.xlu0 %v11686
        %v11688 = vpop.xlane.xlu0 %11687
        %v11689 = vmul.f32 %v11688, 0.0078125
        %v11690 = vmul.f32 %v11679, %v11679
        %v11691 = vsel %vm897, %v11690, 0.0
        %11692 = vadd.xlane.f32.xlu0 %v11691
        %v11693 = vpop.xlane.xlu0 %11692
        %v11694 = vmul.f32 %v11693, 0.0078125
        %v11695 = vmul.f32 %v11689, %v11689
        %v11696 = vsub.f32 %v11694, %v11695
        %v11697 = vmax.f32 %v11696, 0.0
        %v11698 = vsub.f32 %v11679, %v11689
        %v11699 = vadd.f32 %v11697, 1e-05
        %v11700 = vrsqrt.pop %v11699
        %v11701 = vmul.f32 %v11698, %v11700
        %v11702 = vmul.f32 %v11701, %v11684
        %v11703 = vadd.f32 %v11702, %v11685
        %v11704 = vmul.f32 %v11703, 0.1
        %v11705 = vmax.f32 %v11703, %v11704
        %v11706 = vld [vmem:[%s21] sm:$0xf]
        %v11707 = vld [vmem:[%s21 + $0x4] sm:$0xf]
        %v11708 = vld [vmem:[%s21 + $0x8] sm:$0xf]
        %v11709 = vld [vmem:[%s21 + $0xc] sm:$0xf]
        %v11710 = vld [vmem:[%s21 + $0x10] sm:$0xf]
        %v11711 = vld [vmem:[%s21 + $0x14] sm:$0xf]
        %v11712 = vld [vmem:[%s21 + $0x18] sm:$0xf]
        %v11713 = vld [vmem:[%s21 + $0x1c] sm:$0xf]
        %v11714 = vld [vmem:[%s21 + $0x20] sm:$0xf]
        %v11715 = vld [vmem:[%s21 + $0x24] sm:$0xf]
        %v11716 = vld [vmem:[%s21 + $0x28] sm:$0xf]
        %v11717 = vld [vmem:[%s21 + $0x2c] sm:$0xf]
        %v11718 = vld [vmem:[%s21 + $0x30] sm:$0xf]
        %v11719 = vld [vmem:[%s21 + $0x34] sm:$0xf]
        %v11720 = vld [vmem:[%s21 + $0x38] sm:$0xf]
        %v11721 = vld [vmem:[%s21 + $0x3c] sm:$0xf]
        %v11722 = vpack.c.bf16 %v11705, %v11705
        %v11723 = vld [vmem:[%s22] sm:$0x1]
        %v11740 = vunpack.c.l.b16 %v11706
        %v11741 = vunpack.c.l.b16 %v11707
        %v11742 = vunpack.c.l.b16 %v11708
        %v11743 = vunpack.c.l.b16 %v11709
        %v11744 = vunpack.c.l.b16 %v11710
        %v11745 = vunpack.c.l.b16 %v11711
        %v11746 = vunpack.c.l.b16 %v11712
        %v11747 = vunpack.c.l.b16 %v11713
        %v11748 = vunpack.c.l.b16 %v11714
        %v11749 = vunpack.c.l.b16 %v11715
        %v11750 = vunpack.c.l.b16 %v11716
        %v11751 = vunpack.c.l.b16 %v11717
        %v11752 = vunpack.c.l.b16 %v11718
        %v11753 = vunpack.c.l.b16 %v11719
        %v11754 = vunpack.c.l.b16 %v11720
        %v11755 = vunpack.c.l.b16 %v11721
        %v11756 = vpack.c.b16 %v11741, %v11740
        %v11757 = vpack.c.b16 %v11743, %v11742
        %v11758 = vpack.c.b16 %v11745, %v11744
        %v11759 = vpack.c.b16 %v11747, %v11746
        %v11760 = vpack.c.b16 %v11749, %v11748
        %v11761 = vpack.c.b16 %v11751, %v11750
        %v11762 = vpack.c.b16 %v11753, %v11752
        %v11763 = vpack.c.b16 %v11755, %v11754
        %11772 = vmatprep.subr.bf16.mxu0 0
        %11773 = vmatpush1.bf16.msra.mxu0 %v11756
        %11774 = vmatprep.subr.bf16.mxu0 0
        %11775 = vmatpush1.bf16.msra.mxu0 %v11757
        %11776 = vmatprep.subr.bf16.mxu0 0
        %11777 = vmatpush1.bf16.msra.mxu0 %v11758
        %11778 = vmatprep.subr.bf16.mxu0 0
        %11779 = vmatpush1.bf16.msra.mxu0 %v11759
        %11780 = vmatprep.subr.bf16.mxu0 0
        %11781 = vmatpush1.bf16.msra.mxu0 %v11760
        %11782 = vmatprep.subr.bf16.mxu0 0
        %11783 = vmatpush1.bf16.msra.mxu0 %v11761
        %11784 = vmatprep.subr.bf16.mxu0 0
        %11785 = vmatpush1.bf16.msra.mxu0 %v11762
        %11786 = vmatprep.subr.bf16.mxu0 0
        %11787 = vmatpush1.bf16.msra.mxu0 %v11763
        %11788 = vmatprep.subr.bf16.mxu0 0
        %11789 = vmatpush1.bf16.msra.mxu0 0
        %11790 = vmatprep.subr.bf16.mxu0 0
        %11791 = vmatpush1.bf16.msra.mxu0 0
        %11792 = vmatprep.subr.bf16.mxu0 0
        %11793 = vmatpush1.bf16.msra.mxu0 0
        %11794 = vmatprep.subr.bf16.mxu0 0
        %11795 = vmatpush1.bf16.msra.mxu0 0
        %11796 = vmatprep.subr.bf16.mxu0 0
        %11797 = vmatpush1.bf16.msra.mxu0 0
        %11798 = vmatprep.subr.bf16.mxu0 0
        %11799 = vmatpush1.bf16.msra.mxu0 0
        %11800 = vmatprep.subr.bf16.mxu0 0
        %11801 = vmatpush1.bf16.msra.mxu0 0
        %11802 = vmatprep.subr.bf16.mxu0 0
        %11803 = vmatpush1.bf16.msra.mxu0 0
        %11804 = vmatprep.mubr.bf16.mxu0 0
        %11805 = vmatmul.mubr.bf16.gmra.mrb[0].mxu0 %v11722
        %v11806 = vpop.f32.mrb[0].mxu0
        %v11807 = vadd.f32 %v11723, %v11806
        %v11808 = vpop.f32.mrb[0].mxu0
        %v11809 = vpop.f32.mrb[0].mxu0
        %v11810 = vpop.f32.mrb[0].mxu0
        %11811 = vdwg.mxu0
        %v11812 = vld [vmem:[%s23] sm:$0xf]
        %v11813 = vld [vmem:[%s23 + $0x4] sm:$0xf]
        %v11814 = vld [vmem:[%s23 + $0x8] sm:$0xf]
        %v11815 = vld [vmem:[%s23 + $0xc] sm:$0xf]
        %v11816 = vld [vmem:[%s23 + $0x10] sm:$0xf]
        %v11817 = vld [vmem:[%s23 + $0x14] sm:$0xf]
        %v11818 = vld [vmem:[%s23 + $0x18] sm:$0xf]
        %v11819 = vld [vmem:[%s23 + $0x1c] sm:$0xf]
        %v11820 = vpack.c.bf16 %v11807, %v11807
        %v11821 = vld [vmem:[#allocation2] sm:$0x1]
        %v11830 = vunpack.c.l.b16 %v11812
        %v11831 = vunpack.c.l.b16 %v11813
        %v11832 = vunpack.c.l.b16 %v11814
        %v11833 = vunpack.c.l.b16 %v11815
        %v11834 = vunpack.c.l.b16 %v11816
        %v11835 = vunpack.c.l.b16 %v11817
        %v11836 = vunpack.c.l.b16 %v11818
        %v11837 = vunpack.c.l.b16 %v11819
        %v11838 = vpack.c.b16 %v11831, %v11830
        %v11839 = vpack.c.b16 %v11833, %v11832
        %v11840 = vpack.c.b16 %v11835, %v11834
        %v11841 = vpack.c.b16 %v11837, %v11836
        %v11847 = vsel %vm1452, %v11820, 0
        %11849 = vmatprep.subr.bf16.mxu0 0
        %11850 = vmatpush1.bf16.msra.mxu0 %v11838
        %11851 = vmatprep.subr.bf16.mxu0 0
        %11852 = vmatpush1.bf16.msra.mxu0 %v11839
        %11853 = vmatprep.subr.bf16.mxu0 0
        %11854 = vmatpush1.bf16.msra.mxu0 %v11840
        %11855 = vmatprep.subr.bf16.mxu0 0
        %11856 = vmatpush1.bf16.msra.mxu0 %v11841
        %11857 = vmatprep.subr.bf16.mxu0 0
        %11858 = vmatpush1.bf16.msra.mxu0 0
        %11859 = vmatprep.subr.bf16.mxu0 0
        %11860 = vmatpush1.bf16.msra.mxu0 0
        %11861 = vmatprep.subr.bf16.mxu0 0
        %11862 = vmatpush1.bf16.msra.mxu0 0
        %11863 = vmatprep.subr.bf16.mxu0 0
        %11864 = vmatpush1.bf16.msra.mxu0 0
        %11865 = vmatprep.subr.bf16.mxu0 0
        %11866 = vmatpush1.bf16.msra.mxu0 0
        %11867 = vmatprep.subr.bf16.mxu0 0
        %11868 = vmatpush1.bf16.msra.mxu0 0
        %11869 = vmatprep.subr.bf16.mxu0 0
        %11870 = vmatpush1.bf16.msra.mxu0 0
        %11871 = vmatprep.subr.bf16.mxu0 0
        %11872 = vmatpush1.bf16.msra.mxu0 0
        %11873 = vmatprep.subr.bf16.mxu0 0
        %11874 = vmatpush1.bf16.msra.mxu0 0
        %11875 = vmatprep.subr.bf16.mxu0 0
        %11876 = vmatpush1.bf16.msra.mxu0 0
        %11877 = vmatprep.subr.bf16.mxu0 0
        %11878 = vmatpush1.bf16.msra.mxu0 0
        %11879 = vmatprep.subr.bf16.mxu0 0
        %11880 = vmatpush1.bf16.msra.mxu0 0
        %11881 = vmatprep.mubr.bf16.mxu0 0
        %11882 = vmatmul.mubr.bf16.gmra.mrb[0].mxu0 %v11847
        %v11883 = vpop.f32.mrb[0].mxu0
        %v11884 = vadd.f32 %v11821, %v11883
        %v11885 = vpop.f32.mrb[0].mxu0
        %v11886 = vpop.f32.mrb[0].mxu0
        %v11887 = vpop.f32.mrb[0].mxu0
        %11888 = vdwg.mxu0
        %v11889 = vxor.u32 %v11884, 2147483648
        %v11890 = vmul.f32 %v11889, 1.442695
        %v11891 = vpow.pop %v11890
        %v11892 = vadd.f32 %v11891, 1.0
        %v11893 = vrcp.pop %v11892
        %v11894 = vmul.f32 1.0, %v11893
        %vm11895 = vcmask 0
        %11896 = vst.msk [vmem:[%s800] sm:$0x1] %vm11895, %v11894
        %s11897 = sand.u32 %s581, 1
        %s11898 = scalar_lea.sflag [#allocation4], %s11897
        %s11899 = sand.u32 %s581, 1
        %s11900 = smul.addr %s11899, 9
        %s11901 = scalar_lea.vmem [#allocation3], %s11900
        %p11902 = scmp.lt.s32.totalorder %s43, 1
        %s11903 = scalar_select %p11902, %s43, 1
        %s11904 = scalar_lea.vmem %s26, %s11903
        // Predicated region
        $region121: #{tpu_custom_call.1} parent=119 // pred_check
          %p11905 = pneg %p591
        $region122: #{tpu_custom_call.1} parent=119 // pred_check_branch
          %11907 = sbr.rel (%p11905) target = $region124
        $region123: #{tpu_custom_call.1} parent=119 // pred_region
          %s11909 = ssub.s32 144, 144
          %11910 = vsyncadd %s11898, %s11909
          %s11911 = smul.addr %s43, 9
          %s11912 = smul.addr %s11911, 16
          %s11913 = scalar_lea.hbm %s25, %s11912
          %s11915 = sshll.u32 %s11901, 4
          %s11916 = int_to_ptr.vmem [resolvable:$true] %s11915
          %11918 = dma.vmem_to_hbm [thread:$0]  %s11916, 144, %s11913, %s11898
        $region124: #{tpu_custom_call.1} parent=119 // pred_fallthru
          _
        // Predicated region
        $region125: #{tpu_custom_call.1} parent=119 // pred_check
          %p11919 = pneg %p617
        $region126: #{tpu_custom_call.1} parent=119 // pred_check_branch
          %11921 = sbr.rel (%p11919) target = $region128
        $region127: #{tpu_custom_call.1} parent=119 // pred_region
          _
        $region128: #{tpu_custom_call.1} parent=119 // pred_fallthru
          _
      $region120: #{tpu_custom_call.1} parent=5 // pred_fallthru
        _
      %p11922 = scmp.le.s32.totalorder 2, %s38
      // Predicated region
      $region129: #{tpu_custom_call.1} parent=5 // pred_check
        %p11923 = pneg %p11922
      $region130: #{tpu_custom_call.1} parent=5 // pred_check_branch
        %11925 = sbr.rel (%p11923) target = $region132
      $region131: #{tpu_custom_call.1} parent=5 // pred_region
        %s11926 = ssub.s32 %s38, 2
        // Predicated region
        $region133: #{tpu_custom_call.1} parent=131 // pred_check
          %p11927 = pneg %p597
        $region134: #{tpu_custom_call.1} parent=131 // pred_check_branch
          %11929 = sbr.rel (%p11927) target = $region136
        $region135: #{tpu_custom_call.1} parent=131 // pred_region
          %s11930 = sand.u32 %s582, 1
          %s11931 = scalar_lea.sflag [#allocation4], %s11930
          %s11932 = sand.u32 %s582, 1
          %s11933 = smul.addr %s11932, 9
          %s11934 = scalar_lea.vmem [#allocation3], %s11933
          %11935 = dma.done %s11931, 144
        $region136: #{tpu_custom_call.1} parent=131 // pred_fallthru
          _
        // Predicated region
        $region137: #{tpu_custom_call.1} parent=131 // pred_check
          %p11936 = pneg %p623
        $region138: #{tpu_custom_call.1} parent=131 // pred_check_branch
          %11938 = sbr.rel (%p11936) target = $region140
        $region139: #{tpu_custom_call.1} parent=131 // pred_region
          %p11939 = scmp.lt.s32.totalorder %s44, 1
          %s11940 = scalar_select %p11939, %s44, 1
          %s11941 = scalar_lea.vmem %s26, %s11940
        $region140: #{tpu_custom_call.1} parent=131 // pred_fallthru
          _
      $region132: #{tpu_custom_call.1} parent=5 // pred_fallthru
        _
    $region6: #{tpu_custom_call.1} parent=1 // loop_footer
      %s42 = sadd.s32 1, %s38
    $region7: #{tpu_custom_call.1} parent=1 // loop_footer_branch
      %37 = sbr.rel target = $region3
    $region8: #{tpu_custom_call.1} parent=1 // loop_exit
      _
    %11942 = vsyncpa [#allocation4], 1
    %s11943 = scalar_lea.sflag [#allocation4], 1
    %11944 = vsyncpa %s11943, 1

</llo_original>
